<compile_context>
chip_gen: v7x
topology: tpu7x:2x2x1
jax: 0.10.0
libtpu: 0.0.40
codegen_flags: <defaults>
</compile_context>

<pallas_src>
import math
from functools import partial

import jax
import jax.numpy as jnp
from jax.experimental import pallas as pl

# ----------------------------- small config ---------------------------------
B = 2            # batch
C_IN = 3         # image channels
IMG = 16         # image H = W
PATCH = 4        # patch size -> 4x4 = 16 patches
N_PATCH = (IMG // PATCH) ** 2
D = 32           # embed_dim
VIT_HEADS = 4    # backbone attention heads (head_dim = 8)
DEPTH = 2        # transformer blocks
MLP_HIDDEN = 4 * D
NUM_CLASSES = 10
N_UNSUP = 5      # n_unsup_concepts
N_CONCEPTS = 4   # n_concepts
N_SPATIAL = 6    # n_spatial_concepts
CT_HEADS = 2     # ConceptTransformerVIT num_heads (head_dim = 16)
LN_EPS = 1e-6
LANES = 128
NEG_INF = -1e30


def _pad8(n):
    return ((n + 7) // 8) * 8


# ----------------------------- the fused kernel -------------------------------
def _cvit_kernel(patches_ref, w_ref, out_ref, *, off, batch, n_patch):
    f32 = jnp.float32
    pad_cls = _pad8(batch)
    rows = pad_cls + batch * n_patch
    vit_hd = D // VIT_HEADS
    ct_hd = D // CT_HEADS
    vit_scale = vit_hd ** -0.5
    ct_scale = ct_hd ** -0.5

    def W(name):
        r0, r, c = off[name]
        return w_ref[r0:r0 + r, :c]

    # ---- per-head 0/1 lane masks (VPU iota + compare; no lane slicing) ----
    lane = jax.lax.broadcasted_iota(jnp.int32, (1, D), 1)

    def head_masks(hd, nheads):
        return [((lane >= h * hd) & (lane < (h + 1) * hd)).astype(f32)
                for h in range(nheads)]

    vit_masks = head_masks(vit_hd, VIT_HEADS)
    ct_masks = head_masks(ct_hd, CT_HEADS)

    # ---- block-diagonal additive mask over the batch-folded rows ----
    ridx = jax.lax.broadcasted_iota(jnp.int32, (rows, rows), 0)
    cidx = jax.lax.broadcasted_iota(jnp.int32, (rows, rows), 1)

    def gid(v):
        # rows < pad_cls : id = row (cls b at row b, padding rows get unique ids >= batch)
        # rows >= pad_cls: id = which batch's patch block the row belongs to
        pat = jnp.zeros_like(v)
        for b in range(1, batch):
            pat = pat + (v >= pad_cls + b * n_patch).astype(jnp.int32)
        return jnp.where(v < pad_cls, v, pat)

    attn_bias = jnp.where(gid(ridx) == gid(cidx), 0.0, NEG_INF).astype(f32)

    def softmax(s):
        s = s - jnp.max(s, axis=-1, keepdims=True)
        p = jnp.exp(s)
        return p * pl.reciprocal(jnp.sum(p, axis=-1, keepdims=True), approx=True)

    def layernorm(x, g, b):
        mu = jnp.mean(x, axis=-1, keepdims=True)
        var = jnp.mean(jnp.square(x - mu), axis=-1, keepdims=True)
        return (x - mu) * jax.lax.rsqrt(var + LN_EPS) * g + b

    def gelu_erf(x):
        # exact-GELU via A&S 7.1.26 erf approximation (|err| < 1.5e-7)
        z = x * (1.0 / math.sqrt(2.0))
        az = jnp.abs(z)
        t = pl.reciprocal(1.0 + 0.3275911 * az, approx=False)
        poly = t * (0.254829592 + t * (-0.284496736 + t * (1.421413741
                    + t * (-1.453152027 + t * 1.061405429))))
        erf_abs = 1.0 - poly * jnp.exp(-az * az)
        erf = jnp.where(z >= 0, erf_abs, -erf_abs)
        return 0.5 * x * (1.0 + erf)

    # ---- patch embed + cls token + pos embed (cls-first, 8-aligned layout) ----
    tok = jnp.dot(patches_ref[...], W("patch_w"),
                  preferred_element_type=f32) + W("patch_b")          # (B*NP, D)
    tok = tok + jnp.concatenate([W("pos_patch")] * batch, axis=0)     # + pos_embed[1:]
    cls_blk = jnp.broadcast_to(W("cls_pos0"), (pad_cls, D))           # rows >= batch are padding
    x = jnp.concatenate([cls_blk, tok], axis=0)                       # (rows, D)

    # ---- transformer blocks (all weights resident in VMEM; DEPTH unrolled) ----
    for d in range(DEPTH):
        h = layernorm(x, W(f"n1g{d}"), W(f"n1b{d}"))
        q = jnp.dot(h, W(f"wq{d}"), preferred_element_type=f32) + W(f"bq{d}")
        k = jnp.dot(h, W(f"wk{d}"), preferred_element_type=f32) + W(f"bk{d}")
        v = jnp.dot(h, W(f"wv{d}"), preferred_element_type=f32) + W(f"bv{d}")
        o = jnp.zeros((rows, D), f32)
        for m in vit_masks:   # per-head via lane masks: no lane slicing / concat
            s = jax.lax.dot_general(q * m, k, (((1,), (1,)), ((), ())),
                                    preferred_element_type=f32) * vit_scale + attn_bias
            p = softmax(s)
            o = o + jnp.dot(p, v, preferred_element_type=f32) * m
        x = x + jnp.dot(o, W(f"wo{d}"), preferred_element_type=f32) + W(f"bo{d}")

        h = layernorm(x, W(f"n2g{d}"), W(f"n2b{d}"))
        h1 = jnp.dot(h, W(f"fc1w{d}"), preferred_element_type=f32) + W(f"fc1b{d}")
        h1 = gelu_erf(h1)
        x = x + jnp.dot(h1, W(f"fc2w{d}"), preferred_element_type=f32) + W(f"fc2b{d}")

    x = layernorm(x, W("normg"), W("normb"))

    cls_rows = x[0:batch]                                  # (B, D)  tile-aligned slice
    pat_rows = x[pad_cls:pad_cls + batch * n_patch]        # (B*NP, D) 8-aligned slice

    # ---- merged cls cross-attention (unsup + regular concepts, shared weights) ----
    q_cls = jnp.dot(cls_rows, W("ct_q"), preferred_element_type=f32)       # (B, D)
    conc9 = W("conc9")                                                      # (9, D)
    k9 = jnp.dot(conc9, W("ct_k"), preferred_element_type=f32)
    v9 = jnp.dot(conc9, W("ct_v"), preferred_element_type=f32)
    n9 = N_UNSUP + N_CONCEPTS
    col9 = jax.lax.broadcasted_iota(jnp.int32, (batch, n9), 1)
    m_u = jnp.where(col9 < N_UNSUP, 0.0, NEG_INF).astype(f32)
    m_c = jnp.where(col9 >= N_UNSUP, 0.0, NEG_INF).astype(f32)
    o_cls = jnp.zeros((batch, D), f32)
    attn_u = jnp.zeros((batch, n9), f32)
    attn_c = jnp.zeros((batch, n9), f32)
    for m in ct_masks:
        s = jax.lax.dot_general(q_cls * m, k9, (((1,), (1,)), ((), ())),
                                preferred_element_type=f32) * ct_scale
        pu = softmax(s + m_u)         # softmax over unsup concepts only
        pc = softmax(s + m_c)         # softmax over regular concepts only
        attn_u = attn_u + pu
        attn_c = attn_c + pc
        o_cls = o_cls + jnp.dot(pu + pc, v9, preferred_element_type=f32) * m
    # reference adds the proj bias twice (two separate CrossAttention calls)
    out_cls = jnp.dot(o_cls, W("ct_p"), preferred_element_type=f32) + 2.0 * W("ct_pb")
    attn_u = attn_u * (1.0 / CT_HEADS)
    attn_c = attn_c * (1.0 / CT_HEADS)

    # ---- spatial cross-attention ----
    q_pat = jnp.dot(pat_rows, W("sct_q"), preferred_element_type=f32)       # (B*NP, D)
    sconc = W("sconc")
    ks = jnp.dot(sconc, W("sct_k"), preferred_element_type=f32)
    vs = jnp.dot(sconc, W("sct_v"), preferred_element_type=f32)
    o_s = jnp.zeros((batch * n_patch, D), f32)
    attn_s = jnp.zeros((batch * n_patch, N_SPATIAL), f32)
    for m in ct_masks:
        s = jax.lax.dot_general(q_pat * m, ks, (((1,), (1,)), ((), ())),
                                preferred_element_type=f32) * ct_scale
        p = softmax(s)
        attn_s = attn_s + p
        o_s = o_s + jnp.dot(p, vs, preferred_element_type=f32) * m
    out_s = jnp.dot(o_s, W("sct_p"), preferred_element_type=f32) + W("sct_pb")  # (B*NP, 128)
    attn_s = attn_s * (1.0 / CT_HEADS)

    # per-batch spatial mean over tile-aligned 16-row blocks
    s_mean = jnp.concatenate(
        [jnp.mean(out_s[b * n_patch:(b + 1) * n_patch], axis=0, keepdims=True)
         for b in range(batch)], axis=0)                                      # (B, 128)

    logits = out_cls + s_mean                                                 # (B, 128)

    # ---- single lane-dense packed output slab ----
    def lane_pad(a):
        r, c = a.shape
        if c == LANES:
            return a
        return jnp.concatenate([a, jnp.zeros((r, LANES - c), f32)], axis=1)

    def row_pad(a, n):
        r, c = a.shape
        if r == n:
            return a
        return jnp.concatenate([a, jnp.zeros((n - r, c), f32)], axis=0)

    out_ref[...] = jnp.concatenate([
        lane_pad(attn_s),                        # rows [0, B*NP)
        row_pad(lane_pad(logits), pad_cls),      # rows [B*NP, B*NP + 8)
        row_pad(lane_pad(attn_u), pad_cls),      # rows [B*NP + 8, B*NP + 16)
        row_pad(lane_pad(attn_c), pad_cls),      # rows [B*NP + 16, B*NP + 24)
    ], axis=0)


# ----------------------------- parameters ------------------------------------
def init_params(key):
    keys = iter(jax.random.split(key, 64))

    def nrm(shape, std=0.02):
        return std * jax.random.normal(next(keys), shape, jnp.float32)

    p = {}
    p["patch_w"] = nrm((C_IN * PATCH * PATCH, D))
    p["patch_b"] = nrm((D,))
    p["cls_token"] = nrm((1, 1, D))
    p["pos_embed"] = nrm((1, 1 + N_PATCH, D))

    blocks = []
    for _ in range(DEPTH):
        blocks.append(dict(
            n1_g=jnp.ones((1, D), jnp.float32), n1_b=jnp.zeros((1, D), jnp.float32),
            qkv_w=nrm((D, 3 * D)), qkv_b=nrm((3 * D,)),
            proj_w=nrm((D, D)), proj_b=nrm((D,)),
            n2_g=jnp.ones((1, D), jnp.float32), n2_b=jnp.zeros((1, D), jnp.float32),
            fc1_w=nrm((D, MLP_HIDDEN)), fc1_b=nrm((MLP_HIDDEN,)),
            fc2_w=nrm((MLP_HIDDEN, D)), fc2_b=nrm((D,)),
        ))
    p["blocks"] = blocks
    p["norm_g"] = jnp.ones((1, D), jnp.float32)
    p["norm_b"] = jnp.zeros((1, D), jnp.float32)

    std_c = 1.0 / math.sqrt(D)
    p["unsup_concepts"] = std_c * jax.random.normal(next(keys), (1, N_UNSUP, D), jnp.float32)
    p["concepts"] = std_c * jax.random.normal(next(keys), (1, N_CONCEPTS, D), jnp.float32)
    p["spatial_concepts"] = std_c * jax.random.normal(next(keys), (1, N_SPATIAL, D), jnp.float32)

    # concept_tranformer is shared by the unsup + regular concept paths (as in the reference)
    p["ct"] = dict(q_w=nrm((D, D)), kv_w=nrm((D, 2 * D)),
                   proj_w=nrm((D, NUM_CLASSES)), proj_b=nrm((NUM_CLASSES,)))
    p["sct"] = dict(q_w=nrm((D, D)), kv_w=nrm((D, 2 * D)),
                    proj_w=nrm((D, NUM_CLASSES)), proj_b=nrm((NUM_CLASSES,)))
    return p


# ----------------------------- forward ---------------------------------------
def cvit_forward(params, x):
    # x is NCHW (B, C, H, W); patch extraction is wrapper-side layout glue.
    Bb, C, H, Wd = x.shape
    nH, nW = H // PATCH, Wd // PATCH
    npch = nH * nW
    pad_cls = _pad8(Bb)

    patches = (x.reshape(Bb, C, nH, PATCH, nW, PATCH)
                 .transpose(0, 2, 4, 1, 3, 5)
                 .reshape(Bb * npch, C * PATCH * PATCH))

    blocks = params["blocks"]
    ct, sct = params["ct"], params["sct"]
    pad_n = LANES - NUM_CLASSES

    # ---- pack every weight / bias / concept into ONE lane-dense (R,128) slab ----
    entries = []

    def add(name, a):
        entries.append((name, jnp.asarray(a, jnp.float32)))

    add("patch_w", params["patch_w"])
    add("patch_b", params["patch_b"].reshape(1, -1))
    add("cls_pos0", params["cls_token"][0] + params["pos_embed"][0, :1])
    add("pos_patch", params["pos_embed"][0, 1:])
    for d, blk in enumerate(blocks):
        qkv_w, qkv_b = blk["qkv_w"], blk["qkv_b"]
        add(f"n1g{d}", blk["n1_g"]); add(f"n1b{d}", blk["n1_b"])
        add(f"wq{d}", qkv_w[:, :D]); add(f"wk{d}", qkv_w[:, D:2 * D]); add(f"wv{d}", qkv_w[:, 2 * D:])
        add(f"bq{d}", qkv_b[:D].reshape(1, -1))
        add(f"bk{d}", qkv_b[D:2 * D].reshape(1, -1))
        add(f"bv{d}", qkv_b[2 * D:].reshape(1, -1))
        add(f"wo{d}", blk["proj_w"]); add(f"bo{d}", blk["proj_b"].reshape(1, -1))
        add(f"n2g{d}", blk["n2_g"]); add(f"n2b{d}", blk["n2_b"])
        add(f"fc1w{d}", blk["fc1_w"]); add(f"fc1b{d}", blk["fc1_b"].reshape(1, -1))
        add(f"fc2w{d}", blk["fc2_w"]); add(f"fc2b{d}", blk["fc2_b"].reshape(1, -1))
    add("normg", params["norm_g"]); add("normb", params["norm_b"])
    add("conc9", jnp.concatenate([params["unsup_concepts"][0], params["concepts"][0]], axis=0))
    add("sconc", params["spatial_concepts"][0])
    add("ct_q", ct["q_w"]); add("ct_k", ct["kv_w"][:, :D]); add("ct_v", ct["kv_w"][:, D:])
    add("ct_p", jnp.pad(ct["proj_w"], ((0, 0), (0, pad_n))))
    add("ct_pb", jnp.pad(ct["proj_b"].reshape(1, -1), ((0, 0), (0, pad_n))))
    add("sct_q", sct["q_w"]); add("sct_k", sct["kv_w"][:, :D]); add("sct_v", sct["kv_w"][:, D:])
    add("sct_p", jnp.pad(sct["proj_w"], ((0, 0), (0, pad_n))))
    add("sct_pb", jnp.pad(sct["proj_b"].reshape(1, -1), ((0, 0), (0, pad_n))))

    off, row, padded = {}, 0, []
    for name, a in entries:
        r, c = a.shape
        rp = _pad8(r)
        padded.append(jnp.pad(a, ((0, rp - r), (0, LANES - c))))
        off[name] = (row, r, c)          # static, 8-aligned row offsets
        row += rp
    wslab = jnp.concatenate(padded, axis=0)                                  # (~1128, 128) f32

    out_rows = Bb * npch + 3 * pad_cls
    kern = partial(_cvit_kernel, off=off, batch=Bb, n_patch=npch)
    out_slab = pl.pallas_call(
        kern,
        out_shape=jax.ShapeDtypeStruct((out_rows, LANES), jnp.float32),
        # no grid: single invocation, full arrays resident in VMEM (2 in / 1 out DMA)
    )(patches, wslab)

    r0 = Bb * npch
    out = out_slab[r0:r0 + Bb, :NUM_CLASSES]
    uattn = out_slab[r0 + pad_cls:r0 + pad_cls + Bb, :N_UNSUP].reshape(Bb, 1, N_UNSUP)
    cattn = out_slab[r0 + 2 * pad_cls:r0 + 2 * pad_cls + Bb,
                     N_UNSUP:N_UNSUP + N_CONCEPTS].reshape(Bb, 1, N_CONCEPTS)
    sattn = out_slab[:Bb * npch, :N_SPATIAL].reshape(Bb, npch, N_SPATIAL)
    return out, uattn, cattn, sattn


# ----------------------------- main -------------------------------------------
if __name__ == "__main__":
    key = jax.random.PRNGKey(0)
    params = init_params(key)
    x = jax.random.normal(jax.random.fold_in(key, 999), (B, C_IN, IMG, IMG), jnp.float32)

    fwd = jax.jit(cvit_forward)
    out, a_unsup, a_conc, a_spat = fwd(params, x)
    jax.block_until_ready((out, a_unsup, a_conc, a_spat))

    assert out.shape == (B, NUM_CLASSES)
    assert a_unsup.shape == (B, 1, N_UNSUP)
    assert a_conc.shape == (B, 1, N_CONCEPTS)
    assert a_spat.shape == (B, N_PATCH, N_SPATIAL)
    assert bool(jnp.all(jnp.isfinite(out)))
    # attention weights are head-averaged softmaxes -> rows sum to ~1
    # (loose tolerance: softmax uses the EUP approximate reciprocal)
    assert bool(jnp.allclose(jnp.sum(a_unsup, axis=-1), 1.0, atol=1e-2))
    assert bool(jnp.allclose(jnp.sum(a_conc, axis=-1), 1.0, atol=1e-2))
    assert bool(jnp.allclose(jnp.sum(a_spat, axis=-1), 1.0, atol=1e-2))
    print("KERNEL_OK")
</pallas_src>

<mosaic_0001>
module attributes {stable_mosaic.version = 11 : i64} {
  func.func @_cvit_kernel(%arg0: memref<32x48xf32, #tpu.memory_space<vmem>>, %arg1: memref<1128x128xf32, #tpu.memory_space<vmem>>, %arg2: memref<56x128xf32, #tpu.memory_space<vmem>>) attributes {dimension_semantics = [], scalar_prefetch = 0 : i64, scratch_operands = 0 : i64, tpu.core_type = #tpu.core_type<tc>} {
    %0 = tpu.iota {dimensions = array<i32: 1>} : vector<1x32xi32>
    %c0_i32 = arith.constant 0 : i32
    %1 = vector.broadcast %c0_i32 : i32 to vector<1x32xi32>
    %2 = arith.cmpi sge, %0, %1 : vector<1x32xi32>
    %c8_i32 = arith.constant 8 : i32
    %3 = vector.broadcast %c8_i32 : i32 to vector<1x32xi32>
    %4 = arith.cmpi slt, %0, %3 : vector<1x32xi32>
    %5 = arith.andi %2, %4 : vector<1x32xi1>
    %6 = arith.extui %5 : vector<1x32xi1> to vector<1x32xi32>
    %7 = arith.sitofp %6 : vector<1x32xi32> to vector<1x32xf32>
    %c8_i32_0 = arith.constant 8 : i32
    %8 = vector.broadcast %c8_i32_0 : i32 to vector<1x32xi32>
    %9 = arith.cmpi sge, %0, %8 : vector<1x32xi32>
    %c16_i32 = arith.constant 16 : i32
    %10 = vector.broadcast %c16_i32 : i32 to vector<1x32xi32>
    %11 = arith.cmpi slt, %0, %10 : vector<1x32xi32>
    %12 = arith.andi %9, %11 : vector<1x32xi1>
    %13 = arith.extui %12 : vector<1x32xi1> to vector<1x32xi32>
    %14 = arith.sitofp %13 : vector<1x32xi32> to vector<1x32xf32>
    %c16_i32_1 = arith.constant 16 : i32
    %15 = vector.broadcast %c16_i32_1 : i32 to vector<1x32xi32>
    %16 = arith.cmpi sge, %0, %15 : vector<1x32xi32>
    %c24_i32 = arith.constant 24 : i32
    %17 = vector.broadcast %c24_i32 : i32 to vector<1x32xi32>
    %18 = arith.cmpi slt, %0, %17 : vector<1x32xi32>
    %19 = arith.andi %16, %18 : vector<1x32xi1>
    %20 = arith.extui %19 : vector<1x32xi1> to vector<1x32xi32>
    %21 = arith.sitofp %20 : vector<1x32xi32> to vector<1x32xf32>
    %c24_i32_2 = arith.constant 24 : i32
    %22 = vector.broadcast %c24_i32_2 : i32 to vector<1x32xi32>
    %23 = arith.cmpi sge, %0, %22 : vector<1x32xi32>
    %c32_i32 = arith.constant 32 : i32
    %24 = vector.broadcast %c32_i32 : i32 to vector<1x32xi32>
    %25 = arith.cmpi slt, %0, %24 : vector<1x32xi32>
    %26 = arith.andi %23, %25 : vector<1x32xi1>
    %27 = arith.extui %26 : vector<1x32xi1> to vector<1x32xi32>
    %28 = arith.sitofp %27 : vector<1x32xi32> to vector<1x32xf32>
    %c0_i32_3 = arith.constant 0 : i32
    %29 = vector.broadcast %c0_i32_3 : i32 to vector<1x32xi32>
    %30 = arith.cmpi sge, %0, %29 : vector<1x32xi32>
    %c16_i32_4 = arith.constant 16 : i32
    %31 = vector.broadcast %c16_i32_4 : i32 to vector<1x32xi32>
    %32 = arith.cmpi slt, %0, %31 : vector<1x32xi32>
    %33 = arith.andi %30, %32 : vector<1x32xi1>
    %34 = arith.extui %33 : vector<1x32xi1> to vector<1x32xi32>
    %35 = arith.sitofp %34 : vector<1x32xi32> to vector<1x32xf32>
    %c16_i32_5 = arith.constant 16 : i32
    %36 = vector.broadcast %c16_i32_5 : i32 to vector<1x32xi32>
    %37 = arith.cmpi sge, %0, %36 : vector<1x32xi32>
    %c32_i32_6 = arith.constant 32 : i32
    %38 = vector.broadcast %c32_i32_6 : i32 to vector<1x32xi32>
    %39 = arith.cmpi slt, %0, %38 : vector<1x32xi32>
    %40 = arith.andi %37, %39 : vector<1x32xi1>
    %41 = arith.extui %40 : vector<1x32xi1> to vector<1x32xi32>
    %42 = arith.sitofp %41 : vector<1x32xi32> to vector<1x32xf32>
    %43 = tpu.iota {dimensions = array<i32: 0>} : vector<40x40xi32>
    %44 = tpu.iota {dimensions = array<i32: 1>} : vector<40x40xi32>
    %c0_i32_7 = arith.constant 0 : i32
    %45 = vector.broadcast %c0_i32_7 : i32 to vector<40x40xi32>
    %c24_i32_8 = arith.constant 24 : i32
    %46 = vector.broadcast %c24_i32_8 : i32 to vector<40x40xi32>
    %47 = arith.cmpi sge, %43, %46 : vector<40x40xi32>
    %48 = arith.extui %47 : vector<40x40xi1> to vector<40x40xi32>
    %49 = arith.addi %45, %48 : vector<40x40xi32>
    %c8_i32_9 = arith.constant 8 : i32
    %50 = vector.broadcast %c8_i32_9 : i32 to vector<40x40xi32>
    %51 = arith.cmpi slt, %43, %50 : vector<40x40xi32>
    %52 = arith.select %51, %43, %49 : vector<40x40xi1>, vector<40x40xi32>
    %c0_i32_10 = arith.constant 0 : i32
    %53 = vector.broadcast %c0_i32_10 : i32 to vector<40x40xi32>
    %c24_i32_11 = arith.constant 24 : i32
    %54 = vector.broadcast %c24_i32_11 : i32 to vector<40x40xi32>
    %55 = arith.cmpi sge, %44, %54 : vector<40x40xi32>
    %56 = arith.extui %55 : vector<40x40xi1> to vector<40x40xi32>
    %57 = arith.addi %53, %56 : vector<40x40xi32>
    %c8_i32_12 = arith.constant 8 : i32
    %58 = vector.broadcast %c8_i32_12 : i32 to vector<40x40xi32>
    %59 = arith.cmpi slt, %44, %58 : vector<40x40xi32>
    %60 = arith.select %59, %44, %57 : vector<40x40xi1>, vector<40x40xi32>
    %61 = arith.cmpi eq, %52, %60 : vector<40x40xi32>
    %cst = arith.constant 0.000000e+00 : f32
    %cst_13 = arith.constant -1.000000e+30 : f32
    %62 = vector.broadcast %cst : f32 to vector<40x40xf32>
    %63 = vector.broadcast %cst_13 : f32 to vector<40x40xf32>
    %64 = arith.select %61, %62, %63 : vector<40x40xi1>, vector<40x40xf32>
    %c0 = arith.constant 0 : index
    %c0_14 = arith.constant 0 : index
    %65 = vector.load %arg0[%c0, %c0_14] : memref<32x48xf32, #tpu.memory_space<vmem>>, vector<32x48xf32>
    %c0_15 = arith.constant 0 : index
    %c0_16 = arith.constant 0 : index
    %66 = vector.load %arg1[%c0_15, %c0_16] : memref<1128x128xf32, #tpu.memory_space<vmem>>, vector<48x32xf32>
    %cst_17 = arith.constant dense<0.000000e+00> : vector<32x32xf32>
    %67 = tpu.matmul %65, %66, %cst_17 {dimension_numbers = #tpu.dot_dimension_numbers<[1], [0], [0], [1], [0, 0, 1, 1], [], []>} : vector<32x48xf32>, vector<48x32xf32>, vector<32x32xf32> -> vector<32x32xf32>
    %c48 = arith.constant 48 : index
    %c0_18 = arith.constant 0 : index
    %68 = vector.load %arg1[%c48, %c0_18] : memref<1128x128xf32, #tpu.memory_space<vmem>>, vector<1x32xf32>
    %69 = vector.broadcast %68 : vector<1x32xf32> to vector<32x32xf32>
    %70 = arith.addf %67, %69 : vector<32x32xf32>
    %c64 = arith.constant 64 : index
    %c0_19 = arith.constant 0 : index
    %71 = vector.load %arg1[%c64, %c0_19] : memref<1128x128xf32, #tpu.memory_space<vmem>>, vector<16x32xf32>
    %72 = tpu.concatenate %71, %71 in 0 : vector<16x32xf32>, vector<16x32xf32> -> vector<32x32xf32>
    %73 = arith.addf %70, %72 : vector<32x32xf32>
    %c56 = arith.constant 56 : index
    %c0_20 = arith.constant 0 : index
    %74 = vector.load %arg1[%c56, %c0_20] : memref<1128x128xf32, #tpu.memory_space<vmem>>, vector<1x32xf32>
    %75 = vector.shape_cast %74 : vector<1x32xf32> to vector<1x32xf32>
    %76 = vector.broadcast %75 : vector<1x32xf32> to vector<8x32xf32>
    %77 = tpu.concatenate %76, %73 in 0 : vector<8x32xf32>, vector<32x32xf32> -> vector<40x32xf32>
    %c80 = arith.constant 80 : index
    %c0_21 = arith.constant 0 : index
    %78 = vector.load %arg1[%c80, %c0_21] : memref<1128x128xf32, #tpu.memory_space<vmem>>, vector<1x32xf32>
    %c88 = arith.constant 88 : index
    %c0_22 = arith.constant 0 : index
    %79 = vector.load %arg1[%c88, %c0_22] : memref<1128x128xf32, #tpu.memory_space<vmem>>, vector<1x32xf32>
    %cst_23 = arith.constant dense<0.000000e+00> : vector<40xf32>
    %80 = vector.multi_reduction <add>, %77, %cst_23 [1] : vector<40x32xf32> to vector<40xf32>
    %81 = vector.shape_cast %80 : vector<40xf32> to vector<40x1xf32>
    %cst_24 = arith.constant 3.200000e+01 : f32
    %82 = vector.broadcast %cst_24 : f32 to vector<40x1xf32>
    %83 = arith.divf %81, %82 : vector<40x1xf32>
    %84 = vector.broadcast %83 : vector<40x1xf32> to vector<40x32xf32>
    %85 = arith.subf %77, %84 : vector<40x32xf32>
    %86 = arith.mulf %85, %85 : vector<40x32xf32>
    %cst_25 = arith.constant dense<0.000000e+00> : vector<40xf32>
    %87 = vector.multi_reduction <add>, %86, %cst_25 [1] : vector<40x32xf32> to vector<40xf32>
    %88 = vector.shape_cast %87 : vector<40xf32> to vector<40x1xf32>
    %cst_26 = arith.constant 3.200000e+01 : f32
    %89 = vector.broadcast %cst_26 : f32 to vector<40x1xf32>
    %90 = arith.divf %88, %89 : vector<40x1xf32>
    %91 = vector.broadcast %83 : vector<40x1xf32> to vector<40x32xf32>
    %92 = arith.subf %77, %91 : vector<40x32xf32>
    %cst_27 = arith.constant 9.99999997E-7 : f32
    %93 = vector.broadcast %cst_27 : f32 to vector<40x1xf32>
    %94 = arith.addf %90, %93 : vector<40x1xf32>
    %95 = math.rsqrt %94 : vector<40x1xf32>
    %96 = vector.broadcast %95 : vector<40x1xf32> to vector<40x32xf32>
    %97 = arith.mulf %92, %96 : vector<40x32xf32>
    %98 = vector.broadcast %78 : vector<1x32xf32> to vector<40x32xf32>
    %99 = arith.mulf %97, %98 : vector<40x32xf32>
    %100 = vector.broadcast %79 : vector<1x32xf32> to vector<40x32xf32>
    %101 = arith.addf %99, %100 : vector<40x32xf32>
    %c96 = arith.constant 96 : index
    %c0_28 = arith.constant 0 : index
    %102 = vector.load %arg1[%c96, %c0_28] : memref<1128x128xf32, #tpu.memory_space<vmem>>, vector<32x32xf32>
    %cst_29 = arith.constant dense<0.000000e+00> : vector<40x32xf32>
    %103 = tpu.matmul %101, %102, %cst_29 {dimension_numbers = #tpu.dot_dimension_numbers<[1], [0], [0], [1], [0, 0, 1, 1], [], []>} : vector<40x32xf32>, vector<32x32xf32>, vector<40x32xf32> -> vector<40x32xf32>
    %c192 = arith.constant 192 : index
    %c0_30 = arith.constant 0 : index
    %104 = vector.load %arg1[%c192, %c0_30] : memref<1128x128xf32, #tpu.memory_space<vmem>>, vector<1x32xf32>
    %105 = vector.broadcast %104 : vector<1x32xf32> to vector<40x32xf32>
    %106 = arith.addf %103, %105 : vector<40x32xf32>
    %c128 = arith.constant 128 : index
    %c0_31 = arith.constant 0 : index
    %107 = vector.load %arg1[%c128, %c0_31] : memref<1128x128xf32, #tpu.memory_space<vmem>>, vector<32x32xf32>
    %cst_32 = arith.constant dense<0.000000e+00> : vector<40x32xf32>
    %108 = tpu.matmul %101, %107, %cst_32 {dimension_numbers = #tpu.dot_dimension_numbers<[1], [0], [0], [1], [0, 0, 1, 1], [], []>} : vector<40x32xf32>, vector<32x32xf32>, vector<40x32xf32> -> vector<40x32xf32>
    %c200 = arith.constant 200 : index
    %c0_33 = arith.constant 0 : index
    %109 = vector.load %arg1[%c200, %c0_33] : memref<1128x128xf32, #tpu.memory_space<vmem>>, vector<1x32xf32>
    %110 = vector.broadcast %109 : vector<1x32xf32> to vector<40x32xf32>
    %111 = arith.addf %108, %110 : vector<40x32xf32>
    %c160 = arith.constant 160 : index
    %c0_34 = arith.constant 0 : index
    %112 = vector.load %arg1[%c160, %c0_34] : memref<1128x128xf32, #tpu.memory_space<vmem>>, vector<32x32xf32>
    %cst_35 = arith.constant dense<0.000000e+00> : vector<40x32xf32>
    %113 = tpu.matmul %101, %112, %cst_35 {dimension_numbers = #tpu.dot_dimension_numbers<[1], [0], [0], [1], [0, 0, 1, 1], [], []>} : vector<40x32xf32>, vector<32x32xf32>, vector<40x32xf32> -> vector<40x32xf32>
    %c208 = arith.constant 208 : index
    %c0_36 = arith.constant 0 : index
    %114 = vector.load %arg1[%c208, %c0_36] : memref<1128x128xf32, #tpu.memory_space<vmem>>, vector<1x32xf32>
    %115 = vector.broadcast %114 : vector<1x32xf32> to vector<40x32xf32>
    %116 = arith.addf %113, %115 : vector<40x32xf32>
    %cst_37 = arith.constant 0.000000e+00 : f32
    %117 = vector.broadcast %cst_37 : f32 to vector<40x32xf32>
    %118 = vector.broadcast %7 : vector<1x32xf32> to vector<40x32xf32>
    %119 = arith.mulf %106, %118 : vector<40x32xf32>
    %cst_38 = arith.constant dense<0.000000e+00> : vector<40x40xf32>
    %120 = tpu.matmul %119, %111, %cst_38 {dimension_numbers = #tpu.dot_dimension_numbers<[1], [1], [0], [0], [0, 0, 1, 0], [], []>} : vector<40x32xf32>, vector<40x32xf32>, vector<40x40xf32> -> vector<40x40xf32>
    %cst_39 = arith.constant 0.353553385 : f32
    %121 = vector.broadcast %cst_39 : f32 to vector<40x40xf32>
    %122 = arith.mulf %120, %121 : vector<40x40xf32>
    %123 = arith.addf %122, %64 : vector<40x40xf32>
    %cst_40 = arith.constant dense<0xFF800000> : vector<40xf32>
    %124 = vector.multi_reduction <maximumf>, %123, %cst_40 [1] : vector<40x40xf32> to vector<40xf32>
    %125 = vector.shape_cast %124 : vector<40xf32> to vector<40x1xf32>
    %126 = vector.broadcast %125 : vector<40x1xf32> to vector<40x40xf32>
    %127 = arith.subf %123, %126 : vector<40x40xf32>
    %128 = math.exp %127 : vector<40x40xf32>
    %cst_41 = arith.constant dense<0.000000e+00> : vector<40xf32>
    %129 = vector.multi_reduction <add>, %128, %cst_41 [1] : vector<40x40xf32> to vector<40xf32>
    %130 = vector.shape_cast %129 : vector<40xf32> to vector<40x1xf32>
    %131 = tpu.reciprocal %130 {approx = true} : vector<40x1xf32> -> vector<40x1xf32>
    %132 = vector.broadcast %131 : vector<40x1xf32> to vector<40x40xf32>
    %133 = arith.mulf %128, %132 : vector<40x40xf32>
    %cst_42 = arith.constant dense<0.000000e+00> : vector<40x32xf32>
    %134 = tpu.matmul %133, %116, %cst_42 {dimension_numbers = #tpu.dot_dimension_numbers<[1], [0], [0], [1], [0, 0, 1, 1], [], []>} : vector<40x40xf32>, vector<40x32xf32>, vector<40x32xf32> -> vector<40x32xf32>
    %135 = vector.broadcast %7 : vector<1x32xf32> to vector<40x32xf32>
    %136 = arith.mulf %134, %135 : vector<40x32xf32>
    %137 = arith.addf %117, %136 : vector<40x32xf32>
    %138 = vector.broadcast %14 : vector<1x32xf32> to vector<40x32xf32>
    %139 = arith.mulf %106, %138 : vector<40x32xf32>
    %cst_43 = arith.constant dense<0.000000e+00> : vector<40x40xf32>
    %140 = tpu.matmul %139, %111, %cst_43 {dimension_numbers = #tpu.dot_dimension_numbers<[1], [1], [0], [0], [0, 0, 1, 0], [], []>} : vector<40x32xf32>, vector<40x32xf32>, vector<40x40xf32> -> vector<40x40xf32>
    %cst_44 = arith.constant 0.353553385 : f32
    %141 = vector.broadcast %cst_44 : f32 to vector<40x40xf32>
    %142 = arith.mulf %140, %141 : vector<40x40xf32>
    %143 = arith.addf %142, %64 : vector<40x40xf32>
    %cst_45 = arith.constant dense<0xFF800000> : vector<40xf32>
    %144 = vector.multi_reduction <maximumf>, %143, %cst_45 [1] : vector<40x40xf32> to vector<40xf32>
    %145 = vector.shape_cast %144 : vector<40xf32> to vector<40x1xf32>
    %146 = vector.broadcast %145 : vector<40x1xf32> to vector<40x40xf32>
    %147 = arith.subf %143, %146 : vector<40x40xf32>
    %148 = math.exp %147 : vector<40x40xf32>
    %cst_46 = arith.constant dense<0.000000e+00> : vector<40xf32>
    %149 = vector.multi_reduction <add>, %148, %cst_46 [1] : vector<40x40xf32> to vector<40xf32>
    %150 = vector.shape_cast %149 : vector<40xf32> to vector<40x1xf32>
    %151 = tpu.reciprocal %150 {approx = true} : vector<40x1xf32> -> vector<40x1xf32>
    %152 = vector.broadcast %151 : vector<40x1xf32> to vector<40x40xf32>
    %153 = arith.mulf %148, %152 : vector<40x40xf32>
    %cst_47 = arith.constant dense<0.000000e+00> : vector<40x32xf32>
    %154 = tpu.matmul %153, %116, %cst_47 {dimension_numbers = #tpu.dot_dimension_numbers<[1], [0], [0], [1], [0, 0, 1, 1], [], []>} : vector<40x40xf32>, vector<40x32xf32>, vector<40x32xf32> -> vector<40x32xf32>
    %155 = vector.broadcast %14 : vector<1x32xf32> to vector<40x32xf32>
    %156 = arith.mulf %154, %155 : vector<40x32xf32>
    %157 = arith.addf %137, %156 : vector<40x32xf32>
    %158 = vector.broadcast %21 : vector<1x32xf32> to vector<40x32xf32>
    %159 = arith.mulf %106, %158 : vector<40x32xf32>
    %cst_48 = arith.constant dense<0.000000e+00> : vector<40x40xf32>
    %160 = tpu.matmul %159, %111, %cst_48 {dimension_numbers = #tpu.dot_dimension_numbers<[1], [1], [0], [0], [0, 0, 1, 0], [], []>} : vector<40x32xf32>, vector<40x32xf32>, vector<40x40xf32> -> vector<40x40xf32>
    %cst_49 = arith.constant 0.353553385 : f32
    %161 = vector.broadcast %cst_49 : f32 to vector<40x40xf32>
    %162 = arith.mulf %160, %161 : vector<40x40xf32>
    %163 = arith.addf %162, %64 : vector<40x40xf32>
    %cst_50 = arith.constant dense<0xFF800000> : vector<40xf32>
    %164 = vector.multi_reduction <maximumf>, %163, %cst_50 [1] : vector<40x40xf32> to vector<40xf32>
    %165 = vector.shape_cast %164 : vector<40xf32> to vector<40x1xf32>
    %166 = vector.broadcast %165 : vector<40x1xf32> to vector<40x40xf32>
    %167 = arith.subf %163, %166 : vector<40x40xf32>
    %168 = math.exp %167 : vector<40x40xf32>
    %cst_51 = arith.constant dense<0.000000e+00> : vector<40xf32>
    %169 = vector.multi_reduction <add>, %168, %cst_51 [1] : vector<40x40xf32> to vector<40xf32>
    %170 = vector.shape_cast %169 : vector<40xf32> to vector<40x1xf32>
    %171 = tpu.reciprocal %170 {approx = true} : vector<40x1xf32> -> vector<40x1xf32>
    %172 = vector.broadcast %171 : vector<40x1xf32> to vector<40x40xf32>
    %173 = arith.mulf %168, %172 : vector<40x40xf32>
    %cst_52 = arith.constant dense<0.000000e+00> : vector<40x32xf32>
    %174 = tpu.matmul %173, %116, %cst_52 {dimension_numbers = #tpu.dot_dimension_numbers<[1], [0], [0], [1], [0, 0, 1, 1], [], []>} : vector<40x40xf32>, vector<40x32xf32>, vector<40x32xf32> -> vector<40x32xf32>
    %175 = vector.broadcast %21 : vector<1x32xf32> to vector<40x32xf32>
    %176 = arith.mulf %174, %175 : vector<40x32xf32>
    %177 = arith.addf %157, %176 : vector<40x32xf32>
    %178 = vector.broadcast %28 : vector<1x32xf32> to vector<40x32xf32>
    %179 = arith.mulf %106, %178 : vector<40x32xf32>
    %cst_53 = arith.constant dense<0.000000e+00> : vector<40x40xf32>
    %180 = tpu.matmul %179, %111, %cst_53 {dimension_numbers = #tpu.dot_dimension_numbers<[1], [1], [0], [0], [0, 0, 1, 0], [], []>} : vector<40x32xf32>, vector<40x32xf32>, vector<40x40xf32> -> vector<40x40xf32>
    %cst_54 = arith.constant 0.353553385 : f32
    %181 = vector.broadcast %cst_54 : f32 to vector<40x40xf32>
    %182 = arith.mulf %180, %181 : vector<40x40xf32>
    %183 = arith.addf %182, %64 : vector<40x40xf32>
    %cst_55 = arith.constant dense<0xFF800000> : vector<40xf32>
    %184 = vector.multi_reduction <maximumf>, %183, %cst_55 [1] : vector<40x40xf32> to vector<40xf32>
    %185 = vector.shape_cast %184 : vector<40xf32> to vector<40x1xf32>
    %186 = vector.broadcast %185 : vector<40x1xf32> to vector<40x40xf32>
    %187 = arith.subf %183, %186 : vector<40x40xf32>
    %188 = math.exp %187 : vector<40x40xf32>
    %cst_56 = arith.constant dense<0.000000e+00> : vector<40xf32>
    %189 = vector.multi_reduction <add>, %188, %cst_56 [1] : vector<40x40xf32> to vector<40xf32>
    %190 = vector.shape_cast %189 : vector<40xf32> to vector<40x1xf32>
    %191 = tpu.reciprocal %190 {approx = true} : vector<40x1xf32> -> vector<40x1xf32>
    %192 = vector.broadcast %191 : vector<40x1xf32> to vector<40x40xf32>
    %193 = arith.mulf %188, %192 : vector<40x40xf32>
    %cst_57 = arith.constant dense<0.000000e+00> : vector<40x32xf32>
    %194 = tpu.matmul %193, %116, %cst_57 {dimension_numbers = #tpu.dot_dimension_numbers<[1], [0], [0], [1], [0, 0, 1, 1], [], []>} : vector<40x40xf32>, vector<40x32xf32>, vector<40x32xf32> -> vector<40x32xf32>
    %195 = vector.broadcast %28 : vector<1x32xf32> to vector<40x32xf32>
    %196 = arith.mulf %194, %195 : vector<40x32xf32>
    %197 = arith.addf %177, %196 : vector<40x32xf32>
    %c216 = arith.constant 216 : index
    %c0_58 = arith.constant 0 : index
    %198 = vector.load %arg1[%c216, %c0_58] : memref<1128x128xf32, #tpu.memory_space<vmem>>, vector<32x32xf32>
    %cst_59 = arith.constant dense<0.000000e+00> : vector<40x32xf32>
    %199 = tpu.matmul %197, %198, %cst_59 {dimension_numbers = #tpu.dot_dimension_numbers<[1], [0], [0], [1], [0, 0, 1, 1], [], []>} : vector<40x32xf32>, vector<32x32xf32>, vector<40x32xf32> -> vector<40x32xf32>
    %200 = arith.addf %77, %199 : vector<40x32xf32>
    %c248 = arith.constant 248 : index
    %c0_60 = arith.constant 0 : index
    %201 = vector.load %arg1[%c248, %c0_60] : memref<1128x128xf32, #tpu.memory_space<vmem>>, vector<1x32xf32>
    %202 = vector.broadcast %201 : vector<1x32xf32> to vector<40x32xf32>
    %203 = arith.addf %200, %202 : vector<40x32xf32>
    %c256 = arith.constant 256 : index
    %c0_61 = arith.constant 0 : index
    %204 = vector.load %arg1[%c256, %c0_61] : memref<1128x128xf32, #tpu.memory_space<vmem>>, vector<1x32xf32>
    %c264 = arith.constant 264 : index
    %c0_62 = arith.constant 0 : index
    %205 = vector.load %arg1[%c264, %c0_62] : memref<1128x128xf32, #tpu.memory_space<vmem>>, vector<1x32xf32>
    %cst_63 = arith.constant dense<0.000000e+00> : vector<40xf32>
    %206 = vector.multi_reduction <add>, %203, %cst_63 [1] : vector<40x32xf32> to vector<40xf32>
    %207 = vector.shape_cast %206 : vector<40xf32> to vector<40x1xf32>
    %cst_64 = arith.constant 3.200000e+01 : f32
    %208 = vector.broadcast %cst_64 : f32 to vector<40x1xf32>
    %209 = arith.divf %207, %208 : vector<40x1xf32>
    %210 = vector.broadcast %209 : vector<40x1xf32> to vector<40x32xf32>
    %211 = arith.subf %203, %210 : vector<40x32xf32>
    %212 = arith.mulf %211, %211 : vector<40x32xf32>
    %cst_65 = arith.constant dense<0.000000e+00> : vector<40xf32>
    %213 = vector.multi_reduction <add>, %212, %cst_65 [1] : vector<40x32xf32> to vector<40xf32>
    %214 = vector.shape_cast %213 : vector<40xf32> to vector<40x1xf32>
    %cst_66 = arith.constant 3.200000e+01 : f32
    %215 = vector.broadcast %cst_66 : f32 to vector<40x1xf32>
    %216 = arith.divf %214, %215 : vector<40x1xf32>
    %217 = vector.broadcast %209 : vector<40x1xf32> to vector<40x32xf32>
    %218 = arith.subf %203, %217 : vector<40x32xf32>
    %cst_67 = arith.constant 9.99999997E-7 : f32
    %219 = vector.broadcast %cst_67 : f32 to vector<40x1xf32>
    %220 = arith.addf %216, %219 : vector<40x1xf32>
    %221 = math.rsqrt %220 : vector<40x1xf32>
    %222 = vector.broadcast %221 : vector<40x1xf32> to vector<40x32xf32>
    %223 = arith.mulf %218, %222 : vector<40x32xf32>
    %224 = vector.broadcast %204 : vector<1x32xf32> to vector<40x32xf32>
    %225 = arith.mulf %223, %224 : vector<40x32xf32>
    %226 = vector.broadcast %205 : vector<1x32xf32> to vector<40x32xf32>
    %227 = arith.addf %225, %226 : vector<40x32xf32>
    %c272 = arith.constant 272 : index
    %c0_68 = arith.constant 0 : index
    %228 = vector.load %arg1[%c272, %c0_68] : memref<1128x128xf32, #tpu.memory_space<vmem>>, vector<32x128xf32>
    %cst_69 = arith.constant dense<0.000000e+00> : vector<40x128xf32>
    %229 = tpu.matmul %227, %228, %cst_69 {dimension_numbers = #tpu.dot_dimension_numbers<[1], [0], [0], [1], [0, 0, 1, 1], [], []>} : vector<40x32xf32>, vector<32x128xf32>, vector<40x128xf32> -> vector<40x128xf32>
    %c304 = arith.constant 304 : index
    %c0_70 = arith.constant 0 : index
    %230 = vector.load %arg1[%c304, %c0_70] : memref<1128x128xf32, #tpu.memory_space<vmem>>, vector<1x128xf32>
    %231 = vector.broadcast %230 : vector<1x128xf32> to vector<40x128xf32>
    %232 = arith.addf %229, %231 : vector<40x128xf32>
    %cst_71 = arith.constant 0.707106769 : f32
    %233 = vector.broadcast %cst_71 : f32 to vector<40x128xf32>
    %234 = arith.mulf %232, %233 : vector<40x128xf32>
    %235 = math.absf %234 : vector<40x128xf32>
    %cst_72 = arith.constant 0.327591091 : f32
    %236 = vector.broadcast %cst_72 : f32 to vector<40x128xf32>
    %237 = arith.mulf %236, %235 : vector<40x128xf32>
    %cst_73 = arith.constant 1.000000e+00 : f32
    %238 = vector.broadcast %cst_73 : f32 to vector<40x128xf32>
    %239 = arith.addf %238, %237 : vector<40x128xf32>
    %240 = tpu.reciprocal %239 : vector<40x128xf32> -> vector<40x128xf32>
    %cst_74 = arith.constant 1.06140542 : f32
    %241 = vector.broadcast %cst_74 : f32 to vector<40x128xf32>
    %242 = arith.mulf %240, %241 : vector<40x128xf32>
    %cst_75 = arith.constant -1.45315206 : f32
    %243 = vector.broadcast %cst_75 : f32 to vector<40x128xf32>
    %244 = arith.addf %243, %242 : vector<40x128xf32>
    %245 = arith.mulf %240, %244 : vector<40x128xf32>
    %cst_76 = arith.constant 1.42141378 : f32
    %246 = vector.broadcast %cst_76 : f32 to vector<40x128xf32>
    %247 = arith.addf %246, %245 : vector<40x128xf32>
    %248 = arith.mulf %240, %247 : vector<40x128xf32>
    %cst_77 = arith.constant -0.284496725 : f32
    %249 = vector.broadcast %cst_77 : f32 to vector<40x128xf32>
    %250 = arith.addf %249, %248 : vector<40x128xf32>
    %251 = arith.mulf %240, %250 : vector<40x128xf32>
    %cst_78 = arith.constant 0.254829586 : f32
    %252 = vector.broadcast %cst_78 : f32 to vector<40x128xf32>
    %253 = arith.addf %252, %251 : vector<40x128xf32>
    %254 = arith.mulf %240, %253 : vector<40x128xf32>
    %cst_79 = arith.constant 0.000000e+00 : f32
    %255 = vector.broadcast %cst_79 : f32 to vector<40x128xf32>
    %256 = arith.subf %255, %235 : vector<40x128xf32>
    %257 = arith.mulf %256, %235 : vector<40x128xf32>
    %258 = math.exp %257 : vector<40x128xf32>
    %259 = arith.mulf %254, %258 : vector<40x128xf32>
    %cst_80 = arith.constant 1.000000e+00 : f32
    %260 = vector.broadcast %cst_80 : f32 to vector<40x128xf32>
    %261 = arith.subf %260, %259 : vector<40x128xf32>
    %cst_81 = arith.constant 0.000000e+00 : f32
    %262 = vector.broadcast %cst_81 : f32 to vector<40x128xf32>
    %263 = arith.cmpf oge, %234, %262 : vector<40x128xf32>
    %cst_82 = arith.constant 0.000000e+00 : f32
    %264 = vector.broadcast %cst_82 : f32 to vector<40x128xf32>
    %265 = arith.subf %264, %261 : vector<40x128xf32>
    %266 = arith.select %263, %261, %265 : vector<40x128xi1>, vector<40x128xf32>
    %cst_83 = arith.constant 5.000000e-01 : f32
    %267 = vector.broadcast %cst_83 : f32 to vector<40x128xf32>
    %268 = arith.mulf %267, %232 : vector<40x128xf32>
    %cst_84 = arith.constant 1.000000e+00 : f32
    %269 = vector.broadcast %cst_84 : f32 to vector<40x128xf32>
    %270 = arith.addf %269, %266 : vector<40x128xf32>
    %271 = arith.mulf %268, %270 : vector<40x128xf32>
    %c312 = arith.constant 312 : index
    %c0_85 = arith.constant 0 : index
    %272 = vector.load %arg1[%c312, %c0_85] : memref<1128x128xf32, #tpu.memory_space<vmem>>, vector<128x32xf32>
    %cst_86 = arith.constant dense<0.000000e+00> : vector<40x32xf32>
    %273 = tpu.matmul %271, %272, %cst_86 {dimension_numbers = #tpu.dot_dimension_numbers<[1], [0], [0], [1], [0, 0, 1, 1], [], []>} : vector<40x128xf32>, vector<128x32xf32>, vector<40x32xf32> -> vector<40x32xf32>
    %274 = arith.addf %203, %273 : vector<40x32xf32>
    %c440 = arith.constant 440 : index
    %c0_87 = arith.constant 0 : index
    %275 = vector.load %arg1[%c440, %c0_87] : memref<1128x128xf32, #tpu.memory_space<vmem>>, vector<1x32xf32>
    %276 = vector.broadcast %275 : vector<1x32xf32> to vector<40x32xf32>
    %277 = arith.addf %274, %276 : vector<40x32xf32>
    %c448 = arith.constant 448 : index
    %c0_88 = arith.constant 0 : index
    %278 = vector.load %arg1[%c448, %c0_88] : memref<1128x128xf32, #tpu.memory_space<vmem>>, vector<1x32xf32>
    %c456 = arith.constant 456 : index
    %c0_89 = arith.constant 0 : index
    %279 = vector.load %arg1[%c456, %c0_89] : memref<1128x128xf32, #tpu.memory_space<vmem>>, vector<1x32xf32>
    %cst_90 = arith.constant dense<0.000000e+00> : vector<40xf32>
    %280 = vector.multi_reduction <add>, %277, %cst_90 [1] : vector<40x32xf32> to vector<40xf32>
    %281 = vector.shape_cast %280 : vector<40xf32> to vector<40x1xf32>
    %cst_91 = arith.constant 3.200000e+01 : f32
    %282 = vector.broadcast %cst_91 : f32 to vector<40x1xf32>
    %283 = arith.divf %281, %282 : vector<40x1xf32>
    %284 = vector.broadcast %283 : vector<40x1xf32> to vector<40x32xf32>
    %285 = arith.subf %277, %284 : vector<40x32xf32>
    %286 = arith.mulf %285, %285 : vector<40x32xf32>
    %cst_92 = arith.constant dense<0.000000e+00> : vector<40xf32>
    %287 = vector.multi_reduction <add>, %286, %cst_92 [1] : vector<40x32xf32> to vector<40xf32>
    %288 = vector.shape_cast %287 : vector<40xf32> to vector<40x1xf32>
    %cst_93 = arith.constant 3.200000e+01 : f32
    %289 = vector.broadcast %cst_93 : f32 to vector<40x1xf32>
    %290 = arith.divf %288, %289 : vector<40x1xf32>
    %291 = vector.broadcast %283 : vector<40x1xf32> to vector<40x32xf32>
    %292 = arith.subf %277, %291 : vector<40x32xf32>
    %cst_94 = arith.constant 9.99999997E-7 : f32
    %293 = vector.broadcast %cst_94 : f32 to vector<40x1xf32>
    %294 = arith.addf %290, %293 : vector<40x1xf32>
    %295 = math.rsqrt %294 : vector<40x1xf32>
    %296 = vector.broadcast %295 : vector<40x1xf32> to vector<40x32xf32>
    %297 = arith.mulf %292, %296 : vector<40x32xf32>
    %298 = vector.broadcast %278 : vector<1x32xf32> to vector<40x32xf32>
    %299 = arith.mulf %297, %298 : vector<40x32xf32>
    %300 = vector.broadcast %279 : vector<1x32xf32> to vector<40x32xf32>
    %301 = arith.addf %299, %300 : vector<40x32xf32>
    %c464 = arith.constant 464 : index
    %c0_95 = arith.constant 0 : index
    %302 = vector.load %arg1[%c464, %c0_95] : memref<1128x128xf32, #tpu.memory_space<vmem>>, vector<32x32xf32>
    %cst_96 = arith.constant dense<0.000000e+00> : vector<40x32xf32>
    %303 = tpu.matmul %301, %302, %cst_96 {dimension_numbers = #tpu.dot_dimension_numbers<[1], [0], [0], [1], [0, 0, 1, 1], [], []>} : vector<40x32xf32>, vector<32x32xf32>, vector<40x32xf32> -> vector<40x32xf32>
    %c560 = arith.constant 560 : index
    %c0_97 = arith.constant 0 : index
    %304 = vector.load %arg1[%c560, %c0_97] : memref<1128x128xf32, #tpu.memory_space<vmem>>, vector<1x32xf32>
    %305 = vector.broadcast %304 : vector<1x32xf32> to vector<40x32xf32>
    %306 = arith.addf %303, %305 : vector<40x32xf32>
    %c496 = arith.constant 496 : index
    %c0_98 = arith.constant 0 : index
    %307 = vector.load %arg1[%c496, %c0_98] : memref<1128x128xf32, #tpu.memory_space<vmem>>, vector<32x32xf32>
    %cst_99 = arith.constant dense<0.000000e+00> : vector<40x32xf32>
    %308 = tpu.matmul %301, %307, %cst_99 {dimension_numbers = #tpu.dot_dimension_numbers<[1], [0], [0], [1], [0, 0, 1, 1], [], []>} : vector<40x32xf32>, vector<32x32xf32>, vector<40x32xf32> -> vector<40x32xf32>
    %c568 = arith.constant 568 : index
    %c0_100 = arith.constant 0 : index
    %309 = vector.load %arg1[%c568, %c0_100] : memref<1128x128xf32, #tpu.memory_space<vmem>>, vector<1x32xf32>
    %310 = vector.broadcast %309 : vector<1x32xf32> to vector<40x32xf32>
    %311 = arith.addf %308, %310 : vector<40x32xf32>
    %c528 = arith.constant 528 : index
    %c0_101 = arith.constant 0 : index
    %312 = vector.load %arg1[%c528, %c0_101] : memref<1128x128xf32, #tpu.memory_space<vmem>>, vector<32x32xf32>
    %cst_102 = arith.constant dense<0.000000e+00> : vector<40x32xf32>
    %313 = tpu.matmul %301, %312, %cst_102 {dimension_numbers = #tpu.dot_dimension_numbers<[1], [0], [0], [1], [0, 0, 1, 1], [], []>} : vector<40x32xf32>, vector<32x32xf32>, vector<40x32xf32> -> vector<40x32xf32>
    %c576 = arith.constant 576 : index
    %c0_103 = arith.constant 0 : index
    %314 = vector.load %arg1[%c576, %c0_103] : memref<1128x128xf32, #tpu.memory_space<vmem>>, vector<1x32xf32>
    %315 = vector.broadcast %314 : vector<1x32xf32> to vector<40x32xf32>
    %316 = arith.addf %313, %315 : vector<40x32xf32>
    %cst_104 = arith.constant 0.000000e+00 : f32
    %317 = vector.broadcast %cst_104 : f32 to vector<40x32xf32>
    %318 = vector.broadcast %7 : vector<1x32xf32> to vector<40x32xf32>
    %319 = arith.mulf %306, %318 : vector<40x32xf32>
    %cst_105 = arith.constant dense<0.000000e+00> : vector<40x40xf32>
    %320 = tpu.matmul %319, %311, %cst_105 {dimension_numbers = #tpu.dot_dimension_numbers<[1], [1], [0], [0], [0, 0, 1, 0], [], []>} : vector<40x32xf32>, vector<40x32xf32>, vector<40x40xf32> -> vector<40x40xf32>
    %cst_106 = arith.constant 0.353553385 : f32
    %321 = vector.broadcast %cst_106 : f32 to vector<40x40xf32>
    %322 = arith.mulf %320, %321 : vector<40x40xf32>
    %323 = arith.addf %322, %64 : vector<40x40xf32>
    %cst_107 = arith.constant dense<0xFF800000> : vector<40xf32>
    %324 = vector.multi_reduction <maximumf>, %323, %cst_107 [1] : vector<40x40xf32> to vector<40xf32>
    %325 = vector.shape_cast %324 : vector<40xf32> to vector<40x1xf32>
    %326 = vector.broadcast %325 : vector<40x1xf32> to vector<40x40xf32>
    %327 = arith.subf %323, %326 : vector<40x40xf32>
    %328 = math.exp %327 : vector<40x40xf32>
    %cst_108 = arith.constant dense<0.000000e+00> : vector<40xf32>
    %329 = vector.multi_reduction <add>, %328, %cst_108 [1] : vector<40x40xf32> to vector<40xf32>
    %330 = vector.shape_cast %329 : vector<40xf32> to vector<40x1xf32>
    %331 = tpu.reciprocal %330 {approx = true} : vector<40x1xf32> -> vector<40x1xf32>
    %332 = vector.broadcast %331 : vector<40x1xf32> to vector<40x40xf32>
    %333 = arith.mulf %328, %332 : vector<40x40xf32>
    %cst_109 = arith.constant dense<0.000000e+00> : vector<40x32xf32>
    %334 = tpu.matmul %333, %316, %cst_109 {dimension_numbers = #tpu.dot_dimension_numbers<[1], [0], [0], [1], [0, 0, 1, 1], [], []>} : vector<40x40xf32>, vector<40x32xf32>, vector<40x32xf32> -> vector<40x32xf32>
    %335 = vector.broadcast %7 : vector<1x32xf32> to vector<40x32xf32>
    %336 = arith.mulf %334, %335 : vector<40x32xf32>
    %337 = arith.addf %317, %336 : vector<40x32xf32>
    %338 = vector.broadcast %14 : vector<1x32xf32> to vector<40x32xf32>
    %339 = arith.mulf %306, %338 : vector<40x32xf32>
    %cst_110 = arith.constant dense<0.000000e+00> : vector<40x40xf32>
    %340 = tpu.matmul %339, %311, %cst_110 {dimension_numbers = #tpu.dot_dimension_numbers<[1], [1], [0], [0], [0, 0, 1, 0], [], []>} : vector<40x32xf32>, vector<40x32xf32>, vector<40x40xf32> -> vector<40x40xf32>
    %cst_111 = arith.constant 0.353553385 : f32
    %341 = vector.broadcast %cst_111 : f32 to vector<40x40xf32>
    %342 = arith.mulf %340, %341 : vector<40x40xf32>
    %343 = arith.addf %342, %64 : vector<40x40xf32>
    %cst_112 = arith.constant dense<0xFF800000> : vector<40xf32>
    %344 = vector.multi_reduction <maximumf>, %343, %cst_112 [1] : vector<40x40xf32> to vector<40xf32>
    %345 = vector.shape_cast %344 : vector<40xf32> to vector<40x1xf32>
    %346 = vector.broadcast %345 : vector<40x1xf32> to vector<40x40xf32>
    %347 = arith.subf %343, %346 : vector<40x40xf32>
    %348 = math.exp %347 : vector<40x40xf32>
    %cst_113 = arith.constant dense<0.000000e+00> : vector<40xf32>
    %349 = vector.multi_reduction <add>, %348, %cst_113 [1] : vector<40x40xf32> to vector<40xf32>
    %350 = vector.shape_cast %349 : vector<40xf32> to vector<40x1xf32>
    %351 = tpu.reciprocal %350 {approx = true} : vector<40x1xf32> -> vector<40x1xf32>
    %352 = vector.broadcast %351 : vector<40x1xf32> to vector<40x40xf32>
    %353 = arith.mulf %348, %352 : vector<40x40xf32>
    %cst_114 = arith.constant dense<0.000000e+00> : vector<40x32xf32>
    %354 = tpu.matmul %353, %316, %cst_114 {dimension_numbers = #tpu.dot_dimension_numbers<[1], [0], [0], [1], [0, 0, 1, 1], [], []>} : vector<40x40xf32>, vector<40x32xf32>, vector<40x32xf32> -> vector<40x32xf32>
    %355 = vector.broadcast %14 : vector<1x32xf32> to vector<40x32xf32>
    %356 = arith.mulf %354, %355 : vector<40x32xf32>
    %357 = arith.addf %337, %356 : vector<40x32xf32>
    %358 = vector.broadcast %21 : vector<1x32xf32> to vector<40x32xf32>
    %359 = arith.mulf %306, %358 : vector<40x32xf32>
    %cst_115 = arith.constant dense<0.000000e+00> : vector<40x40xf32>
    %360 = tpu.matmul %359, %311, %cst_115 {dimension_numbers = #tpu.dot_dimension_numbers<[1], [1], [0], [0], [0, 0, 1, 0], [], []>} : vector<40x32xf32>, vector<40x32xf32>, vector<40x40xf32> -> vector<40x40xf32>
    %cst_116 = arith.constant 0.353553385 : f32
    %361 = vector.broadcast %cst_116 : f32 to vector<40x40xf32>
    %362 = arith.mulf %360, %361 : vector<40x40xf32>
    %363 = arith.addf %362, %64 : vector<40x40xf32>
    %cst_117 = arith.constant dense<0xFF800000> : vector<40xf32>
    %364 = vector.multi_reduction <maximumf>, %363, %cst_117 [1] : vector<40x40xf32> to vector<40xf32>
    %365 = vector.shape_cast %364 : vector<40xf32> to vector<40x1xf32>
    %366 = vector.broadcast %365 : vector<40x1xf32> to vector<40x40xf32>
    %367 = arith.subf %363, %366 : vector<40x40xf32>
    %368 = math.exp %367 : vector<40x40xf32>
    %cst_118 = arith.constant dense<0.000000e+00> : vector<40xf32>
    %369 = vector.multi_reduction <add>, %368, %cst_118 [1] : vector<40x40xf32> to vector<40xf32>
    %370 = vector.shape_cast %369 : vector<40xf32> to vector<40x1xf32>
    %371 = tpu.reciprocal %370 {approx = true} : vector<40x1xf32> -> vector<40x1xf32>
    %372 = vector.broadcast %371 : vector<40x1xf32> to vector<40x40xf32>
    %373 = arith.mulf %368, %372 : vector<40x40xf32>
    %cst_119 = arith.constant dense<0.000000e+00> : vector<40x32xf32>
    %374 = tpu.matmul %373, %316, %cst_119 {dimension_numbers = #tpu.dot_dimension_numbers<[1], [0], [0], [1], [0, 0, 1, 1], [], []>} : vector<40x40xf32>, vector<40x32xf32>, vector<40x32xf32> -> vector<40x32xf32>
    %375 = vector.broadcast %21 : vector<1x32xf32> to vector<40x32xf32>
    %376 = arith.mulf %374, %375 : vector<40x32xf32>
    %377 = arith.addf %357, %376 : vector<40x32xf32>
    %378 = vector.broadcast %28 : vector<1x32xf32> to vector<40x32xf32>
    %379 = arith.mulf %306, %378 : vector<40x32xf32>
    %cst_120 = arith.constant dense<0.000000e+00> : vector<40x40xf32>
    %380 = tpu.matmul %379, %311, %cst_120 {dimension_numbers = #tpu.dot_dimension_numbers<[1], [1], [0], [0], [0, 0, 1, 0], [], []>} : vector<40x32xf32>, vector<40x32xf32>, vector<40x40xf32> -> vector<40x40xf32>
    %cst_121 = arith.constant 0.353553385 : f32
    %381 = vector.broadcast %cst_121 : f32 to vector<40x40xf32>
    %382 = arith.mulf %380, %381 : vector<40x40xf32>
    %383 = arith.addf %382, %64 : vector<40x40xf32>
    %cst_122 = arith.constant dense<0xFF800000> : vector<40xf32>
    %384 = vector.multi_reduction <maximumf>, %383, %cst_122 [1] : vector<40x40xf32> to vector<40xf32>
    %385 = vector.shape_cast %384 : vector<40xf32> to vector<40x1xf32>
    %386 = vector.broadcast %385 : vector<40x1xf32> to vector<40x40xf32>
    %387 = arith.subf %383, %386 : vector<40x40xf32>
    %388 = math.exp %387 : vector<40x40xf32>
    %cst_123 = arith.constant dense<0.000000e+00> : vector<40xf32>
    %389 = vector.multi_reduction <add>, %388, %cst_123 [1] : vector<40x40xf32> to vector<40xf32>
    %390 = vector.shape_cast %389 : vector<40xf32> to vector<40x1xf32>
    %391 = tpu.reciprocal %390 {approx = true} : vector<40x1xf32> -> vector<40x1xf32>
    %392 = vector.broadcast %391 : vector<40x1xf32> to vector<40x40xf32>
    %393 = arith.mulf %388, %392 : vector<40x40xf32>
    %cst_124 = arith.constant dense<0.000000e+00> : vector<40x32xf32>
    %394 = tpu.matmul %393, %316, %cst_124 {dimension_numbers = #tpu.dot_dimension_numbers<[1], [0], [0], [1], [0, 0, 1, 1], [], []>} : vector<40x40xf32>, vector<40x32xf32>, vector<40x32xf32> -> vector<40x32xf32>
    %395 = vector.broadcast %28 : vector<1x32xf32> to vector<40x32xf32>
    %396 = arith.mulf %394, %395 : vector<40x32xf32>
    %397 = arith.addf %377, %396 : vector<40x32xf32>
    %c584 = arith.constant 584 : index
    %c0_125 = arith.constant 0 : index
    %398 = vector.load %arg1[%c584, %c0_125] : memref<1128x128xf32, #tpu.memory_space<vmem>>, vector<32x32xf32>
    %cst_126 = arith.constant dense<0.000000e+00> : vector<40x32xf32>
    %399 = tpu.matmul %397, %398, %cst_126 {dimension_numbers = #tpu.dot_dimension_numbers<[1], [0], [0], [1], [0, 0, 1, 1], [], []>} : vector<40x32xf32>, vector<32x32xf32>, vector<40x32xf32> -> vector<40x32xf32>
    %400 = arith.addf %277, %399 : vector<40x32xf32>
    %c616 = arith.constant 616 : index
    %c0_127 = arith.constant 0 : index
    %401 = vector.load %arg1[%c616, %c0_127] : memref<1128x128xf32, #tpu.memory_space<vmem>>, vector<1x32xf32>
    %402 = vector.broadcast %401 : vector<1x32xf32> to vector<40x32xf32>
    %403 = arith.addf %400, %402 : vector<40x32xf32>
    %c624 = arith.constant 624 : index
    %c0_128 = arith.constant 0 : index
    %404 = vector.load %arg1[%c624, %c0_128] : memref<1128x128xf32, #tpu.memory_space<vmem>>, vector<1x32xf32>
    %c632 = arith.constant 632 : index
    %c0_129 = arith.constant 0 : index
    %405 = vector.load %arg1[%c632, %c0_129] : memref<1128x128xf32, #tpu.memory_space<vmem>>, vector<1x32xf32>
    %cst_130 = arith.constant dense<0.000000e+00> : vector<40xf32>
    %406 = vector.multi_reduction <add>, %403, %cst_130 [1] : vector<40x32xf32> to vector<40xf32>
    %407 = vector.shape_cast %406 : vector<40xf32> to vector<40x1xf32>
    %cst_131 = arith.constant 3.200000e+01 : f32
    %408 = vector.broadcast %cst_131 : f32 to vector<40x1xf32>
    %409 = arith.divf %407, %408 : vector<40x1xf32>
    %410 = vector.broadcast %409 : vector<40x1xf32> to vector<40x32xf32>
    %411 = arith.subf %403, %410 : vector<40x32xf32>
    %412 = arith.mulf %411, %411 : vector<40x32xf32>
    %cst_132 = arith.constant dense<0.000000e+00> : vector<40xf32>
    %413 = vector.multi_reduction <add>, %412, %cst_132 [1] : vector<40x32xf32> to vector<40xf32>
    %414 = vector.shape_cast %413 : vector<40xf32> to vector<40x1xf32>
    %cst_133 = arith.constant 3.200000e+01 : f32
    %415 = vector.broadcast %cst_133 : f32 to vector<40x1xf32>
    %416 = arith.divf %414, %415 : vector<40x1xf32>
    %417 = vector.broadcast %409 : vector<40x1xf32> to vector<40x32xf32>
    %418 = arith.subf %403, %417 : vector<40x32xf32>
    %cst_134 = arith.constant 9.99999997E-7 : f32
    %419 = vector.broadcast %cst_134 : f32 to vector<40x1xf32>
    %420 = arith.addf %416, %419 : vector<40x1xf32>
    %421 = math.rsqrt %420 : vector<40x1xf32>
    %422 = vector.broadcast %421 : vector<40x1xf32> to vector<40x32xf32>
    %423 = arith.mulf %418, %422 : vector<40x32xf32>
    %424 = vector.broadcast %404 : vector<1x32xf32> to vector<40x32xf32>
    %425 = arith.mulf %423, %424 : vector<40x32xf32>
    %426 = vector.broadcast %405 : vector<1x32xf32> to vector<40x32xf32>
    %427 = arith.addf %425, %426 : vector<40x32xf32>
    %c640 = arith.constant 640 : index
    %c0_135 = arith.constant 0 : index
    %428 = vector.load %arg1[%c640, %c0_135] : memref<1128x128xf32, #tpu.memory_space<vmem>>, vector<32x128xf32>
    %cst_136 = arith.constant dense<0.000000e+00> : vector<40x128xf32>
    %429 = tpu.matmul %427, %428, %cst_136 {dimension_numbers = #tpu.dot_dimension_numbers<[1], [0], [0], [1], [0, 0, 1, 1], [], []>} : vector<40x32xf32>, vector<32x128xf32>, vector<40x128xf32> -> vector<40x128xf32>
    %c672 = arith.constant 672 : index
    %c0_137 = arith.constant 0 : index
    %430 = vector.load %arg1[%c672, %c0_137] : memref<1128x128xf32, #tpu.memory_space<vmem>>, vector<1x128xf32>
    %431 = vector.broadcast %430 : vector<1x128xf32> to vector<40x128xf32>
    %432 = arith.addf %429, %431 : vector<40x128xf32>
    %cst_138 = arith.constant 0.707106769 : f32
    %433 = vector.broadcast %cst_138 : f32 to vector<40x128xf32>
    %434 = arith.mulf %432, %433 : vector<40x128xf32>
    %435 = math.absf %434 : vector<40x128xf32>
    %cst_139 = arith.constant 0.327591091 : f32
    %436 = vector.broadcast %cst_139 : f32 to vector<40x128xf32>
    %437 = arith.mulf %436, %435 : vector<40x128xf32>
    %cst_140 = arith.constant 1.000000e+00 : f32
    %438 = vector.broadcast %cst_140 : f32 to vector<40x128xf32>
    %439 = arith.addf %438, %437 : vector<40x128xf32>
    %440 = tpu.reciprocal %439 : vector<40x128xf32> -> vector<40x128xf32>
    %cst_141 = arith.constant 1.06140542 : f32
    %441 = vector.broadcast %cst_141 : f32 to vector<40x128xf32>
    %442 = arith.mulf %440, %441 : vector<40x128xf32>
    %cst_142 = arith.constant -1.45315206 : f32
    %443 = vector.broadcast %cst_142 : f32 to vector<40x128xf32>
    %444 = arith.addf %443, %442 : vector<40x128xf32>
    %445 = arith.mulf %440, %444 : vector<40x128xf32>
    %cst_143 = arith.constant 1.42141378 : f32
    %446 = vector.broadcast %cst_143 : f32 to vector<40x128xf32>
    %447 = arith.addf %446, %445 : vector<40x128xf32>
    %448 = arith.mulf %440, %447 : vector<40x128xf32>
    %cst_144 = arith.constant -0.284496725 : f32
    %449 = vector.broadcast %cst_144 : f32 to vector<40x128xf32>
    %450 = arith.addf %449, %448 : vector<40x128xf32>
    %451 = arith.mulf %440, %450 : vector<40x128xf32>
    %cst_145 = arith.constant 0.254829586 : f32
    %452 = vector.broadcast %cst_145 : f32 to vector<40x128xf32>
    %453 = arith.addf %452, %451 : vector<40x128xf32>
    %454 = arith.mulf %440, %453 : vector<40x128xf32>
    %cst_146 = arith.constant 0.000000e+00 : f32
    %455 = vector.broadcast %cst_146 : f32 to vector<40x128xf32>
    %456 = arith.subf %455, %435 : vector<40x128xf32>
    %457 = arith.mulf %456, %435 : vector<40x128xf32>
    %458 = math.exp %457 : vector<40x128xf32>
    %459 = arith.mulf %454, %458 : vector<40x128xf32>
    %cst_147 = arith.constant 1.000000e+00 : f32
    %460 = vector.broadcast %cst_147 : f32 to vector<40x128xf32>
    %461 = arith.subf %460, %459 : vector<40x128xf32>
    %cst_148 = arith.constant 0.000000e+00 : f32
    %462 = vector.broadcast %cst_148 : f32 to vector<40x128xf32>
    %463 = arith.cmpf oge, %434, %462 : vector<40x128xf32>
    %cst_149 = arith.constant 0.000000e+00 : f32
    %464 = vector.broadcast %cst_149 : f32 to vector<40x128xf32>
    %465 = arith.subf %464, %461 : vector<40x128xf32>
    %466 = arith.select %463, %461, %465 : vector<40x128xi1>, vector<40x128xf32>
    %cst_150 = arith.constant 5.000000e-01 : f32
    %467 = vector.broadcast %cst_150 : f32 to vector<40x128xf32>
    %468 = arith.mulf %467, %432 : vector<40x128xf32>
    %cst_151 = arith.constant 1.000000e+00 : f32
    %469 = vector.broadcast %cst_151 : f32 to vector<40x128xf32>
    %470 = arith.addf %469, %466 : vector<40x128xf32>
    %471 = arith.mulf %468, %470 : vector<40x128xf32>
    %c680 = arith.constant 680 : index
    %c0_152 = arith.constant 0 : index
    %472 = vector.load %arg1[%c680, %c0_152] : memref<1128x128xf32, #tpu.memory_space<vmem>>, vector<128x32xf32>
    %cst_153 = arith.constant dense<0.000000e+00> : vector<40x32xf32>
    %473 = tpu.matmul %471, %472, %cst_153 {dimension_numbers = #tpu.dot_dimension_numbers<[1], [0], [0], [1], [0, 0, 1, 1], [], []>} : vector<40x128xf32>, vector<128x32xf32>, vector<40x32xf32> -> vector<40x32xf32>
    %474 = arith.addf %403, %473 : vector<40x32xf32>
    %c808 = arith.constant 808 : index
    %c0_154 = arith.constant 0 : index
    %475 = vector.load %arg1[%c808, %c0_154] : memref<1128x128xf32, #tpu.memory_space<vmem>>, vector<1x32xf32>
    %476 = vector.broadcast %475 : vector<1x32xf32> to vector<40x32xf32>
    %477 = arith.addf %474, %476 : vector<40x32xf32>
    %c816 = arith.constant 816 : index
    %c0_155 = arith.constant 0 : index
    %478 = vector.load %arg1[%c816, %c0_155] : memref<1128x128xf32, #tpu.memory_space<vmem>>, vector<1x32xf32>
    %c824 = arith.constant 824 : index
    %c0_156 = arith.constant 0 : index
    %479 = vector.load %arg1[%c824, %c0_156] : memref<1128x128xf32, #tpu.memory_space<vmem>>, vector<1x32xf32>
    %cst_157 = arith.constant dense<0.000000e+00> : vector<40xf32>
    %480 = vector.multi_reduction <add>, %477, %cst_157 [1] : vector<40x32xf32> to vector<40xf32>
    %481 = vector.shape_cast %480 : vector<40xf32> to vector<40x1xf32>
    %cst_158 = arith.constant 3.200000e+01 : f32
    %482 = vector.broadcast %cst_158 : f32 to vector<40x1xf32>
    %483 = arith.divf %481, %482 : vector<40x1xf32>
    %484 = vector.broadcast %483 : vector<40x1xf32> to vector<40x32xf32>
    %485 = arith.subf %477, %484 : vector<40x32xf32>
    %486 = arith.mulf %485, %485 : vector<40x32xf32>
    %cst_159 = arith.constant dense<0.000000e+00> : vector<40xf32>
    %487 = vector.multi_reduction <add>, %486, %cst_159 [1] : vector<40x32xf32> to vector<40xf32>
    %488 = vector.shape_cast %487 : vector<40xf32> to vector<40x1xf32>
    %cst_160 = arith.constant 3.200000e+01 : f32
    %489 = vector.broadcast %cst_160 : f32 to vector<40x1xf32>
    %490 = arith.divf %488, %489 : vector<40x1xf32>
    %491 = vector.broadcast %483 : vector<40x1xf32> to vector<40x32xf32>
    %492 = arith.subf %477, %491 : vector<40x32xf32>
    %cst_161 = arith.constant 9.99999997E-7 : f32
    %493 = vector.broadcast %cst_161 : f32 to vector<40x1xf32>
    %494 = arith.addf %490, %493 : vector<40x1xf32>
    %495 = math.rsqrt %494 : vector<40x1xf32>
    %496 = vector.broadcast %495 : vector<40x1xf32> to vector<40x32xf32>
    %497 = arith.mulf %492, %496 : vector<40x32xf32>
    %498 = vector.broadcast %478 : vector<1x32xf32> to vector<40x32xf32>
    %499 = arith.mulf %497, %498 : vector<40x32xf32>
    %500 = vector.broadcast %479 : vector<1x32xf32> to vector<40x32xf32>
    %501 = arith.addf %499, %500 : vector<40x32xf32>
    %502 = vector.extract_strided_slice %501 {offsets = [0, 0], sizes = [2, 32], strides = [1, 1]} : vector<40x32xf32> to vector<2x32xf32>
    %503 = vector.extract_strided_slice %501 {offsets = [8, 0], sizes = [32, 32], strides = [1, 1]} : vector<40x32xf32> to vector<32x32xf32>
    %c856 = arith.constant 856 : index
    %c0_162 = arith.constant 0 : index
    %504 = vector.load %arg1[%c856, %c0_162] : memref<1128x128xf32, #tpu.memory_space<vmem>>, vector<32x32xf32>
    %cst_163 = arith.constant dense<0.000000e+00> : vector<2x32xf32>
    %505 = tpu.matmul %502, %504, %cst_163 {dimension_numbers = #tpu.dot_dimension_numbers<[1], [0], [0], [1], [0, 0, 1, 1], [], []>} : vector<2x32xf32>, vector<32x32xf32>, vector<2x32xf32> -> vector<2x32xf32>
    %c832 = arith.constant 832 : index
    %c0_164 = arith.constant 0 : index
    %506 = vector.load %arg1[%c832, %c0_164] : memref<1128x128xf32, #tpu.memory_space<vmem>>, vector<9x32xf32>
    %c888 = arith.constant 888 : index
    %c0_165 = arith.constant 0 : index
    %507 = vector.load %arg1[%c888, %c0_165] : memref<1128x128xf32, #tpu.memory_space<vmem>>, vector<32x32xf32>
    %cst_166 = arith.constant dense<0.000000e+00> : vector<9x32xf32>
    %508 = tpu.matmul %506, %507, %cst_166 {dimension_numbers = #tpu.dot_dimension_numbers<[1], [0], [0], [1], [0, 0, 1, 1], [], []>} : vector<9x32xf32>, vector<32x32xf32>, vector<9x32xf32> -> vector<9x32xf32>
    %c920 = arith.constant 920 : index
    %c0_167 = arith.constant 0 : index
    %509 = vector.load %arg1[%c920, %c0_167] : memref<1128x128xf32, #tpu.memory_space<vmem>>, vector<32x32xf32>
    %cst_168 = arith.constant dense<0.000000e+00> : vector<9x32xf32>
    %510 = tpu.matmul %506, %509, %cst_168 {dimension_numbers = #tpu.dot_dimension_numbers<[1], [0], [0], [1], [0, 0, 1, 1], [], []>} : vector<9x32xf32>, vector<32x32xf32>, vector<9x32xf32> -> vector<9x32xf32>
    %511 = tpu.iota {dimensions = array<i32: 1>} : vector<2x9xi32>
    %c5_i32 = arith.constant 5 : i32
    %512 = vector.broadcast %c5_i32 : i32 to vector<2x9xi32>
    %513 = arith.cmpi slt, %511, %512 : vector<2x9xi32>
    %cst_169 = arith.constant 0.000000e+00 : f32
    %cst_170 = arith.constant -1.000000e+30 : f32
    %514 = vector.broadcast %cst_169 : f32 to vector<2x9xf32>
    %515 = vector.broadcast %cst_170 : f32 to vector<2x9xf32>
    %516 = arith.select %513, %514, %515 : vector<2x9xi1>, vector<2x9xf32>
    %c5_i32_171 = arith.constant 5 : i32
    %517 = vector.broadcast %c5_i32_171 : i32 to vector<2x9xi32>
    %518 = arith.cmpi sge, %511, %517 : vector<2x9xi32>
    %cst_172 = arith.constant 0.000000e+00 : f32
    %cst_173 = arith.constant -1.000000e+30 : f32
    %519 = vector.broadcast %cst_172 : f32 to vector<2x9xf32>
    %520 = vector.broadcast %cst_173 : f32 to vector<2x9xf32>
    %521 = arith.select %518, %519, %520 : vector<2x9xi1>, vector<2x9xf32>
    %cst_174 = arith.constant 0.000000e+00 : f32
    %522 = vector.broadcast %cst_174 : f32 to vector<2x32xf32>
    %cst_175 = arith.constant 0.000000e+00 : f32
    %523 = vector.broadcast %cst_175 : f32 to vector<2x9xf32>
    %cst_176 = arith.constant 0.000000e+00 : f32
    %524 = vector.broadcast %cst_176 : f32 to vector<2x9xf32>
    %525 = vector.broadcast %35 : vector<1x32xf32> to vector<2x32xf32>
    %526 = arith.mulf %505, %525 : vector<2x32xf32>
    %cst_177 = arith.constant dense<0.000000e+00> : vector<2x9xf32>
    %527 = tpu.matmul %526, %508, %cst_177 {dimension_numbers = #tpu.dot_dimension_numbers<[1], [1], [0], [0], [0, 0, 1, 0], [], []>} : vector<2x32xf32>, vector<9x32xf32>, vector<2x9xf32> -> vector<2x9xf32>
    %cst_178 = arith.constant 2.500000e-01 : f32
    %528 = vector.broadcast %cst_178 : f32 to vector<2x9xf32>
    %529 = arith.mulf %527, %528 : vector<2x9xf32>
    %530 = arith.addf %529, %516 : vector<2x9xf32>
    %cst_179 = arith.constant dense<0xFF800000> : vector<2xf32>
    %531 = vector.multi_reduction <maximumf>, %530, %cst_179 [1] : vector<2x9xf32> to vector<2xf32>
    %532 = vector.shape_cast %531 : vector<2xf32> to vector<2x1xf32>
    %533 = vector.broadcast %532 : vector<2x1xf32> to vector<2x9xf32>
    %534 = arith.subf %530, %533 : vector<2x9xf32>
    %535 = math.exp %534 : vector<2x9xf32>
    %cst_180 = arith.constant dense<0.000000e+00> : vector<2xf32>
    %536 = vector.multi_reduction <add>, %535, %cst_180 [1] : vector<2x9xf32> to vector<2xf32>
    %537 = vector.shape_cast %536 : vector<2xf32> to vector<2x1xf32>
    %538 = tpu.reciprocal %537 {approx = true} : vector<2x1xf32> -> vector<2x1xf32>
    %539 = vector.broadcast %538 : vector<2x1xf32> to vector<2x9xf32>
    %540 = arith.mulf %535, %539 : vector<2x9xf32>
    %541 = arith.addf %529, %521 : vector<2x9xf32>
    %cst_181 = arith.constant dense<0xFF800000> : vector<2xf32>
    %542 = vector.multi_reduction <maximumf>, %541, %cst_181 [1] : vector<2x9xf32> to vector<2xf32>
    %543 = vector.shape_cast %542 : vector<2xf32> to vector<2x1xf32>
    %544 = vector.broadcast %543 : vector<2x1xf32> to vector<2x9xf32>
    %545 = arith.subf %541, %544 : vector<2x9xf32>
    %546 = math.exp %545 : vector<2x9xf32>
    %cst_182 = arith.constant dense<0.000000e+00> : vector<2xf32>
    %547 = vector.multi_reduction <add>, %546, %cst_182 [1] : vector<2x9xf32> to vector<2xf32>
    %548 = vector.shape_cast %547 : vector<2xf32> to vector<2x1xf32>
    %549 = tpu.reciprocal %548 {approx = true} : vector<2x1xf32> -> vector<2x1xf32>
    %550 = vector.broadcast %549 : vector<2x1xf32> to vector<2x9xf32>
    %551 = arith.mulf %546, %550 : vector<2x9xf32>
    %552 = arith.addf %523, %540 : vector<2x9xf32>
    %553 = arith.addf %524, %551 : vector<2x9xf32>
    %554 = arith.addf %540, %551 : vector<2x9xf32>
    %cst_183 = arith.constant dense<0.000000e+00> : vector<2x32xf32>
    %555 = tpu.matmul %554, %510, %cst_183 {dimension_numbers = #tpu.dot_dimension_numbers<[1], [0], [0], [1], [0, 0, 1, 1], [], []>} : vector<2x9xf32>, vector<9x32xf32>, vector<2x32xf32> -> vector<2x32xf32>
    %556 = vector.broadcast %35 : vector<1x32xf32> to vector<2x32xf32>
    %557 = arith.mulf %555, %556 : vector<2x32xf32>
    %558 = arith.addf %522, %557 : vector<2x32xf32>
    %559 = vector.broadcast %42 : vector<1x32xf32> to vector<2x32xf32>
    %560 = arith.mulf %505, %559 : vector<2x32xf32>
    %cst_184 = arith.constant dense<0.000000e+00> : vector<2x9xf32>
    %561 = tpu.matmul %560, %508, %cst_184 {dimension_numbers = #tpu.dot_dimension_numbers<[1], [1], [0], [0], [0, 0, 1, 0], [], []>} : vector<2x32xf32>, vector<9x32xf32>, vector<2x9xf32> -> vector<2x9xf32>
    %cst_185 = arith.constant 2.500000e-01 : f32
    %562 = vector.broadcast %cst_185 : f32 to vector<2x9xf32>
    %563 = arith.mulf %561, %562 : vector<2x9xf32>
    %564 = arith.addf %563, %516 : vector<2x9xf32>
    %cst_186 = arith.constant dense<0xFF800000> : vector<2xf32>
    %565 = vector.multi_reduction <maximumf>, %564, %cst_186 [1] : vector<2x9xf32> to vector<2xf32>
    %566 = vector.shape_cast %565 : vector<2xf32> to vector<2x1xf32>
    %567 = vector.broadcast %566 : vector<2x1xf32> to vector<2x9xf32>
    %568 = arith.subf %564, %567 : vector<2x9xf32>
    %569 = math.exp %568 : vector<2x9xf32>
    %cst_187 = arith.constant dense<0.000000e+00> : vector<2xf32>
    %570 = vector.multi_reduction <add>, %569, %cst_187 [1] : vector<2x9xf32> to vector<2xf32>
    %571 = vector.shape_cast %570 : vector<2xf32> to vector<2x1xf32>
    %572 = tpu.reciprocal %571 {approx = true} : vector<2x1xf32> -> vector<2x1xf32>
    %573 = vector.broadcast %572 : vector<2x1xf32> to vector<2x9xf32>
    %574 = arith.mulf %569, %573 : vector<2x9xf32>
    %575 = arith.addf %563, %521 : vector<2x9xf32>
    %cst_188 = arith.constant dense<0xFF800000> : vector<2xf32>
    %576 = vector.multi_reduction <maximumf>, %575, %cst_188 [1] : vector<2x9xf32> to vector<2xf32>
    %577 = vector.shape_cast %576 : vector<2xf32> to vector<2x1xf32>
    %578 = vector.broadcast %577 : vector<2x1xf32> to vector<2x9xf32>
    %579 = arith.subf %575, %578 : vector<2x9xf32>
    %580 = math.exp %579 : vector<2x9xf32>
    %cst_189 = arith.constant dense<0.000000e+00> : vector<2xf32>
    %581 = vector.multi_reduction <add>, %580, %cst_189 [1] : vector<2x9xf32> to vector<2xf32>
    %582 = vector.shape_cast %581 : vector<2xf32> to vector<2x1xf32>
    %583 = tpu.reciprocal %582 {approx = true} : vector<2x1xf32> -> vector<2x1xf32>
    %584 = vector.broadcast %583 : vector<2x1xf32> to vector<2x9xf32>
    %585 = arith.mulf %580, %584 : vector<2x9xf32>
    %586 = arith.addf %552, %574 : vector<2x9xf32>
    %587 = arith.addf %553, %585 : vector<2x9xf32>
    %588 = arith.addf %574, %585 : vector<2x9xf32>
    %cst_190 = arith.constant dense<0.000000e+00> : vector<2x32xf32>
    %589 = tpu.matmul %588, %510, %cst_190 {dimension_numbers = #tpu.dot_dimension_numbers<[1], [0], [0], [1], [0, 0, 1, 1], [], []>} : vector<2x9xf32>, vector<9x32xf32>, vector<2x32xf32> -> vector<2x32xf32>
    %590 = vector.broadcast %42 : vector<1x32xf32> to vector<2x32xf32>
    %591 = arith.mulf %589, %590 : vector<2x32xf32>
    %592 = arith.addf %558, %591 : vector<2x32xf32>
    %c952 = arith.constant 952 : index
    %c0_191 = arith.constant 0 : index
    %593 = vector.load %arg1[%c952, %c0_191] : memref<1128x128xf32, #tpu.memory_space<vmem>>, vector<32x128xf32>
    %cst_192 = arith.constant dense<0.000000e+00> : vector<2x128xf32>
    %594 = tpu.matmul %592, %593, %cst_192 {dimension_numbers = #tpu.dot_dimension_numbers<[1], [0], [0], [1], [0, 0, 1, 1], [], []>} : vector<2x32xf32>, vector<32x128xf32>, vector<2x128xf32> -> vector<2x128xf32>
    %c984 = arith.constant 984 : index
    %c0_193 = arith.constant 0 : index
    %595 = vector.load %arg1[%c984, %c0_193] : memref<1128x128xf32, #tpu.memory_space<vmem>>, vector<1x128xf32>
    %cst_194 = arith.constant 2.000000e+00 : f32
    %596 = vector.broadcast %cst_194 : f32 to vector<1x128xf32>
    %597 = arith.mulf %596, %595 : vector<1x128xf32>
    %598 = vector.broadcast %597 : vector<1x128xf32> to vector<2x128xf32>
    %599 = arith.addf %594, %598 : vector<2x128xf32>
    %cst_195 = arith.constant 5.000000e-01 : f32
    %600 = vector.broadcast %cst_195 : f32 to vector<2x9xf32>
    %601 = arith.mulf %586, %600 : vector<2x9xf32>
    %cst_196 = arith.constant 5.000000e-01 : f32
    %602 = vector.broadcast %cst_196 : f32 to vector<2x9xf32>
    %603 = arith.mulf %587, %602 : vector<2x9xf32>
    %c992 = arith.constant 992 : index
    %c0_197 = arith.constant 0 : index
    %604 = vector.load %arg1[%c992, %c0_197] : memref<1128x128xf32, #tpu.memory_space<vmem>>, vector<32x32xf32>
    %cst_198 = arith.constant dense<0.000000e+00> : vector<32x32xf32>
    %605 = tpu.matmul %503, %604, %cst_198 {dimension_numbers = #tpu.dot_dimension_numbers<[1], [0], [0], [1], [0, 0, 1, 1], [], []>} : vector<32x32xf32>, vector<32x32xf32>, vector<32x32xf32> -> vector<32x32xf32>
    %c848 = arith.constant 848 : index
    %c0_199 = arith.constant 0 : index
    %606 = vector.load %arg1[%c848, %c0_199] : memref<1128x128xf32, #tpu.memory_space<vmem>>, vector<6x32xf32>
    %c1024 = arith.constant 1024 : index
    %c0_200 = arith.constant 0 : index
    %607 = vector.load %arg1[%c1024, %c0_200] : memref<1128x128xf32, #tpu.memory_space<vmem>>, vector<32x32xf32>
    %cst_201 = arith.constant dense<0.000000e+00> : vector<6x32xf32>
    %608 = tpu.matmul %606, %607, %cst_201 {dimension_numbers = #tpu.dot_dimension_numbers<[1], [0], [0], [1], [0, 0, 1, 1], [], []>} : vector<6x32xf32>, vector<32x32xf32>, vector<6x32xf32> -> vector<6x32xf32>
    %c1056 = arith.constant 1056 : index
    %c0_202 = arith.constant 0 : index
    %609 = vector.load %arg1[%c1056, %c0_202] : memref<1128x128xf32, #tpu.memory_space<vmem>>, vector<32x32xf32>
    %cst_203 = arith.constant dense<0.000000e+00> : vector<6x32xf32>
    %610 = tpu.matmul %606, %609, %cst_203 {dimension_numbers = #tpu.dot_dimension_numbers<[1], [0], [0], [1], [0, 0, 1, 1], [], []>} : vector<6x32xf32>, vector<32x32xf32>, vector<6x32xf32> -> vector<6x32xf32>
    %cst_204 = arith.constant 0.000000e+00 : f32
    %611 = vector.broadcast %cst_204 : f32 to vector<32x32xf32>
    %cst_205 = arith.constant 0.000000e+00 : f32
    %612 = vector.broadcast %cst_205 : f32 to vector<32x6xf32>
    %613 = vector.broadcast %35 : vector<1x32xf32> to vector<32x32xf32>
    %614 = arith.mulf %605, %613 : vector<32x32xf32>
    %cst_206 = arith.constant dense<0.000000e+00> : vector<32x6xf32>
    %615 = tpu.matmul %614, %608, %cst_206 {dimension_numbers = #tpu.dot_dimension_numbers<[1], [1], [0], [0], [0, 0, 1, 0], [], []>} : vector<32x32xf32>, vector<6x32xf32>, vector<32x6xf32> -> vector<32x6xf32>
    %cst_207 = arith.constant 2.500000e-01 : f32
    %616 = vector.broadcast %cst_207 : f32 to vector<32x6xf32>
    %617 = arith.mulf %615, %616 : vector<32x6xf32>
    %cst_208 = arith.constant dense<0xFF800000> : vector<32xf32>
    %618 = vector.multi_reduction <maximumf>, %617, %cst_208 [1] : vector<32x6xf32> to vector<32xf32>
    %619 = vector.shape_cast %618 : vector<32xf32> to vector<32x1xf32>
    %620 = vector.broadcast %619 : vector<32x1xf32> to vector<32x6xf32>
    %621 = arith.subf %617, %620 : vector<32x6xf32>
    %622 = math.exp %621 : vector<32x6xf32>
    %cst_209 = arith.constant dense<0.000000e+00> : vector<32xf32>
    %623 = vector.multi_reduction <add>, %622, %cst_209 [1] : vector<32x6xf32> to vector<32xf32>
    %624 = vector.shape_cast %623 : vector<32xf32> to vector<32x1xf32>
    %625 = tpu.reciprocal %624 {approx = true} : vector<32x1xf32> -> vector<32x1xf32>
    %626 = vector.broadcast %625 : vector<32x1xf32> to vector<32x6xf32>
    %627 = arith.mulf %622, %626 : vector<32x6xf32>
    %628 = arith.addf %612, %627 : vector<32x6xf32>
    %cst_210 = arith.constant dense<0.000000e+00> : vector<32x32xf32>
    %629 = tpu.matmul %627, %610, %cst_210 {dimension_numbers = #tpu.dot_dimension_numbers<[1], [0], [0], [1], [0, 0, 1, 1], [], []>} : vector<32x6xf32>, vector<6x32xf32>, vector<32x32xf32> -> vector<32x32xf32>
    %630 = vector.broadcast %35 : vector<1x32xf32> to vector<32x32xf32>
    %631 = arith.mulf %629, %630 : vector<32x32xf32>
    %632 = arith.addf %611, %631 : vector<32x32xf32>
    %633 = vector.broadcast %42 : vector<1x32xf32> to vector<32x32xf32>
    %634 = arith.mulf %605, %633 : vector<32x32xf32>
    %cst_211 = arith.constant dense<0.000000e+00> : vector<32x6xf32>
    %635 = tpu.matmul %634, %608, %cst_211 {dimension_numbers = #tpu.dot_dimension_numbers<[1], [1], [0], [0], [0, 0, 1, 0], [], []>} : vector<32x32xf32>, vector<6x32xf32>, vector<32x6xf32> -> vector<32x6xf32>
    %cst_212 = arith.constant 2.500000e-01 : f32
    %636 = vector.broadcast %cst_212 : f32 to vector<32x6xf32>
    %637 = arith.mulf %635, %636 : vector<32x6xf32>
    %cst_213 = arith.constant dense<0xFF800000> : vector<32xf32>
    %638 = vector.multi_reduction <maximumf>, %637, %cst_213 [1] : vector<32x6xf32> to vector<32xf32>
    %639 = vector.shape_cast %638 : vector<32xf32> to vector<32x1xf32>
    %640 = vector.broadcast %639 : vector<32x1xf32> to vector<32x6xf32>
    %641 = arith.subf %637, %640 : vector<32x6xf32>
    %642 = math.exp %641 : vector<32x6xf32>
    %cst_214 = arith.constant dense<0.000000e+00> : vector<32xf32>
    %643 = vector.multi_reduction <add>, %642, %cst_214 [1] : vector<32x6xf32> to vector<32xf32>
    %644 = vector.shape_cast %643 : vector<32xf32> to vector<32x1xf32>
    %645 = tpu.reciprocal %644 {approx = true} : vector<32x1xf32> -> vector<32x1xf32>
    %646 = vector.broadcast %645 : vector<32x1xf32> to vector<32x6xf32>
    %647 = arith.mulf %642, %646 : vector<32x6xf32>
    %648 = arith.addf %628, %647 : vector<32x6xf32>
    %cst_215 = arith.constant dense<0.000000e+00> : vector<32x32xf32>
    %649 = tpu.matmul %647, %610, %cst_215 {dimension_numbers = #tpu.dot_dimension_numbers<[1], [0], [0], [1], [0, 0, 1, 1], [], []>} : vector<32x6xf32>, vector<6x32xf32>, vector<32x32xf32> -> vector<32x32xf32>
    %650 = vector.broadcast %42 : vector<1x32xf32> to vector<32x32xf32>
    %651 = arith.mulf %649, %650 : vector<32x32xf32>
    %652 = arith.addf %632, %651 : vector<32x32xf32>
    %c1088 = arith.constant 1088 : index
    %c0_216 = arith.constant 0 : index
    %653 = vector.load %arg1[%c1088, %c0_216] : memref<1128x128xf32, #tpu.memory_space<vmem>>, vector<32x128xf32>
    %cst_217 = arith.constant dense<0.000000e+00> : vector<32x128xf32>
    %654 = tpu.matmul %652, %653, %cst_217 {dimension_numbers = #tpu.dot_dimension_numbers<[1], [0], [0], [1], [0, 0, 1, 1], [], []>} : vector<32x32xf32>, vector<32x128xf32>, vector<32x128xf32> -> vector<32x128xf32>
    %c1120 = arith.constant 1120 : index
    %c0_218 = arith.constant 0 : index
    %655 = vector.load %arg1[%c1120, %c0_218] : memref<1128x128xf32, #tpu.memory_space<vmem>>, vector<1x128xf32>
    %656 = vector.broadcast %655 : vector<1x128xf32> to vector<32x128xf32>
    %657 = arith.addf %654, %656 : vector<32x128xf32>
    %cst_219 = arith.constant 5.000000e-01 : f32
    %658 = vector.broadcast %cst_219 : f32 to vector<32x6xf32>
    %659 = arith.mulf %648, %658 : vector<32x6xf32>
    %660 = vector.extract_strided_slice %657 {offsets = [0, 0], sizes = [16, 128], strides = [1, 1]} : vector<32x128xf32> to vector<16x128xf32>
    %cst_220 = arith.constant dense<0.000000e+00> : vector<128xf32>
    %661 = vector.multi_reduction <add>, %660, %cst_220 [0] : vector<16x128xf32> to vector<128xf32>
    %662 = vector.shape_cast %661 : vector<128xf32> to vector<1x128xf32>
    %cst_221 = arith.constant 1.600000e+01 : f32
    %663 = vector.broadcast %cst_221 : f32 to vector<1x128xf32>
    %664 = arith.divf %662, %663 : vector<1x128xf32>
    %665 = vector.extract_strided_slice %657 {offsets = [16, 0], sizes = [16, 128], strides = [1, 1]} : vector<32x128xf32> to vector<16x128xf32>
    %cst_222 = arith.constant dense<0.000000e+00> : vector<128xf32>
    %666 = vector.multi_reduction <add>, %665, %cst_222 [0] : vector<16x128xf32> to vector<128xf32>
    %667 = vector.shape_cast %666 : vector<128xf32> to vector<1x128xf32>
    %cst_223 = arith.constant 1.600000e+01 : f32
    %668 = vector.broadcast %cst_223 : f32 to vector<1x128xf32>
    %669 = arith.divf %667, %668 : vector<1x128xf32>
    %670 = tpu.concatenate %664, %669 in 0 : vector<1x128xf32>, vector<1x128xf32> -> vector<2x128xf32>
    %671 = arith.addf %599, %670 : vector<2x128xf32>
    %cst_224 = arith.constant 0.000000e+00 : f32
    %672 = vector.broadcast %cst_224 : f32 to vector<32x122xf32>
    %673 = tpu.concatenate %659, %672 in 1 : vector<32x6xf32>, vector<32x122xf32> -> vector<32x128xf32>
    %cst_225 = arith.constant 0.000000e+00 : f32
    %674 = vector.broadcast %cst_225 : f32 to vector<6x128xf32>
    %675 = tpu.concatenate %671, %674 in 0 : vector<2x128xf32>, vector<6x128xf32> -> vector<8x128xf32>
    %cst_226 = arith.constant 0.000000e+00 : f32
    %676 = vector.broadcast %cst_226 : f32 to vector<2x119xf32>
    %677 = tpu.concatenate %601, %676 in 1 : vector<2x9xf32>, vector<2x119xf32> -> vector<2x128xf32>
    %cst_227 = arith.constant 0.000000e+00 : f32
    %678 = vector.broadcast %cst_227 : f32 to vector<6x128xf32>
    %679 = tpu.concatenate %677, %678 in 0 : vector<2x128xf32>, vector<6x128xf32> -> vector<8x128xf32>
    %cst_228 = arith.constant 0.000000e+00 : f32
    %680 = vector.broadcast %cst_228 : f32 to vector<2x119xf32>
    %681 = tpu.concatenate %603, %680 in 1 : vector<2x9xf32>, vector<2x119xf32> -> vector<2x128xf32>
    %cst_229 = arith.constant 0.000000e+00 : f32
    %682 = vector.broadcast %cst_229 : f32 to vector<6x128xf32>
    %683 = tpu.concatenate %681, %682 in 0 : vector<2x128xf32>, vector<6x128xf32> -> vector<8x128xf32>
    %684 = tpu.concatenate %673, %675, %679, %683 in 0 : vector<32x128xf32>, vector<8x128xf32>, vector<8x128xf32>, vector<8x128xf32> -> vector<56x128xf32>
    %c0_230 = arith.constant 0 : index
    %c0_231 = arith.constant 0 : index
    %685 = vector.load %arg2[%c0_230, %c0_231] : memref<56x128xf32, #tpu.memory_space<vmem>>, vector<56x128xf32>
    tpu.vector_store %arg2[%c0_230, %c0_231], %684 {strides = array<i32>} : memref<56x128xf32, #tpu.memory_space<vmem>>, vector<56x128xf32>,
    return
  }
}

</mosaic_0001>

<llo_original>
// kernel: cvit_forward.1
$region0: #{cvit_forward.1}
  #allocation0 [shape = 'u32[]', space=smem, size = 0x4, offset = 0x4, fixed_abs, tag = 'smem constant byte address 0x4 - core index']
  #allocation1 [shape = 'u32[144,128]{1,0:T(1,128)}', space=vmem, size = 0x12000, scoped, tag = 'internal scratch']
  %s0 = inlined_call_operand.vmem [shape: f32[32,48], index: 0, kind: input, shape index: {}]
  %s1 = inlined_call_operand.vmem [shape: f32[1128,128], index: 1, kind: input, shape index: {}]
  %s2 = inlined_call_operand.vmem [shape: f32[56,128], index: 2, kind: output, shape index: {}]
  %s3 = sld [smem:[#allocation0]]
  $region18: #{cvit_forward.1} parent=0
    _
  %s5 = ssub.s32 1, %s3
  %s6 = scalar_select 0, %s5, %s3
  // Predicated region
  $region2: #{cvit_forward.1} parent=0 // pred_check
    _
  $region3: #{cvit_forward.1} parent=0 // pred_check_branch
    %8 = sbr.rel (0) target = $region5
  $region4: #{cvit_forward.1} parent=0 // pred_region
    _
  $region5: #{cvit_forward.1} parent=0 // pred_fallthru
    _
  // Predicated region
  $region6: #{cvit_forward.1} parent=0 // pred_check
    _
  $region7: #{cvit_forward.1} parent=0 // pred_check_branch
    %10 = sbr.rel (0) target = $region9
  $region8: #{cvit_forward.1} parent=0 // pred_region
    _
  $region9: #{cvit_forward.1} parent=0 // pred_fallthru
    _
  %v11 = vlaneseq
  %v12 = vand.u32 %v11, 127
  %vm13 = vcmp.ge.s32.totalorder %v12, 0
  %vm14 = vcmp.lt.s32.totalorder %v12, 8
  %vm15 = vmand %vm13, %vm14
  %v16 = vsel %vm15, 1, 0
  %v17 = vcvt.s32.f32 %v16
  %vm18 = vcmp.ge.s32.totalorder %v12, 8
  %vm19 = vcmp.lt.s32.totalorder %v12, 16
  %vm20 = vmand %vm18, %vm19
  %v21 = vsel %vm20, 1, 0
  %v22 = vcvt.s32.f32 %v21
  %vm23 = vcmp.ge.s32.totalorder %v12, 16
  %vm24 = vcmp.lt.s32.totalorder %v12, 24
  %vm25 = vmand %vm23, %vm24
  %v26 = vsel %vm25, 1, 0
  %v27 = vcvt.s32.f32 %v26
  %vm28 = vcmp.ge.s32.totalorder %v12, 24
  %vm29 = vcmp.lt.s32.totalorder %v12, 32
  %vm30 = vmand %vm28, %vm29
  %v31 = vsel %vm30, 1, 0
  %v32 = vcvt.s32.f32 %v31
  %vm33 = vmand %vm13, %vm19
  %v34 = vsel %vm33, 1, 0
  %v35 = vcvt.s32.f32 %v34
  %vm36 = vmand %vm23, %vm29
  %v37 = vsel %vm36, 1, 0
  %v38 = vcvt.s32.f32 %v37
  %v39 = vlaneseq
  %v40 = vshrl.u32 %v39, 7
  %v41 = vadd.s32 %v40, 8
  %v42 = vadd.s32 %v40, 16
  %v43 = vadd.s32 %v40, 24
  %v44 = vadd.s32 %v40, 32
  %vm45 = vcmp.ge.s32.totalorder %v40, 24
  %vm46 = vcmp.ge.s32.totalorder %v41, 24
  %vm47 = vcmp.ge.s32.totalorder %v42, 24
  %vm48 = vcmp.ge.s32.totalorder %v43, 24
  %vm49 = vcmp.ge.s32.totalorder %v44, 24
  %v50 = vsel %vm45, 1, 0
  %v51 = vsel %vm46, 1, 0
  %v52 = vsel %vm47, 1, 0
  %v53 = vsel %vm48, 1, 0
  %v54 = vsel %vm49, 1, 0
  %vm55 = vcmp.lt.s32.totalorder %v40, 8
  %vm56 = vcmp.lt.s32.totalorder %v41, 8
  %vm57 = vcmp.lt.s32.totalorder %v42, 8
  %vm58 = vcmp.lt.s32.totalorder %v43, 8
  %vm59 = vcmp.lt.s32.totalorder %v44, 8
  %v60 = vsel %vm55, %v40, %v50
  %v61 = vsel %vm56, %v41, %v51
  %v62 = vsel %vm57, %v42, %v52
  %v63 = vsel %vm58, %v43, %v53
  %v64 = vsel %vm59, %v44, %v54
  %v65 = vsel %vm28, 1, 0
  %v66 = vsel %vm14, %v12, %v65
  %vm67 = vcmp.eq.s32.totalorder %v60, %v66
  %vm68 = vcmp.eq.s32.totalorder %v61, %v66
  %vm69 = vcmp.eq.s32.totalorder %v62, %v66
  %vm70 = vcmp.eq.s32.totalorder %v63, %v66
  %vm71 = vcmp.eq.s32.totalorder %v64, %v66
  %v72 = vsel %vm67, 0.0, -1e+30
  %v73 = vsel %vm68, 0.0, -1e+30
  %v74 = vsel %vm69, 0.0, -1e+30
  %v75 = vsel %vm70, 0.0, -1e+30
  %v76 = vsel %vm71, 0.0, -1e+30
  %v77 = vld [vmem:[%s0] sm:$0xff]
  %v78 = vld [vmem:[%s0 + $0x8] sm:$0xff]
  %v79 = vld [vmem:[%s0 + $0x10] sm:$0xff]
  %v80 = vld [vmem:[%s0 + $0x18] sm:$0xff]
  %v81 = vld [vmem:[%s1] sm:$0xff]
  %v82 = vld [vmem:[%s1 + $0x8] sm:$0xff]
  %v83 = vld [vmem:[%s1 + $0x10] sm:$0xff]
  %v84 = vld [vmem:[%s1 + $0x18] sm:$0xff]
  %v85 = vld [vmem:[%s1 + $0x20] sm:$0xff]
  %v86 = vld [vmem:[%s1 + $0x28] sm:$0xff]
  %v87 = vld [vmem:[%s1 + $0x30] sm:$0x1]
  %v88 = vlaneseq
  %v89 = vshrl.u32 %v88, 7
  %v90 = vsub.s32 0, %v89
  %v91 = vrot.slane %v87, %v90
  %vm92 = vcmask 392192
  %v94 = vsel %vm92, %v77, 0
  %v97 = vsel %vm92, %v78, 0
  %v100 = vsel %vm92, %v79, 0
  %v103 = vsel %vm92, %v80, 0
  %105 = vmatprep.subr.mxu0 0.0
  %106 = vmatpush1.msra.mxu0 %v81
  %107 = vmatprep.subr.mxu0 0.0
  %108 = vmatpush1.msra.mxu0 %v82
  %109 = vmatprep.subr.mxu0 0.0
  %110 = vmatpush1.msra.mxu0 %v83
  %111 = vmatprep.subr.mxu0 0.0
  %112 = vmatpush1.msra.mxu0 %v84
  %113 = vmatprep.subr.mxu0 0.0
  %114 = vmatpush1.msra.mxu0 %v85
  %115 = vmatprep.subr.mxu0 0.0
  %116 = vmatpush1.msra.mxu0 %v86
  %117 = vmatprep.subr.mxu0 0.0
  %118 = vmatpush1.msra.mxu0 0.0
  %119 = vmatprep.subr.mxu0 0.0
  %120 = vmatpush1.msra.mxu0 0.0
  %121 = vmatprep.subr.mxu0 0.0
  %122 = vmatpush1.msra.mxu0 0.0
  %123 = vmatprep.subr.mxu0 0.0
  %124 = vmatpush1.msra.mxu0 0.0
  %125 = vmatprep.subr.mxu0 0.0
  %126 = vmatpush1.msra.mxu0 0.0
  %127 = vmatprep.subr.mxu0 0.0
  %128 = vmatpush1.msra.mxu0 0.0
  %129 = vmatprep.subr.mxu0 0.0
  %130 = vmatpush1.msra.mxu0 0.0
  %131 = vmatprep.subr.mxu0 0.0
  %132 = vmatpush1.msra.mxu0 0.0
  %133 = vmatprep.subr.mxu0 0.0
  %134 = vmatpush1.msra.mxu0 0.0
  %135 = vmatprep.subr.mxu0 0.0
  %136 = vmatpush1.msra.mxu0 0.0
  %137 = vmatprep.subr.mxu0 0.0
  %138 = vmatpush1.msra.mxu0 0.0
  %139 = vmatprep.subr.mxu0 0.0
  %140 = vmatpush1.msra.mxu0 0.0
  %141 = vmatprep.subr.mxu0 0.0
  %142 = vmatpush1.msra.mxu0 0.0
  %143 = vmatprep.subr.mxu0 0.0
  %144 = vmatpush1.msra.mxu0 0.0
  %145 = vmatprep.subr.mxu0 0.0
  %146 = vmatpush1.msra.mxu0 0.0
  %147 = vmatprep.subr.mxu0 0.0
  %148 = vmatpush1.msra.mxu0 0.0
  %149 = vmatprep.subr.mxu0 0.0
  %150 = vmatpush1.msra.mxu0 0.0
  %151 = vmatprep.subr.mxu0 0.0
  %152 = vmatpush1.msra.mxu0 0.0
  %153 = vmatprep.subr.mxu0 0.0
  %154 = vmatpush1.msra.mxu0 0.0
  %155 = vmatprep.subr.mxu0 0.0
  %156 = vmatpush1.msra.mxu0 0.0
  %157 = vmatprep.subr.mxu0 0.0
  %158 = vmatpush1.msra.mxu0 0.0
  %159 = vmatprep.subr.mxu0 0.0
  %160 = vmatpush1.msra.mxu0 0.0
  %161 = vmatprep.subr.mxu0 0.0
  %162 = vmatpush1.msra.mxu0 0.0
  %163 = vmatprep.subr.mxu0 0.0
  %164 = vmatpush1.msra.mxu0 0.0
  %165 = vmatprep.subr.mxu0 0.0
  %166 = vmatpush1.msra.mxu0 0.0
  %167 = vmatprep.subr.mxu0 0.0
  %168 = vmatpush1.msra.mxu0 0.0
  %169 = vmatprep.mubr.f32.mxu0 0.0
  %170 = vmatmul.mubr.f32.gmra.mrb[0].mxu0 %v94
  %v171 = vpop.f32.mrb[0].mxu0
  %v172 = vadd.f32 %v91, %v171
  %v173 = vpop.f32.mrb[0].mxu0
  %174 = vmatprep.mubr.f32.mxu0 0.0
  %175 = vmatmul.mubr.f32.gmra.mrb[0].mxu0 %v97
  %v176 = vpop.f32.mrb[0].mxu0
  %v177 = vadd.f32 %v91, %v176
  %v178 = vpop.f32.mrb[0].mxu0
  %179 = vmatprep.mubr.f32.mxu0 0.0
  %180 = vmatmul.mubr.f32.gmra.mrb[0].mxu0 %v100
  %v181 = vpop.f32.mrb[0].mxu0
  %v182 = vadd.f32 %v91, %v181
  %v183 = vpop.f32.mrb[0].mxu0
  %184 = vmatprep.mubr.f32.mxu0 0.0
  %185 = vmatmul.mubr.f32.gmra.mrb[0].mxu0 %v103
  %v186 = vpop.f32.mrb[0].mxu0
  %v187 = vadd.f32 %v91, %v186
  %v188 = vpop.f32.mrb[0].mxu0
  %189 = vdwg.mxu0
  %v190 = vld [vmem:[%s1 + $0x40] sm:$0xff]
  %v191 = vld [vmem:[%s1 + $0x48] sm:$0xff]
  %v192 = vadd.f32 %v172, %v190
  %v193 = vadd.f32 %v177, %v191
  %v194 = vadd.f32 %v182, %v190
  %v195 = vadd.f32 %v187, %v191
  %v196 = vld [vmem:[%s1 + $0x38] sm:$0x1]
  %v197 = vlaneseq
  %v198 = vshrl.u32 %v197, 7
  %v199 = vsub.s32 0, %v198
  %v200 = vrot.slane %v196, %v199
  %v201 = vld [vmem:[%s1 + $0x50] sm:$0x1]
  %v202 = vld [vmem:[%s1 + $0x58] sm:$0x1]
  %vm203 = vcmask 261120
  %v204 = vsel %vm203, %v200, 0.0
  %205 = vadd.xlane.f32.xlu0 %v204
  %v206 = vpop.xlane.xlu0 %205
  %v207 = vsel %vm203, %v192, 0.0
  %208 = vadd.xlane.f32.xlu0 %v207
  %v209 = vpop.xlane.xlu0 %208
  %v210 = vsel %vm203, %v193, 0.0
  %211 = vadd.xlane.f32.xlu0 %v210
  %v212 = vpop.xlane.xlu0 %211
  %v213 = vsel %vm203, %v194, 0.0
  %214 = vadd.xlane.f32.xlu0 %v213
  %v215 = vpop.xlane.xlu0 %214
  %v216 = vsel %vm203, %v195, 0.0
  %217 = vadd.xlane.f32.xlu0 %v216
  %v218 = vpop.xlane.xlu0 %217
  %v219 = vrcp.pop 32.0
  %v220 = vmul.f32 %v206, %v219
  %v221 = vmul.f32 %v209, %v219
  %v222 = vmul.f32 %v212, %v219
  %v223 = vmul.f32 %v215, %v219
  %v224 = vmul.f32 %v218, %v219
  %v225 = vsub.f32 %v200, %v220
  %v226 = vsub.f32 %v192, %v221
  %v227 = vsub.f32 %v193, %v222
  %v228 = vsub.f32 %v194, %v223
  %v229 = vsub.f32 %v195, %v224
  %v230 = vmul.f32 %v225, %v225
  %v231 = vmul.f32 %v226, %v226
  %v232 = vmul.f32 %v227, %v227
  %v233 = vmul.f32 %v228, %v228
  %v234 = vmul.f32 %v229, %v229
  %v235 = vsel %vm203, %v230, 0.0
  %236 = vadd.xlane.f32.xlu0 %v235
  %v237 = vpop.xlane.xlu0 %236
  %v238 = vsel %vm203, %v231, 0.0
  %239 = vadd.xlane.f32.xlu0 %v238
  %v240 = vpop.xlane.xlu0 %239
  %v241 = vsel %vm203, %v232, 0.0
  %242 = vadd.xlane.f32.xlu0 %v241
  %v243 = vpop.xlane.xlu0 %242
  %v244 = vsel %vm203, %v233, 0.0
  %245 = vadd.xlane.f32.xlu0 %v244
  %v246 = vpop.xlane.xlu0 %245
  %v247 = vsel %vm203, %v234, 0.0
  %248 = vadd.xlane.f32.xlu0 %v247
  %v249 = vpop.xlane.xlu0 %248
  %v250 = vmul.f32 %v237, %v219
  %v251 = vmul.f32 %v240, %v219
  %v252 = vmul.f32 %v243, %v219
  %v253 = vmul.f32 %v246, %v219
  %v254 = vmul.f32 %v249, %v219
  %v255 = vadd.f32 %v250, 1e-06
  %v256 = vadd.f32 %v251, 1e-06
  %v257 = vadd.f32 %v252, 1e-06
  %v258 = vadd.f32 %v253, 1e-06
  %v259 = vadd.f32 %v254, 1e-06
  %v260 = vrsqrt.pop %v255
  %v261 = vrsqrt.pop %v256
  %v262 = vrsqrt.pop %v257
  %v263 = vrsqrt.pop %v258
  %v264 = vrsqrt.pop %v259
  %v265 = vmul.f32 %v225, %v260
  %v266 = vmul.f32 %v226, %v261
  %v267 = vmul.f32 %v227, %v262
  %v268 = vmul.f32 %v228, %v263
  %v269 = vmul.f32 %v229, %v264
  %v270 = vlaneseq
  %v271 = vshrl.u32 %v270, 7
  %v272 = vsub.s32 0, %v271
  %v273 = vrot.slane %v201, %v272
  %v274 = vmul.f32 %v265, %v273
  %v275 = vmul.f32 %v266, %v273
  %v276 = vmul.f32 %v267, %v273
  %v277 = vmul.f32 %v268, %v273
  %v278 = vmul.f32 %v269, %v273
  %v279 = vlaneseq
  %v280 = vshrl.u32 %v279, 7
  %v281 = vsub.s32 0, %v280
  %v282 = vrot.slane %v202, %v281
  %v283 = vadd.f32 %v274, %v282
  %v284 = vadd.f32 %v275, %v282
  %v285 = vadd.f32 %v276, %v282
  %v286 = vadd.f32 %v277, %v282
  %v287 = vadd.f32 %v278, %v282
  %v288 = vld [vmem:[%s1 + $0x60] sm:$0xff]
  %v289 = vld [vmem:[%s1 + $0x68] sm:$0xff]
  %v290 = vld [vmem:[%s1 + $0x70] sm:$0xff]
  %v291 = vld [vmem:[%s1 + $0x78] sm:$0xff]
  %v292 = vld [vmem:[%s1 + $0xc0] sm:$0x1]
  %v293 = vlaneseq
  %v294 = vshrl.u32 %v293, 7
  %v295 = vsub.s32 0, %v294
  %v296 = vrot.slane %v292, %v295
  %v298 = vsel %vm203, %v283, 0
  %v301 = vsel %vm203, %v284, 0
  %v304 = vsel %vm203, %v285, 0
  %v307 = vsel %vm203, %v286, 0
  %v310 = vsel %vm203, %v287, 0
  %312 = vmatprep.subr.mxu0 0.0
  %313 = vmatpush1.msra.mxu0 %v288
  %314 = vmatprep.subr.mxu0 0.0
  %315 = vmatpush1.msra.mxu0 %v289
  %316 = vmatprep.subr.mxu0 0.0
  %317 = vmatpush1.msra.mxu0 %v290
  %318 = vmatprep.subr.mxu0 0.0
  %319 = vmatpush1.msra.mxu0 %v291
  %320 = vmatprep.subr.mxu0 0.0
  %321 = vmatpush1.msra.mxu0 0.0
  %322 = vmatprep.subr.mxu0 0.0
  %323 = vmatpush1.msra.mxu0 0.0
  %324 = vmatprep.subr.mxu0 0.0
  %325 = vmatpush1.msra.mxu0 0.0
  %326 = vmatprep.subr.mxu0 0.0
  %327 = vmatpush1.msra.mxu0 0.0
  %328 = vmatprep.subr.mxu0 0.0
  %329 = vmatpush1.msra.mxu0 0.0
  %330 = vmatprep.subr.mxu0 0.0
  %331 = vmatpush1.msra.mxu0 0.0
  %332 = vmatprep.subr.mxu0 0.0
  %333 = vmatpush1.msra.mxu0 0.0
  %334 = vmatprep.subr.mxu0 0.0
  %335 = vmatpush1.msra.mxu0 0.0
  %336 = vmatprep.subr.mxu0 0.0
  %337 = vmatpush1.msra.mxu0 0.0
  %338 = vmatprep.subr.mxu0 0.0
  %339 = vmatpush1.msra.mxu0 0.0
  %340 = vmatprep.subr.mxu0 0.0
  %341 = vmatpush1.msra.mxu0 0.0
  %342 = vmatprep.subr.mxu0 0.0
  %343 = vmatpush1.msra.mxu0 0.0
  %344 = vmatprep.subr.mxu0 0.0
  %345 = vmatpush1.msra.mxu0 0.0
  %346 = vmatprep.subr.mxu0 0.0
  %347 = vmatpush1.msra.mxu0 0.0
  %348 = vmatprep.subr.mxu0 0.0
  %349 = vmatpush1.msra.mxu0 0.0
  %350 = vmatprep.subr.mxu0 0.0
  %351 = vmatpush1.msra.mxu0 0.0
  %352 = vmatprep.subr.mxu0 0.0
  %353 = vmatpush1.msra.mxu0 0.0
  %354 = vmatprep.subr.mxu0 0.0
  %355 = vmatpush1.msra.mxu0 0.0
  %356 = vmatprep.subr.mxu0 0.0
  %357 = vmatpush1.msra.mxu0 0.0
  %358 = vmatprep.subr.mxu0 0.0
  %359 = vmatpush1.msra.mxu0 0.0
  %360 = vmatprep.subr.mxu0 0.0
  %361 = vmatpush1.msra.mxu0 0.0
  %362 = vmatprep.subr.mxu0 0.0
  %363 = vmatpush1.msra.mxu0 0.0
  %364 = vmatprep.subr.mxu0 0.0
  %365 = vmatpush1.msra.mxu0 0.0
  %366 = vmatprep.subr.mxu0 0.0
  %367 = vmatpush1.msra.mxu0 0.0
  %368 = vmatprep.subr.mxu0 0.0
  %369 = vmatpush1.msra.mxu0 0.0
  %370 = vmatprep.subr.mxu0 0.0
  %371 = vmatpush1.msra.mxu0 0.0
  %372 = vmatprep.subr.mxu0 0.0
  %373 = vmatpush1.msra.mxu0 0.0
  %374 = vmatprep.subr.mxu0 0.0
  %375 = vmatpush1.msra.mxu0 0.0
  %376 = vmatprep.mubr.f32.mxu0 0.0
  %377 = vmatmul.mubr.f32.gmra.mrb[0].mxu0 %v298
  %v378 = vpop.f32.mrb[0].mxu0
  %v379 = vadd.f32 %v296, %v378
  %v380 = vpop.f32.mrb[0].mxu0
  %381 = vmatprep.mubr.f32.mxu0 0.0
  %382 = vmatmul.mubr.f32.gmra.mrb[0].mxu0 %v301
  %v383 = vpop.f32.mrb[0].mxu0
  %v384 = vadd.f32 %v296, %v383
  %v385 = vpop.f32.mrb[0].mxu0
  %386 = vmatprep.mubr.f32.mxu0 0.0
  %387 = vmatmul.mubr.f32.gmra.mrb[0].mxu0 %v304
  %v388 = vpop.f32.mrb[0].mxu0
  %v389 = vadd.f32 %v296, %v388
  %v390 = vpop.f32.mrb[0].mxu0
  %391 = vmatprep.mubr.f32.mxu0 0.0
  %392 = vmatmul.mubr.f32.gmra.mrb[0].mxu0 %v307
  %v393 = vpop.f32.mrb[0].mxu0
  %v394 = vadd.f32 %v296, %v393
  %v395 = vpop.f32.mrb[0].mxu0
  %396 = vmatprep.mubr.f32.mxu0 0.0
  %397 = vmatmul.mubr.f32.gmra.mrb[0].mxu0 %v310
  %v398 = vpop.f32.mrb[0].mxu0
  %v399 = vadd.f32 %v296, %v398
  %v400 = vpop.f32.mrb[0].mxu0
  %401 = vdwg.mxu0
  %v402 = vld [vmem:[%s1 + $0x80] sm:$0xff]
  %v403 = vld [vmem:[%s1 + $0x88] sm:$0xff]
  %v404 = vld [vmem:[%s1 + $0x90] sm:$0xff]
  %v405 = vld [vmem:[%s1 + $0x98] sm:$0xff]
  %v406 = vld [vmem:[%s1 + $0xc8] sm:$0x1]
  %v407 = vlaneseq
  %v408 = vshrl.u32 %v407, 7
  %v409 = vsub.s32 0, %v408
  %v410 = vrot.slane %v406, %v409
  %411 = vmatprep.subr.mxu0 0.0
  %412 = vmatpush1.msra.mxu0 %v402
  %413 = vmatprep.subr.mxu0 0.0
  %414 = vmatpush1.msra.mxu0 %v403
  %415 = vmatprep.subr.mxu0 0.0
  %416 = vmatpush1.msra.mxu0 %v404
  %417 = vmatprep.subr.mxu0 0.0
  %418 = vmatpush1.msra.mxu0 %v405
  %419 = vmatprep.subr.mxu0 0.0
  %420 = vmatpush1.msra.mxu0 0.0
  %421 = vmatprep.subr.mxu0 0.0
  %422 = vmatpush1.msra.mxu0 0.0
  %423 = vmatprep.subr.mxu0 0.0
  %424 = vmatpush1.msra.mxu0 0.0
  %425 = vmatprep.subr.mxu0 0.0
  %426 = vmatpush1.msra.mxu0 0.0
  %427 = vmatprep.subr.mxu0 0.0
  %428 = vmatpush1.msra.mxu0 0.0
  %429 = vmatprep.subr.mxu0 0.0
  %430 = vmatpush1.msra.mxu0 0.0
  %431 = vmatprep.subr.mxu0 0.0
  %432 = vmatpush1.msra.mxu0 0.0
  %433 = vmatprep.subr.mxu0 0.0
  %434 = vmatpush1.msra.mxu0 0.0
  %435 = vmatprep.subr.mxu0 0.0
  %436 = vmatpush1.msra.mxu0 0.0
  %437 = vmatprep.subr.mxu0 0.0
  %438 = vmatpush1.msra.mxu0 0.0
  %439 = vmatprep.subr.mxu0 0.0
  %440 = vmatpush1.msra.mxu0 0.0
  %441 = vmatprep.subr.mxu0 0.0
  %442 = vmatpush1.msra.mxu0 0.0
  %443 = vmatprep.subr.mxu0 0.0
  %444 = vmatpush1.msra.mxu0 0.0
  %445 = vmatprep.subr.mxu0 0.0
  %446 = vmatpush1.msra.mxu0 0.0
  %447 = vmatprep.subr.mxu0 0.0
  %448 = vmatpush1.msra.mxu0 0.0
  %449 = vmatprep.subr.mxu0 0.0
  %450 = vmatpush1.msra.mxu0 0.0
  %451 = vmatprep.subr.mxu0 0.0
  %452 = vmatpush1.msra.mxu0 0.0
  %453 = vmatprep.subr.mxu0 0.0
  %454 = vmatpush1.msra.mxu0 0.0
  %455 = vmatprep.subr.mxu0 0.0
  %456 = vmatpush1.msra.mxu0 0.0
  %457 = vmatprep.subr.mxu0 0.0
  %458 = vmatpush1.msra.mxu0 0.0
  %459 = vmatprep.subr.mxu0 0.0
  %460 = vmatpush1.msra.mxu0 0.0
  %461 = vmatprep.subr.mxu0 0.0
  %462 = vmatpush1.msra.mxu0 0.0
  %463 = vmatprep.subr.mxu0 0.0
  %464 = vmatpush1.msra.mxu0 0.0
  %465 = vmatprep.subr.mxu0 0.0
  %466 = vmatpush1.msra.mxu0 0.0
  %467 = vmatprep.subr.mxu0 0.0
  %468 = vmatpush1.msra.mxu0 0.0
  %469 = vmatprep.subr.mxu0 0.0
  %470 = vmatpush1.msra.mxu0 0.0
  %471 = vmatprep.subr.mxu0 0.0
  %472 = vmatpush1.msra.mxu0 0.0
  %473 = vmatprep.subr.mxu0 0.0
  %474 = vmatpush1.msra.mxu0 0.0
  %475 = vmatprep.mubr.f32.mxu0 0.0
  %476 = vmatmul.mubr.f32.gmra.mrb[0].mxu0 %v298
  %v477 = vpop.f32.mrb[0].mxu0
  %v478 = vadd.f32 %v410, %v477
  %v479 = vpop.f32.mrb[0].mxu0
  %480 = vmatprep.mubr.f32.mxu0 0.0
  %481 = vmatmul.mubr.f32.gmra.mrb[0].mxu0 %v301
  %v482 = vpop.f32.mrb[0].mxu0
  %v483 = vadd.f32 %v410, %v482
  %v484 = vpop.f32.mrb[0].mxu0
  %485 = vmatprep.mubr.f32.mxu0 0.0
  %486 = vmatmul.mubr.f32.gmra.mrb[0].mxu0 %v304
  %v487 = vpop.f32.mrb[0].mxu0
  %v488 = vadd.f32 %v410, %v487
  %v489 = vpop.f32.mrb[0].mxu0
  %490 = vmatprep.mubr.f32.mxu0 0.0
  %491 = vmatmul.mubr.f32.gmra.mrb[0].mxu0 %v307
  %v492 = vpop.f32.mrb[0].mxu0
  %v493 = vadd.f32 %v410, %v492
  %v494 = vpop.f32.mrb[0].mxu0
  %495 = vmatprep.mubr.f32.mxu0 0.0
  %496 = vmatmul.mubr.f32.gmra.mrb[0].mxu0 %v310
  %v497 = vpop.f32.mrb[0].mxu0
  %v498 = vadd.f32 %v410, %v497
  %v499 = vpop.f32.mrb[0].mxu0
  %500 = vdwg.mxu0
  %v501 = vld [vmem:[%s1 + $0xa0] sm:$0xff]
  %v502 = vld [vmem:[%s1 + $0xa8] sm:$0xff]
  %v503 = vld [vmem:[%s1 + $0xb0] sm:$0xff]
  %v504 = vld [vmem:[%s1 + $0xb8] sm:$0xff]
  %v505 = vld [vmem:[%s1 + $0xd0] sm:$0x1]
  %v506 = vlaneseq
  %v507 = vshrl.u32 %v506, 7
  %v508 = vsub.s32 0, %v507
  %v509 = vrot.slane %v505, %v508
  %510 = vmatprep.subr.mxu0 0.0
  %511 = vmatpush1.msra.mxu0 %v501
  %512 = vmatprep.subr.mxu0 0.0
  %513 = vmatpush1.msra.mxu0 %v502
  %514 = vmatprep.subr.mxu0 0.0
  %515 = vmatpush1.msra.mxu0 %v503
  %516 = vmatprep.subr.mxu0 0.0
  %517 = vmatpush1.msra.mxu0 %v504
  %518 = vmatprep.subr.mxu0 0.0
  %519 = vmatpush1.msra.mxu0 0.0
  %520 = vmatprep.subr.mxu0 0.0
  %521 = vmatpush1.msra.mxu0 0.0
  %522 = vmatprep.subr.mxu0 0.0
  %523 = vmatpush1.msra.mxu0 0.0
  %524 = vmatprep.subr.mxu0 0.0
  %525 = vmatpush1.msra.mxu0 0.0
  %526 = vmatprep.subr.mxu0 0.0
  %527 = vmatpush1.msra.mxu0 0.0
  %528 = vmatprep.subr.mxu0 0.0
  %529 = vmatpush1.msra.mxu0 0.0
  %530 = vmatprep.subr.mxu0 0.0
  %531 = vmatpush1.msra.mxu0 0.0
  %532 = vmatprep.subr.mxu0 0.0
  %533 = vmatpush1.msra.mxu0 0.0
  %534 = vmatprep.subr.mxu0 0.0
  %535 = vmatpush1.msra.mxu0 0.0
  %536 = vmatprep.subr.mxu0 0.0
  %537 = vmatpush1.msra.mxu0 0.0
  %538 = vmatprep.subr.mxu0 0.0
  %539 = vmatpush1.msra.mxu0 0.0
  %540 = vmatprep.subr.mxu0 0.0
  %541 = vmatpush1.msra.mxu0 0.0
  %542 = vmatprep.subr.mxu0 0.0
  %543 = vmatpush1.msra.mxu0 0.0
  %544 = vmatprep.subr.mxu0 0.0
  %545 = vmatpush1.msra.mxu0 0.0
  %546 = vmatprep.subr.mxu0 0.0
  %547 = vmatpush1.msra.mxu0 0.0
  %548 = vmatprep.subr.mxu0 0.0
  %549 = vmatpush1.msra.mxu0 0.0
  %550 = vmatprep.subr.mxu0 0.0
  %551 = vmatpush1.msra.mxu0 0.0
  %552 = vmatprep.subr.mxu0 0.0
  %553 = vmatpush1.msra.mxu0 0.0
  %554 = vmatprep.subr.mxu0 0.0
  %555 = vmatpush1.msra.mxu0 0.0
  %556 = vmatprep.subr.mxu0 0.0
  %557 = vmatpush1.msra.mxu0 0.0
  %558 = vmatprep.subr.mxu0 0.0
  %559 = vmatpush1.msra.mxu0 0.0
  %560 = vmatprep.subr.mxu0 0.0
  %561 = vmatpush1.msra.mxu0 0.0
  %562 = vmatprep.subr.mxu0 0.0
  %563 = vmatpush1.msra.mxu0 0.0
  %564 = vmatprep.subr.mxu0 0.0
  %565 = vmatpush1.msra.mxu0 0.0
  %566 = vmatprep.subr.mxu0 0.0
  %567 = vmatpush1.msra.mxu0 0.0
  %568 = vmatprep.subr.mxu0 0.0
  %569 = vmatpush1.msra.mxu0 0.0
  %570 = vmatprep.subr.mxu0 0.0
  %571 = vmatpush1.msra.mxu0 0.0
  %572 = vmatprep.subr.mxu0 0.0
  %573 = vmatpush1.msra.mxu0 0.0
  %574 = vmatprep.mubr.f32.mxu0 0.0
  %575 = vmatmul.mubr.f32.gmra.mrb[0].mxu0 %v298
  %v576 = vpop.f32.mrb[0].mxu0
  %v577 = vadd.f32 %v509, %v576
  %v578 = vpop.f32.mrb[0].mxu0
  %579 = vmatprep.mubr.f32.mxu0 0.0
  %580 = vmatmul.mubr.f32.gmra.mrb[0].mxu0 %v301
  %v581 = vpop.f32.mrb[0].mxu0
  %v582 = vadd.f32 %v509, %v581
  %v583 = vpop.f32.mrb[0].mxu0
  %584 = vmatprep.mubr.f32.mxu0 0.0
  %585 = vmatmul.mubr.f32.gmra.mrb[0].mxu0 %v304
  %v586 = vpop.f32.mrb[0].mxu0
  %v587 = vadd.f32 %v509, %v586
  %v588 = vpop.f32.mrb[0].mxu0
  %589 = vmatprep.mubr.f32.mxu0 0.0
  %590 = vmatmul.mubr.f32.gmra.mrb[0].mxu0 %v307
  %v591 = vpop.f32.mrb[0].mxu0
  %v592 = vadd.f32 %v509, %v591
  %v593 = vpop.f32.mrb[0].mxu0
  %594 = vmatprep.mubr.f32.mxu0 0.0
  %595 = vmatmul.mubr.f32.gmra.mrb[0].mxu0 %v310
  %v596 = vpop.f32.mrb[0].mxu0
  %v597 = vadd.f32 %v509, %v596
  %v598 = vpop.f32.mrb[0].mxu0
  %599 = vdwg.mxu0
  %v600 = vmul.f32 %v379, %v17
  %v601 = vmul.f32 %v384, %v17
  %v602 = vmul.f32 %v389, %v17
  %v603 = vmul.f32 %v394, %v17
  %v604 = vmul.f32 %v399, %v17
  %v606 = vsel %vm203, %v600, 0
  %v609 = vsel %vm203, %v601, 0
  %v612 = vsel %vm203, %v602, 0
  %v615 = vsel %vm203, %v603, 0
  %v618 = vsel %vm203, %v604, 0
  %v621 = vsel %vm203, %v478, 0
  %v624 = vsel %vm203, %v483, 0
  %v627 = vsel %vm203, %v488, 0
  %v630 = vsel %vm203, %v493, 0
  %v633 = vsel %vm203, %v498, 0
  %635 = vmatprep.subr.mxu0 0.0
  %636 = vmatpush1.xpose.msra.mxu0 %v621
  %637 = vmatprep.subr.mxu0 0.0
  %638 = vmatpush1.xpose.msra.mxu0 %v624
  %639 = vmatprep.subr.mxu0 0.0
  %640 = vmatpush1.xpose.msra.mxu0 %v627
  %641 = vmatprep.subr.mxu0 0.0
  %642 = vmatpush1.xpose.msra.mxu0 %v630
  %643 = vmatprep.subr.mxu0 0.0
  %644 = vmatpush1.xpose.msra.mxu0 %v633
  %645 = vmatprep.subr.mxu0 0.0
  %646 = vmatpush1.xpose.msra.mxu0 0.0
  %647 = vmatprep.subr.mxu0 0.0
  %648 = vmatpush1.xpose.msra.mxu0 0.0
  %649 = vmatprep.subr.mxu0 0.0
  %650 = vmatpush1.xpose.msra.mxu0 0.0
  %651 = vmatprep.subr.mxu0 0.0
  %652 = vmatpush1.xpose.msra.mxu0 0.0
  %653 = vmatprep.subr.mxu0 0.0
  %654 = vmatpush1.xpose.msra.mxu0 0.0
  %655 = vmatprep.subr.mxu0 0.0
  %656 = vmatpush1.xpose.msra.mxu0 0.0
  %657 = vmatprep.subr.mxu0 0.0
  %658 = vmatpush1.xpose.msra.mxu0 0.0
  %659 = vmatprep.subr.mxu0 0.0
  %660 = vmatpush1.xpose.msra.mxu0 0.0
  %661 = vmatprep.subr.mxu0 0.0
  %662 = vmatpush1.xpose.msra.mxu0 0.0
  %663 = vmatprep.subr.mxu0 0.0
  %664 = vmatpush1.xpose.msra.mxu0 0.0
  %665 = vmatprep.subr.mxu0 0.0
  %666 = vmatpush1.xpose.msra.mxu0 0.0
  %667 = vmatprep.subr.mxu0 0.0
  %668 = vmatpush1.xpose.msra.mxu0 0.0
  %669 = vmatprep.subr.mxu0 0.0
  %670 = vmatpush1.xpose.msra.mxu0 0.0
  %671 = vmatprep.subr.mxu0 0.0
  %672 = vmatpush1.xpose.msra.mxu0 0.0
  %673 = vmatprep.subr.mxu0 0.0
  %674 = vmatpush1.xpose.msra.mxu0 0.0
  %675 = vmatprep.subr.mxu0 0.0
  %676 = vmatpush1.xpose.msra.mxu0 0.0
  %677 = vmatprep.subr.mxu0 0.0
  %678 = vmatpush1.xpose.msra.mxu0 0.0
  %679 = vmatprep.subr.mxu0 0.0
  %680 = vmatpush1.xpose.msra.mxu0 0.0
  %681 = vmatprep.subr.mxu0 0.0
  %682 = vmatpush1.xpose.msra.mxu0 0.0
  %683 = vmatprep.subr.mxu0 0.0
  %684 = vmatpush1.xpose.msra.mxu0 0.0
  %685 = vmatprep.subr.mxu0 0.0
  %686 = vmatpush1.xpose.msra.mxu0 0.0
  %687 = vmatprep.subr.mxu0 0.0
  %688 = vmatpush1.xpose.msra.mxu0 0.0
  %689 = vmatprep.subr.mxu0 0.0
  %690 = vmatpush1.xpose.msra.mxu0 0.0
  %691 = vmatprep.subr.mxu0 0.0
  %692 = vmatpush1.xpose.msra.mxu0 0.0
  %693 = vmatprep.subr.mxu0 0.0
  %694 = vmatpush1.xpose.msra.mxu0 0.0
  %695 = vmatprep.subr.mxu0 0.0
  %696 = vmatpush1.xpose.msra.mxu0 0.0
  %697 = vmatprep.subr.mxu0 0.0
  %698 = vmatpush1.xpose.msra.mxu0 0.0
  %699 = vmatprep.mubr.f32.mxu0 0.0
  %700 = vmatmul.mubr.f32.gmra.mrb[0].mxu0 %v606
  %v701 = vpop.f32.mrb[0].mxu0
  %v702 = vadd.f32 0.0, %v701
  %v703 = vpop.f32.mrb[0].mxu0
  %704 = vmatprep.mubr.f32.mxu0 0.0
  %705 = vmatmul.mubr.f32.gmra.mrb[0].mxu0 %v609
  %v706 = vpop.f32.mrb[0].mxu0
  %v707 = vadd.f32 0.0, %v706
  %v708 = vpop.f32.mrb[0].mxu0
  %709 = vmatprep.mubr.f32.mxu0 0.0
  %710 = vmatmul.mubr.f32.gmra.mrb[0].mxu0 %v612
  %v711 = vpop.f32.mrb[0].mxu0
  %v712 = vadd.f32 0.0, %v711
  %v713 = vpop.f32.mrb[0].mxu0
  %714 = vmatprep.mubr.f32.mxu0 0.0
  %715 = vmatmul.mubr.f32.gmra.mrb[0].mxu0 %v615
  %v716 = vpop.f32.mrb[0].mxu0
  %v717 = vadd.f32 0.0, %v716
  %v718 = vpop.f32.mrb[0].mxu0
  %719 = vmatprep.mubr.f32.mxu0 0.0
  %720 = vmatmul.mubr.f32.gmra.mrb[0].mxu0 %v618
  %v721 = vpop.f32.mrb[0].mxu0
  %v722 = vadd.f32 0.0, %v721
  %v723 = vpop.f32.mrb[0].mxu0
  %724 = vdwg.mxu0
  %v725 = vmul.f32 %v702, 0.35355338
  %v726 = vmul.f32 %v707, 0.35355338
  %v727 = vmul.f32 %v712, 0.35355338
  %v728 = vmul.f32 %v717, 0.35355338
  %v729 = vmul.f32 %v722, 0.35355338
  %v730 = vadd.f32 %v725, %v72
  %v731 = vadd.f32 %v726, %v73
  %v732 = vadd.f32 %v727, %v74
  %v733 = vadd.f32 %v728, %v75
  %v734 = vadd.f32 %v729, %v76
  %vm735 = vcmask 326656
  %v736 = vsel %vm735, %v730, -inf
  %737 = vmax.xlane.f32.xlu0 %v736
  %v738 = vpop.xlane.xlu0 %737
  %v739 = vsel %vm735, %v731, -inf
  %740 = vmax.xlane.f32.xlu0 %v739
  %v741 = vpop.xlane.xlu0 %740
  %v742 = vsel %vm735, %v732, -inf
  %743 = vmax.xlane.f32.xlu0 %v742
  %v744 = vpop.xlane.xlu0 %743
  %v745 = vsel %vm735, %v733, -inf
  %746 = vmax.xlane.f32.xlu0 %v745
  %v747 = vpop.xlane.xlu0 %746
  %v748 = vsel %vm735, %v734, -inf
  %749 = vmax.xlane.f32.xlu0 %v748
  %v750 = vpop.xlane.xlu0 %749
  %v751 = vsub.f32 %v730, %v738
  %v752 = vsub.f32 %v731, %v741
  %v753 = vsub.f32 %v732, %v744
  %v754 = vsub.f32 %v733, %v747
  %v755 = vsub.f32 %v734, %v750
  %v756 = vmul.f32 %v751, 1.442695
  %v757 = vpow.pop %v756
  %v758 = vmul.f32 %v752, 1.442695
  %v759 = vpow.pop %v758
  %v760 = vmul.f32 %v753, 1.442695
  %v761 = vpow.pop %v760
  %v762 = vmul.f32 %v754, 1.442695
  %v763 = vpow.pop %v762
  %v764 = vmul.f32 %v755, 1.442695
  %v765 = vpow.pop %v764
  %v766 = vsel %vm735, %v757, 0.0
  %767 = vadd.xlane.f32.xlu0 %v766
  %v768 = vpop.xlane.xlu0 %767
  %v769 = vsel %vm735, %v759, 0.0
  %770 = vadd.xlane.f32.xlu0 %v769
  %v771 = vpop.xlane.xlu0 %770
  %v772 = vsel %vm735, %v761, 0.0
  %773 = vadd.xlane.f32.xlu0 %v772
  %v774 = vpop.xlane.xlu0 %773
  %v775 = vsel %vm735, %v763, 0.0
  %776 = vadd.xlane.f32.xlu0 %v775
  %v777 = vpop.xlane.xlu0 %776
  %v778 = vsel %vm735, %v765, 0.0
  %779 = vadd.xlane.f32.xlu0 %v778
  %v780 = vpop.xlane.xlu0 %779
  %v781 = vrcp.pop %v768
  %v782 = vrcp.pop %v771
  %v783 = vrcp.pop %v774
  %v784 = vrcp.pop %v777
  %v785 = vrcp.pop %v780
  %v786 = vmul.f32 %v757, %v781
  %v787 = vmul.f32 %v759, %v782
  %v788 = vmul.f32 %v761, %v783
  %v789 = vmul.f32 %v763, %v784
  %v790 = vmul.f32 %v765, %v785
  %v792 = vsel %vm735, %v786, 0
  %v795 = vsel %vm735, %v787, 0
  %v798 = vsel %vm735, %v788, 0
  %v801 = vsel %vm735, %v789, 0
  %v804 = vsel %vm735, %v790, 0
  %806 = vmatprep.subr.mxu0 0.0
  %807 = vmatpush1.msra.mxu0 %v577
  %808 = vmatprep.subr.mxu0 0.0
  %809 = vmatpush1.msra.mxu0 %v582
  %810 = vmatprep.subr.mxu0 0.0
  %811 = vmatpush1.msra.mxu0 %v587
  %812 = vmatprep.subr.mxu0 0.0
  %813 = vmatpush1.msra.mxu0 %v592
  %814 = vmatprep.subr.mxu0 0.0
  %815 = vmatpush1.msra.mxu0 %v597
  %816 = vmatprep.subr.mxu0 0.0
  %817 = vmatpush1.msra.mxu0 0.0
  %818 = vmatprep.subr.mxu0 0.0
  %819 = vmatpush1.msra.mxu0 0.0
  %820 = vmatprep.subr.mxu0 0.0
  %821 = vmatpush1.msra.mxu0 0.0
  %822 = vmatprep.subr.mxu0 0.0
  %823 = vmatpush1.msra.mxu0 0.0
  %824 = vmatprep.subr.mxu0 0.0
  %825 = vmatpush1.msra.mxu0 0.0
  %826 = vmatprep.subr.mxu0 0.0
  %827 = vmatpush1.msra.mxu0 0.0
  %828 = vmatprep.subr.mxu0 0.0
  %829 = vmatpush1.msra.mxu0 0.0
  %830 = vmatprep.subr.mxu0 0.0
  %831 = vmatpush1.msra.mxu0 0.0
  %832 = vmatprep.subr.mxu0 0.0
  %833 = vmatpush1.msra.mxu0 0.0
  %834 = vmatprep.subr.mxu0 0.0
  %835 = vmatpush1.msra.mxu0 0.0
  %836 = vmatprep.subr.mxu0 0.0
  %837 = vmatpush1.msra.mxu0 0.0
  %838 = vmatprep.subr.mxu0 0.0
  %839 = vmatpush1.msra.mxu0 0.0
  %840 = vmatprep.subr.mxu0 0.0
  %841 = vmatpush1.msra.mxu0 0.0
  %842 = vmatprep.subr.mxu0 0.0
  %843 = vmatpush1.msra.mxu0 0.0
  %844 = vmatprep.subr.mxu0 0.0
  %845 = vmatpush1.msra.mxu0 0.0
  %846 = vmatprep.subr.mxu0 0.0
  %847 = vmatpush1.msra.mxu0 0.0
  %848 = vmatprep.subr.mxu0 0.0
  %849 = vmatpush1.msra.mxu0 0.0
  %850 = vmatprep.subr.mxu0 0.0
  %851 = vmatpush1.msra.mxu0 0.0
  %852 = vmatprep.subr.mxu0 0.0
  %853 = vmatpush1.msra.mxu0 0.0
  %854 = vmatprep.subr.mxu0 0.0
  %855 = vmatpush1.msra.mxu0 0.0
  %856 = vmatprep.subr.mxu0 0.0
  %857 = vmatpush1.msra.mxu0 0.0
  %858 = vmatprep.subr.mxu0 0.0
  %859 = vmatpush1.msra.mxu0 0.0
  %860 = vmatprep.subr.mxu0 0.0
  %861 = vmatpush1.msra.mxu0 0.0
  %862 = vmatprep.subr.mxu0 0.0
  %863 = vmatpush1.msra.mxu0 0.0
  %864 = vmatprep.subr.mxu0 0.0
  %865 = vmatpush1.msra.mxu0 0.0
  %866 = vmatprep.subr.mxu0 0.0
  %867 = vmatpush1.msra.mxu0 0.0
  %868 = vmatprep.subr.mxu0 0.0
  %869 = vmatpush1.msra.mxu0 0.0
  %870 = vmatprep.mubr.f32.mxu0 0.0
  %871 = vmatmul.mubr.f32.gmra.mrb[0].mxu0 %v792
  %v872 = vpop.f32.mrb[0].mxu0
  %v873 = vadd.f32 0.0, %v872
  %v874 = vpop.f32.mrb[0].mxu0
  %875 = vmatprep.mubr.f32.mxu0 0.0
  %876 = vmatmul.mubr.f32.gmra.mrb[0].mxu0 %v795
  %v877 = vpop.f32.mrb[0].mxu0
  %v878 = vadd.f32 0.0, %v877
  %v879 = vpop.f32.mrb[0].mxu0
  %880 = vmatprep.mubr.f32.mxu0 0.0
  %881 = vmatmul.mubr.f32.gmra.mrb[0].mxu0 %v798
  %v882 = vpop.f32.mrb[0].mxu0
  %v883 = vadd.f32 0.0, %v882
  %v884 = vpop.f32.mrb[0].mxu0
  %885 = vmatprep.mubr.f32.mxu0 0.0
  %886 = vmatmul.mubr.f32.gmra.mrb[0].mxu0 %v801
  %v887 = vpop.f32.mrb[0].mxu0
  %v888 = vadd.f32 0.0, %v887
  %v889 = vpop.f32.mrb[0].mxu0
  %890 = vmatprep.mubr.f32.mxu0 0.0
  %891 = vmatmul.mubr.f32.gmra.mrb[0].mxu0 %v804
  %v892 = vpop.f32.mrb[0].mxu0
  %v893 = vadd.f32 0.0, %v892
  %v894 = vpop.f32.mrb[0].mxu0
  %895 = vdwg.mxu0
  %v896 = vmul.f32 %v873, %v17
  %v897 = vmul.f32 %v878, %v17
  %v898 = vmul.f32 %v883, %v17
  %v899 = vmul.f32 %v888, %v17
  %v900 = vmul.f32 %v893, %v17
  %v901 = vadd.f32 %v896, 0.0
  %v902 = vadd.f32 %v897, 0.0
  %v903 = vadd.f32 %v898, 0.0
  %v904 = vadd.f32 %v899, 0.0
  %v905 = vadd.f32 %v900, 0.0
  %v906 = vmul.f32 %v379, %v22
  %v907 = vmul.f32 %v384, %v22
  %v908 = vmul.f32 %v389, %v22
  %v909 = vmul.f32 %v394, %v22
  %v910 = vmul.f32 %v399, %v22
  %v912 = vsel %vm203, %v906, 0
  %v915 = vsel %vm203, %v907, 0
  %v918 = vsel %vm203, %v908, 0
  %v921 = vsel %vm203, %v909, 0
  %v924 = vsel %vm203, %v910, 0
  %926 = vmatprep.subr.mxu0 0.0
  %927 = vmatpush1.xpose.msra.mxu0 %v621
  %928 = vmatprep.subr.mxu0 0.0
  %929 = vmatpush1.xpose.msra.mxu0 %v624
  %930 = vmatprep.subr.mxu0 0.0
  %931 = vmatpush1.xpose.msra.mxu0 %v627
  %932 = vmatprep.subr.mxu0 0.0
  %933 = vmatpush1.xpose.msra.mxu0 %v630
  %934 = vmatprep.subr.mxu0 0.0
  %935 = vmatpush1.xpose.msra.mxu0 %v633
  %936 = vmatprep.subr.mxu0 0.0
  %937 = vmatpush1.xpose.msra.mxu0 0.0
  %938 = vmatprep.subr.mxu0 0.0
  %939 = vmatpush1.xpose.msra.mxu0 0.0
  %940 = vmatprep.subr.mxu0 0.0
  %941 = vmatpush1.xpose.msra.mxu0 0.0
  %942 = vmatprep.subr.mxu0 0.0
  %943 = vmatpush1.xpose.msra.mxu0 0.0
  %944 = vmatprep.subr.mxu0 0.0
  %945 = vmatpush1.xpose.msra.mxu0 0.0
  %946 = vmatprep.subr.mxu0 0.0
  %947 = vmatpush1.xpose.msra.mxu0 0.0
  %948 = vmatprep.subr.mxu0 0.0
  %949 = vmatpush1.xpose.msra.mxu0 0.0
  %950 = vmatprep.subr.mxu0 0.0
  %951 = vmatpush1.xpose.msra.mxu0 0.0
  %952 = vmatprep.subr.mxu0 0.0
  %953 = vmatpush1.xpose.msra.mxu0 0.0
  %954 = vmatprep.subr.mxu0 0.0
  %955 = vmatpush1.xpose.msra.mxu0 0.0
  %956 = vmatprep.subr.mxu0 0.0
  %957 = vmatpush1.xpose.msra.mxu0 0.0
  %958 = vmatprep.subr.mxu0 0.0
  %959 = vmatpush1.xpose.msra.mxu0 0.0
  %960 = vmatprep.subr.mxu0 0.0
  %961 = vmatpush1.xpose.msra.mxu0 0.0
  %962 = vmatprep.subr.mxu0 0.0
  %963 = vmatpush1.xpose.msra.mxu0 0.0
  %964 = vmatprep.subr.mxu0 0.0
  %965 = vmatpush1.xpose.msra.mxu0 0.0
  %966 = vmatprep.subr.mxu0 0.0
  %967 = vmatpush1.xpose.msra.mxu0 0.0
  %968 = vmatprep.subr.mxu0 0.0
  %969 = vmatpush1.xpose.msra.mxu0 0.0
  %970 = vmatprep.subr.mxu0 0.0
  %971 = vmatpush1.xpose.msra.mxu0 0.0
  %972 = vmatprep.subr.mxu0 0.0
  %973 = vmatpush1.xpose.msra.mxu0 0.0
  %974 = vmatprep.subr.mxu0 0.0
  %975 = vmatpush1.xpose.msra.mxu0 0.0
  %976 = vmatprep.subr.mxu0 0.0
  %977 = vmatpush1.xpose.msra.mxu0 0.0
  %978 = vmatprep.subr.mxu0 0.0
  %979 = vmatpush1.xpose.msra.mxu0 0.0
  %980 = vmatprep.subr.mxu0 0.0
  %981 = vmatpush1.xpose.msra.mxu0 0.0
  %982 = vmatprep.subr.mxu0 0.0
  %983 = vmatpush1.xpose.msra.mxu0 0.0
  %984 = vmatprep.subr.mxu0 0.0
  %985 = vmatpush1.xpose.msra.mxu0 0.0
  %986 = vmatprep.subr.mxu0 0.0
  %987 = vmatpush1.xpose.msra.mxu0 0.0
  %988 = vmatprep.subr.mxu0 0.0
  %989 = vmatpush1.xpose.msra.mxu0 0.0
  %990 = vmatprep.mubr.f32.mxu0 0.0
  %991 = vmatmul.mubr.f32.gmra.mrb[0].mxu0 %v912
  %v992 = vpop.f32.mrb[0].mxu0
  %v993 = vadd.f32 0.0, %v992
  %v994 = vpop.f32.mrb[0].mxu0
  %995 = vmatprep.mubr.f32.mxu0 0.0
  %996 = vmatmul.mubr.f32.gmra.mrb[0].mxu0 %v915
  %v997 = vpop.f32.mrb[0].mxu0
  %v998 = vadd.f32 0.0, %v997
  %v999 = vpop.f32.mrb[0].mxu0
  %1000 = vmatprep.mubr.f32.mxu0 0.0
  %1001 = vmatmul.mubr.f32.gmra.mrb[0].mxu0 %v918
  %v1002 = vpop.f32.mrb[0].mxu0
  %v1003 = vadd.f32 0.0, %v1002
  %v1004 = vpop.f32.mrb[0].mxu0
  %1005 = vmatprep.mubr.f32.mxu0 0.0
  %1006 = vmatmul.mubr.f32.gmra.mrb[0].mxu0 %v921
  %v1007 = vpop.f32.mrb[0].mxu0
  %v1008 = vadd.f32 0.0, %v1007
  %v1009 = vpop.f32.mrb[0].mxu0
  %1010 = vmatprep.mubr.f32.mxu0 0.0
  %1011 = vmatmul.mubr.f32.gmra.mrb[0].mxu0 %v924
  %v1012 = vpop.f32.mrb[0].mxu0
  %v1013 = vadd.f32 0.0, %v1012
  %v1014 = vpop.f32.mrb[0].mxu0
  %1015 = vdwg.mxu0
  %v1016 = vmul.f32 %v993, 0.35355338
  %v1017 = vmul.f32 %v998, 0.35355338
  %v1018 = vmul.f32 %v1003, 0.35355338
  %v1019 = vmul.f32 %v1008, 0.35355338
  %v1020 = vmul.f32 %v1013, 0.35355338
  %v1021 = vadd.f32 %v1016, %v72
  %v1022 = vadd.f32 %v1017, %v73
  %v1023 = vadd.f32 %v1018, %v74
  %v1024 = vadd.f32 %v1019, %v75
  %v1025 = vadd.f32 %v1020, %v76
  %v1026 = vsel %vm735, %v1021, -inf
  %1027 = vmax.xlane.f32.xlu0 %v1026
  %v1028 = vpop.xlane.xlu0 %1027
  %v1029 = vsel %vm735, %v1022, -inf
  %1030 = vmax.xlane.f32.xlu0 %v1029
  %v1031 = vpop.xlane.xlu0 %1030
  %v1032 = vsel %vm735, %v1023, -inf
  %1033 = vmax.xlane.f32.xlu0 %v1032
  %v1034 = vpop.xlane.xlu0 %1033
  %v1035 = vsel %vm735, %v1024, -inf
  %1036 = vmax.xlane.f32.xlu0 %v1035
  %v1037 = vpop.xlane.xlu0 %1036
  %v1038 = vsel %vm735, %v1025, -inf
  %1039 = vmax.xlane.f32.xlu0 %v1038
  %v1040 = vpop.xlane.xlu0 %1039
  %v1041 = vsub.f32 %v1021, %v1028
  %v1042 = vsub.f32 %v1022, %v1031
  %v1043 = vsub.f32 %v1023, %v1034
  %v1044 = vsub.f32 %v1024, %v1037
  %v1045 = vsub.f32 %v1025, %v1040
  %v1046 = vmul.f32 %v1041, 1.442695
  %v1047 = vpow.pop %v1046
  %v1048 = vmul.f32 %v1042, 1.442695
  %v1049 = vpow.pop %v1048
  %v1050 = vmul.f32 %v1043, 1.442695
  %v1051 = vpow.pop %v1050
  %v1052 = vmul.f32 %v1044, 1.442695
  %v1053 = vpow.pop %v1052
  %v1054 = vmul.f32 %v1045, 1.442695
  %v1055 = vpow.pop %v1054
  %v1056 = vsel %vm735, %v1047, 0.0
  %1057 = vadd.xlane.f32.xlu0 %v1056
  %v1058 = vpop.xlane.xlu0 %1057
  %v1059 = vsel %vm735, %v1049, 0.0
  %1060 = vadd.xlane.f32.xlu0 %v1059
  %v1061 = vpop.xlane.xlu0 %1060
  %v1062 = vsel %vm735, %v1051, 0.0
  %1063 = vadd.xlane.f32.xlu0 %v1062
  %v1064 = vpop.xlane.xlu0 %1063
  %v1065 = vsel %vm735, %v1053, 0.0
  %1066 = vadd.xlane.f32.xlu0 %v1065
  %v1067 = vpop.xlane.xlu0 %1066
  %v1068 = vsel %vm735, %v1055, 0.0
  %1069 = vadd.xlane.f32.xlu0 %v1068
  %v1070 = vpop.xlane.xlu0 %1069
  %v1071 = vrcp.pop %v1058
  %v1072 = vrcp.pop %v1061
  %v1073 = vrcp.pop %v1064
  %v1074 = vrcp.pop %v1067
  %v1075 = vrcp.pop %v1070
  %v1076 = vmul.f32 %v1047, %v1071
  %v1077 = vmul.f32 %v1049, %v1072
  %v1078 = vmul.f32 %v1051, %v1073
  %v1079 = vmul.f32 %v1053, %v1074
  %v1080 = vmul.f32 %v1055, %v1075
  %v1082 = vsel %vm735, %v1076, 0
  %v1085 = vsel %vm735, %v1077, 0
  %v1088 = vsel %vm735, %v1078, 0
  %v1091 = vsel %vm735, %v1079, 0
  %v1094 = vsel %vm735, %v1080, 0
  %1096 = vmatprep.subr.mxu0 0.0
  %1097 = vmatpush1.msra.mxu0 %v577
  %1098 = vmatprep.subr.mxu0 0.0
  %1099 = vmatpush1.msra.mxu0 %v582
  %1100 = vmatprep.subr.mxu0 0.0
  %1101 = vmatpush1.msra.mxu0 %v587
  %1102 = vmatprep.subr.mxu0 0.0
  %1103 = vmatpush1.msra.mxu0 %v592
  %1104 = vmatprep.subr.mxu0 0.0
  %1105 = vmatpush1.msra.mxu0 %v597
  %1106 = vmatprep.subr.mxu0 0.0
  %1107 = vmatpush1.msra.mxu0 0.0
  %1108 = vmatprep.subr.mxu0 0.0
  %1109 = vmatpush1.msra.mxu0 0.0
  %1110 = vmatprep.subr.mxu0 0.0
  %1111 = vmatpush1.msra.mxu0 0.0
  %1112 = vmatprep.subr.mxu0 0.0
  %1113 = vmatpush1.msra.mxu0 0.0
  %1114 = vmatprep.subr.mxu0 0.0
  %1115 = vmatpush1.msra.mxu0 0.0
  %1116 = vmatprep.subr.mxu0 0.0
  %1117 = vmatpush1.msra.mxu0 0.0
  %1118 = vmatprep.subr.mxu0 0.0
  %1119 = vmatpush1.msra.mxu0 0.0
  %1120 = vmatprep.subr.mxu0 0.0
  %1121 = vmatpush1.msra.mxu0 0.0
  %1122 = vmatprep.subr.mxu0 0.0
  %1123 = vmatpush1.msra.mxu0 0.0
  %1124 = vmatprep.subr.mxu0 0.0
  %1125 = vmatpush1.msra.mxu0 0.0
  %1126 = vmatprep.subr.mxu0 0.0
  %1127 = vmatpush1.msra.mxu0 0.0
  %1128 = vmatprep.subr.mxu0 0.0
  %1129 = vmatpush1.msra.mxu0 0.0
  %1130 = vmatprep.subr.mxu0 0.0
  %1131 = vmatpush1.msra.mxu0 0.0
  %1132 = vmatprep.subr.mxu0 0.0
  %1133 = vmatpush1.msra.mxu0 0.0
  %1134 = vmatprep.subr.mxu0 0.0
  %1135 = vmatpush1.msra.mxu0 0.0
  %1136 = vmatprep.subr.mxu0 0.0
  %1137 = vmatpush1.msra.mxu0 0.0
  %1138 = vmatprep.subr.mxu0 0.0
  %1139 = vmatpush1.msra.mxu0 0.0
  %1140 = vmatprep.subr.mxu0 0.0
  %1141 = vmatpush1.msra.mxu0 0.0
  %1142 = vmatprep.subr.mxu0 0.0
  %1143 = vmatpush1.msra.mxu0 0.0
  %1144 = vmatprep.subr.mxu0 0.0
  %1145 = vmatpush1.msra.mxu0 0.0
  %1146 = vmatprep.subr.mxu0 0.0
  %1147 = vmatpush1.msra.mxu0 0.0
  %1148 = vmatprep.subr.mxu0 0.0
  %1149 = vmatpush1.msra.mxu0 0.0
  %1150 = vmatprep.subr.mxu0 0.0
  %1151 = vmatpush1.msra.mxu0 0.0
  %1152 = vmatprep.subr.mxu0 0.0
  %1153 = vmatpush1.msra.mxu0 0.0
  %1154 = vmatprep.subr.mxu0 0.0
  %1155 = vmatpush1.msra.mxu0 0.0
  %1156 = vmatprep.subr.mxu0 0.0
  %1157 = vmatpush1.msra.mxu0 0.0
  %1158 = vmatprep.subr.mxu0 0.0
  %1159 = vmatpush1.msra.mxu0 0.0
  %1160 = vmatprep.mubr.f32.mxu0 0.0
  %1161 = vmatmul.mubr.f32.gmra.mrb[0].mxu0 %v1082
  %v1162 = vpop.f32.mrb[0].mxu0
  %v1163 = vadd.f32 0.0, %v1162
  %v1164 = vpop.f32.mrb[0].mxu0
  %1165 = vmatprep.mubr.f32.mxu0 0.0
  %1166 = vmatmul.mubr.f32.gmra.mrb[0].mxu0 %v1085
  %v1167 = vpop.f32.mrb[0].mxu0
  %v1168 = vadd.f32 0.0, %v1167
  %v1169 = vpop.f32.mrb[0].mxu0
  %1170 = vmatprep.mubr.f32.mxu0 0.0
  %1171 = vmatmul.mubr.f32.gmra.mrb[0].mxu0 %v1088
  %v1172 = vpop.f32.mrb[0].mxu0
  %v1173 = vadd.f32 0.0, %v1172
  %v1174 = vpop.f32.mrb[0].mxu0
  %1175 = vmatprep.mubr.f32.mxu0 0.0
  %1176 = vmatmul.mubr.f32.gmra.mrb[0].mxu0 %v1091
  %v1177 = vpop.f32.mrb[0].mxu0
  %v1178 = vadd.f32 0.0, %v1177
  %v1179 = vpop.f32.mrb[0].mxu0
  %1180 = vmatprep.mubr.f32.mxu0 0.0
  %1181 = vmatmul.mubr.f32.gmra.mrb[0].mxu0 %v1094
  %v1182 = vpop.f32.mrb[0].mxu0
  %v1183 = vadd.f32 0.0, %v1182
  %v1184 = vpop.f32.mrb[0].mxu0
  %1185 = vdwg.mxu0
  %v1186 = vmul.f32 %v1163, %v22
  %v1187 = vmul.f32 %v1168, %v22
  %v1188 = vmul.f32 %v1173, %v22
  %v1189 = vmul.f32 %v1178, %v22
  %v1190 = vmul.f32 %v1183, %v22
  %v1191 = vadd.f32 %v901, %v1186
  %v1192 = vadd.f32 %v902, %v1187
  %v1193 = vadd.f32 %v903, %v1188
  %v1194 = vadd.f32 %v904, %v1189
  %v1195 = vadd.f32 %v905, %v1190
  %v1196 = vmul.f32 %v379, %v27
  %v1197 = vmul.f32 %v384, %v27
  %v1198 = vmul.f32 %v389, %v27
  %v1199 = vmul.f32 %v394, %v27
  %v1200 = vmul.f32 %v399, %v27
  %v1202 = vsel %vm203, %v1196, 0
  %v1205 = vsel %vm203, %v1197, 0
  %v1208 = vsel %vm203, %v1198, 0
  %v1211 = vsel %vm203, %v1199, 0
  %v1214 = vsel %vm203, %v1200, 0
  %1216 = vmatprep.subr.mxu0 0.0
  %1217 = vmatpush1.xpose.msra.mxu0 %v621
  %1218 = vmatprep.subr.mxu0 0.0
  %1219 = vmatpush1.xpose.msra.mxu0 %v624
  %1220 = vmatprep.subr.mxu0 0.0
  %1221 = vmatpush1.xpose.msra.mxu0 %v627
  %1222 = vmatprep.subr.mxu0 0.0
  %1223 = vmatpush1.xpose.msra.mxu0 %v630
  %1224 = vmatprep.subr.mxu0 0.0
  %1225 = vmatpush1.xpose.msra.mxu0 %v633
  %1226 = vmatprep.subr.mxu0 0.0
  %1227 = vmatpush1.xpose.msra.mxu0 0.0
  %1228 = vmatprep.subr.mxu0 0.0
  %1229 = vmatpush1.xpose.msra.mxu0 0.0
  %1230 = vmatprep.subr.mxu0 0.0
  %1231 = vmatpush1.xpose.msra.mxu0 0.0
  %1232 = vmatprep.subr.mxu0 0.0
  %1233 = vmatpush1.xpose.msra.mxu0 0.0
  %1234 = vmatprep.subr.mxu0 0.0
  %1235 = vmatpush1.xpose.msra.mxu0 0.0
  %1236 = vmatprep.subr.mxu0 0.0
  %1237 = vmatpush1.xpose.msra.mxu0 0.0
  %1238 = vmatprep.subr.mxu0 0.0
  %1239 = vmatpush1.xpose.msra.mxu0 0.0
  %1240 = vmatprep.subr.mxu0 0.0
  %1241 = vmatpush1.xpose.msra.mxu0 0.0
  %1242 = vmatprep.subr.mxu0 0.0
  %1243 = vmatpush1.xpose.msra.mxu0 0.0
  %1244 = vmatprep.subr.mxu0 0.0
  %1245 = vmatpush1.xpose.msra.mxu0 0.0
  %1246 = vmatprep.subr.mxu0 0.0
  %1247 = vmatpush1.xpose.msra.mxu0 0.0
  %1248 = vmatprep.subr.mxu0 0.0
  %1249 = vmatpush1.xpose.msra.mxu0 0.0
  %1250 = vmatprep.subr.mxu0 0.0
  %1251 = vmatpush1.xpose.msra.mxu0 0.0
  %1252 = vmatprep.subr.mxu0 0.0
  %1253 = vmatpush1.xpose.msra.mxu0 0.0
  %1254 = vmatprep.subr.mxu0 0.0
  %1255 = vmatpush1.xpose.msra.mxu0 0.0
  %1256 = vmatprep.subr.mxu0 0.0
  %1257 = vmatpush1.xpose.msra.mxu0 0.0
  %1258 = vmatprep.subr.mxu0 0.0
  %1259 = vmatpush1.xpose.msra.mxu0 0.0
  %1260 = vmatprep.subr.mxu0 0.0
  %1261 = vmatpush1.xpose.msra.mxu0 0.0
  %1262 = vmatprep.subr.mxu0 0.0
  %1263 = vmatpush1.xpose.msra.mxu0 0.0
  %1264 = vmatprep.subr.mxu0 0.0
  %1265 = vmatpush1.xpose.msra.mxu0 0.0
  %1266 = vmatprep.subr.mxu0 0.0
  %1267 = vmatpush1.xpose.msra.mxu0 0.0
  %1268 = vmatprep.subr.mxu0 0.0
  %1269 = vmatpush1.xpose.msra.mxu0 0.0
  %1270 = vmatprep.subr.mxu0 0.0
  %1271 = vmatpush1.xpose.msra.mxu0 0.0
  %1272 = vmatprep.subr.mxu0 0.0
  %1273 = vmatpush1.xpose.msra.mxu0 0.0
  %1274 = vmatprep.subr.mxu0 0.0
  %1275 = vmatpush1.xpose.msra.mxu0 0.0
  %1276 = vmatprep.subr.mxu0 0.0
  %1277 = vmatpush1.xpose.msra.mxu0 0.0
  %1278 = vmatprep.subr.mxu0 0.0
  %1279 = vmatpush1.xpose.msra.mxu0 0.0
  %1280 = vmatprep.mubr.f32.mxu0 0.0
  %1281 = vmatmul.mubr.f32.gmra.mrb[0].mxu0 %v1202
  %v1282 = vpop.f32.mrb[0].mxu0
  %v1283 = vadd.f32 0.0, %v1282
  %v1284 = vpop.f32.mrb[0].mxu0
  %1285 = vmatprep.mubr.f32.mxu0 0.0
  %1286 = vmatmul.mubr.f32.gmra.mrb[0].mxu0 %v1205
  %v1287 = vpop.f32.mrb[0].mxu0
  %v1288 = vadd.f32 0.0, %v1287
  %v1289 = vpop.f32.mrb[0].mxu0
  %1290 = vmatprep.mubr.f32.mxu0 0.0
  %1291 = vmatmul.mubr.f32.gmra.mrb[0].mxu0 %v1208
  %v1292 = vpop.f32.mrb[0].mxu0
  %v1293 = vadd.f32 0.0, %v1292
  %v1294 = vpop.f32.mrb[0].mxu0
  %1295 = vmatprep.mubr.f32.mxu0 0.0
  %1296 = vmatmul.mubr.f32.gmra.mrb[0].mxu0 %v1211
  %v1297 = vpop.f32.mrb[0].mxu0
  %v1298 = vadd.f32 0.0, %v1297
  %v1299 = vpop.f32.mrb[0].mxu0
  %1300 = vmatprep.mubr.f32.mxu0 0.0
  %1301 = vmatmul.mubr.f32.gmra.mrb[0].mxu0 %v1214
  %v1302 = vpop.f32.mrb[0].mxu0
  %v1303 = vadd.f32 0.0, %v1302
  %v1304 = vpop.f32.mrb[0].mxu0
  %1305 = vdwg.mxu0
  %v1306 = vmul.f32 %v1283, 0.35355338
  %v1307 = vmul.f32 %v1288, 0.35355338
  %v1308 = vmul.f32 %v1293, 0.35355338
  %v1309 = vmul.f32 %v1298, 0.35355338
  %v1310 = vmul.f32 %v1303, 0.35355338
  %v1311 = vadd.f32 %v1306, %v72
  %v1312 = vadd.f32 %v1307, %v73
  %v1313 = vadd.f32 %v1308, %v74
  %v1314 = vadd.f32 %v1309, %v75
  %v1315 = vadd.f32 %v1310, %v76
  %v1316 = vsel %vm735, %v1311, -inf
  %1317 = vmax.xlane.f32.xlu0 %v1316
  %v1318 = vpop.xlane.xlu0 %1317
  %v1319 = vsel %vm735, %v1312, -inf
  %1320 = vmax.xlane.f32.xlu0 %v1319
  %v1321 = vpop.xlane.xlu0 %1320
  %v1322 = vsel %vm735, %v1313, -inf
  %1323 = vmax.xlane.f32.xlu0 %v1322
  %v1324 = vpop.xlane.xlu0 %1323
  %v1325 = vsel %vm735, %v1314, -inf
  %1326 = vmax.xlane.f32.xlu0 %v1325
  %v1327 = vpop.xlane.xlu0 %1326
  %v1328 = vsel %vm735, %v1315, -inf
  %1329 = vmax.xlane.f32.xlu0 %v1328
  %v1330 = vpop.xlane.xlu0 %1329
  %v1331 = vsub.f32 %v1311, %v1318
  %v1332 = vsub.f32 %v1312, %v1321
  %v1333 = vsub.f32 %v1313, %v1324
  %v1334 = vsub.f32 %v1314, %v1327
  %v1335 = vsub.f32 %v1315, %v1330
  %v1336 = vmul.f32 %v1331, 1.442695
  %v1337 = vpow.pop %v1336
  %v1338 = vmul.f32 %v1332, 1.442695
  %v1339 = vpow.pop %v1338
  %v1340 = vmul.f32 %v1333, 1.442695
  %v1341 = vpow.pop %v1340
  %v1342 = vmul.f32 %v1334, 1.442695
  %v1343 = vpow.pop %v1342
  %v1344 = vmul.f32 %v1335, 1.442695
  %v1345 = vpow.pop %v1344
  %v1346 = vsel %vm735, %v1337, 0.0
  %1347 = vadd.xlane.f32.xlu0 %v1346
  %v1348 = vpop.xlane.xlu0 %1347
  %v1349 = vsel %vm735, %v1339, 0.0
  %1350 = vadd.xlane.f32.xlu0 %v1349
  %v1351 = vpop.xlane.xlu0 %1350
  %v1352 = vsel %vm735, %v1341, 0.0
  %1353 = vadd.xlane.f32.xlu0 %v1352
  %v1354 = vpop.xlane.xlu0 %1353
  %v1355 = vsel %vm735, %v1343, 0.0
  %1356 = vadd.xlane.f32.xlu0 %v1355
  %v1357 = vpop.xlane.xlu0 %1356
  %v1358 = vsel %vm735, %v1345, 0.0
  %1359 = vadd.xlane.f32.xlu0 %v1358
  %v1360 = vpop.xlane.xlu0 %1359
  %v1361 = vrcp.pop %v1348
  %v1362 = vrcp.pop %v1351
  %v1363 = vrcp.pop %v1354
  %v1364 = vrcp.pop %v1357
  %v1365 = vrcp.pop %v1360
  %v1366 = vmul.f32 %v1337, %v1361
  %v1367 = vmul.f32 %v1339, %v1362
  %v1368 = vmul.f32 %v1341, %v1363
  %v1369 = vmul.f32 %v1343, %v1364
  %v1370 = vmul.f32 %v1345, %v1365
  %v1372 = vsel %vm735, %v1366, 0
  %v1375 = vsel %vm735, %v1367, 0
  %v1378 = vsel %vm735, %v1368, 0
  %v1381 = vsel %vm735, %v1369, 0
  %v1384 = vsel %vm735, %v1370, 0
  %1386 = vmatprep.subr.mxu0 0.0
  %1387 = vmatpush1.msra.mxu0 %v577
  %1388 = vmatprep.subr.mxu0 0.0
  %1389 = vmatpush1.msra.mxu0 %v582
  %1390 = vmatprep.subr.mxu0 0.0
  %1391 = vmatpush1.msra.mxu0 %v587
  %1392 = vmatprep.subr.mxu0 0.0
  %1393 = vmatpush1.msra.mxu0 %v592
  %1394 = vmatprep.subr.mxu0 0.0
  %1395 = vmatpush1.msra.mxu0 %v597
  %1396 = vmatprep.subr.mxu0 0.0
  %1397 = vmatpush1.msra.mxu0 0.0
  %1398 = vmatprep.subr.mxu0 0.0
  %1399 = vmatpush1.msra.mxu0 0.0
  %1400 = vmatprep.subr.mxu0 0.0
  %1401 = vmatpush1.msra.mxu0 0.0
  %1402 = vmatprep.subr.mxu0 0.0
  %1403 = vmatpush1.msra.mxu0 0.0
  %1404 = vmatprep.subr.mxu0 0.0
  %1405 = vmatpush1.msra.mxu0 0.0
  %1406 = vmatprep.subr.mxu0 0.0
  %1407 = vmatpush1.msra.mxu0 0.0
  %1408 = vmatprep.subr.mxu0 0.0
  %1409 = vmatpush1.msra.mxu0 0.0
  %1410 = vmatprep.subr.mxu0 0.0
  %1411 = vmatpush1.msra.mxu0 0.0
  %1412 = vmatprep.subr.mxu0 0.0
  %1413 = vmatpush1.msra.mxu0 0.0
  %1414 = vmatprep.subr.mxu0 0.0
  %1415 = vmatpush1.msra.mxu0 0.0
  %1416 = vmatprep.subr.mxu0 0.0
  %1417 = vmatpush1.msra.mxu0 0.0
  %1418 = vmatprep.subr.mxu0 0.0
  %1419 = vmatpush1.msra.mxu0 0.0
  %1420 = vmatprep.subr.mxu0 0.0
  %1421 = vmatpush1.msra.mxu0 0.0
  %1422 = vmatprep.subr.mxu0 0.0
  %1423 = vmatpush1.msra.mxu0 0.0
  %1424 = vmatprep.subr.mxu0 0.0
  %1425 = vmatpush1.msra.mxu0 0.0
  %1426 = vmatprep.subr.mxu0 0.0
  %1427 = vmatpush1.msra.mxu0 0.0
  %1428 = vmatprep.subr.mxu0 0.0
  %1429 = vmatpush1.msra.mxu0 0.0
  %1430 = vmatprep.subr.mxu0 0.0
  %1431 = vmatpush1.msra.mxu0 0.0
  %1432 = vmatprep.subr.mxu0 0.0
  %1433 = vmatpush1.msra.mxu0 0.0
  %1434 = vmatprep.subr.mxu0 0.0
  %1435 = vmatpush1.msra.mxu0 0.0
  %1436 = vmatprep.subr.mxu0 0.0
  %1437 = vmatpush1.msra.mxu0 0.0
  %1438 = vmatprep.subr.mxu0 0.0
  %1439 = vmatpush1.msra.mxu0 0.0
  %1440 = vmatprep.subr.mxu0 0.0
  %1441 = vmatpush1.msra.mxu0 0.0
  %1442 = vmatprep.subr.mxu0 0.0
  %1443 = vmatpush1.msra.mxu0 0.0
  %1444 = vmatprep.subr.mxu0 0.0
  %1445 = vmatpush1.msra.mxu0 0.0
  %1446 = vmatprep.subr.mxu0 0.0
  %1447 = vmatpush1.msra.mxu0 0.0
  %1448 = vmatprep.subr.mxu0 0.0
  %1449 = vmatpush1.msra.mxu0 0.0
  %1450 = vmatprep.mubr.f32.mxu0 0.0
  %1451 = vmatmul.mubr.f32.gmra.mrb[0].mxu0 %v1372
  %v1452 = vpop.f32.mrb[0].mxu0
  %v1453 = vadd.f32 0.0, %v1452
  %v1454 = vpop.f32.mrb[0].mxu0
  %1455 = vmatprep.mubr.f32.mxu0 0.0
  %1456 = vmatmul.mubr.f32.gmra.mrb[0].mxu0 %v1375
  %v1457 = vpop.f32.mrb[0].mxu0
  %v1458 = vadd.f32 0.0, %v1457
  %v1459 = vpop.f32.mrb[0].mxu0
  %1460 = vmatprep.mubr.f32.mxu0 0.0
  %1461 = vmatmul.mubr.f32.gmra.mrb[0].mxu0 %v1378
  %v1462 = vpop.f32.mrb[0].mxu0
  %v1463 = vadd.f32 0.0, %v1462
  %v1464 = vpop.f32.mrb[0].mxu0
  %1465 = vmatprep.mubr.f32.mxu0 0.0
  %1466 = vmatmul.mubr.f32.gmra.mrb[0].mxu0 %v1381
  %v1467 = vpop.f32.mrb[0].mxu0
  %v1468 = vadd.f32 0.0, %v1467
  %v1469 = vpop.f32.mrb[0].mxu0
  %1470 = vmatprep.mubr.f32.mxu0 0.0
  %1471 = vmatmul.mubr.f32.gmra.mrb[0].mxu0 %v1384
  %v1472 = vpop.f32.mrb[0].mxu0
  %v1473 = vadd.f32 0.0, %v1472
  %v1474 = vpop.f32.mrb[0].mxu0
  %1475 = vdwg.mxu0
  %v1476 = vmul.f32 %v1453, %v27
  %v1477 = vmul.f32 %v1458, %v27
  %v1478 = vmul.f32 %v1463, %v27
  %v1479 = vmul.f32 %v1468, %v27
  %v1480 = vmul.f32 %v1473, %v27
  %v1481 = vadd.f32 %v1191, %v1476
  %v1482 = vadd.f32 %v1192, %v1477
  %v1483 = vadd.f32 %v1193, %v1478
  %v1484 = vadd.f32 %v1194, %v1479
  %v1485 = vadd.f32 %v1195, %v1480
  %v1486 = vmul.f32 %v379, %v32
  %v1487 = vmul.f32 %v384, %v32
  %v1488 = vmul.f32 %v389, %v32
  %v1489 = vmul.f32 %v394, %v32
  %v1490 = vmul.f32 %v399, %v32
  %v1492 = vsel %vm203, %v1486, 0
  %v1495 = vsel %vm203, %v1487, 0
  %v1498 = vsel %vm203, %v1488, 0
  %v1501 = vsel %vm203, %v1489, 0
  %v1504 = vsel %vm203, %v1490, 0
  %1506 = vmatprep.subr.mxu0 0.0
  %1507 = vmatpush1.xpose.msra.mxu0 %v621
  %1508 = vmatprep.subr.mxu0 0.0
  %1509 = vmatpush1.xpose.msra.mxu0 %v624
  %1510 = vmatprep.subr.mxu0 0.0
  %1511 = vmatpush1.xpose.msra.mxu0 %v627
  %1512 = vmatprep.subr.mxu0 0.0
  %1513 = vmatpush1.xpose.msra.mxu0 %v630
  %1514 = vmatprep.subr.mxu0 0.0
  %1515 = vmatpush1.xpose.msra.mxu0 %v633
  %1516 = vmatprep.subr.mxu0 0.0
  %1517 = vmatpush1.xpose.msra.mxu0 0.0
  %1518 = vmatprep.subr.mxu0 0.0
  %1519 = vmatpush1.xpose.msra.mxu0 0.0
  %1520 = vmatprep.subr.mxu0 0.0
  %1521 = vmatpush1.xpose.msra.mxu0 0.0
  %1522 = vmatprep.subr.mxu0 0.0
  %1523 = vmatpush1.xpose.msra.mxu0 0.0
  %1524 = vmatprep.subr.mxu0 0.0
  %1525 = vmatpush1.xpose.msra.mxu0 0.0
  %1526 = vmatprep.subr.mxu0 0.0
  %1527 = vmatpush1.xpose.msra.mxu0 0.0
  %1528 = vmatprep.subr.mxu0 0.0
  %1529 = vmatpush1.xpose.msra.mxu0 0.0
  %1530 = vmatprep.subr.mxu0 0.0
  %1531 = vmatpush1.xpose.msra.mxu0 0.0
  %1532 = vmatprep.subr.mxu0 0.0
  %1533 = vmatpush1.xpose.msra.mxu0 0.0
  %1534 = vmatprep.subr.mxu0 0.0
  %1535 = vmatpush1.xpose.msra.mxu0 0.0
  %1536 = vmatprep.subr.mxu0 0.0
  %1537 = vmatpush1.xpose.msra.mxu0 0.0
  %1538 = vmatprep.subr.mxu0 0.0
  %1539 = vmatpush1.xpose.msra.mxu0 0.0
  %1540 = vmatprep.subr.mxu0 0.0
  %1541 = vmatpush1.xpose.msra.mxu0 0.0
  %1542 = vmatprep.subr.mxu0 0.0
  %1543 = vmatpush1.xpose.msra.mxu0 0.0
  %1544 = vmatprep.subr.mxu0 0.0
  %1545 = vmatpush1.xpose.msra.mxu0 0.0
  %1546 = vmatprep.subr.mxu0 0.0
  %1547 = vmatpush1.xpose.msra.mxu0 0.0
  %1548 = vmatprep.subr.mxu0 0.0
  %1549 = vmatpush1.xpose.msra.mxu0 0.0
  %1550 = vmatprep.subr.mxu0 0.0
  %1551 = vmatpush1.xpose.msra.mxu0 0.0
  %1552 = vmatprep.subr.mxu0 0.0
  %1553 = vmatpush1.xpose.msra.mxu0 0.0
  %1554 = vmatprep.subr.mxu0 0.0
  %1555 = vmatpush1.xpose.msra.mxu0 0.0
  %1556 = vmatprep.subr.mxu0 0.0
  %1557 = vmatpush1.xpose.msra.mxu0 0.0
  %1558 = vmatprep.subr.mxu0 0.0
  %1559 = vmatpush1.xpose.msra.mxu0 0.0
  %1560 = vmatprep.subr.mxu0 0.0
  %1561 = vmatpush1.xpose.msra.mxu0 0.0
  %1562 = vmatprep.subr.mxu0 0.0
  %1563 = vmatpush1.xpose.msra.mxu0 0.0
  %1564 = vmatprep.subr.mxu0 0.0
  %1565 = vmatpush1.xpose.msra.mxu0 0.0
  %1566 = vmatprep.subr.mxu0 0.0
  %1567 = vmatpush1.xpose.msra.mxu0 0.0
  %1568 = vmatprep.subr.mxu0 0.0
  %1569 = vmatpush1.xpose.msra.mxu0 0.0
  %1570 = vmatprep.mubr.f32.mxu0 0.0
  %1571 = vmatmul.mubr.f32.gmra.mrb[0].mxu0 %v1492
  %v1572 = vpop.f32.mrb[0].mxu0
  %v1573 = vadd.f32 0.0, %v1572
  %v1574 = vpop.f32.mrb[0].mxu0
  %1575 = vmatprep.mubr.f32.mxu0 0.0
  %1576 = vmatmul.mubr.f32.gmra.mrb[0].mxu0 %v1495
  %v1577 = vpop.f32.mrb[0].mxu0
  %v1578 = vadd.f32 0.0, %v1577
  %v1579 = vpop.f32.mrb[0].mxu0
  %1580 = vmatprep.mubr.f32.mxu0 0.0
  %1581 = vmatmul.mubr.f32.gmra.mrb[0].mxu0 %v1498
  %v1582 = vpop.f32.mrb[0].mxu0
  %v1583 = vadd.f32 0.0, %v1582
  %v1584 = vpop.f32.mrb[0].mxu0
  %1585 = vmatprep.mubr.f32.mxu0 0.0
  %1586 = vmatmul.mubr.f32.gmra.mrb[0].mxu0 %v1501
  %v1587 = vpop.f32.mrb[0].mxu0
  %v1588 = vadd.f32 0.0, %v1587
  %v1589 = vpop.f32.mrb[0].mxu0
  %1590 = vmatprep.mubr.f32.mxu0 0.0
  %1591 = vmatmul.mubr.f32.gmra.mrb[0].mxu0 %v1504
  %v1592 = vpop.f32.mrb[0].mxu0
  %v1593 = vadd.f32 0.0, %v1592
  %v1594 = vpop.f32.mrb[0].mxu0
  %1595 = vdwg.mxu0
  %v1596 = vmul.f32 %v1573, 0.35355338
  %v1597 = vmul.f32 %v1578, 0.35355338
  %v1598 = vmul.f32 %v1583, 0.35355338
  %v1599 = vmul.f32 %v1588, 0.35355338
  %v1600 = vmul.f32 %v1593, 0.35355338
  %v1601 = vadd.f32 %v1596, %v72
  %v1602 = vadd.f32 %v1597, %v73
  %v1603 = vadd.f32 %v1598, %v74
  %v1604 = vadd.f32 %v1599, %v75
  %v1605 = vadd.f32 %v1600, %v76
  %v1606 = vsel %vm735, %v1601, -inf
  %1607 = vmax.xlane.f32.xlu0 %v1606
  %v1608 = vpop.xlane.xlu0 %1607
  %v1609 = vsel %vm735, %v1602, -inf
  %1610 = vmax.xlane.f32.xlu0 %v1609
  %v1611 = vpop.xlane.xlu0 %1610
  %v1612 = vsel %vm735, %v1603, -inf
  %1613 = vmax.xlane.f32.xlu0 %v1612
  %v1614 = vpop.xlane.xlu0 %1613
  %v1615 = vsel %vm735, %v1604, -inf
  %1616 = vmax.xlane.f32.xlu0 %v1615
  %v1617 = vpop.xlane.xlu0 %1616
  %v1618 = vsel %vm735, %v1605, -inf
  %1619 = vmax.xlane.f32.xlu0 %v1618
  %v1620 = vpop.xlane.xlu0 %1619
  %v1621 = vsub.f32 %v1601, %v1608
  %v1622 = vsub.f32 %v1602, %v1611
  %v1623 = vsub.f32 %v1603, %v1614
  %v1624 = vsub.f32 %v1604, %v1617
  %v1625 = vsub.f32 %v1605, %v1620
  %v1626 = vmul.f32 %v1621, 1.442695
  %v1627 = vpow.pop %v1626
  %v1628 = vmul.f32 %v1622, 1.442695
  %v1629 = vpow.pop %v1628
  %v1630 = vmul.f32 %v1623, 1.442695
  %v1631 = vpow.pop %v1630
  %v1632 = vmul.f32 %v1624, 1.442695
  %v1633 = vpow.pop %v1632
  %v1634 = vmul.f32 %v1625, 1.442695
  %v1635 = vpow.pop %v1634
  %v1636 = vsel %vm735, %v1627, 0.0
  %1637 = vadd.xlane.f32.xlu0 %v1636
  %v1638 = vpop.xlane.xlu0 %1637
  %v1639 = vsel %vm735, %v1629, 0.0
  %1640 = vadd.xlane.f32.xlu0 %v1639
  %v1641 = vpop.xlane.xlu0 %1640
  %v1642 = vsel %vm735, %v1631, 0.0
  %1643 = vadd.xlane.f32.xlu0 %v1642
  %v1644 = vpop.xlane.xlu0 %1643
  %v1645 = vsel %vm735, %v1633, 0.0
  %1646 = vadd.xlane.f32.xlu0 %v1645
  %v1647 = vpop.xlane.xlu0 %1646
  %v1648 = vsel %vm735, %v1635, 0.0
  %1649 = vadd.xlane.f32.xlu0 %v1648
  %v1650 = vpop.xlane.xlu0 %1649
  %v1651 = vrcp.pop %v1638
  %v1652 = vrcp.pop %v1641
  %v1653 = vrcp.pop %v1644
  %v1654 = vrcp.pop %v1647
  %v1655 = vrcp.pop %v1650
  %v1656 = vmul.f32 %v1627, %v1651
  %v1657 = vmul.f32 %v1629, %v1652
  %v1658 = vmul.f32 %v1631, %v1653
  %v1659 = vmul.f32 %v1633, %v1654
  %v1660 = vmul.f32 %v1635, %v1655
  %v1662 = vsel %vm735, %v1656, 0
  %v1665 = vsel %vm735, %v1657, 0
  %v1668 = vsel %vm735, %v1658, 0
  %v1671 = vsel %vm735, %v1659, 0
  %v1674 = vsel %vm735, %v1660, 0
  %1676 = vmatprep.subr.mxu0 0.0
  %1677 = vmatpush1.msra.mxu0 %v577
  %1678 = vmatprep.subr.mxu0 0.0
  %1679 = vmatpush1.msra.mxu0 %v582
  %1680 = vmatprep.subr.mxu0 0.0
  %1681 = vmatpush1.msra.mxu0 %v587
  %1682 = vmatprep.subr.mxu0 0.0
  %1683 = vmatpush1.msra.mxu0 %v592
  %1684 = vmatprep.subr.mxu0 0.0
  %1685 = vmatpush1.msra.mxu0 %v597
  %1686 = vmatprep.subr.mxu0 0.0
  %1687 = vmatpush1.msra.mxu0 0.0
  %1688 = vmatprep.subr.mxu0 0.0
  %1689 = vmatpush1.msra.mxu0 0.0
  %1690 = vmatprep.subr.mxu0 0.0
  %1691 = vmatpush1.msra.mxu0 0.0
  %1692 = vmatprep.subr.mxu0 0.0
  %1693 = vmatpush1.msra.mxu0 0.0
  %1694 = vmatprep.subr.mxu0 0.0
  %1695 = vmatpush1.msra.mxu0 0.0
  %1696 = vmatprep.subr.mxu0 0.0
  %1697 = vmatpush1.msra.mxu0 0.0
  %1698 = vmatprep.subr.mxu0 0.0
  %1699 = vmatpush1.msra.mxu0 0.0
  %1700 = vmatprep.subr.mxu0 0.0
  %1701 = vmatpush1.msra.mxu0 0.0
  %1702 = vmatprep.subr.mxu0 0.0
  %1703 = vmatpush1.msra.mxu0 0.0
  %1704 = vmatprep.subr.mxu0 0.0
  %1705 = vmatpush1.msra.mxu0 0.0
  %1706 = vmatprep.subr.mxu0 0.0
  %1707 = vmatpush1.msra.mxu0 0.0
  %1708 = vmatprep.subr.mxu0 0.0
  %1709 = vmatpush1.msra.mxu0 0.0
  %1710 = vmatprep.subr.mxu0 0.0
  %1711 = vmatpush1.msra.mxu0 0.0
  %1712 = vmatprep.subr.mxu0 0.0
  %1713 = vmatpush1.msra.mxu0 0.0
  %1714 = vmatprep.subr.mxu0 0.0
  %1715 = vmatpush1.msra.mxu0 0.0
  %1716 = vmatprep.subr.mxu0 0.0
  %1717 = vmatpush1.msra.mxu0 0.0
  %1718 = vmatprep.subr.mxu0 0.0
  %1719 = vmatpush1.msra.mxu0 0.0
  %1720 = vmatprep.subr.mxu0 0.0
  %1721 = vmatpush1.msra.mxu0 0.0
  %1722 = vmatprep.subr.mxu0 0.0
  %1723 = vmatpush1.msra.mxu0 0.0
  %1724 = vmatprep.subr.mxu0 0.0
  %1725 = vmatpush1.msra.mxu0 0.0
  %1726 = vmatprep.subr.mxu0 0.0
  %1727 = vmatpush1.msra.mxu0 0.0
  %1728 = vmatprep.subr.mxu0 0.0
  %1729 = vmatpush1.msra.mxu0 0.0
  %1730 = vmatprep.subr.mxu0 0.0
  %1731 = vmatpush1.msra.mxu0 0.0
  %1732 = vmatprep.subr.mxu0 0.0
  %1733 = vmatpush1.msra.mxu0 0.0
  %1734 = vmatprep.subr.mxu0 0.0
  %1735 = vmatpush1.msra.mxu0 0.0
  %1736 = vmatprep.subr.mxu0 0.0
  %1737 = vmatpush1.msra.mxu0 0.0
  %1738 = vmatprep.subr.mxu0 0.0
  %1739 = vmatpush1.msra.mxu0 0.0
  %1740 = vmatprep.mubr.f32.mxu0 0.0
  %1741 = vmatmul.mubr.f32.gmra.mrb[0].mxu0 %v1662
  %v1742 = vpop.f32.mrb[0].mxu0
  %v1743 = vadd.f32 0.0, %v1742
  %v1744 = vpop.f32.mrb[0].mxu0
  %1745 = vmatprep.mubr.f32.mxu0 0.0
  %1746 = vmatmul.mubr.f32.gmra.mrb[0].mxu0 %v1665
  %v1747 = vpop.f32.mrb[0].mxu0
  %v1748 = vadd.f32 0.0, %v1747
  %v1749 = vpop.f32.mrb[0].mxu0
  %1750 = vmatprep.mubr.f32.mxu0 0.0
  %1751 = vmatmul.mubr.f32.gmra.mrb[0].mxu0 %v1668
  %v1752 = vpop.f32.mrb[0].mxu0
  %v1753 = vadd.f32 0.0, %v1752
  %v1754 = vpop.f32.mrb[0].mxu0
  %1755 = vmatprep.mubr.f32.mxu0 0.0
  %1756 = vmatmul.mubr.f32.gmra.mrb[0].mxu0 %v1671
  %v1757 = vpop.f32.mrb[0].mxu0
  %v1758 = vadd.f32 0.0, %v1757
  %v1759 = vpop.f32.mrb[0].mxu0
  %1760 = vmatprep.mubr.f32.mxu0 0.0
  %1761 = vmatmul.mubr.f32.gmra.mrb[0].mxu0 %v1674
  %v1762 = vpop.f32.mrb[0].mxu0
  %v1763 = vadd.f32 0.0, %v1762
  %v1764 = vpop.f32.mrb[0].mxu0
  %1765 = vdwg.mxu0
  %v1766 = vmul.f32 %v1743, %v32
  %v1767 = vmul.f32 %v1748, %v32
  %v1768 = vmul.f32 %v1753, %v32
  %v1769 = vmul.f32 %v1758, %v32
  %v1770 = vmul.f32 %v1763, %v32
  %v1771 = vadd.f32 %v1481, %v1766
  %v1772 = vadd.f32 %v1482, %v1767
  %v1773 = vadd.f32 %v1483, %v1768
  %v1774 = vadd.f32 %v1484, %v1769
  %v1775 = vadd.f32 %v1485, %v1770
  %v1776 = vld [vmem:[%s1 + $0xd8] sm:$0xff]
  %v1777 = vld [vmem:[%s1 + $0xe0] sm:$0xff]
  %v1778 = vld [vmem:[%s1 + $0xe8] sm:$0xff]
  %v1779 = vld [vmem:[%s1 + $0xf0] sm:$0xff]
  %v1781 = vsel %vm203, %v1771, 0
  %v1784 = vsel %vm203, %v1772, 0
  %v1787 = vsel %vm203, %v1773, 0
  %v1790 = vsel %vm203, %v1774, 0
  %v1793 = vsel %vm203, %v1775, 0
  %1795 = vmatprep.subr.mxu0 0.0
  %1796 = vmatpush1.msra.mxu0 %v1776
  %1797 = vmatprep.subr.mxu0 0.0
  %1798 = vmatpush1.msra.mxu0 %v1777
  %1799 = vmatprep.subr.mxu0 0.0
  %1800 = vmatpush1.msra.mxu0 %v1778
  %1801 = vmatprep.subr.mxu0 0.0
  %1802 = vmatpush1.msra.mxu0 %v1779
  %1803 = vmatprep.subr.mxu0 0.0
  %1804 = vmatpush1.msra.mxu0 0.0
  %1805 = vmatprep.subr.mxu0 0.0
  %1806 = vmatpush1.msra.mxu0 0.0
  %1807 = vmatprep.subr.mxu0 0.0
  %1808 = vmatpush1.msra.mxu0 0.0
  %1809 = vmatprep.subr.mxu0 0.0
  %1810 = vmatpush1.msra.mxu0 0.0
  %1811 = vmatprep.subr.mxu0 0.0
  %1812 = vmatpush1.msra.mxu0 0.0
  %1813 = vmatprep.subr.mxu0 0.0
  %1814 = vmatpush1.msra.mxu0 0.0
  %1815 = vmatprep.subr.mxu0 0.0
  %1816 = vmatpush1.msra.mxu0 0.0
  %1817 = vmatprep.subr.mxu0 0.0
  %1818 = vmatpush1.msra.mxu0 0.0
  %1819 = vmatprep.subr.mxu0 0.0
  %1820 = vmatpush1.msra.mxu0 0.0
  %1821 = vmatprep.subr.mxu0 0.0
  %1822 = vmatpush1.msra.mxu0 0.0
  %1823 = vmatprep.subr.mxu0 0.0
  %1824 = vmatpush1.msra.mxu0 0.0
  %1825 = vmatprep.subr.mxu0 0.0
  %1826 = vmatpush1.msra.mxu0 0.0
  %1827 = vmatprep.subr.mxu0 0.0
  %1828 = vmatpush1.msra.mxu0 0.0
  %1829 = vmatprep.subr.mxu0 0.0
  %1830 = vmatpush1.msra.mxu0 0.0
  %1831 = vmatprep.subr.mxu0 0.0
  %1832 = vmatpush1.msra.mxu0 0.0
  %1833 = vmatprep.subr.mxu0 0.0
  %1834 = vmatpush1.msra.mxu0 0.0
  %1835 = vmatprep.subr.mxu0 0.0
  %1836 = vmatpush1.msra.mxu0 0.0
  %1837 = vmatprep.subr.mxu0 0.0
  %1838 = vmatpush1.msra.mxu0 0.0
  %1839 = vmatprep.subr.mxu0 0.0
  %1840 = vmatpush1.msra.mxu0 0.0
  %1841 = vmatprep.subr.mxu0 0.0
  %1842 = vmatpush1.msra.mxu0 0.0
  %1843 = vmatprep.subr.mxu0 0.0
  %1844 = vmatpush1.msra.mxu0 0.0
  %1845 = vmatprep.subr.mxu0 0.0
  %1846 = vmatpush1.msra.mxu0 0.0
  %1847 = vmatprep.subr.mxu0 0.0
  %1848 = vmatpush1.msra.mxu0 0.0
  %1849 = vmatprep.subr.mxu0 0.0
  %1850 = vmatpush1.msra.mxu0 0.0
  %1851 = vmatprep.subr.mxu0 0.0
  %1852 = vmatpush1.msra.mxu0 0.0
  %1853 = vmatprep.subr.mxu0 0.0
  %1854 = vmatpush1.msra.mxu0 0.0
  %1855 = vmatprep.subr.mxu0 0.0
  %1856 = vmatpush1.msra.mxu0 0.0
  %1857 = vmatprep.subr.mxu0 0.0
  %1858 = vmatpush1.msra.mxu0 0.0
  %1859 = vmatprep.mubr.f32.mxu0 0.0
  %1860 = vmatmul.mubr.f32.gmra.mrb[0].mxu0 %v1781
  %v1861 = vpop.f32.mrb[0].mxu0
  %v1862 = vadd.f32 0.0, %v1861
  %v1863 = vpop.f32.mrb[0].mxu0
  %1864 = vmatprep.mubr.f32.mxu0 0.0
  %1865 = vmatmul.mubr.f32.gmra.mrb[0].mxu0 %v1784
  %v1866 = vpop.f32.mrb[0].mxu0
  %v1867 = vadd.f32 0.0, %v1866
  %v1868 = vpop.f32.mrb[0].mxu0
  %1869 = vmatprep.mubr.f32.mxu0 0.0
  %1870 = vmatmul.mubr.f32.gmra.mrb[0].mxu0 %v1787
  %v1871 = vpop.f32.mrb[0].mxu0
  %v1872 = vadd.f32 0.0, %v1871
  %v1873 = vpop.f32.mrb[0].mxu0
  %1874 = vmatprep.mubr.f32.mxu0 0.0
  %1875 = vmatmul.mubr.f32.gmra.mrb[0].mxu0 %v1790
  %v1876 = vpop.f32.mrb[0].mxu0
  %v1877 = vadd.f32 0.0, %v1876
  %v1878 = vpop.f32.mrb[0].mxu0
  %1879 = vmatprep.mubr.f32.mxu0 0.0
  %1880 = vmatmul.mubr.f32.gmra.mrb[0].mxu0 %v1793
  %v1881 = vpop.f32.mrb[0].mxu0
  %v1882 = vadd.f32 0.0, %v1881
  %v1883 = vpop.f32.mrb[0].mxu0
  %1884 = vdwg.mxu0
  %v1885 = vadd.f32 %v200, %v1862
  %v1886 = vadd.f32 %v192, %v1867
  %v1887 = vadd.f32 %v193, %v1872
  %v1888 = vadd.f32 %v194, %v1877
  %v1889 = vadd.f32 %v195, %v1882
  %v1890 = vld [vmem:[%s1 + $0xf8] sm:$0x1]
  %v1891 = vlaneseq
  %v1892 = vshrl.u32 %v1891, 7
  %v1893 = vsub.s32 0, %v1892
  %v1894 = vrot.slane %v1890, %v1893
  %v1895 = vadd.f32 %v1885, %v1894
  %v1896 = vadd.f32 %v1886, %v1894
  %v1897 = vadd.f32 %v1887, %v1894
  %v1898 = vadd.f32 %v1888, %v1894
  %v1899 = vadd.f32 %v1889, %v1894
  %v1900 = vld [vmem:[%s1 + $0x100] sm:$0x1]
  %v1901 = vld [vmem:[%s1 + $0x108] sm:$0x1]
  %v1902 = vsel %vm203, %v1895, 0.0
  %1903 = vadd.xlane.f32.xlu0 %v1902
  %v1904 = vpop.xlane.xlu0 %1903
  %v1905 = vsel %vm203, %v1896, 0.0
  %1906 = vadd.xlane.f32.xlu0 %v1905
  %v1907 = vpop.xlane.xlu0 %1906
  %v1908 = vsel %vm203, %v1897, 0.0
  %1909 = vadd.xlane.f32.xlu0 %v1908
  %v1910 = vpop.xlane.xlu0 %1909
  %v1911 = vsel %vm203, %v1898, 0.0
  %1912 = vadd.xlane.f32.xlu0 %v1911
  %v1913 = vpop.xlane.xlu0 %1912
  %v1914 = vsel %vm203, %v1899, 0.0
  %1915 = vadd.xlane.f32.xlu0 %v1914
  %v1916 = vpop.xlane.xlu0 %1915
  %v1917 = vmul.f32 %v1904, %v219
  %v1918 = vmul.f32 %v1907, %v219
  %v1919 = vmul.f32 %v1910, %v219
  %v1920 = vmul.f32 %v1913, %v219
  %v1921 = vmul.f32 %v1916, %v219
  %v1922 = vsub.f32 %v1895, %v1917
  %v1923 = vsub.f32 %v1896, %v1918
  %v1924 = vsub.f32 %v1897, %v1919
  %v1925 = vsub.f32 %v1898, %v1920
  %v1926 = vsub.f32 %v1899, %v1921
  %v1927 = vmul.f32 %v1922, %v1922
  %v1928 = vmul.f32 %v1923, %v1923
  %v1929 = vmul.f32 %v1924, %v1924
  %v1930 = vmul.f32 %v1925, %v1925
  %v1931 = vmul.f32 %v1926, %v1926
  %v1932 = vsel %vm203, %v1927, 0.0
  %1933 = vadd.xlane.f32.xlu0 %v1932
  %v1934 = vpop.xlane.xlu0 %1933
  %v1935 = vsel %vm203, %v1928, 0.0
  %1936 = vadd.xlane.f32.xlu0 %v1935
  %v1937 = vpop.xlane.xlu0 %1936
  %v1938 = vsel %vm203, %v1929, 0.0
  %1939 = vadd.xlane.f32.xlu0 %v1938
  %v1940 = vpop.xlane.xlu0 %1939
  %v1941 = vsel %vm203, %v1930, 0.0
  %1942 = vadd.xlane.f32.xlu0 %v1941
  %v1943 = vpop.xlane.xlu0 %1942
  %v1944 = vsel %vm203, %v1931, 0.0
  %1945 = vadd.xlane.f32.xlu0 %v1944
  %v1946 = vpop.xlane.xlu0 %1945
  %v1947 = vmul.f32 %v1934, %v219
  %v1948 = vmul.f32 %v1937, %v219
  %v1949 = vmul.f32 %v1940, %v219
  %v1950 = vmul.f32 %v1943, %v219
  %v1951 = vmul.f32 %v1946, %v219
  %v1952 = vadd.f32 %v1947, 1e-06
  %v1953 = vadd.f32 %v1948, 1e-06
  %v1954 = vadd.f32 %v1949, 1e-06
  %v1955 = vadd.f32 %v1950, 1e-06
  %v1956 = vadd.f32 %v1951, 1e-06
  %v1957 = vrsqrt.pop %v1952
  %v1958 = vrsqrt.pop %v1953
  %v1959 = vrsqrt.pop %v1954
  %v1960 = vrsqrt.pop %v1955
  %v1961 = vrsqrt.pop %v1956
  %v1962 = vmul.f32 %v1922, %v1957
  %v1963 = vmul.f32 %v1923, %v1958
  %v1964 = vmul.f32 %v1924, %v1959
  %v1965 = vmul.f32 %v1925, %v1960
  %v1966 = vmul.f32 %v1926, %v1961
  %v1967 = vlaneseq
  %v1968 = vshrl.u32 %v1967, 7
  %v1969 = vsub.s32 0, %v1968
  %v1970 = vrot.slane %v1900, %v1969
  %v1971 = vmul.f32 %v1962, %v1970
  %v1972 = vmul.f32 %v1963, %v1970
  %v1973 = vmul.f32 %v1964, %v1970
  %v1974 = vmul.f32 %v1965, %v1970
  %v1975 = vmul.f32 %v1966, %v1970
  %v1976 = vlaneseq
  %v1977 = vshrl.u32 %v1976, 7
  %v1978 = vsub.s32 0, %v1977
  %v1979 = vrot.slane %v1901, %v1978
  %v1980 = vadd.f32 %v1971, %v1979
  %v1981 = vadd.f32 %v1972, %v1979
  %v1982 = vadd.f32 %v1973, %v1979
  %v1983 = vadd.f32 %v1974, %v1979
  %v1984 = vadd.f32 %v1975, %v1979
  %v1985 = vld [vmem:[%s1 + $0x110] sm:$0xff]
  %v1986 = vld [vmem:[%s1 + $0x118] sm:$0xff]
  %v1987 = vld [vmem:[%s1 + $0x120] sm:$0xff]
  %v1988 = vld [vmem:[%s1 + $0x128] sm:$0xff]
  %v1989 = vld [vmem:[%s1 + $0x130] sm:$0x1]
  %v1990 = vlaneseq
  %v1991 = vshrl.u32 %v1990, 7
  %v1992 = vsub.s32 0, %v1991
  %v1993 = vrot.slane %v1989, %v1992
  %v1995 = vsel %vm203, %v1980, 0
  %v1998 = vsel %vm203, %v1981, 0
  %v2001 = vsel %vm203, %v1982, 0
  %v2004 = vsel %vm203, %v1983, 0
  %v2007 = vsel %vm203, %v1984, 0
  %2009 = vmatprep.subr.mxu0 0.0
  %2010 = vmatpush1.msra.mxu0 %v1985
  %2011 = vmatprep.subr.mxu0 0.0
  %2012 = vmatpush1.msra.mxu0 %v1986
  %2013 = vmatprep.subr.mxu0 0.0
  %2014 = vmatpush1.msra.mxu0 %v1987
  %2015 = vmatprep.subr.mxu0 0.0
  %2016 = vmatpush1.msra.mxu0 %v1988
  %2017 = vmatprep.subr.mxu0 0.0
  %2018 = vmatpush1.msra.mxu0 0.0
  %2019 = vmatprep.subr.mxu0 0.0
  %2020 = vmatpush1.msra.mxu0 0.0
  %2021 = vmatprep.subr.mxu0 0.0
  %2022 = vmatpush1.msra.mxu0 0.0
  %2023 = vmatprep.subr.mxu0 0.0
  %2024 = vmatpush1.msra.mxu0 0.0
  %2025 = vmatprep.subr.mxu0 0.0
  %2026 = vmatpush1.msra.mxu0 0.0
  %2027 = vmatprep.subr.mxu0 0.0
  %2028 = vmatpush1.msra.mxu0 0.0
  %2029 = vmatprep.subr.mxu0 0.0
  %2030 = vmatpush1.msra.mxu0 0.0
  %2031 = vmatprep.subr.mxu0 0.0
  %2032 = vmatpush1.msra.mxu0 0.0
  %2033 = vmatprep.subr.mxu0 0.0
  %2034 = vmatpush1.msra.mxu0 0.0
  %2035 = vmatprep.subr.mxu0 0.0
  %2036 = vmatpush1.msra.mxu0 0.0
  %2037 = vmatprep.subr.mxu0 0.0
  %2038 = vmatpush1.msra.mxu0 0.0
  %2039 = vmatprep.subr.mxu0 0.0
  %2040 = vmatpush1.msra.mxu0 0.0
  %2041 = vmatprep.subr.mxu0 0.0
  %2042 = vmatpush1.msra.mxu0 0.0
  %2043 = vmatprep.subr.mxu0 0.0
  %2044 = vmatpush1.msra.mxu0 0.0
  %2045 = vmatprep.subr.mxu0 0.0
  %2046 = vmatpush1.msra.mxu0 0.0
  %2047 = vmatprep.subr.mxu0 0.0
  %2048 = vmatpush1.msra.mxu0 0.0
  %2049 = vmatprep.subr.mxu0 0.0
  %2050 = vmatpush1.msra.mxu0 0.0
  %2051 = vmatprep.subr.mxu0 0.0
  %2052 = vmatpush1.msra.mxu0 0.0
  %2053 = vmatprep.subr.mxu0 0.0
  %2054 = vmatpush1.msra.mxu0 0.0
  %2055 = vmatprep.subr.mxu0 0.0
  %2056 = vmatpush1.msra.mxu0 0.0
  %2057 = vmatprep.subr.mxu0 0.0
  %2058 = vmatpush1.msra.mxu0 0.0
  %2059 = vmatprep.subr.mxu0 0.0
  %2060 = vmatpush1.msra.mxu0 0.0
  %2061 = vmatprep.subr.mxu0 0.0
  %2062 = vmatpush1.msra.mxu0 0.0
  %2063 = vmatprep.subr.mxu0 0.0
  %2064 = vmatpush1.msra.mxu0 0.0
  %2065 = vmatprep.subr.mxu0 0.0
  %2066 = vmatpush1.msra.mxu0 0.0
  %2067 = vmatprep.subr.mxu0 0.0
  %2068 = vmatpush1.msra.mxu0 0.0
  %2069 = vmatprep.subr.mxu0 0.0
  %2070 = vmatpush1.msra.mxu0 0.0
  %2071 = vmatprep.subr.mxu0 0.0
  %2072 = vmatpush1.msra.mxu0 0.0
  %2073 = vmatprep.mubr.f32.mxu0 0.0
  %2074 = vmatmul.mubr.f32.gmra.mrb[0].mxu0 %v1995
  %v2075 = vpop.f32.mrb[0].mxu0
  %v2076 = vadd.f32 %v1993, %v2075
  %v2077 = vpop.f32.mrb[0].mxu0
  %2078 = vmatprep.mubr.f32.mxu0 0.0
  %2079 = vmatmul.mubr.f32.gmra.mrb[0].mxu0 %v1998
  %v2080 = vpop.f32.mrb[0].mxu0
  %v2081 = vadd.f32 %v1993, %v2080
  %v2082 = vpop.f32.mrb[0].mxu0
  %2083 = vmatprep.mubr.f32.mxu0 0.0
  %2084 = vmatmul.mubr.f32.gmra.mrb[0].mxu0 %v2001
  %v2085 = vpop.f32.mrb[0].mxu0
  %v2086 = vadd.f32 %v1993, %v2085
  %v2087 = vpop.f32.mrb[0].mxu0
  %2088 = vmatprep.mubr.f32.mxu0 0.0
  %2089 = vmatmul.mubr.f32.gmra.mrb[0].mxu0 %v2004
  %v2090 = vpop.f32.mrb[0].mxu0
  %v2091 = vadd.f32 %v1993, %v2090
  %v2092 = vpop.f32.mrb[0].mxu0
  %2093 = vmatprep.mubr.f32.mxu0 0.0
  %2094 = vmatmul.mubr.f32.gmra.mrb[0].mxu0 %v2007
  %v2095 = vpop.f32.mrb[0].mxu0
  %v2096 = vadd.f32 %v1993, %v2095
  %v2097 = vpop.f32.mrb[0].mxu0
  %2098 = vdwg.mxu0
  %v2099 = vmul.f32 %v2076, 0.70710677
  %v2100 = vmul.f32 %v2081, 0.70710677
  %v2101 = vmul.f32 %v2086, 0.70710677
  %v2102 = vmul.f32 %v2091, 0.70710677
  %v2103 = vmul.f32 %v2096, 0.70710677
  %v2104 = vand.u32 2147483647, %v2099
  %v2105 = vand.u32 2147483647, %v2100
  %v2106 = vand.u32 2147483647, %v2101
  %v2107 = vand.u32 2147483647, %v2102
  %v2108 = vand.u32 2147483647, %v2103
  %v2109 = vmul.f32 %v2104, 0.3275911
  %v2110 = vmul.f32 %v2105, 0.3275911
  %v2111 = vmul.f32 %v2106, 0.3275911
  %v2112 = vmul.f32 %v2107, 0.3275911
  %v2113 = vmul.f32 %v2108, 0.3275911
  %v2114 = vadd.f32 %v2109, 1.0
  %v2115 = vadd.f32 %v2110, 1.0
  %v2116 = vadd.f32 %v2111, 1.0
  %v2117 = vadd.f32 %v2112, 1.0
  %v2118 = vadd.f32 %v2113, 1.0
  %v2119 = vrcp.pop %v2114
  %v2120 = vrcp.pop %v2115
  %v2121 = vrcp.pop %v2116
  %v2122 = vrcp.pop %v2117
  %v2123 = vrcp.pop %v2118
  %v2124 = vmul.f32 %v2119, 1.0614054
  %v2125 = vmul.f32 %v2120, 1.0614054
  %v2126 = vmul.f32 %v2121, 1.0614054
  %v2127 = vmul.f32 %v2122, 1.0614054
  %v2128 = vmul.f32 %v2123, 1.0614054
  %v2129 = vadd.f32 %v2124, -1.4531521
  %v2130 = vadd.f32 %v2125, -1.4531521
  %v2131 = vadd.f32 %v2126, -1.4531521
  %v2132 = vadd.f32 %v2127, -1.4531521
  %v2133 = vadd.f32 %v2128, -1.4531521
  %v2134 = vmul.f32 %v2119, %v2129
  %v2135 = vmul.f32 %v2120, %v2130
  %v2136 = vmul.f32 %v2121, %v2131
  %v2137 = vmul.f32 %v2122, %v2132
  %v2138 = vmul.f32 %v2123, %v2133
  %v2139 = vadd.f32 %v2134, 1.4214138
  %v2140 = vadd.f32 %v2135, 1.4214138
  %v2141 = vadd.f32 %v2136, 1.4214138
  %v2142 = vadd.f32 %v2137, 1.4214138
  %v2143 = vadd.f32 %v2138, 1.4214138
  %v2144 = vmul.f32 %v2119, %v2139
  %v2145 = vmul.f32 %v2120, %v2140
  %v2146 = vmul.f32 %v2121, %v2141
  %v2147 = vmul.f32 %v2122, %v2142
  %v2148 = vmul.f32 %v2123, %v2143
  %v2149 = vadd.f32 %v2144, -0.28449672
  %v2150 = vadd.f32 %v2145, -0.28449672
  %v2151 = vadd.f32 %v2146, -0.28449672
  %v2152 = vadd.f32 %v2147, -0.28449672
  %v2153 = vadd.f32 %v2148, -0.28449672
  %v2154 = vmul.f32 %v2119, %v2149
  %v2155 = vmul.f32 %v2120, %v2150
  %v2156 = vmul.f32 %v2121, %v2151
  %v2157 = vmul.f32 %v2122, %v2152
  %v2158 = vmul.f32 %v2123, %v2153
  %v2159 = vadd.f32 %v2154, 0.2548296
  %v2160 = vadd.f32 %v2155, 0.2548296
  %v2161 = vadd.f32 %v2156, 0.2548296
  %v2162 = vadd.f32 %v2157, 0.2548296
  %v2163 = vadd.f32 %v2158, 0.2548296
  %v2164 = vmul.f32 %v2119, %v2159
  %v2165 = vmul.f32 %v2120, %v2160
  %v2166 = vmul.f32 %v2121, %v2161
  %v2167 = vmul.f32 %v2122, %v2162
  %v2168 = vmul.f32 %v2123, %v2163
  %v2169 = vsub.f32 0.0, %v2104
  %v2170 = vsub.f32 0.0, %v2105
  %v2171 = vsub.f32 0.0, %v2106
  %v2172 = vsub.f32 0.0, %v2107
  %v2173 = vsub.f32 0.0, %v2108
  %v2174 = vmul.f32 %v2169, %v2104
  %v2175 = vmul.f32 %v2170, %v2105
  %v2176 = vmul.f32 %v2171, %v2106
  %v2177 = vmul.f32 %v2172, %v2107
  %v2178 = vmul.f32 %v2173, %v2108
  %v2179 = vmul.f32 %v2174, 1.442695
  %v2180 = vpow.pop %v2179
  %v2181 = vmul.f32 %v2175, 1.442695
  %v2182 = vpow.pop %v2181
  %v2183 = vmul.f32 %v2176, 1.442695
  %v2184 = vpow.pop %v2183
  %v2185 = vmul.f32 %v2177, 1.442695
  %v2186 = vpow.pop %v2185
  %v2187 = vmul.f32 %v2178, 1.442695
  %v2188 = vpow.pop %v2187
  %v2189 = vmul.f32 %v2164, %v2180
  %v2190 = vmul.f32 %v2165, %v2182
  %v2191 = vmul.f32 %v2166, %v2184
  %v2192 = vmul.f32 %v2167, %v2186
  %v2193 = vmul.f32 %v2168, %v2188
  %v2194 = vsub.f32 1.0, %v2189
  %v2195 = vsub.f32 1.0, %v2190
  %v2196 = vsub.f32 1.0, %v2191
  %v2197 = vsub.f32 1.0, %v2192
  %v2198 = vsub.f32 1.0, %v2193
  %vm2199 = vcmp.ge.f32.partialorder %v2099, 0.0
  %vm2200 = vcmp.ge.f32.partialorder %v2100, 0.0
  %vm2201 = vcmp.ge.f32.partialorder %v2101, 0.0
  %vm2202 = vcmp.ge.f32.partialorder %v2102, 0.0
  %vm2203 = vcmp.ge.f32.partialorder %v2103, 0.0
  %v2204 = vsub.f32 0.0, %v2194
  %v2205 = vsub.f32 0.0, %v2195
  %v2206 = vsub.f32 0.0, %v2196
  %v2207 = vsub.f32 0.0, %v2197
  %v2208 = vsub.f32 0.0, %v2198
  %v2209 = vsel %vm2199, %v2194, %v2204
  %v2210 = vsel %vm2200, %v2195, %v2205
  %v2211 = vsel %vm2201, %v2196, %v2206
  %v2212 = vsel %vm2202, %v2197, %v2207
  %v2213 = vsel %vm2203, %v2198, %v2208
  %v2214 = vmul.f32 %v2076, 0.5
  %v2215 = vmul.f32 %v2081, 0.5
  %v2216 = vmul.f32 %v2086, 0.5
  %v2217 = vmul.f32 %v2091, 0.5
  %v2218 = vmul.f32 %v2096, 0.5
  %v2219 = vadd.f32 %v2209, 1.0
  %v2220 = vadd.f32 %v2210, 1.0
  %v2221 = vadd.f32 %v2211, 1.0
  %v2222 = vadd.f32 %v2212, 1.0
  %v2223 = vadd.f32 %v2213, 1.0
  %v2224 = vmul.f32 %v2214, %v2219
  %v2225 = vmul.f32 %v2215, %v2220
  %v2226 = vmul.f32 %v2216, %v2221
  %v2227 = vmul.f32 %v2217, %v2222
  %v2228 = vmul.f32 %v2218, %v2223
  %v2229 = vld [vmem:[%s1 + $0x138] sm:$0xff]
  %v2230 = vld [vmem:[%s1 + $0x140] sm:$0xff]
  %v2231 = vld [vmem:[%s1 + $0x148] sm:$0xff]
  %v2232 = vld [vmem:[%s1 + $0x150] sm:$0xff]
  %v2233 = vld [vmem:[%s1 + $0x158] sm:$0xff]
  %v2234 = vld [vmem:[%s1 + $0x160] sm:$0xff]
  %v2235 = vld [vmem:[%s1 + $0x168] sm:$0xff]
  %v2236 = vld [vmem:[%s1 + $0x170] sm:$0xff]
  %v2237 = vld [vmem:[%s1 + $0x178] sm:$0xff]
  %v2238 = vld [vmem:[%s1 + $0x180] sm:$0xff]
  %v2239 = vld [vmem:[%s1 + $0x188] sm:$0xff]
  %v2240 = vld [vmem:[%s1 + $0x190] sm:$0xff]
  %v2241 = vld [vmem:[%s1 + $0x198] sm:$0xff]
  %v2242 = vld [vmem:[%s1 + $0x1a0] sm:$0xff]
  %v2243 = vld [vmem:[%s1 + $0x1a8] sm:$0xff]
  %v2244 = vld [vmem:[%s1 + $0x1b0] sm:$0xff]
  %2245 = vmatprep.subr.mxu0 0.0
  %2246 = vmatpush1.msra.mxu0 %v2229
  %2247 = vmatprep.subr.mxu0 0.0
  %2248 = vmatpush1.msra.mxu0 %v2230
  %2249 = vmatprep.subr.mxu0 0.0
  %2250 = vmatpush1.msra.mxu0 %v2231
  %2251 = vmatprep.subr.mxu0 0.0
  %2252 = vmatpush1.msra.mxu0 %v2232
  %2253 = vmatprep.subr.mxu0 0.0
  %2254 = vmatpush1.msra.mxu0 %v2233
  %2255 = vmatprep.subr.mxu0 0.0
  %2256 = vmatpush1.msra.mxu0 %v2234
  %2257 = vmatprep.subr.mxu0 0.0
  %2258 = vmatpush1.msra.mxu0 %v2235
  %2259 = vmatprep.subr.mxu0 0.0
  %2260 = vmatpush1.msra.mxu0 %v2236
  %2261 = vmatprep.subr.mxu0 0.0
  %2262 = vmatpush1.msra.mxu0 %v2237
  %2263 = vmatprep.subr.mxu0 0.0
  %2264 = vmatpush1.msra.mxu0 %v2238
  %2265 = vmatprep.subr.mxu0 0.0
  %2266 = vmatpush1.msra.mxu0 %v2239
  %2267 = vmatprep.subr.mxu0 0.0
  %2268 = vmatpush1.msra.mxu0 %v2240
  %2269 = vmatprep.subr.mxu0 0.0
  %2270 = vmatpush1.msra.mxu0 %v2241
  %2271 = vmatprep.subr.mxu0 0.0
  %2272 = vmatpush1.msra.mxu0 %v2242
  %2273 = vmatprep.subr.mxu0 0.0
  %2274 = vmatpush1.msra.mxu0 %v2243
  %2275 = vmatprep.subr.mxu0 0.0
  %2276 = vmatpush1.msra.mxu0 %v2244
  %2277 = vmatprep.subr.mxu0 0.0
  %2278 = vmatpush1.msra.mxu0 0.0
  %2279 = vmatprep.subr.mxu0 0.0
  %2280 = vmatpush1.msra.mxu0 0.0
  %2281 = vmatprep.subr.mxu0 0.0
  %2282 = vmatpush1.msra.mxu0 0.0
  %2283 = vmatprep.subr.mxu0 0.0
  %2284 = vmatpush1.msra.mxu0 0.0
  %2285 = vmatprep.subr.mxu0 0.0
  %2286 = vmatpush1.msra.mxu0 0.0
  %2287 = vmatprep.subr.mxu0 0.0
  %2288 = vmatpush1.msra.mxu0 0.0
  %2289 = vmatprep.subr.mxu0 0.0
  %2290 = vmatpush1.msra.mxu0 0.0
  %2291 = vmatprep.subr.mxu0 0.0
  %2292 = vmatpush1.msra.mxu0 0.0
  %2293 = vmatprep.subr.mxu0 0.0
  %2294 = vmatpush1.msra.mxu0 0.0
  %2295 = vmatprep.subr.mxu0 0.0
  %2296 = vmatpush1.msra.mxu0 0.0
  %2297 = vmatprep.subr.mxu0 0.0
  %2298 = vmatpush1.msra.mxu0 0.0
  %2299 = vmatprep.subr.mxu0 0.0
  %2300 = vmatpush1.msra.mxu0 0.0
  %2301 = vmatprep.subr.mxu0 0.0
  %2302 = vmatpush1.msra.mxu0 0.0
  %2303 = vmatprep.subr.mxu0 0.0
  %2304 = vmatpush1.msra.mxu0 0.0
  %2305 = vmatprep.subr.mxu0 0.0
  %2306 = vmatpush1.msra.mxu0 0.0
  %2307 = vmatprep.subr.mxu0 0.0
  %2308 = vmatpush1.msra.mxu0 0.0
  %2309 = vmatprep.mubr.f32.mxu0 0.0
  %2310 = vmatmul.mubr.f32.gmra.mrb[0].mxu0 %v2224
  %v2311 = vpop.f32.mrb[0].mxu0
  %v2312 = vadd.f32 0.0, %v2311
  %v2313 = vpop.f32.mrb[0].mxu0
  %2314 = vmatprep.mubr.f32.mxu0 0.0
  %2315 = vmatmul.mubr.f32.gmra.mrb[0].mxu0 %v2225
  %v2316 = vpop.f32.mrb[0].mxu0
  %v2317 = vadd.f32 0.0, %v2316
  %v2318 = vpop.f32.mrb[0].mxu0
  %2319 = vmatprep.mubr.f32.mxu0 0.0
  %2320 = vmatmul.mubr.f32.gmra.mrb[0].mxu0 %v2226
  %v2321 = vpop.f32.mrb[0].mxu0
  %v2322 = vadd.f32 0.0, %v2321
  %v2323 = vpop.f32.mrb[0].mxu0
  %2324 = vmatprep.mubr.f32.mxu0 0.0
  %2325 = vmatmul.mubr.f32.gmra.mrb[0].mxu0 %v2227
  %v2326 = vpop.f32.mrb[0].mxu0
  %v2327 = vadd.f32 0.0, %v2326
  %v2328 = vpop.f32.mrb[0].mxu0
  %2329 = vmatprep.mubr.f32.mxu0 0.0
  %2330 = vmatmul.mubr.f32.gmra.mrb[0].mxu0 %v2228
  %v2331 = vpop.f32.mrb[0].mxu0
  %v2332 = vadd.f32 0.0, %v2331
  %v2333 = vpop.f32.mrb[0].mxu0
  %2334 = vdwg.mxu0
  %v2335 = vadd.f32 %v1895, %v2312
  %v2336 = vadd.f32 %v1896, %v2317
  %v2337 = vadd.f32 %v1897, %v2322
  %v2338 = vadd.f32 %v1898, %v2327
  %v2339 = vadd.f32 %v1899, %v2332
  %v2340 = vld [vmem:[%s1 + $0x1b8] sm:$0x1]
  %v2341 = vlaneseq
  %v2342 = vshrl.u32 %v2341, 7
  %v2343 = vsub.s32 0, %v2342
  %v2344 = vrot.slane %v2340, %v2343
  %v2345 = vadd.f32 %v2335, %v2344
  %v2346 = vadd.f32 %v2336, %v2344
  %v2347 = vadd.f32 %v2337, %v2344
  %v2348 = vadd.f32 %v2338, %v2344
  %v2349 = vadd.f32 %v2339, %v2344
  %v2350 = vld [vmem:[%s1 + $0x1c0] sm:$0x1]
  %v2351 = vld [vmem:[%s1 + $0x1c8] sm:$0x1]
  %v2352 = vsel %vm203, %v2345, 0.0
  %2353 = vadd.xlane.f32.xlu0 %v2352
  %v2354 = vpop.xlane.xlu0 %2353
  %v2355 = vsel %vm203, %v2346, 0.0
  %2356 = vadd.xlane.f32.xlu0 %v2355
  %v2357 = vpop.xlane.xlu0 %2356
  %v2358 = vsel %vm203, %v2347, 0.0
  %2359 = vadd.xlane.f32.xlu0 %v2358
  %v2360 = vpop.xlane.xlu0 %2359
  %v2361 = vsel %vm203, %v2348, 0.0
  %2362 = vadd.xlane.f32.xlu0 %v2361
  %v2363 = vpop.xlane.xlu0 %2362
  %v2364 = vsel %vm203, %v2349, 0.0
  %2365 = vadd.xlane.f32.xlu0 %v2364
  %v2366 = vpop.xlane.xlu0 %2365
  %v2367 = vmul.f32 %v2354, %v219
  %v2368 = vmul.f32 %v2357, %v219
  %v2369 = vmul.f32 %v2360, %v219
  %v2370 = vmul.f32 %v2363, %v219
  %v2371 = vmul.f32 %v2366, %v219
  %v2372 = vsub.f32 %v2345, %v2367
  %v2373 = vsub.f32 %v2346, %v2368
  %v2374 = vsub.f32 %v2347, %v2369
  %v2375 = vsub.f32 %v2348, %v2370
  %v2376 = vsub.f32 %v2349, %v2371
  %v2377 = vmul.f32 %v2372, %v2372
  %v2378 = vmul.f32 %v2373, %v2373
  %v2379 = vmul.f32 %v2374, %v2374
  %v2380 = vmul.f32 %v2375, %v2375
  %v2381 = vmul.f32 %v2376, %v2376
  %v2382 = vsel %vm203, %v2377, 0.0
  %2383 = vadd.xlane.f32.xlu0 %v2382
  %v2384 = vpop.xlane.xlu0 %2383
  %v2385 = vsel %vm203, %v2378, 0.0
  %2386 = vadd.xlane.f32.xlu0 %v2385
  %v2387 = vpop.xlane.xlu0 %2386
  %v2388 = vsel %vm203, %v2379, 0.0
  %2389 = vadd.xlane.f32.xlu0 %v2388
  %v2390 = vpop.xlane.xlu0 %2389
  %v2391 = vsel %vm203, %v2380, 0.0
  %2392 = vadd.xlane.f32.xlu0 %v2391
  %v2393 = vpop.xlane.xlu0 %2392
  %v2394 = vsel %vm203, %v2381, 0.0
  %2395 = vadd.xlane.f32.xlu0 %v2394
  %v2396 = vpop.xlane.xlu0 %2395
  %v2397 = vmul.f32 %v2384, %v219
  %v2398 = vmul.f32 %v2387, %v219
  %v2399 = vmul.f32 %v2390, %v219
  %v2400 = vmul.f32 %v2393, %v219
  %v2401 = vmul.f32 %v2396, %v219
  %v2402 = vadd.f32 %v2397, 1e-06
  %v2403 = vadd.f32 %v2398, 1e-06
  %v2404 = vadd.f32 %v2399, 1e-06
  %v2405 = vadd.f32 %v2400, 1e-06
  %v2406 = vadd.f32 %v2401, 1e-06
  %v2407 = vrsqrt.pop %v2402
  %v2408 = vrsqrt.pop %v2403
  %v2409 = vrsqrt.pop %v2404
  %v2410 = vrsqrt.pop %v2405
  %v2411 = vrsqrt.pop %v2406
  %v2412 = vmul.f32 %v2372, %v2407
  %v2413 = vmul.f32 %v2373, %v2408
  %v2414 = vmul.f32 %v2374, %v2409
  %v2415 = vmul.f32 %v2375, %v2410
  %v2416 = vmul.f32 %v2376, %v2411
  %v2417 = vlaneseq
  %v2418 = vshrl.u32 %v2417, 7
  %v2419 = vsub.s32 0, %v2418
  %v2420 = vrot.slane %v2350, %v2419
  %v2421 = vmul.f32 %v2412, %v2420
  %v2422 = vmul.f32 %v2413, %v2420
  %v2423 = vmul.f32 %v2414, %v2420
  %v2424 = vmul.f32 %v2415, %v2420
  %v2425 = vmul.f32 %v2416, %v2420
  %v2426 = vlaneseq
  %v2427 = vshrl.u32 %v2426, 7
  %v2428 = vsub.s32 0, %v2427
  %v2429 = vrot.slane %v2351, %v2428
  %v2430 = vadd.f32 %v2421, %v2429
  %v2431 = vadd.f32 %v2422, %v2429
  %v2432 = vadd.f32 %v2423, %v2429
  %v2433 = vadd.f32 %v2424, %v2429
  %v2434 = vadd.f32 %v2425, %v2429
  %v2435 = vld [vmem:[%s1 + $0x1d0] sm:$0xff]
  %v2436 = vld [vmem:[%s1 + $0x1d8] sm:$0xff]
  %v2437 = vld [vmem:[%s1 + $0x1e0] sm:$0xff]
  %v2438 = vld [vmem:[%s1 + $0x1e8] sm:$0xff]
  %v2439 = vld [vmem:[%s1 + $0x230] sm:$0x1]
  %v2440 = vlaneseq
  %v2441 = vshrl.u32 %v2440, 7
  %v2442 = vsub.s32 0, %v2441
  %v2443 = vrot.slane %v2439, %v2442
  %v2445 = vsel %vm203, %v2430, 0
  %v2448 = vsel %vm203, %v2431, 0
  %v2451 = vsel %vm203, %v2432, 0
  %v2454 = vsel %vm203, %v2433, 0
  %v2457 = vsel %vm203, %v2434, 0
  %2459 = vmatprep.subr.mxu0 0.0
  %2460 = vmatpush1.msra.mxu0 %v2435
  %2461 = vmatprep.subr.mxu0 0.0
  %2462 = vmatpush1.msra.mxu0 %v2436
  %2463 = vmatprep.subr.mxu0 0.0
  %2464 = vmatpush1.msra.mxu0 %v2437
  %2465 = vmatprep.subr.mxu0 0.0
  %2466 = vmatpush1.msra.mxu0 %v2438
  %2467 = vmatprep.subr.mxu0 0.0
  %2468 = vmatpush1.msra.mxu0 0.0
  %2469 = vmatprep.subr.mxu0 0.0
  %2470 = vmatpush1.msra.mxu0 0.0
  %2471 = vmatprep.subr.mxu0 0.0
  %2472 = vmatpush1.msra.mxu0 0.0
  %2473 = vmatprep.subr.mxu0 0.0
  %2474 = vmatpush1.msra.mxu0 0.0
  %2475 = vmatprep.subr.mxu0 0.0
  %2476 = vmatpush1.msra.mxu0 0.0
  %2477 = vmatprep.subr.mxu0 0.0
  %2478 = vmatpush1.msra.mxu0 0.0
  %2479 = vmatprep.subr.mxu0 0.0
  %2480 = vmatpush1.msra.mxu0 0.0
  %2481 = vmatprep.subr.mxu0 0.0
  %2482 = vmatpush1.msra.mxu0 0.0
  %2483 = vmatprep.subr.mxu0 0.0
  %2484 = vmatpush1.msra.mxu0 0.0
  %2485 = vmatprep.subr.mxu0 0.0
  %2486 = vmatpush1.msra.mxu0 0.0
  %2487 = vmatprep.subr.mxu0 0.0
  %2488 = vmatpush1.msra.mxu0 0.0
  %2489 = vmatprep.subr.mxu0 0.0
  %2490 = vmatpush1.msra.mxu0 0.0
  %2491 = vmatprep.subr.mxu0 0.0
  %2492 = vmatpush1.msra.mxu0 0.0
  %2493 = vmatprep.subr.mxu0 0.0
  %2494 = vmatpush1.msra.mxu0 0.0
  %2495 = vmatprep.subr.mxu0 0.0
  %2496 = vmatpush1.msra.mxu0 0.0
  %2497 = vmatprep.subr.mxu0 0.0
  %2498 = vmatpush1.msra.mxu0 0.0
  %2499 = vmatprep.subr.mxu0 0.0
  %2500 = vmatpush1.msra.mxu0 0.0
  %2501 = vmatprep.subr.mxu0 0.0
  %2502 = vmatpush1.msra.mxu0 0.0
  %2503 = vmatprep.subr.mxu0 0.0
  %2504 = vmatpush1.msra.mxu0 0.0
  %2505 = vmatprep.subr.mxu0 0.0
  %2506 = vmatpush1.msra.mxu0 0.0
  %2507 = vmatprep.subr.mxu0 0.0
  %2508 = vmatpush1.msra.mxu0 0.0
  %2509 = vmatprep.subr.mxu0 0.0
  %2510 = vmatpush1.msra.mxu0 0.0
  %2511 = vmatprep.subr.mxu0 0.0
  %2512 = vmatpush1.msra.mxu0 0.0
  %2513 = vmatprep.subr.mxu0 0.0
  %2514 = vmatpush1.msra.mxu0 0.0
  %2515 = vmatprep.subr.mxu0 0.0
  %2516 = vmatpush1.msra.mxu0 0.0
  %2517 = vmatprep.subr.mxu0 0.0
  %2518 = vmatpush1.msra.mxu0 0.0
  %2519 = vmatprep.subr.mxu0 0.0
  %2520 = vmatpush1.msra.mxu0 0.0
  %2521 = vmatprep.subr.mxu0 0.0
  %2522 = vmatpush1.msra.mxu0 0.0
  %2523 = vmatprep.mubr.f32.mxu0 0.0
  %2524 = vmatmul.mubr.f32.gmra.mrb[0].mxu0 %v2445
  %v2525 = vpop.f32.mrb[0].mxu0
  %v2526 = vadd.f32 %v2443, %v2525
  %v2527 = vpop.f32.mrb[0].mxu0
  %2528 = vmatprep.mubr.f32.mxu0 0.0
  %2529 = vmatmul.mubr.f32.gmra.mrb[0].mxu0 %v2448
  %v2530 = vpop.f32.mrb[0].mxu0
  %v2531 = vadd.f32 %v2443, %v2530
  %v2532 = vpop.f32.mrb[0].mxu0
  %2533 = vmatprep.mubr.f32.mxu0 0.0
  %2534 = vmatmul.mubr.f32.gmra.mrb[0].mxu0 %v2451
  %v2535 = vpop.f32.mrb[0].mxu0
  %v2536 = vadd.f32 %v2443, %v2535
  %v2537 = vpop.f32.mrb[0].mxu0
  %2538 = vmatprep.mubr.f32.mxu0 0.0
  %2539 = vmatmul.mubr.f32.gmra.mrb[0].mxu0 %v2454
  %v2540 = vpop.f32.mrb[0].mxu0
  %v2541 = vadd.f32 %v2443, %v2540
  %v2542 = vpop.f32.mrb[0].mxu0
  %2543 = vmatprep.mubr.f32.mxu0 0.0
  %2544 = vmatmul.mubr.f32.gmra.mrb[0].mxu0 %v2457
  %v2545 = vpop.f32.mrb[0].mxu0
  %v2546 = vadd.f32 %v2443, %v2545
  %v2547 = vpop.f32.mrb[0].mxu0
  %2548 = vdwg.mxu0
  %v2549 = vld [vmem:[%s1 + $0x1f0] sm:$0xff]
  %v2550 = vld [vmem:[%s1 + $0x1f8] sm:$0xff]
  %v2551 = vld [vmem:[%s1 + $0x200] sm:$0xff]
  %v2552 = vld [vmem:[%s1 + $0x208] sm:$0xff]
  %v2553 = vld [vmem:[%s1 + $0x238] sm:$0x1]
  %v2554 = vlaneseq
  %v2555 = vshrl.u32 %v2554, 7
  %v2556 = vsub.s32 0, %v2555
  %v2557 = vrot.slane %v2553, %v2556
  %2558 = vmatprep.subr.mxu0 0.0
  %2559 = vmatpush1.msra.mxu0 %v2549
  %2560 = vmatprep.subr.mxu0 0.0
  %2561 = vmatpush1.msra.mxu0 %v2550
  %2562 = vmatprep.subr.mxu0 0.0
  %2563 = vmatpush1.msra.mxu0 %v2551
  %2564 = vmatprep.subr.mxu0 0.0
  %2565 = vmatpush1.msra.mxu0 %v2552
  %2566 = vmatprep.subr.mxu0 0.0
  %2567 = vmatpush1.msra.mxu0 0.0
  %2568 = vmatprep.subr.mxu0 0.0
  %2569 = vmatpush1.msra.mxu0 0.0
  %2570 = vmatprep.subr.mxu0 0.0
  %2571 = vmatpush1.msra.mxu0 0.0
  %2572 = vmatprep.subr.mxu0 0.0
  %2573 = vmatpush1.msra.mxu0 0.0
  %2574 = vmatprep.subr.mxu0 0.0
  %2575 = vmatpush1.msra.mxu0 0.0
  %2576 = vmatprep.subr.mxu0 0.0
  %2577 = vmatpush1.msra.mxu0 0.0
  %2578 = vmatprep.subr.mxu0 0.0
  %2579 = vmatpush1.msra.mxu0 0.0
  %2580 = vmatprep.subr.mxu0 0.0
  %2581 = vmatpush1.msra.mxu0 0.0
  %2582 = vmatprep.subr.mxu0 0.0
  %2583 = vmatpush1.msra.mxu0 0.0
  %2584 = vmatprep.subr.mxu0 0.0
  %2585 = vmatpush1.msra.mxu0 0.0
  %2586 = vmatprep.subr.mxu0 0.0
  %2587 = vmatpush1.msra.mxu0 0.0
  %2588 = vmatprep.subr.mxu0 0.0
  %2589 = vmatpush1.msra.mxu0 0.0
  %2590 = vmatprep.subr.mxu0 0.0
  %2591 = vmatpush1.msra.mxu0 0.0
  %2592 = vmatprep.subr.mxu0 0.0
  %2593 = vmatpush1.msra.mxu0 0.0
  %2594 = vmatprep.subr.mxu0 0.0
  %2595 = vmatpush1.msra.mxu0 0.0
  %2596 = vmatprep.subr.mxu0 0.0
  %2597 = vmatpush1.msra.mxu0 0.0
  %2598 = vmatprep.subr.mxu0 0.0
  %2599 = vmatpush1.msra.mxu0 0.0
  %2600 = vmatprep.subr.mxu0 0.0
  %2601 = vmatpush1.msra.mxu0 0.0
  %2602 = vmatprep.subr.mxu0 0.0
  %2603 = vmatpush1.msra.mxu0 0.0
  %2604 = vmatprep.subr.mxu0 0.0
  %2605 = vmatpush1.msra.mxu0 0.0
  %2606 = vmatprep.subr.mxu0 0.0
  %2607 = vmatpush1.msra.mxu0 0.0
  %2608 = vmatprep.subr.mxu0 0.0
  %2609 = vmatpush1.msra.mxu0 0.0
  %2610 = vmatprep.subr.mxu0 0.0
  %2611 = vmatpush1.msra.mxu0 0.0
  %2612 = vmatprep.subr.mxu0 0.0
  %2613 = vmatpush1.msra.mxu0 0.0
  %2614 = vmatprep.subr.mxu0 0.0
  %2615 = vmatpush1.msra.mxu0 0.0
  %2616 = vmatprep.subr.mxu0 0.0
  %2617 = vmatpush1.msra.mxu0 0.0
  %2618 = vmatprep.subr.mxu0 0.0
  %2619 = vmatpush1.msra.mxu0 0.0
  %2620 = vmatprep.subr.mxu0 0.0
  %2621 = vmatpush1.msra.mxu0 0.0
  %2622 = vmatprep.mubr.f32.mxu0 0.0
  %2623 = vmatmul.mubr.f32.gmra.mrb[0].mxu0 %v2445
  %v2624 = vpop.f32.mrb[0].mxu0
  %v2625 = vadd.f32 %v2557, %v2624
  %v2626 = vpop.f32.mrb[0].mxu0
  %2627 = vmatprep.mubr.f32.mxu0 0.0
  %2628 = vmatmul.mubr.f32.gmra.mrb[0].mxu0 %v2448
  %v2629 = vpop.f32.mrb[0].mxu0
  %v2630 = vadd.f32 %v2557, %v2629
  %v2631 = vpop.f32.mrb[0].mxu0
  %2632 = vmatprep.mubr.f32.mxu0 0.0
  %2633 = vmatmul.mubr.f32.gmra.mrb[0].mxu0 %v2451
  %v2634 = vpop.f32.mrb[0].mxu0
  %v2635 = vadd.f32 %v2557, %v2634
  %v2636 = vpop.f32.mrb[0].mxu0
  %2637 = vmatprep.mubr.f32.mxu0 0.0
  %2638 = vmatmul.mubr.f32.gmra.mrb[0].mxu0 %v2454
  %v2639 = vpop.f32.mrb[0].mxu0
  %v2640 = vadd.f32 %v2557, %v2639
  %v2641 = vpop.f32.mrb[0].mxu0
  %2642 = vmatprep.mubr.f32.mxu0 0.0
  %2643 = vmatmul.mubr.f32.gmra.mrb[0].mxu0 %v2457
  %v2644 = vpop.f32.mrb[0].mxu0
  %v2645 = vadd.f32 %v2557, %v2644
  %v2646 = vpop.f32.mrb[0].mxu0
  %2647 = vdwg.mxu0
  %v2648 = vld [vmem:[%s1 + $0x210] sm:$0xff]
  %v2649 = vld [vmem:[%s1 + $0x218] sm:$0xff]
  %v2650 = vld [vmem:[%s1 + $0x220] sm:$0xff]
  %v2651 = vld [vmem:[%s1 + $0x228] sm:$0xff]
  %v2652 = vld [vmem:[%s1 + $0x240] sm:$0x1]
  %v2653 = vlaneseq
  %v2654 = vshrl.u32 %v2653, 7
  %v2655 = vsub.s32 0, %v2654
  %v2656 = vrot.slane %v2652, %v2655
  %2657 = vmatprep.subr.mxu0 0.0
  %2658 = vmatpush1.msra.mxu0 %v2648
  %2659 = vmatprep.subr.mxu0 0.0
  %2660 = vmatpush1.msra.mxu0 %v2649
  %2661 = vmatprep.subr.mxu0 0.0
  %2662 = vmatpush1.msra.mxu0 %v2650
  %2663 = vmatprep.subr.mxu0 0.0
  %2664 = vmatpush1.msra.mxu0 %v2651
  %2665 = vmatprep.subr.mxu0 0.0
  %2666 = vmatpush1.msra.mxu0 0.0
  %2667 = vmatprep.subr.mxu0 0.0
  %2668 = vmatpush1.msra.mxu0 0.0
  %2669 = vmatprep.subr.mxu0 0.0
  %2670 = vmatpush1.msra.mxu0 0.0
  %2671 = vmatprep.subr.mxu0 0.0
  %2672 = vmatpush1.msra.mxu0 0.0
  %2673 = vmatprep.subr.mxu0 0.0
  %2674 = vmatpush1.msra.mxu0 0.0
  %2675 = vmatprep.subr.mxu0 0.0
  %2676 = vmatpush1.msra.mxu0 0.0
  %2677 = vmatprep.subr.mxu0 0.0
  %2678 = vmatpush1.msra.mxu0 0.0
  %2679 = vmatprep.subr.mxu0 0.0
  %2680 = vmatpush1.msra.mxu0 0.0
  %2681 = vmatprep.subr.mxu0 0.0
  %2682 = vmatpush1.msra.mxu0 0.0
  %2683 = vmatprep.subr.mxu0 0.0
  %2684 = vmatpush1.msra.mxu0 0.0
  %2685 = vmatprep.subr.mxu0 0.0
  %2686 = vmatpush1.msra.mxu0 0.0
  %2687 = vmatprep.subr.mxu0 0.0
  %2688 = vmatpush1.msra.mxu0 0.0
  %2689 = vmatprep.subr.mxu0 0.0
  %2690 = vmatpush1.msra.mxu0 0.0
  %2691 = vmatprep.subr.mxu0 0.0
  %2692 = vmatpush1.msra.mxu0 0.0
  %2693 = vmatprep.subr.mxu0 0.0
  %2694 = vmatpush1.msra.mxu0 0.0
  %2695 = vmatprep.subr.mxu0 0.0
  %2696 = vmatpush1.msra.mxu0 0.0
  %2697 = vmatprep.subr.mxu0 0.0
  %2698 = vmatpush1.msra.mxu0 0.0
  %2699 = vmatprep.subr.mxu0 0.0
  %2700 = vmatpush1.msra.mxu0 0.0
  %2701 = vmatprep.subr.mxu0 0.0
  %2702 = vmatpush1.msra.mxu0 0.0
  %2703 = vmatprep.subr.mxu0 0.0
  %2704 = vmatpush1.msra.mxu0 0.0
  %2705 = vmatprep.subr.mxu0 0.0
  %2706 = vmatpush1.msra.mxu0 0.0
  %2707 = vmatprep.subr.mxu0 0.0
  %2708 = vmatpush1.msra.mxu0 0.0
  %2709 = vmatprep.subr.mxu0 0.0
  %2710 = vmatpush1.msra.mxu0 0.0
  %2711 = vmatprep.subr.mxu0 0.0
  %2712 = vmatpush1.msra.mxu0 0.0
  %2713 = vmatprep.subr.mxu0 0.0
  %2714 = vmatpush1.msra.mxu0 0.0
  %2715 = vmatprep.subr.mxu0 0.0
  %2716 = vmatpush1.msra.mxu0 0.0
  %2717 = vmatprep.subr.mxu0 0.0
  %2718 = vmatpush1.msra.mxu0 0.0
  %2719 = vmatprep.subr.mxu0 0.0
  %2720 = vmatpush1.msra.mxu0 0.0
  %2721 = vmatprep.mubr.f32.mxu0 0.0
  %2722 = vmatmul.mubr.f32.gmra.mrb[0].mxu0 %v2445
  %v2723 = vpop.f32.mrb[0].mxu0
  %v2724 = vadd.f32 %v2656, %v2723
  %v2725 = vpop.f32.mrb[0].mxu0
  %2726 = vmatprep.mubr.f32.mxu0 0.0
  %2727 = vmatmul.mubr.f32.gmra.mrb[0].mxu0 %v2448
  %v2728 = vpop.f32.mrb[0].mxu0
  %v2729 = vadd.f32 %v2656, %v2728
  %v2730 = vpop.f32.mrb[0].mxu0
  %2731 = vmatprep.mubr.f32.mxu0 0.0
  %2732 = vmatmul.mubr.f32.gmra.mrb[0].mxu0 %v2451
  %v2733 = vpop.f32.mrb[0].mxu0
  %v2734 = vadd.f32 %v2656, %v2733
  %v2735 = vpop.f32.mrb[0].mxu0
  %2736 = vmatprep.mubr.f32.mxu0 0.0
  %2737 = vmatmul.mubr.f32.gmra.mrb[0].mxu0 %v2454
  %v2738 = vpop.f32.mrb[0].mxu0
  %v2739 = vadd.f32 %v2656, %v2738
  %v2740 = vpop.f32.mrb[0].mxu0
  %2741 = vmatprep.mubr.f32.mxu0 0.0
  %2742 = vmatmul.mubr.f32.gmra.mrb[0].mxu0 %v2457
  %v2743 = vpop.f32.mrb[0].mxu0
  %v2744 = vadd.f32 %v2656, %v2743
  %v2745 = vpop.f32.mrb[0].mxu0
  %2746 = vdwg.mxu0
  %v2747 = vmul.f32 %v2526, %v17
  %v2748 = vmul.f32 %v2531, %v17
  %v2749 = vmul.f32 %v2536, %v17
  %v2750 = vmul.f32 %v2541, %v17
  %v2751 = vmul.f32 %v2546, %v17
  %v2753 = vsel %vm203, %v2747, 0
  %v2756 = vsel %vm203, %v2748, 0
  %v2759 = vsel %vm203, %v2749, 0
  %v2762 = vsel %vm203, %v2750, 0
  %v2765 = vsel %vm203, %v2751, 0
  %v2768 = vsel %vm203, %v2625, 0
  %v2771 = vsel %vm203, %v2630, 0
  %v2774 = vsel %vm203, %v2635, 0
  %v2777 = vsel %vm203, %v2640, 0
  %v2780 = vsel %vm203, %v2645, 0
  %2782 = vmatprep.subr.mxu0 0.0
  %2783 = vmatpush1.xpose.msra.mxu0 %v2768
  %2784 = vmatprep.subr.mxu0 0.0
  %2785 = vmatpush1.xpose.msra.mxu0 %v2771
  %2786 = vmatprep.subr.mxu0 0.0
  %2787 = vmatpush1.xpose.msra.mxu0 %v2774
  %2788 = vmatprep.subr.mxu0 0.0
  %2789 = vmatpush1.xpose.msra.mxu0 %v2777
  %2790 = vmatprep.subr.mxu0 0.0
  %2791 = vmatpush1.xpose.msra.mxu0 %v2780
  %2792 = vmatprep.subr.mxu0 0.0
  %2793 = vmatpush1.xpose.msra.mxu0 0.0
  %2794 = vmatprep.subr.mxu0 0.0
  %2795 = vmatpush1.xpose.msra.mxu0 0.0
  %2796 = vmatprep.subr.mxu0 0.0
  %2797 = vmatpush1.xpose.msra.mxu0 0.0
  %2798 = vmatprep.subr.mxu0 0.0
  %2799 = vmatpush1.xpose.msra.mxu0 0.0
  %2800 = vmatprep.subr.mxu0 0.0
  %2801 = vmatpush1.xpose.msra.mxu0 0.0
  %2802 = vmatprep.subr.mxu0 0.0
  %2803 = vmatpush1.xpose.msra.mxu0 0.0
  %2804 = vmatprep.subr.mxu0 0.0
  %2805 = vmatpush1.xpose.msra.mxu0 0.0
  %2806 = vmatprep.subr.mxu0 0.0
  %2807 = vmatpush1.xpose.msra.mxu0 0.0
  %2808 = vmatprep.subr.mxu0 0.0
  %2809 = vmatpush1.xpose.msra.mxu0 0.0
  %2810 = vmatprep.subr.mxu0 0.0
  %2811 = vmatpush1.xpose.msra.mxu0 0.0
  %2812 = vmatprep.subr.mxu0 0.0
  %2813 = vmatpush1.xpose.msra.mxu0 0.0
  %2814 = vmatprep.subr.mxu0 0.0
  %2815 = vmatpush1.xpose.msra.mxu0 0.0
  %2816 = vmatprep.subr.mxu0 0.0
  %2817 = vmatpush1.xpose.msra.mxu0 0.0
  %2818 = vmatprep.subr.mxu0 0.0
  %2819 = vmatpush1.xpose.msra.mxu0 0.0
  %2820 = vmatprep.subr.mxu0 0.0
  %2821 = vmatpush1.xpose.msra.mxu0 0.0
  %2822 = vmatprep.subr.mxu0 0.0
  %2823 = vmatpush1.xpose.msra.mxu0 0.0
  %2824 = vmatprep.subr.mxu0 0.0
  %2825 = vmatpush1.xpose.msra.mxu0 0.0
  %2826 = vmatprep.subr.mxu0 0.0
  %2827 = vmatpush1.xpose.msra.mxu0 0.0
  %2828 = vmatprep.subr.mxu0 0.0
  %2829 = vmatpush1.xpose.msra.mxu0 0.0
  %2830 = vmatprep.subr.mxu0 0.0
  %2831 = vmatpush1.xpose.msra.mxu0 0.0
  %2832 = vmatprep.subr.mxu0 0.0
  %2833 = vmatpush1.xpose.msra.mxu0 0.0
  %2834 = vmatprep.subr.mxu0 0.0
  %2835 = vmatpush1.xpose.msra.mxu0 0.0
  %2836 = vmatprep.subr.mxu0 0.0
  %2837 = vmatpush1.xpose.msra.mxu0 0.0
  %2838 = vmatprep.subr.mxu0 0.0
  %2839 = vmatpush1.xpose.msra.mxu0 0.0
  %2840 = vmatprep.subr.mxu0 0.0
  %2841 = vmatpush1.xpose.msra.mxu0 0.0
  %2842 = vmatprep.subr.mxu0 0.0
  %2843 = vmatpush1.xpose.msra.mxu0 0.0
  %2844 = vmatprep.subr.mxu0 0.0
  %2845 = vmatpush1.xpose.msra.mxu0 0.0
  %2846 = vmatprep.mubr.f32.mxu0 0.0
  %2847 = vmatmul.mubr.f32.gmra.mrb[0].mxu0 %v2753
  %v2848 = vpop.f32.mrb[0].mxu0
  %v2849 = vadd.f32 0.0, %v2848
  %v2850 = vpop.f32.mrb[0].mxu0
  %2851 = vmatprep.mubr.f32.mxu0 0.0
  %2852 = vmatmul.mubr.f32.gmra.mrb[0].mxu0 %v2756
  %v2853 = vpop.f32.mrb[0].mxu0
  %v2854 = vadd.f32 0.0, %v2853
  %v2855 = vpop.f32.mrb[0].mxu0
  %2856 = vmatprep.mubr.f32.mxu0 0.0
  %2857 = vmatmul.mubr.f32.gmra.mrb[0].mxu0 %v2759
  %v2858 = vpop.f32.mrb[0].mxu0
  %v2859 = vadd.f32 0.0, %v2858
  %v2860 = vpop.f32.mrb[0].mxu0
  %2861 = vmatprep.mubr.f32.mxu0 0.0
  %2862 = vmatmul.mubr.f32.gmra.mrb[0].mxu0 %v2762
  %v2863 = vpop.f32.mrb[0].mxu0
  %v2864 = vadd.f32 0.0, %v2863
  %v2865 = vpop.f32.mrb[0].mxu0
  %2866 = vmatprep.mubr.f32.mxu0 0.0
  %2867 = vmatmul.mubr.f32.gmra.mrb[0].mxu0 %v2765
  %v2868 = vpop.f32.mrb[0].mxu0
  %v2869 = vadd.f32 0.0, %v2868
  %v2870 = vpop.f32.mrb[0].mxu0
  %2871 = vdwg.mxu0
  %v2872 = vmul.f32 %v2849, 0.35355338
  %v2873 = vmul.f32 %v2854, 0.35355338
  %v2874 = vmul.f32 %v2859, 0.35355338
  %v2875 = vmul.f32 %v2864, 0.35355338
  %v2876 = vmul.f32 %v2869, 0.35355338
  %v2877 = vadd.f32 %v2872, %v72
  %v2878 = vadd.f32 %v2873, %v73
  %v2879 = vadd.f32 %v2874, %v74
  %v2880 = vadd.f32 %v2875, %v75
  %v2881 = vadd.f32 %v2876, %v76
  %v2882 = vsel %vm735, %v2877, -inf
  %2883 = vmax.xlane.f32.xlu0 %v2882
  %v2884 = vpop.xlane.xlu0 %2883
  %v2885 = vsel %vm735, %v2878, -inf
  %2886 = vmax.xlane.f32.xlu0 %v2885
  %v2887 = vpop.xlane.xlu0 %2886
  %v2888 = vsel %vm735, %v2879, -inf
  %2889 = vmax.xlane.f32.xlu0 %v2888
  %v2890 = vpop.xlane.xlu0 %2889
  %v2891 = vsel %vm735, %v2880, -inf
  %2892 = vmax.xlane.f32.xlu0 %v2891
  %v2893 = vpop.xlane.xlu0 %2892
  %v2894 = vsel %vm735, %v2881, -inf
  %2895 = vmax.xlane.f32.xlu0 %v2894
  %v2896 = vpop.xlane.xlu0 %2895
  %v2897 = vsub.f32 %v2877, %v2884
  %v2898 = vsub.f32 %v2878, %v2887
  %v2899 = vsub.f32 %v2879, %v2890
  %v2900 = vsub.f32 %v2880, %v2893
  %v2901 = vsub.f32 %v2881, %v2896
  %v2902 = vmul.f32 %v2897, 1.442695
  %v2903 = vpow.pop %v2902
  %v2904 = vmul.f32 %v2898, 1.442695
  %v2905 = vpow.pop %v2904
  %v2906 = vmul.f32 %v2899, 1.442695
  %v2907 = vpow.pop %v2906
  %v2908 = vmul.f32 %v2900, 1.442695
  %v2909 = vpow.pop %v2908
  %v2910 = vmul.f32 %v2901, 1.442695
  %v2911 = vpow.pop %v2910
  %v2912 = vsel %vm735, %v2903, 0.0
  %2913 = vadd.xlane.f32.xlu0 %v2912
  %v2914 = vpop.xlane.xlu0 %2913
  %v2915 = vsel %vm735, %v2905, 0.0
  %2916 = vadd.xlane.f32.xlu0 %v2915
  %v2917 = vpop.xlane.xlu0 %2916
  %v2918 = vsel %vm735, %v2907, 0.0
  %2919 = vadd.xlane.f32.xlu0 %v2918
  %v2920 = vpop.xlane.xlu0 %2919
  %v2921 = vsel %vm735, %v2909, 0.0
  %2922 = vadd.xlane.f32.xlu0 %v2921
  %v2923 = vpop.xlane.xlu0 %2922
  %v2924 = vsel %vm735, %v2911, 0.0
  %2925 = vadd.xlane.f32.xlu0 %v2924
  %v2926 = vpop.xlane.xlu0 %2925
  %v2927 = vrcp.pop %v2914
  %v2928 = vrcp.pop %v2917
  %v2929 = vrcp.pop %v2920
  %v2930 = vrcp.pop %v2923
  %v2931 = vrcp.pop %v2926
  %v2932 = vmul.f32 %v2903, %v2927
  %v2933 = vmul.f32 %v2905, %v2928
  %v2934 = vmul.f32 %v2907, %v2929
  %v2935 = vmul.f32 %v2909, %v2930
  %v2936 = vmul.f32 %v2911, %v2931
  %v2938 = vsel %vm735, %v2932, 0
  %v2941 = vsel %vm735, %v2933, 0
  %v2944 = vsel %vm735, %v2934, 0
  %v2947 = vsel %vm735, %v2935, 0
  %v2950 = vsel %vm735, %v2936, 0
  %2952 = vmatprep.subr.mxu0 0.0
  %2953 = vmatpush1.msra.mxu0 %v2724
  %2954 = vmatprep.subr.mxu0 0.0
  %2955 = vmatpush1.msra.mxu0 %v2729
  %2956 = vmatprep.subr.mxu0 0.0
  %2957 = vmatpush1.msra.mxu0 %v2734
  %2958 = vmatprep.subr.mxu0 0.0
  %2959 = vmatpush1.msra.mxu0 %v2739
  %2960 = vmatprep.subr.mxu0 0.0
  %2961 = vmatpush1.msra.mxu0 %v2744
  %2962 = vmatprep.subr.mxu0 0.0
  %2963 = vmatpush1.msra.mxu0 0.0
  %2964 = vmatprep.subr.mxu0 0.0
  %2965 = vmatpush1.msra.mxu0 0.0
  %2966 = vmatprep.subr.mxu0 0.0
  %2967 = vmatpush1.msra.mxu0 0.0
  %2968 = vmatprep.subr.mxu0 0.0
  %2969 = vmatpush1.msra.mxu0 0.0
  %2970 = vmatprep.subr.mxu0 0.0
  %2971 = vmatpush1.msra.mxu0 0.0
  %2972 = vmatprep.subr.mxu0 0.0
  %2973 = vmatpush1.msra.mxu0 0.0
  %2974 = vmatprep.subr.mxu0 0.0
  %2975 = vmatpush1.msra.mxu0 0.0
  %2976 = vmatprep.subr.mxu0 0.0
  %2977 = vmatpush1.msra.mxu0 0.0
  %2978 = vmatprep.subr.mxu0 0.0
  %2979 = vmatpush1.msra.mxu0 0.0
  %2980 = vmatprep.subr.mxu0 0.0
  %2981 = vmatpush1.msra.mxu0 0.0
  %2982 = vmatprep.subr.mxu0 0.0
  %2983 = vmatpush1.msra.mxu0 0.0
  %2984 = vmatprep.subr.mxu0 0.0
  %2985 = vmatpush1.msra.mxu0 0.0
  %2986 = vmatprep.subr.mxu0 0.0
  %2987 = vmatpush1.msra.mxu0 0.0
  %2988 = vmatprep.subr.mxu0 0.0
  %2989 = vmatpush1.msra.mxu0 0.0
  %2990 = vmatprep.subr.mxu0 0.0
  %2991 = vmatpush1.msra.mxu0 0.0
  %2992 = vmatprep.subr.mxu0 0.0
  %2993 = vmatpush1.msra.mxu0 0.0
  %2994 = vmatprep.subr.mxu0 0.0
  %2995 = vmatpush1.msra.mxu0 0.0
  %2996 = vmatprep.subr.mxu0 0.0
  %2997 = vmatpush1.msra.mxu0 0.0
  %2998 = vmatprep.subr.mxu0 0.0
  %2999 = vmatpush1.msra.mxu0 0.0
  %3000 = vmatprep.subr.mxu0 0.0
  %3001 = vmatpush1.msra.mxu0 0.0
  %3002 = vmatprep.subr.mxu0 0.0
  %3003 = vmatpush1.msra.mxu0 0.0
  %3004 = vmatprep.subr.mxu0 0.0
  %3005 = vmatpush1.msra.mxu0 0.0
  %3006 = vmatprep.subr.mxu0 0.0
  %3007 = vmatpush1.msra.mxu0 0.0
  %3008 = vmatprep.subr.mxu0 0.0
  %3009 = vmatpush1.msra.mxu0 0.0
  %3010 = vmatprep.subr.mxu0 0.0
  %3011 = vmatpush1.msra.mxu0 0.0
  %3012 = vmatprep.subr.mxu0 0.0
  %3013 = vmatpush1.msra.mxu0 0.0
  %3014 = vmatprep.subr.mxu0 0.0
  %3015 = vmatpush1.msra.mxu0 0.0
  %3016 = vmatprep.mubr.f32.mxu0 0.0
  %3017 = vmatmul.mubr.f32.gmra.mrb[0].mxu0 %v2938
  %v3018 = vpop.f32.mrb[0].mxu0
  %v3019 = vadd.f32 0.0, %v3018
  %v3020 = vpop.f32.mrb[0].mxu0
  %3021 = vmatprep.mubr.f32.mxu0 0.0
  %3022 = vmatmul.mubr.f32.gmra.mrb[0].mxu0 %v2941
  %v3023 = vpop.f32.mrb[0].mxu0
  %v3024 = vadd.f32 0.0, %v3023
  %v3025 = vpop.f32.mrb[0].mxu0
  %3026 = vmatprep.mubr.f32.mxu0 0.0
  %3027 = vmatmul.mubr.f32.gmra.mrb[0].mxu0 %v2944
  %v3028 = vpop.f32.mrb[0].mxu0
  %v3029 = vadd.f32 0.0, %v3028
  %v3030 = vpop.f32.mrb[0].mxu0
  %3031 = vmatprep.mubr.f32.mxu0 0.0
  %3032 = vmatmul.mubr.f32.gmra.mrb[0].mxu0 %v2947
  %v3033 = vpop.f32.mrb[0].mxu0
  %v3034 = vadd.f32 0.0, %v3033
  %v3035 = vpop.f32.mrb[0].mxu0
  %3036 = vmatprep.mubr.f32.mxu0 0.0
  %3037 = vmatmul.mubr.f32.gmra.mrb[0].mxu0 %v2950
  %v3038 = vpop.f32.mrb[0].mxu0
  %v3039 = vadd.f32 0.0, %v3038
  %v3040 = vpop.f32.mrb[0].mxu0
  %3041 = vdwg.mxu0
  %v3042 = vmul.f32 %v3019, %v17
  %v3043 = vmul.f32 %v3024, %v17
  %v3044 = vmul.f32 %v3029, %v17
  %v3045 = vmul.f32 %v3034, %v17
  %v3046 = vmul.f32 %v3039, %v17
  %v3047 = vadd.f32 %v3042, 0.0
  %v3048 = vadd.f32 %v3043, 0.0
  %v3049 = vadd.f32 %v3044, 0.0
  %v3050 = vadd.f32 %v3045, 0.0
  %v3051 = vadd.f32 %v3046, 0.0
  %v3052 = vmul.f32 %v2526, %v22
  %v3053 = vmul.f32 %v2531, %v22
  %v3054 = vmul.f32 %v2536, %v22
  %v3055 = vmul.f32 %v2541, %v22
  %v3056 = vmul.f32 %v2546, %v22
  %v3058 = vsel %vm203, %v3052, 0
  %v3061 = vsel %vm203, %v3053, 0
  %v3064 = vsel %vm203, %v3054, 0
  %v3067 = vsel %vm203, %v3055, 0
  %v3070 = vsel %vm203, %v3056, 0
  %3072 = vmatprep.subr.mxu0 0.0
  %3073 = vmatpush1.xpose.msra.mxu0 %v2768
  %3074 = vmatprep.subr.mxu0 0.0
  %3075 = vmatpush1.xpose.msra.mxu0 %v2771
  %3076 = vmatprep.subr.mxu0 0.0
  %3077 = vmatpush1.xpose.msra.mxu0 %v2774
  %3078 = vmatprep.subr.mxu0 0.0
  %3079 = vmatpush1.xpose.msra.mxu0 %v2777
  %3080 = vmatprep.subr.mxu0 0.0
  %3081 = vmatpush1.xpose.msra.mxu0 %v2780
  %3082 = vmatprep.subr.mxu0 0.0
  %3083 = vmatpush1.xpose.msra.mxu0 0.0
  %3084 = vmatprep.subr.mxu0 0.0
  %3085 = vmatpush1.xpose.msra.mxu0 0.0
  %3086 = vmatprep.subr.mxu0 0.0
  %3087 = vmatpush1.xpose.msra.mxu0 0.0
  %3088 = vmatprep.subr.mxu0 0.0
  %3089 = vmatpush1.xpose.msra.mxu0 0.0
  %3090 = vmatprep.subr.mxu0 0.0
  %3091 = vmatpush1.xpose.msra.mxu0 0.0
  %3092 = vmatprep.subr.mxu0 0.0
  %3093 = vmatpush1.xpose.msra.mxu0 0.0
  %3094 = vmatprep.subr.mxu0 0.0
  %3095 = vmatpush1.xpose.msra.mxu0 0.0
  %3096 = vmatprep.subr.mxu0 0.0
  %3097 = vmatpush1.xpose.msra.mxu0 0.0
  %3098 = vmatprep.subr.mxu0 0.0
  %3099 = vmatpush1.xpose.msra.mxu0 0.0
  %3100 = vmatprep.subr.mxu0 0.0
  %3101 = vmatpush1.xpose.msra.mxu0 0.0
  %3102 = vmatprep.subr.mxu0 0.0
  %3103 = vmatpush1.xpose.msra.mxu0 0.0
  %3104 = vmatprep.subr.mxu0 0.0
  %3105 = vmatpush1.xpose.msra.mxu0 0.0
  %3106 = vmatprep.subr.mxu0 0.0
  %3107 = vmatpush1.xpose.msra.mxu0 0.0
  %3108 = vmatprep.subr.mxu0 0.0
  %3109 = vmatpush1.xpose.msra.mxu0 0.0
  %3110 = vmatprep.subr.mxu0 0.0
  %3111 = vmatpush1.xpose.msra.mxu0 0.0
  %3112 = vmatprep.subr.mxu0 0.0
  %3113 = vmatpush1.xpose.msra.mxu0 0.0
  %3114 = vmatprep.subr.mxu0 0.0
  %3115 = vmatpush1.xpose.msra.mxu0 0.0
  %3116 = vmatprep.subr.mxu0 0.0
  %3117 = vmatpush1.xpose.msra.mxu0 0.0
  %3118 = vmatprep.subr.mxu0 0.0
  %3119 = vmatpush1.xpose.msra.mxu0 0.0
  %3120 = vmatprep.subr.mxu0 0.0
  %3121 = vmatpush1.xpose.msra.mxu0 0.0
  %3122 = vmatprep.subr.mxu0 0.0
  %3123 = vmatpush1.xpose.msra.mxu0 0.0
  %3124 = vmatprep.subr.mxu0 0.0
  %3125 = vmatpush1.xpose.msra.mxu0 0.0
  %3126 = vmatprep.subr.mxu0 0.0
  %3127 = vmatpush1.xpose.msra.mxu0 0.0
  %3128 = vmatprep.subr.mxu0 0.0
  %3129 = vmatpush1.xpose.msra.mxu0 0.0
  %3130 = vmatprep.subr.mxu0 0.0
  %3131 = vmatpush1.xpose.msra.mxu0 0.0
  %3132 = vmatprep.subr.mxu0 0.0
  %3133 = vmatpush1.xpose.msra.mxu0 0.0
  %3134 = vmatprep.subr.mxu0 0.0
  %3135 = vmatpush1.xpose.msra.mxu0 0.0
  %3136 = vmatprep.mubr.f32.mxu0 0.0
  %3137 = vmatmul.mubr.f32.gmra.mrb[0].mxu0 %v3058
  %v3138 = vpop.f32.mrb[0].mxu0
  %v3139 = vadd.f32 0.0, %v3138
  %v3140 = vpop.f32.mrb[0].mxu0
  %3141 = vmatprep.mubr.f32.mxu0 0.0
  %3142 = vmatmul.mubr.f32.gmra.mrb[0].mxu0 %v3061
  %v3143 = vpop.f32.mrb[0].mxu0
  %v3144 = vadd.f32 0.0, %v3143
  %v3145 = vpop.f32.mrb[0].mxu0
  %3146 = vmatprep.mubr.f32.mxu0 0.0
  %3147 = vmatmul.mubr.f32.gmra.mrb[0].mxu0 %v3064
  %v3148 = vpop.f32.mrb[0].mxu0
  %v3149 = vadd.f32 0.0, %v3148
  %v3150 = vpop.f32.mrb[0].mxu0
  %3151 = vmatprep.mubr.f32.mxu0 0.0
  %3152 = vmatmul.mubr.f32.gmra.mrb[0].mxu0 %v3067
  %v3153 = vpop.f32.mrb[0].mxu0
  %v3154 = vadd.f32 0.0, %v3153
  %v3155 = vpop.f32.mrb[0].mxu0
  %3156 = vmatprep.mubr.f32.mxu0 0.0
  %3157 = vmatmul.mubr.f32.gmra.mrb[0].mxu0 %v3070
  %v3158 = vpop.f32.mrb[0].mxu0
  %v3159 = vadd.f32 0.0, %v3158
  %v3160 = vpop.f32.mrb[0].mxu0
  %3161 = vdwg.mxu0
  %v3162 = vmul.f32 %v3139, 0.35355338
  %v3163 = vmul.f32 %v3144, 0.35355338
  %v3164 = vmul.f32 %v3149, 0.35355338
  %v3165 = vmul.f32 %v3154, 0.35355338
  %v3166 = vmul.f32 %v3159, 0.35355338
  %v3167 = vadd.f32 %v3162, %v72
  %v3168 = vadd.f32 %v3163, %v73
  %v3169 = vadd.f32 %v3164, %v74
  %v3170 = vadd.f32 %v3165, %v75
  %v3171 = vadd.f32 %v3166, %v76
  %v3172 = vsel %vm735, %v3167, -inf
  %3173 = vmax.xlane.f32.xlu0 %v3172
  %v3174 = vpop.xlane.xlu0 %3173
  %v3175 = vsel %vm735, %v3168, -inf
  %3176 = vmax.xlane.f32.xlu0 %v3175
  %v3177 = vpop.xlane.xlu0 %3176
  %v3178 = vsel %vm735, %v3169, -inf
  %3179 = vmax.xlane.f32.xlu0 %v3178
  %v3180 = vpop.xlane.xlu0 %3179
  %v3181 = vsel %vm735, %v3170, -inf
  %3182 = vmax.xlane.f32.xlu0 %v3181
  %v3183 = vpop.xlane.xlu0 %3182
  %v3184 = vsel %vm735, %v3171, -inf
  %3185 = vmax.xlane.f32.xlu0 %v3184
  %v3186 = vpop.xlane.xlu0 %3185
  %v3187 = vsub.f32 %v3167, %v3174
  %v3188 = vsub.f32 %v3168, %v3177
  %v3189 = vsub.f32 %v3169, %v3180
  %v3190 = vsub.f32 %v3170, %v3183
  %v3191 = vsub.f32 %v3171, %v3186
  %v3192 = vmul.f32 %v3187, 1.442695
  %v3193 = vpow.pop %v3192
  %v3194 = vmul.f32 %v3188, 1.442695
  %v3195 = vpow.pop %v3194
  %v3196 = vmul.f32 %v3189, 1.442695
  %v3197 = vpow.pop %v3196
  %v3198 = vmul.f32 %v3190, 1.442695
  %v3199 = vpow.pop %v3198
  %v3200 = vmul.f32 %v3191, 1.442695
  %v3201 = vpow.pop %v3200
  %v3202 = vsel %vm735, %v3193, 0.0
  %3203 = vadd.xlane.f32.xlu0 %v3202
  %v3204 = vpop.xlane.xlu0 %3203
  %v3205 = vsel %vm735, %v3195, 0.0
  %3206 = vadd.xlane.f32.xlu0 %v3205
  %v3207 = vpop.xlane.xlu0 %3206
  %v3208 = vsel %vm735, %v3197, 0.0
  %3209 = vadd.xlane.f32.xlu0 %v3208
  %v3210 = vpop.xlane.xlu0 %3209
  %v3211 = vsel %vm735, %v3199, 0.0
  %3212 = vadd.xlane.f32.xlu0 %v3211
  %v3213 = vpop.xlane.xlu0 %3212
  %v3214 = vsel %vm735, %v3201, 0.0
  %3215 = vadd.xlane.f32.xlu0 %v3214
  %v3216 = vpop.xlane.xlu0 %3215
  %v3217 = vrcp.pop %v3204
  %v3218 = vrcp.pop %v3207
  %v3219 = vrcp.pop %v3210
  %v3220 = vrcp.pop %v3213
  %v3221 = vrcp.pop %v3216
  %v3222 = vmul.f32 %v3193, %v3217
  %v3223 = vmul.f32 %v3195, %v3218
  %v3224 = vmul.f32 %v3197, %v3219
  %v3225 = vmul.f32 %v3199, %v3220
  %v3226 = vmul.f32 %v3201, %v3221
  %v3228 = vsel %vm735, %v3222, 0
  %v3231 = vsel %vm735, %v3223, 0
  %v3234 = vsel %vm735, %v3224, 0
  %v3237 = vsel %vm735, %v3225, 0
  %v3240 = vsel %vm735, %v3226, 0
  %3242 = vmatprep.subr.mxu0 0.0
  %3243 = vmatpush1.msra.mxu0 %v2724
  %3244 = vmatprep.subr.mxu0 0.0
  %3245 = vmatpush1.msra.mxu0 %v2729
  %3246 = vmatprep.subr.mxu0 0.0
  %3247 = vmatpush1.msra.mxu0 %v2734
  %3248 = vmatprep.subr.mxu0 0.0
  %3249 = vmatpush1.msra.mxu0 %v2739
  %3250 = vmatprep.subr.mxu0 0.0
  %3251 = vmatpush1.msra.mxu0 %v2744
  %3252 = vmatprep.subr.mxu0 0.0
  %3253 = vmatpush1.msra.mxu0 0.0
  %3254 = vmatprep.subr.mxu0 0.0
  %3255 = vmatpush1.msra.mxu0 0.0
  %3256 = vmatprep.subr.mxu0 0.0
  %3257 = vmatpush1.msra.mxu0 0.0
  %3258 = vmatprep.subr.mxu0 0.0
  %3259 = vmatpush1.msra.mxu0 0.0
  %3260 = vmatprep.subr.mxu0 0.0
  %3261 = vmatpush1.msra.mxu0 0.0
  %3262 = vmatprep.subr.mxu0 0.0
  %3263 = vmatpush1.msra.mxu0 0.0
  %3264 = vmatprep.subr.mxu0 0.0
  %3265 = vmatpush1.msra.mxu0 0.0
  %3266 = vmatprep.subr.mxu0 0.0
  %3267 = vmatpush1.msra.mxu0 0.0
  %3268 = vmatprep.subr.mxu0 0.0
  %3269 = vmatpush1.msra.mxu0 0.0
  %3270 = vmatprep.subr.mxu0 0.0
  %3271 = vmatpush1.msra.mxu0 0.0
  %3272 = vmatprep.subr.mxu0 0.0
  %3273 = vmatpush1.msra.mxu0 0.0
  %3274 = vmatprep.subr.mxu0 0.0
  %3275 = vmatpush1.msra.mxu0 0.0
  %3276 = vmatprep.subr.mxu0 0.0
  %3277 = vmatpush1.msra.mxu0 0.0
  %3278 = vmatprep.subr.mxu0 0.0
  %3279 = vmatpush1.msra.mxu0 0.0
  %3280 = vmatprep.subr.mxu0 0.0
  %3281 = vmatpush1.msra.mxu0 0.0
  %3282 = vmatprep.subr.mxu0 0.0
  %3283 = vmatpush1.msra.mxu0 0.0
  %3284 = vmatprep.subr.mxu0 0.0
  %3285 = vmatpush1.msra.mxu0 0.0
  %3286 = vmatprep.subr.mxu0 0.0
  %3287 = vmatpush1.msra.mxu0 0.0
  %3288 = vmatprep.subr.mxu0 0.0
  %3289 = vmatpush1.msra.mxu0 0.0
  %3290 = vmatprep.subr.mxu0 0.0
  %3291 = vmatpush1.msra.mxu0 0.0
  %3292 = vmatprep.subr.mxu0 0.0
  %3293 = vmatpush1.msra.mxu0 0.0
  %3294 = vmatprep.subr.mxu0 0.0
  %3295 = vmatpush1.msra.mxu0 0.0
  %3296 = vmatprep.subr.mxu0 0.0
  %3297 = vmatpush1.msra.mxu0 0.0
  %3298 = vmatprep.subr.mxu0 0.0
  %3299 = vmatpush1.msra.mxu0 0.0
  %3300 = vmatprep.subr.mxu0 0.0
  %3301 = vmatpush1.msra.mxu0 0.0
  %3302 = vmatprep.subr.mxu0 0.0
  %3303 = vmatpush1.msra.mxu0 0.0
  %3304 = vmatprep.subr.mxu0 0.0
  %3305 = vmatpush1.msra.mxu0 0.0
  %3306 = vmatprep.mubr.f32.mxu0 0.0
  %3307 = vmatmul.mubr.f32.gmra.mrb[0].mxu0 %v3228
  %v3308 = vpop.f32.mrb[0].mxu0
  %v3309 = vadd.f32 0.0, %v3308
  %v3310 = vpop.f32.mrb[0].mxu0
  %3311 = vmatprep.mubr.f32.mxu0 0.0
  %3312 = vmatmul.mubr.f32.gmra.mrb[0].mxu0 %v3231
  %v3313 = vpop.f32.mrb[0].mxu0
  %v3314 = vadd.f32 0.0, %v3313
  %v3315 = vpop.f32.mrb[0].mxu0
  %3316 = vmatprep.mubr.f32.mxu0 0.0
  %3317 = vmatmul.mubr.f32.gmra.mrb[0].mxu0 %v3234
  %v3318 = vpop.f32.mrb[0].mxu0
  %v3319 = vadd.f32 0.0, %v3318
  %v3320 = vpop.f32.mrb[0].mxu0
  %3321 = vmatprep.mubr.f32.mxu0 0.0
  %3322 = vmatmul.mubr.f32.gmra.mrb[0].mxu0 %v3237
  %v3323 = vpop.f32.mrb[0].mxu0
  %v3324 = vadd.f32 0.0, %v3323
  %v3325 = vpop.f32.mrb[0].mxu0
  %3326 = vmatprep.mubr.f32.mxu0 0.0
  %3327 = vmatmul.mubr.f32.gmra.mrb[0].mxu0 %v3240
  %v3328 = vpop.f32.mrb[0].mxu0
  %v3329 = vadd.f32 0.0, %v3328
  %v3330 = vpop.f32.mrb[0].mxu0
  %3331 = vdwg.mxu0
  %v3332 = vmul.f32 %v3309, %v22
  %v3333 = vmul.f32 %v3314, %v22
  %v3334 = vmul.f32 %v3319, %v22
  %v3335 = vmul.f32 %v3324, %v22
  %v3336 = vmul.f32 %v3329, %v22
  %v3337 = vadd.f32 %v3047, %v3332
  %v3338 = vadd.f32 %v3048, %v3333
  %v3339 = vadd.f32 %v3049, %v3334
  %v3340 = vadd.f32 %v3050, %v3335
  %v3341 = vadd.f32 %v3051, %v3336
  %v3342 = vmul.f32 %v2526, %v27
  %v3343 = vmul.f32 %v2531, %v27
  %v3344 = vmul.f32 %v2536, %v27
  %v3345 = vmul.f32 %v2541, %v27
  %v3346 = vmul.f32 %v2546, %v27
  %v3348 = vsel %vm203, %v3342, 0
  %v3351 = vsel %vm203, %v3343, 0
  %v3354 = vsel %vm203, %v3344, 0
  %v3357 = vsel %vm203, %v3345, 0
  %v3360 = vsel %vm203, %v3346, 0
  %3362 = vmatprep.subr.mxu0 0.0
  %3363 = vmatpush1.xpose.msra.mxu0 %v2768
  %3364 = vmatprep.subr.mxu0 0.0
  %3365 = vmatpush1.xpose.msra.mxu0 %v2771
  %3366 = vmatprep.subr.mxu0 0.0
  %3367 = vmatpush1.xpose.msra.mxu0 %v2774
  %3368 = vmatprep.subr.mxu0 0.0
  %3369 = vmatpush1.xpose.msra.mxu0 %v2777
  %3370 = vmatprep.subr.mxu0 0.0
  %3371 = vmatpush1.xpose.msra.mxu0 %v2780
  %3372 = vmatprep.subr.mxu0 0.0
  %3373 = vmatpush1.xpose.msra.mxu0 0.0
  %3374 = vmatprep.subr.mxu0 0.0
  %3375 = vmatpush1.xpose.msra.mxu0 0.0
  %3376 = vmatprep.subr.mxu0 0.0
  %3377 = vmatpush1.xpose.msra.mxu0 0.0
  %3378 = vmatprep.subr.mxu0 0.0
  %3379 = vmatpush1.xpose.msra.mxu0 0.0
  %3380 = vmatprep.subr.mxu0 0.0
  %3381 = vmatpush1.xpose.msra.mxu0 0.0
  %3382 = vmatprep.subr.mxu0 0.0
  %3383 = vmatpush1.xpose.msra.mxu0 0.0
  %3384 = vmatprep.subr.mxu0 0.0
  %3385 = vmatpush1.xpose.msra.mxu0 0.0
  %3386 = vmatprep.subr.mxu0 0.0
  %3387 = vmatpush1.xpose.msra.mxu0 0.0
  %3388 = vmatprep.subr.mxu0 0.0
  %3389 = vmatpush1.xpose.msra.mxu0 0.0
  %3390 = vmatprep.subr.mxu0 0.0
  %3391 = vmatpush1.xpose.msra.mxu0 0.0
  %3392 = vmatprep.subr.mxu0 0.0
  %3393 = vmatpush1.xpose.msra.mxu0 0.0
  %3394 = vmatprep.subr.mxu0 0.0
  %3395 = vmatpush1.xpose.msra.mxu0 0.0
  %3396 = vmatprep.subr.mxu0 0.0
  %3397 = vmatpush1.xpose.msra.mxu0 0.0
  %3398 = vmatprep.subr.mxu0 0.0
  %3399 = vmatpush1.xpose.msra.mxu0 0.0
  %3400 = vmatprep.subr.mxu0 0.0
  %3401 = vmatpush1.xpose.msra.mxu0 0.0
  %3402 = vmatprep.subr.mxu0 0.0
  %3403 = vmatpush1.xpose.msra.mxu0 0.0
  %3404 = vmatprep.subr.mxu0 0.0
  %3405 = vmatpush1.xpose.msra.mxu0 0.0
  %3406 = vmatprep.subr.mxu0 0.0
  %3407 = vmatpush1.xpose.msra.mxu0 0.0
  %3408 = vmatprep.subr.mxu0 0.0
  %3409 = vmatpush1.xpose.msra.mxu0 0.0
  %3410 = vmatprep.subr.mxu0 0.0
  %3411 = vmatpush1.xpose.msra.mxu0 0.0
  %3412 = vmatprep.subr.mxu0 0.0
  %3413 = vmatpush1.xpose.msra.mxu0 0.0
  %3414 = vmatprep.subr.mxu0 0.0
  %3415 = vmatpush1.xpose.msra.mxu0 0.0
  %3416 = vmatprep.subr.mxu0 0.0
  %3417 = vmatpush1.xpose.msra.mxu0 0.0
  %3418 = vmatprep.subr.mxu0 0.0
  %3419 = vmatpush1.xpose.msra.mxu0 0.0
  %3420 = vmatprep.subr.mxu0 0.0
  %3421 = vmatpush1.xpose.msra.mxu0 0.0
  %3422 = vmatprep.subr.mxu0 0.0
  %3423 = vmatpush1.xpose.msra.mxu0 0.0
  %3424 = vmatprep.subr.mxu0 0.0
  %3425 = vmatpush1.xpose.msra.mxu0 0.0
  %3426 = vmatprep.mubr.f32.mxu0 0.0
  %3427 = vmatmul.mubr.f32.gmra.mrb[0].mxu0 %v3348
  %v3428 = vpop.f32.mrb[0].mxu0
  %v3429 = vadd.f32 0.0, %v3428
  %v3430 = vpop.f32.mrb[0].mxu0
  %3431 = vmatprep.mubr.f32.mxu0 0.0
  %3432 = vmatmul.mubr.f32.gmra.mrb[0].mxu0 %v3351
  %v3433 = vpop.f32.mrb[0].mxu0
  %v3434 = vadd.f32 0.0, %v3433
  %v3435 = vpop.f32.mrb[0].mxu0
  %3436 = vmatprep.mubr.f32.mxu0 0.0
  %3437 = vmatmul.mubr.f32.gmra.mrb[0].mxu0 %v3354
  %v3438 = vpop.f32.mrb[0].mxu0
  %v3439 = vadd.f32 0.0, %v3438
  %v3440 = vpop.f32.mrb[0].mxu0
  %3441 = vmatprep.mubr.f32.mxu0 0.0
  %3442 = vmatmul.mubr.f32.gmra.mrb[0].mxu0 %v3357
  %v3443 = vpop.f32.mrb[0].mxu0
  %v3444 = vadd.f32 0.0, %v3443
  %v3445 = vpop.f32.mrb[0].mxu0
  %3446 = vmatprep.mubr.f32.mxu0 0.0
  %3447 = vmatmul.mubr.f32.gmra.mrb[0].mxu0 %v3360
  %v3448 = vpop.f32.mrb[0].mxu0
  %v3449 = vadd.f32 0.0, %v3448
  %v3450 = vpop.f32.mrb[0].mxu0
  %3451 = vdwg.mxu0
  %v3452 = vmul.f32 %v3429, 0.35355338
  %v3453 = vmul.f32 %v3434, 0.35355338
  %v3454 = vmul.f32 %v3439, 0.35355338
  %v3455 = vmul.f32 %v3444, 0.35355338
  %v3456 = vmul.f32 %v3449, 0.35355338
  %v3457 = vadd.f32 %v3452, %v72
  %v3458 = vadd.f32 %v3453, %v73
  %v3459 = vadd.f32 %v3454, %v74
  %v3460 = vadd.f32 %v3455, %v75
  %v3461 = vadd.f32 %v3456, %v76
  %v3462 = vsel %vm735, %v3457, -inf
  %3463 = vmax.xlane.f32.xlu0 %v3462
  %v3464 = vpop.xlane.xlu0 %3463
  %v3465 = vsel %vm735, %v3458, -inf
  %3466 = vmax.xlane.f32.xlu0 %v3465
  %v3467 = vpop.xlane.xlu0 %3466
  %v3468 = vsel %vm735, %v3459, -inf
  %3469 = vmax.xlane.f32.xlu0 %v3468
  %v3470 = vpop.xlane.xlu0 %3469
  %v3471 = vsel %vm735, %v3460, -inf
  %3472 = vmax.xlane.f32.xlu0 %v3471
  %v3473 = vpop.xlane.xlu0 %3472
  %v3474 = vsel %vm735, %v3461, -inf
  %3475 = vmax.xlane.f32.xlu0 %v3474
  %v3476 = vpop.xlane.xlu0 %3475
  %v3477 = vsub.f32 %v3457, %v3464
  %v3478 = vsub.f32 %v3458, %v3467
  %v3479 = vsub.f32 %v3459, %v3470
  %v3480 = vsub.f32 %v3460, %v3473
  %v3481 = vsub.f32 %v3461, %v3476
  %v3482 = vmul.f32 %v3477, 1.442695
  %v3483 = vpow.pop %v3482
  %v3484 = vmul.f32 %v3478, 1.442695
  %v3485 = vpow.pop %v3484
  %v3486 = vmul.f32 %v3479, 1.442695
  %v3487 = vpow.pop %v3486
  %v3488 = vmul.f32 %v3480, 1.442695
  %v3489 = vpow.pop %v3488
  %v3490 = vmul.f32 %v3481, 1.442695
  %v3491 = vpow.pop %v3490
  %v3492 = vsel %vm735, %v3483, 0.0
  %3493 = vadd.xlane.f32.xlu0 %v3492
  %v3494 = vpop.xlane.xlu0 %3493
  %v3495 = vsel %vm735, %v3485, 0.0
  %3496 = vadd.xlane.f32.xlu0 %v3495
  %v3497 = vpop.xlane.xlu0 %3496
  %v3498 = vsel %vm735, %v3487, 0.0
  %3499 = vadd.xlane.f32.xlu0 %v3498
  %v3500 = vpop.xlane.xlu0 %3499
  %v3501 = vsel %vm735, %v3489, 0.0
  %3502 = vadd.xlane.f32.xlu0 %v3501
  %v3503 = vpop.xlane.xlu0 %3502
  %v3504 = vsel %vm735, %v3491, 0.0
  %3505 = vadd.xlane.f32.xlu0 %v3504
  %v3506 = vpop.xlane.xlu0 %3505
  %v3507 = vrcp.pop %v3494
  %v3508 = vrcp.pop %v3497
  %v3509 = vrcp.pop %v3500
  %v3510 = vrcp.pop %v3503
  %v3511 = vrcp.pop %v3506
  %v3512 = vmul.f32 %v3483, %v3507
  %v3513 = vmul.f32 %v3485, %v3508
  %v3514 = vmul.f32 %v3487, %v3509
  %v3515 = vmul.f32 %v3489, %v3510
  %v3516 = vmul.f32 %v3491, %v3511
  %v3518 = vsel %vm735, %v3512, 0
  %v3521 = vsel %vm735, %v3513, 0
  %v3524 = vsel %vm735, %v3514, 0
  %v3527 = vsel %vm735, %v3515, 0
  %v3530 = vsel %vm735, %v3516, 0
  %3532 = vmatprep.subr.mxu0 0.0
  %3533 = vmatpush1.msra.mxu0 %v2724
  %3534 = vmatprep.subr.mxu0 0.0
  %3535 = vmatpush1.msra.mxu0 %v2729
  %3536 = vmatprep.subr.mxu0 0.0
  %3537 = vmatpush1.msra.mxu0 %v2734
  %3538 = vmatprep.subr.mxu0 0.0
  %3539 = vmatpush1.msra.mxu0 %v2739
  %3540 = vmatprep.subr.mxu0 0.0
  %3541 = vmatpush1.msra.mxu0 %v2744
  %3542 = vmatprep.subr.mxu0 0.0
  %3543 = vmatpush1.msra.mxu0 0.0
  %3544 = vmatprep.subr.mxu0 0.0
  %3545 = vmatpush1.msra.mxu0 0.0
  %3546 = vmatprep.subr.mxu0 0.0
  %3547 = vmatpush1.msra.mxu0 0.0
  %3548 = vmatprep.subr.mxu0 0.0
  %3549 = vmatpush1.msra.mxu0 0.0
  %3550 = vmatprep.subr.mxu0 0.0
  %3551 = vmatpush1.msra.mxu0 0.0
  %3552 = vmatprep.subr.mxu0 0.0
  %3553 = vmatpush1.msra.mxu0 0.0
  %3554 = vmatprep.subr.mxu0 0.0
  %3555 = vmatpush1.msra.mxu0 0.0
  %3556 = vmatprep.subr.mxu0 0.0
  %3557 = vmatpush1.msra.mxu0 0.0
  %3558 = vmatprep.subr.mxu0 0.0
  %3559 = vmatpush1.msra.mxu0 0.0
  %3560 = vmatprep.subr.mxu0 0.0
  %3561 = vmatpush1.msra.mxu0 0.0
  %3562 = vmatprep.subr.mxu0 0.0
  %3563 = vmatpush1.msra.mxu0 0.0
  %3564 = vmatprep.subr.mxu0 0.0
  %3565 = vmatpush1.msra.mxu0 0.0
  %3566 = vmatprep.subr.mxu0 0.0
  %3567 = vmatpush1.msra.mxu0 0.0
  %3568 = vmatprep.subr.mxu0 0.0
  %3569 = vmatpush1.msra.mxu0 0.0
  %3570 = vmatprep.subr.mxu0 0.0
  %3571 = vmatpush1.msra.mxu0 0.0
  %3572 = vmatprep.subr.mxu0 0.0
  %3573 = vmatpush1.msra.mxu0 0.0
  %3574 = vmatprep.subr.mxu0 0.0
  %3575 = vmatpush1.msra.mxu0 0.0
  %3576 = vmatprep.subr.mxu0 0.0
  %3577 = vmatpush1.msra.mxu0 0.0
  %3578 = vmatprep.subr.mxu0 0.0
  %3579 = vmatpush1.msra.mxu0 0.0
  %3580 = vmatprep.subr.mxu0 0.0
  %3581 = vmatpush1.msra.mxu0 0.0
  %3582 = vmatprep.subr.mxu0 0.0
  %3583 = vmatpush1.msra.mxu0 0.0
  %3584 = vmatprep.subr.mxu0 0.0
  %3585 = vmatpush1.msra.mxu0 0.0
  %3586 = vmatprep.subr.mxu0 0.0
  %3587 = vmatpush1.msra.mxu0 0.0
  %3588 = vmatprep.subr.mxu0 0.0
  %3589 = vmatpush1.msra.mxu0 0.0
  %3590 = vmatprep.subr.mxu0 0.0
  %3591 = vmatpush1.msra.mxu0 0.0
  %3592 = vmatprep.subr.mxu0 0.0
  %3593 = vmatpush1.msra.mxu0 0.0
  %3594 = vmatprep.subr.mxu0 0.0
  %3595 = vmatpush1.msra.mxu0 0.0
  %3596 = vmatprep.mubr.f32.mxu0 0.0
  %3597 = vmatmul.mubr.f32.gmra.mrb[0].mxu0 %v3518
  %v3598 = vpop.f32.mrb[0].mxu0
  %v3599 = vadd.f32 0.0, %v3598
  %v3600 = vpop.f32.mrb[0].mxu0
  %3601 = vmatprep.mubr.f32.mxu0 0.0
  %3602 = vmatmul.mubr.f32.gmra.mrb[0].mxu0 %v3521
  %v3603 = vpop.f32.mrb[0].mxu0
  %v3604 = vadd.f32 0.0, %v3603
  %v3605 = vpop.f32.mrb[0].mxu0
  %3606 = vmatprep.mubr.f32.mxu0 0.0
  %3607 = vmatmul.mubr.f32.gmra.mrb[0].mxu0 %v3524
  %v3608 = vpop.f32.mrb[0].mxu0
  %v3609 = vadd.f32 0.0, %v3608
  %v3610 = vpop.f32.mrb[0].mxu0
  %3611 = vmatprep.mubr.f32.mxu0 0.0
  %3612 = vmatmul.mubr.f32.gmra.mrb[0].mxu0 %v3527
  %v3613 = vpop.f32.mrb[0].mxu0
  %v3614 = vadd.f32 0.0, %v3613
  %v3615 = vpop.f32.mrb[0].mxu0
  %3616 = vmatprep.mubr.f32.mxu0 0.0
  %3617 = vmatmul.mubr.f32.gmra.mrb[0].mxu0 %v3530
  %v3618 = vpop.f32.mrb[0].mxu0
  %v3619 = vadd.f32 0.0, %v3618
  %v3620 = vpop.f32.mrb[0].mxu0
  %3621 = vdwg.mxu0
  %v3622 = vmul.f32 %v3599, %v27
  %v3623 = vmul.f32 %v3604, %v27
  %v3624 = vmul.f32 %v3609, %v27
  %v3625 = vmul.f32 %v3614, %v27
  %v3626 = vmul.f32 %v3619, %v27
  %v3627 = vadd.f32 %v3337, %v3622
  %v3628 = vadd.f32 %v3338, %v3623
  %v3629 = vadd.f32 %v3339, %v3624
  %v3630 = vadd.f32 %v3340, %v3625
  %v3631 = vadd.f32 %v3341, %v3626
  %v3632 = vmul.f32 %v2526, %v32
  %v3633 = vmul.f32 %v2531, %v32
  %v3634 = vmul.f32 %v2536, %v32
  %v3635 = vmul.f32 %v2541, %v32
  %v3636 = vmul.f32 %v2546, %v32
  %v3638 = vsel %vm203, %v3632, 0
  %v3641 = vsel %vm203, %v3633, 0
  %v3644 = vsel %vm203, %v3634, 0
  %v3647 = vsel %vm203, %v3635, 0
  %v3650 = vsel %vm203, %v3636, 0
  %3652 = vmatprep.subr.mxu0 0.0
  %3653 = vmatpush1.xpose.msra.mxu0 %v2768
  %3654 = vmatprep.subr.mxu0 0.0
  %3655 = vmatpush1.xpose.msra.mxu0 %v2771
  %3656 = vmatprep.subr.mxu0 0.0
  %3657 = vmatpush1.xpose.msra.mxu0 %v2774
  %3658 = vmatprep.subr.mxu0 0.0
  %3659 = vmatpush1.xpose.msra.mxu0 %v2777
  %3660 = vmatprep.subr.mxu0 0.0
  %3661 = vmatpush1.xpose.msra.mxu0 %v2780
  %3662 = vmatprep.subr.mxu0 0.0
  %3663 = vmatpush1.xpose.msra.mxu0 0.0
  %3664 = vmatprep.subr.mxu0 0.0
  %3665 = vmatpush1.xpose.msra.mxu0 0.0
  %3666 = vmatprep.subr.mxu0 0.0
  %3667 = vmatpush1.xpose.msra.mxu0 0.0
  %3668 = vmatprep.subr.mxu0 0.0
  %3669 = vmatpush1.xpose.msra.mxu0 0.0
  %3670 = vmatprep.subr.mxu0 0.0
  %3671 = vmatpush1.xpose.msra.mxu0 0.0
  %3672 = vmatprep.subr.mxu0 0.0
  %3673 = vmatpush1.xpose.msra.mxu0 0.0
  %3674 = vmatprep.subr.mxu0 0.0
  %3675 = vmatpush1.xpose.msra.mxu0 0.0
  %3676 = vmatprep.subr.mxu0 0.0
  %3677 = vmatpush1.xpose.msra.mxu0 0.0
  %3678 = vmatprep.subr.mxu0 0.0
  %3679 = vmatpush1.xpose.msra.mxu0 0.0
  %3680 = vmatprep.subr.mxu0 0.0
  %3681 = vmatpush1.xpose.msra.mxu0 0.0
  %3682 = vmatprep.subr.mxu0 0.0
  %3683 = vmatpush1.xpose.msra.mxu0 0.0
  %3684 = vmatprep.subr.mxu0 0.0
  %3685 = vmatpush1.xpose.msra.mxu0 0.0
  %3686 = vmatprep.subr.mxu0 0.0
  %3687 = vmatpush1.xpose.msra.mxu0 0.0
  %3688 = vmatprep.subr.mxu0 0.0
  %3689 = vmatpush1.xpose.msra.mxu0 0.0
  %3690 = vmatprep.subr.mxu0 0.0
  %3691 = vmatpush1.xpose.msra.mxu0 0.0
  %3692 = vmatprep.subr.mxu0 0.0
  %3693 = vmatpush1.xpose.msra.mxu0 0.0
  %3694 = vmatprep.subr.mxu0 0.0
  %3695 = vmatpush1.xpose.msra.mxu0 0.0
  %3696 = vmatprep.subr.mxu0 0.0
  %3697 = vmatpush1.xpose.msra.mxu0 0.0
  %3698 = vmatprep.subr.mxu0 0.0
  %3699 = vmatpush1.xpose.msra.mxu0 0.0
  %3700 = vmatprep.subr.mxu0 0.0
  %3701 = vmatpush1.xpose.msra.mxu0 0.0
  %3702 = vmatprep.subr.mxu0 0.0
  %3703 = vmatpush1.xpose.msra.mxu0 0.0
  %3704 = vmatprep.subr.mxu0 0.0
  %3705 = vmatpush1.xpose.msra.mxu0 0.0
  %3706 = vmatprep.subr.mxu0 0.0
  %3707 = vmatpush1.xpose.msra.mxu0 0.0
  %3708 = vmatprep.subr.mxu0 0.0
  %3709 = vmatpush1.xpose.msra.mxu0 0.0
  %3710 = vmatprep.subr.mxu0 0.0
  %3711 = vmatpush1.xpose.msra.mxu0 0.0
  %3712 = vmatprep.subr.mxu0 0.0
  %3713 = vmatpush1.xpose.msra.mxu0 0.0
  %3714 = vmatprep.subr.mxu0 0.0
  %3715 = vmatpush1.xpose.msra.mxu0 0.0
  %3716 = vmatprep.mubr.f32.mxu0 0.0
  %3717 = vmatmul.mubr.f32.gmra.mrb[0].mxu0 %v3638
  %v3718 = vpop.f32.mrb[0].mxu0
  %v3719 = vadd.f32 0.0, %v3718
  %v3720 = vpop.f32.mrb[0].mxu0
  %3721 = vmatprep.mubr.f32.mxu0 0.0
  %3722 = vmatmul.mubr.f32.gmra.mrb[0].mxu0 %v3641
  %v3723 = vpop.f32.mrb[0].mxu0
  %v3724 = vadd.f32 0.0, %v3723
  %v3725 = vpop.f32.mrb[0].mxu0
  %3726 = vmatprep.mubr.f32.mxu0 0.0
  %3727 = vmatmul.mubr.f32.gmra.mrb[0].mxu0 %v3644
  %v3728 = vpop.f32.mrb[0].mxu0
  %v3729 = vadd.f32 0.0, %v3728
  %v3730 = vpop.f32.mrb[0].mxu0
  %3731 = vmatprep.mubr.f32.mxu0 0.0
  %3732 = vmatmul.mubr.f32.gmra.mrb[0].mxu0 %v3647
  %v3733 = vpop.f32.mrb[0].mxu0
  %v3734 = vadd.f32 0.0, %v3733
  %v3735 = vpop.f32.mrb[0].mxu0
  %3736 = vmatprep.mubr.f32.mxu0 0.0
  %3737 = vmatmul.mubr.f32.gmra.mrb[0].mxu0 %v3650
  %v3738 = vpop.f32.mrb[0].mxu0
  %v3739 = vadd.f32 0.0, %v3738
  %v3740 = vpop.f32.mrb[0].mxu0
  %3741 = vdwg.mxu0
  %v3742 = vmul.f32 %v3719, 0.35355338
  %v3743 = vmul.f32 %v3724, 0.35355338
  %v3744 = vmul.f32 %v3729, 0.35355338
  %v3745 = vmul.f32 %v3734, 0.35355338
  %v3746 = vmul.f32 %v3739, 0.35355338
  %v3747 = vadd.f32 %v3742, %v72
  %v3748 = vadd.f32 %v3743, %v73
  %v3749 = vadd.f32 %v3744, %v74
  %v3750 = vadd.f32 %v3745, %v75
  %v3751 = vadd.f32 %v3746, %v76
  %v3752 = vsel %vm735, %v3747, -inf
  %3753 = vmax.xlane.f32.xlu0 %v3752
  %v3754 = vpop.xlane.xlu0 %3753
  %v3755 = vsel %vm735, %v3748, -inf
  %3756 = vmax.xlane.f32.xlu0 %v3755
  %v3757 = vpop.xlane.xlu0 %3756
  %v3758 = vsel %vm735, %v3749, -inf
  %3759 = vmax.xlane.f32.xlu0 %v3758
  %v3760 = vpop.xlane.xlu0 %3759
  %v3761 = vsel %vm735, %v3750, -inf
  %3762 = vmax.xlane.f32.xlu0 %v3761
  %v3763 = vpop.xlane.xlu0 %3762
  %v3764 = vsel %vm735, %v3751, -inf
  %3765 = vmax.xlane.f32.xlu0 %v3764
  %v3766 = vpop.xlane.xlu0 %3765
  %v3767 = vsub.f32 %v3747, %v3754
  %v3768 = vsub.f32 %v3748, %v3757
  %v3769 = vsub.f32 %v3749, %v3760
  %v3770 = vsub.f32 %v3750, %v3763
  %v3771 = vsub.f32 %v3751, %v3766
  %v3772 = vmul.f32 %v3767, 1.442695
  %v3773 = vpow.pop %v3772
  %v3774 = vmul.f32 %v3768, 1.442695
  %v3775 = vpow.pop %v3774
  %v3776 = vmul.f32 %v3769, 1.442695
  %v3777 = vpow.pop %v3776
  %v3778 = vmul.f32 %v3770, 1.442695
  %v3779 = vpow.pop %v3778
  %v3780 = vmul.f32 %v3771, 1.442695
  %v3781 = vpow.pop %v3780
  %v3782 = vsel %vm735, %v3773, 0.0
  %3783 = vadd.xlane.f32.xlu0 %v3782
  %v3784 = vpop.xlane.xlu0 %3783
  %v3785 = vsel %vm735, %v3775, 0.0
  %3786 = vadd.xlane.f32.xlu0 %v3785
  %v3787 = vpop.xlane.xlu0 %3786
  %v3788 = vsel %vm735, %v3777, 0.0
  %3789 = vadd.xlane.f32.xlu0 %v3788
  %v3790 = vpop.xlane.xlu0 %3789
  %v3791 = vsel %vm735, %v3779, 0.0
  %3792 = vadd.xlane.f32.xlu0 %v3791
  %v3793 = vpop.xlane.xlu0 %3792
  %v3794 = vsel %vm735, %v3781, 0.0
  %3795 = vadd.xlane.f32.xlu0 %v3794
  %v3796 = vpop.xlane.xlu0 %3795
  %v3797 = vrcp.pop %v3784
  %v3798 = vrcp.pop %v3787
  %v3799 = vrcp.pop %v3790
  %v3800 = vrcp.pop %v3793
  %v3801 = vrcp.pop %v3796
  %v3802 = vmul.f32 %v3773, %v3797
  %v3803 = vmul.f32 %v3775, %v3798
  %v3804 = vmul.f32 %v3777, %v3799
  %v3805 = vmul.f32 %v3779, %v3800
  %v3806 = vmul.f32 %v3781, %v3801
  %v3808 = vsel %vm735, %v3802, 0
  %v3811 = vsel %vm735, %v3803, 0
  %v3814 = vsel %vm735, %v3804, 0
  %v3817 = vsel %vm735, %v3805, 0
  %v3820 = vsel %vm735, %v3806, 0
  %3822 = vmatprep.subr.mxu0 0.0
  %3823 = vmatpush1.msra.mxu0 %v2724
  %3824 = vmatprep.subr.mxu0 0.0
  %3825 = vmatpush1.msra.mxu0 %v2729
  %3826 = vmatprep.subr.mxu0 0.0
  %3827 = vmatpush1.msra.mxu0 %v2734
  %3828 = vmatprep.subr.mxu0 0.0
  %3829 = vmatpush1.msra.mxu0 %v2739
  %3830 = vmatprep.subr.mxu0 0.0
  %3831 = vmatpush1.msra.mxu0 %v2744
  %3832 = vmatprep.subr.mxu0 0.0
  %3833 = vmatpush1.msra.mxu0 0.0
  %3834 = vmatprep.subr.mxu0 0.0
  %3835 = vmatpush1.msra.mxu0 0.0
  %3836 = vmatprep.subr.mxu0 0.0
  %3837 = vmatpush1.msra.mxu0 0.0
  %3838 = vmatprep.subr.mxu0 0.0
  %3839 = vmatpush1.msra.mxu0 0.0
  %3840 = vmatprep.subr.mxu0 0.0
  %3841 = vmatpush1.msra.mxu0 0.0
  %3842 = vmatprep.subr.mxu0 0.0
  %3843 = vmatpush1.msra.mxu0 0.0
  %3844 = vmatprep.subr.mxu0 0.0
  %3845 = vmatpush1.msra.mxu0 0.0
  %3846 = vmatprep.subr.mxu0 0.0
  %3847 = vmatpush1.msra.mxu0 0.0
  %3848 = vmatprep.subr.mxu0 0.0
  %3849 = vmatpush1.msra.mxu0 0.0
  %3850 = vmatprep.subr.mxu0 0.0
  %3851 = vmatpush1.msra.mxu0 0.0
  %3852 = vmatprep.subr.mxu0 0.0
  %3853 = vmatpush1.msra.mxu0 0.0
  %3854 = vmatprep.subr.mxu0 0.0
  %3855 = vmatpush1.msra.mxu0 0.0
  %3856 = vmatprep.subr.mxu0 0.0
  %3857 = vmatpush1.msra.mxu0 0.0
  %3858 = vmatprep.subr.mxu0 0.0
  %3859 = vmatpush1.msra.mxu0 0.0
  %3860 = vmatprep.subr.mxu0 0.0
  %3861 = vmatpush1.msra.mxu0 0.0
  %3862 = vmatprep.subr.mxu0 0.0
  %3863 = vmatpush1.msra.mxu0 0.0
  %3864 = vmatprep.subr.mxu0 0.0
  %3865 = vmatpush1.msra.mxu0 0.0
  %3866 = vmatprep.subr.mxu0 0.0
  %3867 = vmatpush1.msra.mxu0 0.0
  %3868 = vmatprep.subr.mxu0 0.0
  %3869 = vmatpush1.msra.mxu0 0.0
  %3870 = vmatprep.subr.mxu0 0.0
  %3871 = vmatpush1.msra.mxu0 0.0
  %3872 = vmatprep.subr.mxu0 0.0
  %3873 = vmatpush1.msra.mxu0 0.0
  %3874 = vmatprep.subr.mxu0 0.0
  %3875 = vmatpush1.msra.mxu0 0.0
  %3876 = vmatprep.subr.mxu0 0.0
  %3877 = vmatpush1.msra.mxu0 0.0
  %3878 = vmatprep.subr.mxu0 0.0
  %3879 = vmatpush1.msra.mxu0 0.0
  %3880 = vmatprep.subr.mxu0 0.0
  %3881 = vmatpush1.msra.mxu0 0.0
  %3882 = vmatprep.subr.mxu0 0.0
  %3883 = vmatpush1.msra.mxu0 0.0
  %3884 = vmatprep.subr.mxu0 0.0
  %3885 = vmatpush1.msra.mxu0 0.0
  %3886 = vmatprep.mubr.f32.mxu0 0.0
  %3887 = vmatmul.mubr.f32.gmra.mrb[0].mxu0 %v3808
  %v3888 = vpop.f32.mrb[0].mxu0
  %v3889 = vadd.f32 0.0, %v3888
  %v3890 = vpop.f32.mrb[0].mxu0
  %3891 = vmatprep.mubr.f32.mxu0 0.0
  %3892 = vmatmul.mubr.f32.gmra.mrb[0].mxu0 %v3811
  %v3893 = vpop.f32.mrb[0].mxu0
  %v3894 = vadd.f32 0.0, %v3893
  %v3895 = vpop.f32.mrb[0].mxu0
  %3896 = vmatprep.mubr.f32.mxu0 0.0
  %3897 = vmatmul.mubr.f32.gmra.mrb[0].mxu0 %v3814
  %v3898 = vpop.f32.mrb[0].mxu0
  %v3899 = vadd.f32 0.0, %v3898
  %v3900 = vpop.f32.mrb[0].mxu0
  %3901 = vmatprep.mubr.f32.mxu0 0.0
  %3902 = vmatmul.mubr.f32.gmra.mrb[0].mxu0 %v3817
  %v3903 = vpop.f32.mrb[0].mxu0
  %v3904 = vadd.f32 0.0, %v3903
  %v3905 = vpop.f32.mrb[0].mxu0
  %3906 = vmatprep.mubr.f32.mxu0 0.0
  %3907 = vmatmul.mubr.f32.gmra.mrb[0].mxu0 %v3820
  %v3908 = vpop.f32.mrb[0].mxu0
  %v3909 = vadd.f32 0.0, %v3908
  %v3910 = vpop.f32.mrb[0].mxu0
  %3911 = vdwg.mxu0
  %v3912 = vmul.f32 %v3889, %v32
  %v3913 = vmul.f32 %v3894, %v32
  %v3914 = vmul.f32 %v3899, %v32
  %v3915 = vmul.f32 %v3904, %v32
  %v3916 = vmul.f32 %v3909, %v32
  %v3917 = vadd.f32 %v3627, %v3912
  %v3918 = vadd.f32 %v3628, %v3913
  %v3919 = vadd.f32 %v3629, %v3914
  %v3920 = vadd.f32 %v3630, %v3915
  %v3921 = vadd.f32 %v3631, %v3916
  %v3922 = vld [vmem:[%s1 + $0x248] sm:$0xff]
  %v3923 = vld [vmem:[%s1 + $0x250] sm:$0xff]
  %v3924 = vld [vmem:[%s1 + $0x258] sm:$0xff]
  %v3925 = vld [vmem:[%s1 + $0x260] sm:$0xff]
  %v3927 = vsel %vm203, %v3917, 0
  %v3930 = vsel %vm203, %v3918, 0
  %v3933 = vsel %vm203, %v3919, 0
  %v3936 = vsel %vm203, %v3920, 0
  %v3939 = vsel %vm203, %v3921, 0
  %3941 = vmatprep.subr.mxu0 0.0
  %3942 = vmatpush1.msra.mxu0 %v3922
  %3943 = vmatprep.subr.mxu0 0.0
  %3944 = vmatpush1.msra.mxu0 %v3923
  %3945 = vmatprep.subr.mxu0 0.0
  %3946 = vmatpush1.msra.mxu0 %v3924
  %3947 = vmatprep.subr.mxu0 0.0
  %3948 = vmatpush1.msra.mxu0 %v3925
  %3949 = vmatprep.subr.mxu0 0.0
  %3950 = vmatpush1.msra.mxu0 0.0
  %3951 = vmatprep.subr.mxu0 0.0
  %3952 = vmatpush1.msra.mxu0 0.0
  %3953 = vmatprep.subr.mxu0 0.0
  %3954 = vmatpush1.msra.mxu0 0.0
  %3955 = vmatprep.subr.mxu0 0.0
  %3956 = vmatpush1.msra.mxu0 0.0
  %3957 = vmatprep.subr.mxu0 0.0
  %3958 = vmatpush1.msra.mxu0 0.0
  %3959 = vmatprep.subr.mxu0 0.0
  %3960 = vmatpush1.msra.mxu0 0.0
  %3961 = vmatprep.subr.mxu0 0.0
  %3962 = vmatpush1.msra.mxu0 0.0
  %3963 = vmatprep.subr.mxu0 0.0
  %3964 = vmatpush1.msra.mxu0 0.0
  %3965 = vmatprep.subr.mxu0 0.0
  %3966 = vmatpush1.msra.mxu0 0.0
  %3967 = vmatprep.subr.mxu0 0.0
  %3968 = vmatpush1.msra.mxu0 0.0
  %3969 = vmatprep.subr.mxu0 0.0
  %3970 = vmatpush1.msra.mxu0 0.0
  %3971 = vmatprep.subr.mxu0 0.0
  %3972 = vmatpush1.msra.mxu0 0.0
  %3973 = vmatprep.subr.mxu0 0.0
  %3974 = vmatpush1.msra.mxu0 0.0
  %3975 = vmatprep.subr.mxu0 0.0
  %3976 = vmatpush1.msra.mxu0 0.0
  %3977 = vmatprep.subr.mxu0 0.0
  %3978 = vmatpush1.msra.mxu0 0.0
  %3979 = vmatprep.subr.mxu0 0.0
  %3980 = vmatpush1.msra.mxu0 0.0
  %3981 = vmatprep.subr.mxu0 0.0
  %3982 = vmatpush1.msra.mxu0 0.0
  %3983 = vmatprep.subr.mxu0 0.0
  %3984 = vmatpush1.msra.mxu0 0.0
  %3985 = vmatprep.subr.mxu0 0.0
  %3986 = vmatpush1.msra.mxu0 0.0
  %3987 = vmatprep.subr.mxu0 0.0
  %3988 = vmatpush1.msra.mxu0 0.0
  %3989 = vmatprep.subr.mxu0 0.0
  %3990 = vmatpush1.msra.mxu0 0.0
  %3991 = vmatprep.subr.mxu0 0.0
  %3992 = vmatpush1.msra.mxu0 0.0
  %3993 = vmatprep.subr.mxu0 0.0
  %3994 = vmatpush1.msra.mxu0 0.0
  %3995 = vmatprep.subr.mxu0 0.0
  %3996 = vmatpush1.msra.mxu0 0.0
  %3997 = vmatprep.subr.mxu0 0.0
  %3998 = vmatpush1.msra.mxu0 0.0
  %3999 = vmatprep.subr.mxu0 0.0
  %4000 = vmatpush1.msra.mxu0 0.0
  %4001 = vmatprep.subr.mxu0 0.0
  %4002 = vmatpush1.msra.mxu0 0.0
  %4003 = vmatprep.subr.mxu0 0.0
  %4004 = vmatpush1.msra.mxu0 0.0
  %4005 = vmatprep.mubr.f32.mxu0 0.0
  %4006 = vmatmul.mubr.f32.gmra.mrb[0].mxu0 %v3927
  %v4007 = vpop.f32.mrb[0].mxu0
  %v4008 = vadd.f32 0.0, %v4007
  %v4009 = vpop.f32.mrb[0].mxu0
  %4010 = vmatprep.mubr.f32.mxu0 0.0
  %4011 = vmatmul.mubr.f32.gmra.mrb[0].mxu0 %v3930
  %v4012 = vpop.f32.mrb[0].mxu0
  %v4013 = vadd.f32 0.0, %v4012
  %v4014 = vpop.f32.mrb[0].mxu0
  %4015 = vmatprep.mubr.f32.mxu0 0.0
  %4016 = vmatmul.mubr.f32.gmra.mrb[0].mxu0 %v3933
  %v4017 = vpop.f32.mrb[0].mxu0
  %v4018 = vadd.f32 0.0, %v4017
  %v4019 = vpop.f32.mrb[0].mxu0
  %4020 = vmatprep.mubr.f32.mxu0 0.0
  %4021 = vmatmul.mubr.f32.gmra.mrb[0].mxu0 %v3936
  %v4022 = vpop.f32.mrb[0].mxu0
  %v4023 = vadd.f32 0.0, %v4022
  %v4024 = vpop.f32.mrb[0].mxu0
  %4025 = vmatprep.mubr.f32.mxu0 0.0
  %4026 = vmatmul.mubr.f32.gmra.mrb[0].mxu0 %v3939
  %v4027 = vpop.f32.mrb[0].mxu0
  %v4028 = vadd.f32 0.0, %v4027
  %v4029 = vpop.f32.mrb[0].mxu0
  %4030 = vdwg.mxu0
  %v4031 = vadd.f32 %v2345, %v4008
  %v4032 = vadd.f32 %v2346, %v4013
  %v4033 = vadd.f32 %v2347, %v4018
  %v4034 = vadd.f32 %v2348, %v4023
  %v4035 = vadd.f32 %v2349, %v4028
  %v4036 = vld [vmem:[%s1 + $0x268] sm:$0x1]
  %v4037 = vlaneseq
  %v4038 = vshrl.u32 %v4037, 7
  %v4039 = vsub.s32 0, %v4038
  %v4040 = vrot.slane %v4036, %v4039
  %v4041 = vadd.f32 %v4031, %v4040
  %v4042 = vadd.f32 %v4032, %v4040
  %v4043 = vadd.f32 %v4033, %v4040
  %v4044 = vadd.f32 %v4034, %v4040
  %v4045 = vadd.f32 %v4035, %v4040
  %v4046 = vld [vmem:[%s1 + $0x270] sm:$0x1]
  %v4047 = vld [vmem:[%s1 + $0x278] sm:$0x1]
  %v4048 = vsel %vm203, %v4041, 0.0
  %4049 = vadd.xlane.f32.xlu0 %v4048
  %v4050 = vpop.xlane.xlu0 %4049
  %v4051 = vsel %vm203, %v4042, 0.0
  %4052 = vadd.xlane.f32.xlu0 %v4051
  %v4053 = vpop.xlane.xlu0 %4052
  %v4054 = vsel %vm203, %v4043, 0.0
  %4055 = vadd.xlane.f32.xlu0 %v4054
  %v4056 = vpop.xlane.xlu0 %4055
  %v4057 = vsel %vm203, %v4044, 0.0
  %4058 = vadd.xlane.f32.xlu0 %v4057
  %v4059 = vpop.xlane.xlu0 %4058
  %v4060 = vsel %vm203, %v4045, 0.0
  %4061 = vadd.xlane.f32.xlu0 %v4060
  %v4062 = vpop.xlane.xlu0 %4061
  %v4063 = vmul.f32 %v4050, %v219
  %v4064 = vmul.f32 %v4053, %v219
  %v4065 = vmul.f32 %v4056, %v219
  %v4066 = vmul.f32 %v4059, %v219
  %v4067 = vmul.f32 %v4062, %v219
  %v4068 = vsub.f32 %v4041, %v4063
  %v4069 = vsub.f32 %v4042, %v4064
  %v4070 = vsub.f32 %v4043, %v4065
  %v4071 = vsub.f32 %v4044, %v4066
  %v4072 = vsub.f32 %v4045, %v4067
  %v4073 = vmul.f32 %v4068, %v4068
  %v4074 = vmul.f32 %v4069, %v4069
  %v4075 = vmul.f32 %v4070, %v4070
  %v4076 = vmul.f32 %v4071, %v4071
  %v4077 = vmul.f32 %v4072, %v4072
  %v4078 = vsel %vm203, %v4073, 0.0
  %4079 = vadd.xlane.f32.xlu0 %v4078
  %v4080 = vpop.xlane.xlu0 %4079
  %v4081 = vsel %vm203, %v4074, 0.0
  %4082 = vadd.xlane.f32.xlu0 %v4081
  %v4083 = vpop.xlane.xlu0 %4082
  %v4084 = vsel %vm203, %v4075, 0.0
  %4085 = vadd.xlane.f32.xlu0 %v4084
  %v4086 = vpop.xlane.xlu0 %4085
  %v4087 = vsel %vm203, %v4076, 0.0
  %4088 = vadd.xlane.f32.xlu0 %v4087
  %v4089 = vpop.xlane.xlu0 %4088
  %v4090 = vsel %vm203, %v4077, 0.0
  %4091 = vadd.xlane.f32.xlu0 %v4090
  %v4092 = vpop.xlane.xlu0 %4091
  %v4093 = vmul.f32 %v4080, %v219
  %v4094 = vmul.f32 %v4083, %v219
  %v4095 = vmul.f32 %v4086, %v219
  %v4096 = vmul.f32 %v4089, %v219
  %v4097 = vmul.f32 %v4092, %v219
  %v4098 = vadd.f32 %v4093, 1e-06
  %v4099 = vadd.f32 %v4094, 1e-06
  %v4100 = vadd.f32 %v4095, 1e-06
  %v4101 = vadd.f32 %v4096, 1e-06
  %v4102 = vadd.f32 %v4097, 1e-06
  %v4103 = vrsqrt.pop %v4098
  %v4104 = vrsqrt.pop %v4099
  %v4105 = vrsqrt.pop %v4100
  %v4106 = vrsqrt.pop %v4101
  %v4107 = vrsqrt.pop %v4102
  %v4108 = vmul.f32 %v4068, %v4103
  %v4109 = vmul.f32 %v4069, %v4104
  %v4110 = vmul.f32 %v4070, %v4105
  %v4111 = vmul.f32 %v4071, %v4106
  %v4112 = vmul.f32 %v4072, %v4107
  %v4113 = vlaneseq
  %v4114 = vshrl.u32 %v4113, 7
  %v4115 = vsub.s32 0, %v4114
  %v4116 = vrot.slane %v4046, %v4115
  %v4117 = vmul.f32 %v4108, %v4116
  %v4118 = vmul.f32 %v4109, %v4116
  %v4119 = vmul.f32 %v4110, %v4116
  %v4120 = vmul.f32 %v4111, %v4116
  %v4121 = vmul.f32 %v4112, %v4116
  %v4122 = vlaneseq
  %v4123 = vshrl.u32 %v4122, 7
  %v4124 = vsub.s32 0, %v4123
  %v4125 = vrot.slane %v4047, %v4124
  %v4126 = vadd.f32 %v4117, %v4125
  %v4127 = vadd.f32 %v4118, %v4125
  %v4128 = vadd.f32 %v4119, %v4125
  %v4129 = vadd.f32 %v4120, %v4125
  %v4130 = vadd.f32 %v4121, %v4125
  %v4131 = vld [vmem:[%s1 + $0x280] sm:$0xff]
  %v4132 = vld [vmem:[%s1 + $0x288] sm:$0xff]
  %v4133 = vld [vmem:[%s1 + $0x290] sm:$0xff]
  %v4134 = vld [vmem:[%s1 + $0x298] sm:$0xff]
  %v4135 = vld [vmem:[%s1 + $0x2a0] sm:$0x1]
  %v4136 = vlaneseq
  %v4137 = vshrl.u32 %v4136, 7
  %v4138 = vsub.s32 0, %v4137
  %v4139 = vrot.slane %v4135, %v4138
  %v4141 = vsel %vm203, %v4126, 0
  %v4144 = vsel %vm203, %v4127, 0
  %v4147 = vsel %vm203, %v4128, 0
  %v4150 = vsel %vm203, %v4129, 0
  %v4153 = vsel %vm203, %v4130, 0
  %4155 = vmatprep.subr.mxu0 0.0
  %4156 = vmatpush1.msra.mxu0 %v4131
  %4157 = vmatprep.subr.mxu0 0.0
  %4158 = vmatpush1.msra.mxu0 %v4132
  %4159 = vmatprep.subr.mxu0 0.0
  %4160 = vmatpush1.msra.mxu0 %v4133
  %4161 = vmatprep.subr.mxu0 0.0
  %4162 = vmatpush1.msra.mxu0 %v4134
  %4163 = vmatprep.subr.mxu0 0.0
  %4164 = vmatpush1.msra.mxu0 0.0
  %4165 = vmatprep.subr.mxu0 0.0
  %4166 = vmatpush1.msra.mxu0 0.0
  %4167 = vmatprep.subr.mxu0 0.0
  %4168 = vmatpush1.msra.mxu0 0.0
  %4169 = vmatprep.subr.mxu0 0.0
  %4170 = vmatpush1.msra.mxu0 0.0
  %4171 = vmatprep.subr.mxu0 0.0
  %4172 = vmatpush1.msra.mxu0 0.0
  %4173 = vmatprep.subr.mxu0 0.0
  %4174 = vmatpush1.msra.mxu0 0.0
  %4175 = vmatprep.subr.mxu0 0.0
  %4176 = vmatpush1.msra.mxu0 0.0
  %4177 = vmatprep.subr.mxu0 0.0
  %4178 = vmatpush1.msra.mxu0 0.0
  %4179 = vmatprep.subr.mxu0 0.0
  %4180 = vmatpush1.msra.mxu0 0.0
  %4181 = vmatprep.subr.mxu0 0.0
  %4182 = vmatpush1.msra.mxu0 0.0
  %4183 = vmatprep.subr.mxu0 0.0
  %4184 = vmatpush1.msra.mxu0 0.0
  %4185 = vmatprep.subr.mxu0 0.0
  %4186 = vmatpush1.msra.mxu0 0.0
  %4187 = vmatprep.subr.mxu0 0.0
  %4188 = vmatpush1.msra.mxu0 0.0
  %4189 = vmatprep.subr.mxu0 0.0
  %4190 = vmatpush1.msra.mxu0 0.0
  %4191 = vmatprep.subr.mxu0 0.0
  %4192 = vmatpush1.msra.mxu0 0.0
  %4193 = vmatprep.subr.mxu0 0.0
  %4194 = vmatpush1.msra.mxu0 0.0
  %4195 = vmatprep.subr.mxu0 0.0
  %4196 = vmatpush1.msra.mxu0 0.0
  %4197 = vmatprep.subr.mxu0 0.0
  %4198 = vmatpush1.msra.mxu0 0.0
  %4199 = vmatprep.subr.mxu0 0.0
  %4200 = vmatpush1.msra.mxu0 0.0
  %4201 = vmatprep.subr.mxu0 0.0
  %4202 = vmatpush1.msra.mxu0 0.0
  %4203 = vmatprep.subr.mxu0 0.0
  %4204 = vmatpush1.msra.mxu0 0.0
  %4205 = vmatprep.subr.mxu0 0.0
  %4206 = vmatpush1.msra.mxu0 0.0
  %4207 = vmatprep.subr.mxu0 0.0
  %4208 = vmatpush1.msra.mxu0 0.0
  %4209 = vmatprep.subr.mxu0 0.0
  %4210 = vmatpush1.msra.mxu0 0.0
  %4211 = vmatprep.subr.mxu0 0.0
  %4212 = vmatpush1.msra.mxu0 0.0
  %4213 = vmatprep.subr.mxu0 0.0
  %4214 = vmatpush1.msra.mxu0 0.0
  %4215 = vmatprep.subr.mxu0 0.0
  %4216 = vmatpush1.msra.mxu0 0.0
  %4217 = vmatprep.subr.mxu0 0.0
  %4218 = vmatpush1.msra.mxu0 0.0
  %4219 = vmatprep.mubr.f32.mxu0 0.0
  %4220 = vmatmul.mubr.f32.gmra.mrb[0].mxu0 %v4141
  %v4221 = vpop.f32.mrb[0].mxu0
  %v4222 = vadd.f32 %v4139, %v4221
  %v4223 = vpop.f32.mrb[0].mxu0
  %4224 = vmatprep.mubr.f32.mxu0 0.0
  %4225 = vmatmul.mubr.f32.gmra.mrb[0].mxu0 %v4144
  %v4226 = vpop.f32.mrb[0].mxu0
  %v4227 = vadd.f32 %v4139, %v4226
  %v4228 = vpop.f32.mrb[0].mxu0
  %4229 = vmatprep.mubr.f32.mxu0 0.0
  %4230 = vmatmul.mubr.f32.gmra.mrb[0].mxu0 %v4147
  %v4231 = vpop.f32.mrb[0].mxu0
  %v4232 = vadd.f32 %v4139, %v4231
  %v4233 = vpop.f32.mrb[0].mxu0
  %4234 = vmatprep.mubr.f32.mxu0 0.0
  %4235 = vmatmul.mubr.f32.gmra.mrb[0].mxu0 %v4150
  %v4236 = vpop.f32.mrb[0].mxu0
  %v4237 = vadd.f32 %v4139, %v4236
  %v4238 = vpop.f32.mrb[0].mxu0
  %4239 = vmatprep.mubr.f32.mxu0 0.0
  %4240 = vmatmul.mubr.f32.gmra.mrb[0].mxu0 %v4153
  %v4241 = vpop.f32.mrb[0].mxu0
  %v4242 = vadd.f32 %v4139, %v4241
  %v4243 = vpop.f32.mrb[0].mxu0
  %4244 = vdwg.mxu0
  %v4245 = vmul.f32 %v4222, 0.70710677
  %v4246 = vmul.f32 %v4227, 0.70710677
  %v4247 = vmul.f32 %v4232, 0.70710677
  %v4248 = vmul.f32 %v4237, 0.70710677
  %v4249 = vmul.f32 %v4242, 0.70710677
  %v4250 = vand.u32 2147483647, %v4245
  %v4251 = vand.u32 2147483647, %v4246
  %v4252 = vand.u32 2147483647, %v4247
  %v4253 = vand.u32 2147483647, %v4248
  %v4254 = vand.u32 2147483647, %v4249
  %v4255 = vmul.f32 %v4250, 0.3275911
  %v4256 = vmul.f32 %v4251, 0.3275911
  %v4257 = vmul.f32 %v4252, 0.3275911
  %v4258 = vmul.f32 %v4253, 0.3275911
  %v4259 = vmul.f32 %v4254, 0.3275911
  %v4260 = vadd.f32 %v4255, 1.0
  %v4261 = vadd.f32 %v4256, 1.0
  %v4262 = vadd.f32 %v4257, 1.0
  %v4263 = vadd.f32 %v4258, 1.0
  %v4264 = vadd.f32 %v4259, 1.0
  %v4265 = vrcp.pop %v4260
  %v4266 = vrcp.pop %v4261
  %v4267 = vrcp.pop %v4262
  %v4268 = vrcp.pop %v4263
  %v4269 = vrcp.pop %v4264
  %v4270 = vmul.f32 %v4265, 1.0614054
  %v4271 = vmul.f32 %v4266, 1.0614054
  %v4272 = vmul.f32 %v4267, 1.0614054
  %v4273 = vmul.f32 %v4268, 1.0614054
  %v4274 = vmul.f32 %v4269, 1.0614054
  %v4275 = vadd.f32 %v4270, -1.4531521
  %v4276 = vadd.f32 %v4271, -1.4531521
  %v4277 = vadd.f32 %v4272, -1.4531521
  %v4278 = vadd.f32 %v4273, -1.4531521
  %v4279 = vadd.f32 %v4274, -1.4531521
  %v4280 = vmul.f32 %v4265, %v4275
  %v4281 = vmul.f32 %v4266, %v4276
  %v4282 = vmul.f32 %v4267, %v4277
  %v4283 = vmul.f32 %v4268, %v4278
  %v4284 = vmul.f32 %v4269, %v4279
  %v4285 = vadd.f32 %v4280, 1.4214138
  %v4286 = vadd.f32 %v4281, 1.4214138
  %v4287 = vadd.f32 %v4282, 1.4214138
  %v4288 = vadd.f32 %v4283, 1.4214138
  %v4289 = vadd.f32 %v4284, 1.4214138
  %v4290 = vmul.f32 %v4265, %v4285
  %v4291 = vmul.f32 %v4266, %v4286
  %v4292 = vmul.f32 %v4267, %v4287
  %v4293 = vmul.f32 %v4268, %v4288
  %v4294 = vmul.f32 %v4269, %v4289
  %v4295 = vadd.f32 %v4290, -0.28449672
  %v4296 = vadd.f32 %v4291, -0.28449672
  %v4297 = vadd.f32 %v4292, -0.28449672
  %v4298 = vadd.f32 %v4293, -0.28449672
  %v4299 = vadd.f32 %v4294, -0.28449672
  %v4300 = vmul.f32 %v4265, %v4295
  %v4301 = vmul.f32 %v4266, %v4296
  %v4302 = vmul.f32 %v4267, %v4297
  %v4303 = vmul.f32 %v4268, %v4298
  %v4304 = vmul.f32 %v4269, %v4299
  %v4305 = vadd.f32 %v4300, 0.2548296
  %v4306 = vadd.f32 %v4301, 0.2548296
  %v4307 = vadd.f32 %v4302, 0.2548296
  %v4308 = vadd.f32 %v4303, 0.2548296
  %v4309 = vadd.f32 %v4304, 0.2548296
  %v4310 = vmul.f32 %v4265, %v4305
  %v4311 = vmul.f32 %v4266, %v4306
  %v4312 = vmul.f32 %v4267, %v4307
  %v4313 = vmul.f32 %v4268, %v4308
  %v4314 = vmul.f32 %v4269, %v4309
  %v4315 = vsub.f32 0.0, %v4250
  %v4316 = vsub.f32 0.0, %v4251
  %v4317 = vsub.f32 0.0, %v4252
  %v4318 = vsub.f32 0.0, %v4253
  %v4319 = vsub.f32 0.0, %v4254
  %v4320 = vmul.f32 %v4315, %v4250
  %v4321 = vmul.f32 %v4316, %v4251
  %v4322 = vmul.f32 %v4317, %v4252
  %v4323 = vmul.f32 %v4318, %v4253
  %v4324 = vmul.f32 %v4319, %v4254
  %v4325 = vmul.f32 %v4320, 1.442695
  %v4326 = vpow.pop %v4325
  %v4327 = vmul.f32 %v4321, 1.442695
  %v4328 = vpow.pop %v4327
  %v4329 = vmul.f32 %v4322, 1.442695
  %v4330 = vpow.pop %v4329
  %v4331 = vmul.f32 %v4323, 1.442695
  %v4332 = vpow.pop %v4331
  %v4333 = vmul.f32 %v4324, 1.442695
  %v4334 = vpow.pop %v4333
  %v4335 = vmul.f32 %v4310, %v4326
  %v4336 = vmul.f32 %v4311, %v4328
  %v4337 = vmul.f32 %v4312, %v4330
  %v4338 = vmul.f32 %v4313, %v4332
  %v4339 = vmul.f32 %v4314, %v4334
  %v4340 = vsub.f32 1.0, %v4335
  %v4341 = vsub.f32 1.0, %v4336
  %v4342 = vsub.f32 1.0, %v4337
  %v4343 = vsub.f32 1.0, %v4338
  %v4344 = vsub.f32 1.0, %v4339
  %vm4345 = vcmp.ge.f32.partialorder %v4245, 0.0
  %vm4346 = vcmp.ge.f32.partialorder %v4246, 0.0
  %vm4347 = vcmp.ge.f32.partialorder %v4247, 0.0
  %vm4348 = vcmp.ge.f32.partialorder %v4248, 0.0
  %vm4349 = vcmp.ge.f32.partialorder %v4249, 0.0
  %v4350 = vsub.f32 0.0, %v4340
  %v4351 = vsub.f32 0.0, %v4341
  %v4352 = vsub.f32 0.0, %v4342
  %v4353 = vsub.f32 0.0, %v4343
  %v4354 = vsub.f32 0.0, %v4344
  %v4355 = vsel %vm4345, %v4340, %v4350
  %v4356 = vsel %vm4346, %v4341, %v4351
  %v4357 = vsel %vm4347, %v4342, %v4352
  %v4358 = vsel %vm4348, %v4343, %v4353
  %v4359 = vsel %vm4349, %v4344, %v4354
  %v4360 = vmul.f32 %v4222, 0.5
  %v4361 = vmul.f32 %v4227, 0.5
  %v4362 = vmul.f32 %v4232, 0.5
  %v4363 = vmul.f32 %v4237, 0.5
  %v4364 = vmul.f32 %v4242, 0.5
  %v4365 = vadd.f32 %v4355, 1.0
  %v4366 = vadd.f32 %v4356, 1.0
  %v4367 = vadd.f32 %v4357, 1.0
  %v4368 = vadd.f32 %v4358, 1.0
  %v4369 = vadd.f32 %v4359, 1.0
  %v4370 = vmul.f32 %v4360, %v4365
  %v4371 = vmul.f32 %v4361, %v4366
  %v4372 = vmul.f32 %v4362, %v4367
  %v4373 = vmul.f32 %v4363, %v4368
  %v4374 = vmul.f32 %v4364, %v4369
  %v4375 = vld [vmem:[%s1 + $0x2a8] sm:$0xff]
  %v4376 = vld [vmem:[%s1 + $0x2b0] sm:$0xff]
  %v4377 = vld [vmem:[%s1 + $0x2b8] sm:$0xff]
  %v4378 = vld [vmem:[%s1 + $0x2c0] sm:$0xff]
  %v4379 = vld [vmem:[%s1 + $0x2c8] sm:$0xff]
  %v4380 = vld [vmem:[%s1 + $0x2d0] sm:$0xff]
  %v4381 = vld [vmem:[%s1 + $0x2d8] sm:$0xff]
  %v4382 = vld [vmem:[%s1 + $0x2e0] sm:$0xff]
  %v4383 = vld [vmem:[%s1 + $0x2e8] sm:$0xff]
  %v4384 = vld [vmem:[%s1 + $0x2f0] sm:$0xff]
  %v4385 = vld [vmem:[%s1 + $0x2f8] sm:$0xff]
  %v4386 = vld [vmem:[%s1 + $0x300] sm:$0xff]
  %v4387 = vld [vmem:[%s1 + $0x308] sm:$0xff]
  %v4388 = vld [vmem:[%s1 + $0x310] sm:$0xff]
  %v4389 = vld [vmem:[%s1 + $0x318] sm:$0xff]
  %v4390 = vld [vmem:[%s1 + $0x320] sm:$0xff]
  %4391 = vmatprep.subr.mxu0 0.0
  %4392 = vmatpush1.msra.mxu0 %v4375
  %4393 = vmatprep.subr.mxu0 0.0
  %4394 = vmatpush1.msra.mxu0 %v4376
  %4395 = vmatprep.subr.mxu0 0.0
  %4396 = vmatpush1.msra.mxu0 %v4377
  %4397 = vmatprep.subr.mxu0 0.0
  %4398 = vmatpush1.msra.mxu0 %v4378
  %4399 = vmatprep.subr.mxu0 0.0
  %4400 = vmatpush1.msra.mxu0 %v4379
  %4401 = vmatprep.subr.mxu0 0.0
  %4402 = vmatpush1.msra.mxu0 %v4380
  %4403 = vmatprep.subr.mxu0 0.0
  %4404 = vmatpush1.msra.mxu0 %v4381
  %4405 = vmatprep.subr.mxu0 0.0
  %4406 = vmatpush1.msra.mxu0 %v4382
  %4407 = vmatprep.subr.mxu0 0.0
  %4408 = vmatpush1.msra.mxu0 %v4383
  %4409 = vmatprep.subr.mxu0 0.0
  %4410 = vmatpush1.msra.mxu0 %v4384
  %4411 = vmatprep.subr.mxu0 0.0
  %4412 = vmatpush1.msra.mxu0 %v4385
  %4413 = vmatprep.subr.mxu0 0.0
  %4414 = vmatpush1.msra.mxu0 %v4386
  %4415 = vmatprep.subr.mxu0 0.0
  %4416 = vmatpush1.msra.mxu0 %v4387
  %4417 = vmatprep.subr.mxu0 0.0
  %4418 = vmatpush1.msra.mxu0 %v4388
  %4419 = vmatprep.subr.mxu0 0.0
  %4420 = vmatpush1.msra.mxu0 %v4389
  %4421 = vmatprep.subr.mxu0 0.0
  %4422 = vmatpush1.msra.mxu0 %v4390
  %4423 = vmatprep.subr.mxu0 0.0
  %4424 = vmatpush1.msra.mxu0 0.0
  %4425 = vmatprep.subr.mxu0 0.0
  %4426 = vmatpush1.msra.mxu0 0.0
  %4427 = vmatprep.subr.mxu0 0.0
  %4428 = vmatpush1.msra.mxu0 0.0
  %4429 = vmatprep.subr.mxu0 0.0
  %4430 = vmatpush1.msra.mxu0 0.0
  %4431 = vmatprep.subr.mxu0 0.0
  %4432 = vmatpush1.msra.mxu0 0.0
  %4433 = vmatprep.subr.mxu0 0.0
  %4434 = vmatpush1.msra.mxu0 0.0
  %4435 = vmatprep.subr.mxu0 0.0
  %4436 = vmatpush1.msra.mxu0 0.0
  %4437 = vmatprep.subr.mxu0 0.0
  %4438 = vmatpush1.msra.mxu0 0.0
  %4439 = vmatprep.subr.mxu0 0.0
  %4440 = vmatpush1.msra.mxu0 0.0
  %4441 = vmatprep.subr.mxu0 0.0
  %4442 = vmatpush1.msra.mxu0 0.0
  %4443 = vmatprep.subr.mxu0 0.0
  %4444 = vmatpush1.msra.mxu0 0.0
  %4445 = vmatprep.subr.mxu0 0.0
  %4446 = vmatpush1.msra.mxu0 0.0
  %4447 = vmatprep.subr.mxu0 0.0
  %4448 = vmatpush1.msra.mxu0 0.0
  %4449 = vmatprep.subr.mxu0 0.0
  %4450 = vmatpush1.msra.mxu0 0.0
  %4451 = vmatprep.subr.mxu0 0.0
  %4452 = vmatpush1.msra.mxu0 0.0
  %4453 = vmatprep.subr.mxu0 0.0
  %4454 = vmatpush1.msra.mxu0 0.0
  %4455 = vmatprep.mubr.f32.mxu0 0.0
  %4456 = vmatmul.mubr.f32.gmra.mrb[0].mxu0 %v4370
  %v4457 = vpop.f32.mrb[0].mxu0
  %v4458 = vadd.f32 0.0, %v4457
  %v4459 = vpop.f32.mrb[0].mxu0
  %4460 = vmatprep.mubr.f32.mxu0 0.0
  %4461 = vmatmul.mubr.f32.gmra.mrb[0].mxu0 %v4371
  %v4462 = vpop.f32.mrb[0].mxu0
  %v4463 = vadd.f32 0.0, %v4462
  %v4464 = vpop.f32.mrb[0].mxu0
  %4465 = vmatprep.mubr.f32.mxu0 0.0
  %4466 = vmatmul.mubr.f32.gmra.mrb[0].mxu0 %v4372
  %v4467 = vpop.f32.mrb[0].mxu0
  %v4468 = vadd.f32 0.0, %v4467
  %v4469 = vpop.f32.mrb[0].mxu0
  %4470 = vmatprep.mubr.f32.mxu0 0.0
  %4471 = vmatmul.mubr.f32.gmra.mrb[0].mxu0 %v4373
  %v4472 = vpop.f32.mrb[0].mxu0
  %v4473 = vadd.f32 0.0, %v4472
  %v4474 = vpop.f32.mrb[0].mxu0
  %4475 = vmatprep.mubr.f32.mxu0 0.0
  %4476 = vmatmul.mubr.f32.gmra.mrb[0].mxu0 %v4374
  %v4477 = vpop.f32.mrb[0].mxu0
  %v4478 = vadd.f32 0.0, %v4477
  %v4479 = vpop.f32.mrb[0].mxu0
  %4480 = vdwg.mxu0
  %v4481 = vadd.f32 %v4041, %v4458
  %v4482 = vadd.f32 %v4042, %v4463
  %v4483 = vadd.f32 %v4043, %v4468
  %v4484 = vadd.f32 %v4044, %v4473
  %v4485 = vadd.f32 %v4045, %v4478
  %v4486 = vld [vmem:[%s1 + $0x328] sm:$0x1]
  %v4487 = vlaneseq
  %v4488 = vshrl.u32 %v4487, 7
  %v4489 = vsub.s32 0, %v4488
  %v4490 = vrot.slane %v4486, %v4489
  %v4491 = vadd.f32 %v4481, %v4490
  %v4492 = vadd.f32 %v4482, %v4490
  %v4493 = vadd.f32 %v4483, %v4490
  %v4494 = vadd.f32 %v4484, %v4490
  %v4495 = vadd.f32 %v4485, %v4490
  %v4496 = vld [vmem:[%s1 + $0x330] sm:$0x1]
  %v4497 = vld [vmem:[%s1 + $0x338] sm:$0x1]
  %v4498 = vsel %vm203, %v4491, 0.0
  %4499 = vadd.xlane.f32.xlu0 %v4498
  %v4500 = vpop.xlane.xlu0 %4499
  %v4501 = vsel %vm203, %v4492, 0.0
  %4502 = vadd.xlane.f32.xlu0 %v4501
  %v4503 = vpop.xlane.xlu0 %4502
  %v4504 = vsel %vm203, %v4493, 0.0
  %4505 = vadd.xlane.f32.xlu0 %v4504
  %v4506 = vpop.xlane.xlu0 %4505
  %v4507 = vsel %vm203, %v4494, 0.0
  %4508 = vadd.xlane.f32.xlu0 %v4507
  %v4509 = vpop.xlane.xlu0 %4508
  %v4510 = vsel %vm203, %v4495, 0.0
  %4511 = vadd.xlane.f32.xlu0 %v4510
  %v4512 = vpop.xlane.xlu0 %4511
  %v4513 = vmul.f32 %v4500, %v219
  %v4514 = vmul.f32 %v4503, %v219
  %v4515 = vmul.f32 %v4506, %v219
  %v4516 = vmul.f32 %v4509, %v219
  %v4517 = vmul.f32 %v4512, %v219
  %v4518 = vsub.f32 %v4491, %v4513
  %v4519 = vsub.f32 %v4492, %v4514
  %v4520 = vsub.f32 %v4493, %v4515
  %v4521 = vsub.f32 %v4494, %v4516
  %v4522 = vsub.f32 %v4495, %v4517
  %v4523 = vmul.f32 %v4518, %v4518
  %v4524 = vmul.f32 %v4519, %v4519
  %v4525 = vmul.f32 %v4520, %v4520
  %v4526 = vmul.f32 %v4521, %v4521
  %v4527 = vmul.f32 %v4522, %v4522
  %v4528 = vsel %vm203, %v4523, 0.0
  %4529 = vadd.xlane.f32.xlu0 %v4528
  %v4530 = vpop.xlane.xlu0 %4529
  %v4531 = vsel %vm203, %v4524, 0.0
  %4532 = vadd.xlane.f32.xlu0 %v4531
  %v4533 = vpop.xlane.xlu0 %4532
  %v4534 = vsel %vm203, %v4525, 0.0
  %4535 = vadd.xlane.f32.xlu0 %v4534
  %v4536 = vpop.xlane.xlu0 %4535
  %v4537 = vsel %vm203, %v4526, 0.0
  %4538 = vadd.xlane.f32.xlu0 %v4537
  %v4539 = vpop.xlane.xlu0 %4538
  %v4540 = vsel %vm203, %v4527, 0.0
  %4541 = vadd.xlane.f32.xlu0 %v4540
  %v4542 = vpop.xlane.xlu0 %4541
  %v4543 = vmul.f32 %v4530, %v219
  %v4544 = vmul.f32 %v4533, %v219
  %v4545 = vmul.f32 %v4536, %v219
  %v4546 = vmul.f32 %v4539, %v219
  %v4547 = vmul.f32 %v4542, %v219
  %v4548 = vadd.f32 %v4543, 1e-06
  %v4549 = vadd.f32 %v4544, 1e-06
  %v4550 = vadd.f32 %v4545, 1e-06
  %v4551 = vadd.f32 %v4546, 1e-06
  %v4552 = vadd.f32 %v4547, 1e-06
  %v4553 = vrsqrt.pop %v4548
  %v4554 = vrsqrt.pop %v4549
  %v4555 = vrsqrt.pop %v4550
  %v4556 = vrsqrt.pop %v4551
  %v4557 = vrsqrt.pop %v4552
  %v4558 = vmul.f32 %v4518, %v4553
  %v4559 = vmul.f32 %v4519, %v4554
  %v4560 = vmul.f32 %v4520, %v4555
  %v4561 = vmul.f32 %v4521, %v4556
  %v4562 = vmul.f32 %v4522, %v4557
  %v4563 = vlaneseq
  %v4564 = vshrl.u32 %v4563, 7
  %v4565 = vsub.s32 0, %v4564
  %v4566 = vrot.slane %v4496, %v4565
  %v4567 = vmul.f32 %v4558, %v4566
  %v4568 = vmul.f32 %v4559, %v4566
  %v4569 = vmul.f32 %v4560, %v4566
  %v4570 = vmul.f32 %v4561, %v4566
  %v4571 = vmul.f32 %v4562, %v4566
  %v4572 = vlaneseq
  %v4573 = vshrl.u32 %v4572, 7
  %v4574 = vsub.s32 0, %v4573
  %v4575 = vrot.slane %v4497, %v4574
  %v4576 = vadd.f32 %v4567, %v4575
  %v4577 = vadd.f32 %v4568, %v4575
  %v4578 = vadd.f32 %v4569, %v4575
  %v4579 = vadd.f32 %v4570, %v4575
  %v4580 = vadd.f32 %v4571, %v4575
  %v4581 = vld [vmem:[%s1 + $0x358] sm:$0xff]
  %v4582 = vld [vmem:[%s1 + $0x360] sm:$0xff]
  %v4583 = vld [vmem:[%s1 + $0x368] sm:$0xff]
  %v4584 = vld [vmem:[%s1 + $0x370] sm:$0xff]
  %v4586 = vsel %vm203, %v4576, 0
  %4588 = vmatprep.subr.mxu0 0.0
  %4589 = vmatpush1.msra.mxu0 %v4581
  %4590 = vmatprep.subr.mxu0 0.0
  %4591 = vmatpush1.msra.mxu0 %v4582
  %4592 = vmatprep.subr.mxu0 0.0
  %4593 = vmatpush1.msra.mxu0 %v4583
  %4594 = vmatprep.subr.mxu0 0.0
  %4595 = vmatpush1.msra.mxu0 %v4584
  %4596 = vmatprep.subr.mxu0 0.0
  %4597 = vmatpush1.msra.mxu0 0.0
  %4598 = vmatprep.subr.mxu0 0.0
  %4599 = vmatpush1.msra.mxu0 0.0
  %4600 = vmatprep.subr.mxu0 0.0
  %4601 = vmatpush1.msra.mxu0 0.0
  %4602 = vmatprep.subr.mxu0 0.0
  %4603 = vmatpush1.msra.mxu0 0.0
  %4604 = vmatprep.subr.mxu0 0.0
  %4605 = vmatpush1.msra.mxu0 0.0
  %4606 = vmatprep.subr.mxu0 0.0
  %4607 = vmatpush1.msra.mxu0 0.0
  %4608 = vmatprep.subr.mxu0 0.0
  %4609 = vmatpush1.msra.mxu0 0.0
  %4610 = vmatprep.subr.mxu0 0.0
  %4611 = vmatpush1.msra.mxu0 0.0
  %4612 = vmatprep.subr.mxu0 0.0
  %4613 = vmatpush1.msra.mxu0 0.0
  %4614 = vmatprep.subr.mxu0 0.0
  %4615 = vmatpush1.msra.mxu0 0.0
  %4616 = vmatprep.subr.mxu0 0.0
  %4617 = vmatpush1.msra.mxu0 0.0
  %4618 = vmatprep.subr.mxu0 0.0
  %4619 = vmatpush1.msra.mxu0 0.0
  %4620 = vmatprep.subr.mxu0 0.0
  %4621 = vmatpush1.msra.mxu0 0.0
  %4622 = vmatprep.subr.mxu0 0.0
  %4623 = vmatpush1.msra.mxu0 0.0
  %4624 = vmatprep.subr.mxu0 0.0
  %4625 = vmatpush1.msra.mxu0 0.0
  %4626 = vmatprep.subr.mxu0 0.0
  %4627 = vmatpush1.msra.mxu0 0.0
  %4628 = vmatprep.subr.mxu0 0.0
  %4629 = vmatpush1.msra.mxu0 0.0
  %4630 = vmatprep.subr.mxu0 0.0
  %4631 = vmatpush1.msra.mxu0 0.0
  %4632 = vmatprep.subr.mxu0 0.0
  %4633 = vmatpush1.msra.mxu0 0.0
  %4634 = vmatprep.subr.mxu0 0.0
  %4635 = vmatpush1.msra.mxu0 0.0
  %4636 = vmatprep.subr.mxu0 0.0
  %4637 = vmatpush1.msra.mxu0 0.0
  %4638 = vmatprep.subr.mxu0 0.0
  %4639 = vmatpush1.msra.mxu0 0.0
  %4640 = vmatprep.subr.mxu0 0.0
  %4641 = vmatpush1.msra.mxu0 0.0
  %4642 = vmatprep.subr.mxu0 0.0
  %4643 = vmatpush1.msra.mxu0 0.0
  %4644 = vmatprep.subr.mxu0 0.0
  %4645 = vmatpush1.msra.mxu0 0.0
  %4646 = vmatprep.subr.mxu0 0.0
  %4647 = vmatpush1.msra.mxu0 0.0
  %4648 = vmatprep.subr.mxu0 0.0
  %4649 = vmatpush1.msra.mxu0 0.0
  %4650 = vmatprep.subr.mxu0 0.0
  %4651 = vmatpush1.msra.mxu0 0.0
  %4652 = vmatprep.mubr.f32.mxu0 0.0
  %4653 = vmatmul.mubr.f32.gmra.mrb[0].mxu0 %v4586
  %v4654 = vpop.f32.mrb[0].mxu0
  %v4655 = vadd.f32 0.0, %v4654
  %v4656 = vpop.f32.mrb[0].mxu0
  %4657 = vdwg.mxu0
  %v4658 = vld [vmem:[%s1 + $0x340] sm:$0xff]
  %v4659 = vld [vmem:[%s1 + $0x348] sm:$0x1]
  %v4660 = vld [vmem:[%s1 + $0x378] sm:$0xff]
  %v4661 = vld [vmem:[%s1 + $0x380] sm:$0xff]
  %v4662 = vld [vmem:[%s1 + $0x388] sm:$0xff]
  %v4663 = vld [vmem:[%s1 + $0x390] sm:$0xff]
  %v4665 = vsel %vm203, %v4658, 0
  %v4668 = vsel %vm203, %v4659, 0
  %4670 = vmatprep.subr.mxu0 0.0
  %4671 = vmatpush1.msra.mxu0 %v4660
  %4672 = vmatprep.subr.mxu0 0.0
  %4673 = vmatpush1.msra.mxu0 %v4661
  %4674 = vmatprep.subr.mxu0 0.0
  %4675 = vmatpush1.msra.mxu0 %v4662
  %4676 = vmatprep.subr.mxu0 0.0
  %4677 = vmatpush1.msra.mxu0 %v4663
  %4678 = vmatprep.subr.mxu0 0.0
  %4679 = vmatpush1.msra.mxu0 0.0
  %4680 = vmatprep.subr.mxu0 0.0
  %4681 = vmatpush1.msra.mxu0 0.0
  %4682 = vmatprep.subr.mxu0 0.0
  %4683 = vmatpush1.msra.mxu0 0.0
  %4684 = vmatprep.subr.mxu0 0.0
  %4685 = vmatpush1.msra.mxu0 0.0
  %4686 = vmatprep.subr.mxu0 0.0
  %4687 = vmatpush1.msra.mxu0 0.0
  %4688 = vmatprep.subr.mxu0 0.0
  %4689 = vmatpush1.msra.mxu0 0.0
  %4690 = vmatprep.subr.mxu0 0.0
  %4691 = vmatpush1.msra.mxu0 0.0
  %4692 = vmatprep.subr.mxu0 0.0
  %4693 = vmatpush1.msra.mxu0 0.0
  %4694 = vmatprep.subr.mxu0 0.0
  %4695 = vmatpush1.msra.mxu0 0.0
  %4696 = vmatprep.subr.mxu0 0.0
  %4697 = vmatpush1.msra.mxu0 0.0
  %4698 = vmatprep.subr.mxu0 0.0
  %4699 = vmatpush1.msra.mxu0 0.0
  %4700 = vmatprep.subr.mxu0 0.0
  %4701 = vmatpush1.msra.mxu0 0.0
  %4702 = vmatprep.subr.mxu0 0.0
  %4703 = vmatpush1.msra.mxu0 0.0
  %4704 = vmatprep.subr.mxu0 0.0
  %4705 = vmatpush1.msra.mxu0 0.0
  %4706 = vmatprep.subr.mxu0 0.0
  %4707 = vmatpush1.msra.mxu0 0.0
  %4708 = vmatprep.subr.mxu0 0.0
  %4709 = vmatpush1.msra.mxu0 0.0
  %4710 = vmatprep.subr.mxu0 0.0
  %4711 = vmatpush1.msra.mxu0 0.0
  %4712 = vmatprep.subr.mxu0 0.0
  %4713 = vmatpush1.msra.mxu0 0.0
  %4714 = vmatprep.subr.mxu0 0.0
  %4715 = vmatpush1.msra.mxu0 0.0
  %4716 = vmatprep.subr.mxu0 0.0
  %4717 = vmatpush1.msra.mxu0 0.0
  %4718 = vmatprep.subr.mxu0 0.0
  %4719 = vmatpush1.msra.mxu0 0.0
  %4720 = vmatprep.subr.mxu0 0.0
  %4721 = vmatpush1.msra.mxu0 0.0
  %4722 = vmatprep.subr.mxu0 0.0
  %4723 = vmatpush1.msra.mxu0 0.0
  %4724 = vmatprep.subr.mxu0 0.0
  %4725 = vmatpush1.msra.mxu0 0.0
  %4726 = vmatprep.subr.mxu0 0.0
  %4727 = vmatpush1.msra.mxu0 0.0
  %4728 = vmatprep.subr.mxu0 0.0
  %4729 = vmatpush1.msra.mxu0 0.0
  %4730 = vmatprep.subr.mxu0 0.0
  %4731 = vmatpush1.msra.mxu0 0.0
  %4732 = vmatprep.subr.mxu0 0.0
  %4733 = vmatpush1.msra.mxu0 0.0
  %4734 = vmatprep.mubr.f32.mxu0 0.0
  %4735 = vmatmul.mubr.f32.gmra.mrb[0].mxu0 %v4665
  %v4736 = vpop.f32.mrb[0].mxu0
  %v4737 = vadd.f32 0.0, %v4736
  %v4738 = vpop.f32.mrb[0].mxu0
  %4739 = vmatprep.mubr.f32.mxu0 0.0
  %4740 = vmatmul.mubr.f32.gmra.mrb[0].mxu0 %v4668
  %v4741 = vpop.f32.mrb[0].mxu0
  %v4742 = vadd.f32 0.0, %v4741
  %v4743 = vpop.f32.mrb[0].mxu0
  %4744 = vdwg.mxu0
  %v4745 = vld [vmem:[%s1 + $0x398] sm:$0xff]
  %v4746 = vld [vmem:[%s1 + $0x3a0] sm:$0xff]
  %v4747 = vld [vmem:[%s1 + $0x3a8] sm:$0xff]
  %v4748 = vld [vmem:[%s1 + $0x3b0] sm:$0xff]
  %4749 = vmatprep.subr.mxu0 0.0
  %4750 = vmatpush1.msra.mxu0 %v4745
  %4751 = vmatprep.subr.mxu0 0.0
  %4752 = vmatpush1.msra.mxu0 %v4746
  %4753 = vmatprep.subr.mxu0 0.0
  %4754 = vmatpush1.msra.mxu0 %v4747
  %4755 = vmatprep.subr.mxu0 0.0
  %4756 = vmatpush1.msra.mxu0 %v4748
  %4757 = vmatprep.subr.mxu0 0.0
  %4758 = vmatpush1.msra.mxu0 0.0
  %4759 = vmatprep.subr.mxu0 0.0
  %4760 = vmatpush1.msra.mxu0 0.0
  %4761 = vmatprep.subr.mxu0 0.0
  %4762 = vmatpush1.msra.mxu0 0.0
  %4763 = vmatprep.subr.mxu0 0.0
  %4764 = vmatpush1.msra.mxu0 0.0
  %4765 = vmatprep.subr.mxu0 0.0
  %4766 = vmatpush1.msra.mxu0 0.0
  %4767 = vmatprep.subr.mxu0 0.0
  %4768 = vmatpush1.msra.mxu0 0.0
  %4769 = vmatprep.subr.mxu0 0.0
  %4770 = vmatpush1.msra.mxu0 0.0
  %4771 = vmatprep.subr.mxu0 0.0
  %4772 = vmatpush1.msra.mxu0 0.0
  %4773 = vmatprep.subr.mxu0 0.0
  %4774 = vmatpush1.msra.mxu0 0.0
  %4775 = vmatprep.subr.mxu0 0.0
  %4776 = vmatpush1.msra.mxu0 0.0
  %4777 = vmatprep.subr.mxu0 0.0
  %4778 = vmatpush1.msra.mxu0 0.0
  %4779 = vmatprep.subr.mxu0 0.0
  %4780 = vmatpush1.msra.mxu0 0.0
  %4781 = vmatprep.subr.mxu0 0.0
  %4782 = vmatpush1.msra.mxu0 0.0
  %4783 = vmatprep.subr.mxu0 0.0
  %4784 = vmatpush1.msra.mxu0 0.0
  %4785 = vmatprep.subr.mxu0 0.0
  %4786 = vmatpush1.msra.mxu0 0.0
  %4787 = vmatprep.subr.mxu0 0.0
  %4788 = vmatpush1.msra.mxu0 0.0
  %4789 = vmatprep.subr.mxu0 0.0
  %4790 = vmatpush1.msra.mxu0 0.0
  %4791 = vmatprep.subr.mxu0 0.0
  %4792 = vmatpush1.msra.mxu0 0.0
  %4793 = vmatprep.subr.mxu0 0.0
  %4794 = vmatpush1.msra.mxu0 0.0
  %4795 = vmatprep.subr.mxu0 0.0
  %4796 = vmatpush1.msra.mxu0 0.0
  %4797 = vmatprep.subr.mxu0 0.0
  %4798 = vmatpush1.msra.mxu0 0.0
  %4799 = vmatprep.subr.mxu0 0.0
  %4800 = vmatpush1.msra.mxu0 0.0
  %4801 = vmatprep.subr.mxu0 0.0
  %4802 = vmatpush1.msra.mxu0 0.0
  %4803 = vmatprep.subr.mxu0 0.0
  %4804 = vmatpush1.msra.mxu0 0.0
  %4805 = vmatprep.subr.mxu0 0.0
  %4806 = vmatpush1.msra.mxu0 0.0
  %4807 = vmatprep.subr.mxu0 0.0
  %4808 = vmatpush1.msra.mxu0 0.0
  %4809 = vmatprep.subr.mxu0 0.0
  %4810 = vmatpush1.msra.mxu0 0.0
  %4811 = vmatprep.subr.mxu0 0.0
  %4812 = vmatpush1.msra.mxu0 0.0
  %4813 = vmatprep.mubr.f32.mxu0 0.0
  %4814 = vmatmul.mubr.f32.gmra.mrb[0].mxu0 %v4665
  %v4815 = vpop.f32.mrb[0].mxu0
  %v4816 = vadd.f32 0.0, %v4815
  %v4817 = vpop.f32.mrb[0].mxu0
  %4818 = vmatprep.mubr.f32.mxu0 0.0
  %4819 = vmatmul.mubr.f32.gmra.mrb[0].mxu0 %v4668
  %v4820 = vpop.f32.mrb[0].mxu0
  %v4821 = vadd.f32 0.0, %v4820
  %v4822 = vpop.f32.mrb[0].mxu0
  %4823 = vdwg.mxu0
  %vm4824 = vcmp.lt.s32.totalorder %v12, 5
  %v4825 = vsel %vm4824, 0.0, -1e+30
  %vm4826 = vcmp.ge.s32.totalorder %v12, 5
  %v4827 = vsel %vm4826, 0.0, -1e+30
  %v4828 = vmul.f32 %v4655, %v35
  %v4830 = vsel %vm203, %v4828, 0
  %v4833 = vsel %vm203, %v4737, 0
  %v4836 = vsel %vm203, %v4742, 0
  %4838 = vmatprep.subr.mxu0 0.0
  %4839 = vmatpush1.xpose.msra.mxu0 %v4833
  %4840 = vmatprep.subr.mxu0 0.0
  %4841 = vmatpush1.xpose.msra.mxu0 %v4836
  %4842 = vmatprep.subr.mxu0 0.0
  %4843 = vmatpush1.xpose.msra.mxu0 0.0
  %4844 = vmatprep.subr.mxu0 0.0
  %4845 = vmatpush1.xpose.msra.mxu0 0.0
  %4846 = vmatprep.subr.mxu0 0.0
  %4847 = vmatpush1.xpose.msra.mxu0 0.0
  %4848 = vmatprep.subr.mxu0 0.0
  %4849 = vmatpush1.xpose.msra.mxu0 0.0
  %4850 = vmatprep.subr.mxu0 0.0
  %4851 = vmatpush1.xpose.msra.mxu0 0.0
  %4852 = vmatprep.subr.mxu0 0.0
  %4853 = vmatpush1.xpose.msra.mxu0 0.0
  %4854 = vmatprep.subr.mxu0 0.0
  %4855 = vmatpush1.xpose.msra.mxu0 0.0
  %4856 = vmatprep.subr.mxu0 0.0
  %4857 = vmatpush1.xpose.msra.mxu0 0.0
  %4858 = vmatprep.subr.mxu0 0.0
  %4859 = vmatpush1.xpose.msra.mxu0 0.0
  %4860 = vmatprep.subr.mxu0 0.0
  %4861 = vmatpush1.xpose.msra.mxu0 0.0
  %4862 = vmatprep.subr.mxu0 0.0
  %4863 = vmatpush1.xpose.msra.mxu0 0.0
  %4864 = vmatprep.subr.mxu0 0.0
  %4865 = vmatpush1.xpose.msra.mxu0 0.0
  %4866 = vmatprep.subr.mxu0 0.0
  %4867 = vmatpush1.xpose.msra.mxu0 0.0
  %4868 = vmatprep.subr.mxu0 0.0
  %4869 = vmatpush1.xpose.msra.mxu0 0.0
  %4870 = vmatprep.subr.mxu0 0.0
  %4871 = vmatpush1.xpose.msra.mxu0 0.0
  %4872 = vmatprep.subr.mxu0 0.0
  %4873 = vmatpush1.xpose.msra.mxu0 0.0
  %4874 = vmatprep.subr.mxu0 0.0
  %4875 = vmatpush1.xpose.msra.mxu0 0.0
  %4876 = vmatprep.subr.mxu0 0.0
  %4877 = vmatpush1.xpose.msra.mxu0 0.0
  %4878 = vmatprep.subr.mxu0 0.0
  %4879 = vmatpush1.xpose.msra.mxu0 0.0
  %4880 = vmatprep.subr.mxu0 0.0
  %4881 = vmatpush1.xpose.msra.mxu0 0.0
  %4882 = vmatprep.subr.mxu0 0.0
  %4883 = vmatpush1.xpose.msra.mxu0 0.0
  %4884 = vmatprep.subr.mxu0 0.0
  %4885 = vmatpush1.xpose.msra.mxu0 0.0
  %4886 = vmatprep.subr.mxu0 0.0
  %4887 = vmatpush1.xpose.msra.mxu0 0.0
  %4888 = vmatprep.subr.mxu0 0.0
  %4889 = vmatpush1.xpose.msra.mxu0 0.0
  %4890 = vmatprep.subr.mxu0 0.0
  %4891 = vmatpush1.xpose.msra.mxu0 0.0
  %4892 = vmatprep.subr.mxu0 0.0
  %4893 = vmatpush1.xpose.msra.mxu0 0.0
  %4894 = vmatprep.subr.mxu0 0.0
  %4895 = vmatpush1.xpose.msra.mxu0 0.0
  %4896 = vmatprep.subr.mxu0 0.0
  %4897 = vmatpush1.xpose.msra.mxu0 0.0
  %4898 = vmatprep.subr.mxu0 0.0
  %4899 = vmatpush1.xpose.msra.mxu0 0.0
  %4900 = vmatprep.subr.mxu0 0.0
  %4901 = vmatpush1.xpose.msra.mxu0 0.0
  %4902 = vmatprep.mubr.f32.mxu0 0.0
  %4903 = vmatmul.mubr.f32.gmra.mrb[0].mxu0 %v4830
  %v4904 = vpop.f32.mrb[0].mxu0
  %v4905 = vadd.f32 0.0, %v4904
  %v4906 = vpop.f32.mrb[0].mxu0
  %4907 = vdwg.mxu0
  %v4908 = vmul.f32 %v4905, 0.25
  %v4909 = vadd.f32 %v4908, %v4825
  %vm4910 = vcmask 66560
  %v4911 = vsel %vm4910, %v4909, -inf
  %4912 = vmax.xlane.f32.xlu0 %v4911
  %v4913 = vpop.xlane.xlu0 %4912
  %v4914 = vsub.f32 %v4909, %v4913
  %v4915 = vmul.f32 %v4914, 1.442695
  %v4916 = vpow.pop %v4915
  %v4917 = vsel %vm4910, %v4916, 0.0
  %4918 = vadd.xlane.f32.xlu0 %v4917
  %v4919 = vpop.xlane.xlu0 %4918
  %v4920 = vrcp.pop %v4919
  %v4921 = vmul.f32 %v4916, %v4920
  %v4922 = vadd.f32 %v4908, %v4827
  %v4923 = vsel %vm4910, %v4922, -inf
  %4924 = vmax.xlane.f32.xlu0 %v4923
  %v4925 = vpop.xlane.xlu0 %4924
  %v4926 = vsub.f32 %v4922, %v4925
  %v4927 = vmul.f32 %v4926, 1.442695
  %v4928 = vpow.pop %v4927
  %v4929 = vsel %vm4910, %v4928, 0.0
  %4930 = vadd.xlane.f32.xlu0 %v4929
  %v4931 = vpop.xlane.xlu0 %4930
  %v4932 = vrcp.pop %v4931
  %v4933 = vmul.f32 %v4928, %v4932
  %v4934 = vadd.f32 %v4921, 0.0
  %v4935 = vadd.f32 %v4933, 0.0
  %v4936 = vadd.f32 %v4921, %v4933
  %vm4937 = vcmask 72704
  %v4939 = vsel %vm4937, %v4936, 0
  %vm4941 = vcmask 1040384
  %v4943 = vsel %vm4941, %v4821, 0
  %4945 = vmatprep.subr.mxu0 0.0
  %4946 = vmatpush1.msra.mxu0 %v4816
  %4947 = vmatprep.subr.mxu0 0.0
  %4948 = vmatpush1.msra.mxu0 %v4943
  %4949 = vmatprep.subr.mxu0 0.0
  %4950 = vmatpush1.msra.mxu0 0.0
  %4951 = vmatprep.subr.mxu0 0.0
  %4952 = vmatpush1.msra.mxu0 0.0
  %4953 = vmatprep.subr.mxu0 0.0
  %4954 = vmatpush1.msra.mxu0 0.0
  %4955 = vmatprep.subr.mxu0 0.0
  %4956 = vmatpush1.msra.mxu0 0.0
  %4957 = vmatprep.subr.mxu0 0.0
  %4958 = vmatpush1.msra.mxu0 0.0
  %4959 = vmatprep.subr.mxu0 0.0
  %4960 = vmatpush1.msra.mxu0 0.0
  %4961 = vmatprep.subr.mxu0 0.0
  %4962 = vmatpush1.msra.mxu0 0.0
  %4963 = vmatprep.subr.mxu0 0.0
  %4964 = vmatpush1.msra.mxu0 0.0
  %4965 = vmatprep.subr.mxu0 0.0
  %4966 = vmatpush1.msra.mxu0 0.0
  %4967 = vmatprep.subr.mxu0 0.0
  %4968 = vmatpush1.msra.mxu0 0.0
  %4969 = vmatprep.subr.mxu0 0.0
  %4970 = vmatpush1.msra.mxu0 0.0
  %4971 = vmatprep.subr.mxu0 0.0
  %4972 = vmatpush1.msra.mxu0 0.0
  %4973 = vmatprep.subr.mxu0 0.0
  %4974 = vmatpush1.msra.mxu0 0.0
  %4975 = vmatprep.subr.mxu0 0.0
  %4976 = vmatpush1.msra.mxu0 0.0
  %4977 = vmatprep.subr.mxu0 0.0
  %4978 = vmatpush1.msra.mxu0 0.0
  %4979 = vmatprep.subr.mxu0 0.0
  %4980 = vmatpush1.msra.mxu0 0.0
  %4981 = vmatprep.subr.mxu0 0.0
  %4982 = vmatpush1.msra.mxu0 0.0
  %4983 = vmatprep.subr.mxu0 0.0
  %4984 = vmatpush1.msra.mxu0 0.0
  %4985 = vmatprep.subr.mxu0 0.0
  %4986 = vmatpush1.msra.mxu0 0.0
  %4987 = vmatprep.subr.mxu0 0.0
  %4988 = vmatpush1.msra.mxu0 0.0
  %4989 = vmatprep.subr.mxu0 0.0
  %4990 = vmatpush1.msra.mxu0 0.0
  %4991 = vmatprep.subr.mxu0 0.0
  %4992 = vmatpush1.msra.mxu0 0.0
  %4993 = vmatprep.subr.mxu0 0.0
  %4994 = vmatpush1.msra.mxu0 0.0
  %4995 = vmatprep.subr.mxu0 0.0
  %4996 = vmatpush1.msra.mxu0 0.0
  %4997 = vmatprep.subr.mxu0 0.0
  %4998 = vmatpush1.msra.mxu0 0.0
  %4999 = vmatprep.subr.mxu0 0.0
  %5000 = vmatpush1.msra.mxu0 0.0
  %5001 = vmatprep.subr.mxu0 0.0
  %5002 = vmatpush1.msra.mxu0 0.0
  %5003 = vmatprep.subr.mxu0 0.0
  %5004 = vmatpush1.msra.mxu0 0.0
  %5005 = vmatprep.subr.mxu0 0.0
  %5006 = vmatpush1.msra.mxu0 0.0
  %5007 = vmatprep.subr.mxu0 0.0
  %5008 = vmatpush1.msra.mxu0 0.0
  %5009 = vmatprep.mubr.f32.mxu0 0.0
  %5010 = vmatmul.mubr.f32.gmra.mrb[0].mxu0 %v4939
  %v5011 = vpop.f32.mrb[0].mxu0
  %v5012 = vadd.f32 0.0, %v5011
  %v5013 = vpop.f32.mrb[0].mxu0
  %5014 = vdwg.mxu0
  %v5015 = vmul.f32 %v5012, %v35
  %v5016 = vadd.f32 %v5015, 0.0
  %v5017 = vmul.f32 %v4655, %v38
  %v5019 = vsel %vm203, %v5017, 0
  %5021 = vmatprep.subr.mxu0 0.0
  %5022 = vmatpush1.xpose.msra.mxu0 %v4833
  %5023 = vmatprep.subr.mxu0 0.0
  %5024 = vmatpush1.xpose.msra.mxu0 %v4836
  %5025 = vmatprep.subr.mxu0 0.0
  %5026 = vmatpush1.xpose.msra.mxu0 0.0
  %5027 = vmatprep.subr.mxu0 0.0
  %5028 = vmatpush1.xpose.msra.mxu0 0.0
  %5029 = vmatprep.subr.mxu0 0.0
  %5030 = vmatpush1.xpose.msra.mxu0 0.0
  %5031 = vmatprep.subr.mxu0 0.0
  %5032 = vmatpush1.xpose.msra.mxu0 0.0
  %5033 = vmatprep.subr.mxu0 0.0
  %5034 = vmatpush1.xpose.msra.mxu0 0.0
  %5035 = vmatprep.subr.mxu0 0.0
  %5036 = vmatpush1.xpose.msra.mxu0 0.0
  %5037 = vmatprep.subr.mxu0 0.0
  %5038 = vmatpush1.xpose.msra.mxu0 0.0
  %5039 = vmatprep.subr.mxu0 0.0
  %5040 = vmatpush1.xpose.msra.mxu0 0.0
  %5041 = vmatprep.subr.mxu0 0.0
  %5042 = vmatpush1.xpose.msra.mxu0 0.0
  %5043 = vmatprep.subr.mxu0 0.0
  %5044 = vmatpush1.xpose.msra.mxu0 0.0
  %5045 = vmatprep.subr.mxu0 0.0
  %5046 = vmatpush1.xpose.msra.mxu0 0.0
  %5047 = vmatprep.subr.mxu0 0.0
  %5048 = vmatpush1.xpose.msra.mxu0 0.0
  %5049 = vmatprep.subr.mxu0 0.0
  %5050 = vmatpush1.xpose.msra.mxu0 0.0
  %5051 = vmatprep.subr.mxu0 0.0
  %5052 = vmatpush1.xpose.msra.mxu0 0.0
  %5053 = vmatprep.subr.mxu0 0.0
  %5054 = vmatpush1.xpose.msra.mxu0 0.0
  %5055 = vmatprep.subr.mxu0 0.0
  %5056 = vmatpush1.xpose.msra.mxu0 0.0
  %5057 = vmatprep.subr.mxu0 0.0
  %5058 = vmatpush1.xpose.msra.mxu0 0.0
  %5059 = vmatprep.subr.mxu0 0.0
  %5060 = vmatpush1.xpose.msra.mxu0 0.0
  %5061 = vmatprep.subr.mxu0 0.0
  %5062 = vmatpush1.xpose.msra.mxu0 0.0
  %5063 = vmatprep.subr.mxu0 0.0
  %5064 = vmatpush1.xpose.msra.mxu0 0.0
  %5065 = vmatprep.subr.mxu0 0.0
  %5066 = vmatpush1.xpose.msra.mxu0 0.0
  %5067 = vmatprep.subr.mxu0 0.0
  %5068 = vmatpush1.xpose.msra.mxu0 0.0
  %5069 = vmatprep.subr.mxu0 0.0
  %5070 = vmatpush1.xpose.msra.mxu0 0.0
  %5071 = vmatprep.subr.mxu0 0.0
  %5072 = vmatpush1.xpose.msra.mxu0 0.0
  %5073 = vmatprep.subr.mxu0 0.0
  %5074 = vmatpush1.xpose.msra.mxu0 0.0
  %5075 = vmatprep.subr.mxu0 0.0
  %5076 = vmatpush1.xpose.msra.mxu0 0.0
  %5077 = vmatprep.subr.mxu0 0.0
  %5078 = vmatpush1.xpose.msra.mxu0 0.0
  %5079 = vmatprep.subr.mxu0 0.0
  %5080 = vmatpush1.xpose.msra.mxu0 0.0
  %5081 = vmatprep.subr.mxu0 0.0
  %5082 = vmatpush1.xpose.msra.mxu0 0.0
  %5083 = vmatprep.subr.mxu0 0.0
  %5084 = vmatpush1.xpose.msra.mxu0 0.0
  %5085 = vmatprep.mubr.f32.mxu0 0.0
  %5086 = vmatmul.mubr.f32.gmra.mrb[0].mxu0 %v5019
  %v5087 = vpop.f32.mrb[0].mxu0
  %v5088 = vadd.f32 0.0, %v5087
  %v5089 = vpop.f32.mrb[0].mxu0
  %5090 = vdwg.mxu0
  %v5091 = vmul.f32 %v5088, 0.25
  %v5092 = vadd.f32 %v5091, %v4825
  %v5093 = vsel %vm4910, %v5092, -inf
  %5094 = vmax.xlane.f32.xlu0 %v5093
  %v5095 = vpop.xlane.xlu0 %5094
  %v5096 = vsub.f32 %v5092, %v5095
  %v5097 = vmul.f32 %v5096, 1.442695
  %v5098 = vpow.pop %v5097
  %v5099 = vsel %vm4910, %v5098, 0.0
  %5100 = vadd.xlane.f32.xlu0 %v5099
  %v5101 = vpop.xlane.xlu0 %5100
  %v5102 = vrcp.pop %v5101
  %v5103 = vmul.f32 %v5098, %v5102
  %v5104 = vadd.f32 %v5091, %v4827
  %v5105 = vsel %vm4910, %v5104, -inf
  %5106 = vmax.xlane.f32.xlu0 %v5105
  %v5107 = vpop.xlane.xlu0 %5106
  %v5108 = vsub.f32 %v5104, %v5107
  %v5109 = vmul.f32 %v5108, 1.442695
  %v5110 = vpow.pop %v5109
  %v5111 = vsel %vm4910, %v5110, 0.0
  %5112 = vadd.xlane.f32.xlu0 %v5111
  %v5113 = vpop.xlane.xlu0 %5112
  %v5114 = vrcp.pop %v5113
  %v5115 = vmul.f32 %v5110, %v5114
  %v5116 = vadd.f32 %v4934, %v5103
  %v5117 = vadd.f32 %v4935, %v5115
  %v5118 = vadd.f32 %v5103, %v5115
  %v5120 = vsel %vm4937, %v5118, 0
  %5122 = vmatprep.subr.mxu0 0.0
  %5123 = vmatpush1.msra.mxu0 %v4816
  %5124 = vmatprep.subr.mxu0 0.0
  %5125 = vmatpush1.msra.mxu0 %v4943
  %5126 = vmatprep.subr.mxu0 0.0
  %5127 = vmatpush1.msra.mxu0 0.0
  %5128 = vmatprep.subr.mxu0 0.0
  %5129 = vmatpush1.msra.mxu0 0.0
  %5130 = vmatprep.subr.mxu0 0.0
  %5131 = vmatpush1.msra.mxu0 0.0
  %5132 = vmatprep.subr.mxu0 0.0
  %5133 = vmatpush1.msra.mxu0 0.0
  %5134 = vmatprep.subr.mxu0 0.0
  %5135 = vmatpush1.msra.mxu0 0.0
  %5136 = vmatprep.subr.mxu0 0.0
  %5137 = vmatpush1.msra.mxu0 0.0
  %5138 = vmatprep.subr.mxu0 0.0
  %5139 = vmatpush1.msra.mxu0 0.0
  %5140 = vmatprep.subr.mxu0 0.0
  %5141 = vmatpush1.msra.mxu0 0.0
  %5142 = vmatprep.subr.mxu0 0.0
  %5143 = vmatpush1.msra.mxu0 0.0
  %5144 = vmatprep.subr.mxu0 0.0
  %5145 = vmatpush1.msra.mxu0 0.0
  %5146 = vmatprep.subr.mxu0 0.0
  %5147 = vmatpush1.msra.mxu0 0.0
  %5148 = vmatprep.subr.mxu0 0.0
  %5149 = vmatpush1.msra.mxu0 0.0
  %5150 = vmatprep.subr.mxu0 0.0
  %5151 = vmatpush1.msra.mxu0 0.0
  %5152 = vmatprep.subr.mxu0 0.0
  %5153 = vmatpush1.msra.mxu0 0.0
  %5154 = vmatprep.subr.mxu0 0.0
  %5155 = vmatpush1.msra.mxu0 0.0
  %5156 = vmatprep.subr.mxu0 0.0
  %5157 = vmatpush1.msra.mxu0 0.0
  %5158 = vmatprep.subr.mxu0 0.0
  %5159 = vmatpush1.msra.mxu0 0.0
  %5160 = vmatprep.subr.mxu0 0.0
  %5161 = vmatpush1.msra.mxu0 0.0
  %5162 = vmatprep.subr.mxu0 0.0
  %5163 = vmatpush1.msra.mxu0 0.0
  %5164 = vmatprep.subr.mxu0 0.0
  %5165 = vmatpush1.msra.mxu0 0.0
  %5166 = vmatprep.subr.mxu0 0.0
  %5167 = vmatpush1.msra.mxu0 0.0
  %5168 = vmatprep.subr.mxu0 0.0
  %5169 = vmatpush1.msra.mxu0 0.0
  %5170 = vmatprep.subr.mxu0 0.0
  %5171 = vmatpush1.msra.mxu0 0.0
  %5172 = vmatprep.subr.mxu0 0.0
  %5173 = vmatpush1.msra.mxu0 0.0
  %5174 = vmatprep.subr.mxu0 0.0
  %5175 = vmatpush1.msra.mxu0 0.0
  %5176 = vmatprep.subr.mxu0 0.0
  %5177 = vmatpush1.msra.mxu0 0.0
  %5178 = vmatprep.subr.mxu0 0.0
  %5179 = vmatpush1.msra.mxu0 0.0
  %5180 = vmatprep.subr.mxu0 0.0
  %5181 = vmatpush1.msra.mxu0 0.0
  %5182 = vmatprep.subr.mxu0 0.0
  %5183 = vmatpush1.msra.mxu0 0.0
  %5184 = vmatprep.subr.mxu0 0.0
  %5185 = vmatpush1.msra.mxu0 0.0
  %5186 = vmatprep.mubr.f32.mxu0 0.0
  %5187 = vmatmul.mubr.f32.gmra.mrb[0].mxu0 %v5120
  %v5188 = vpop.f32.mrb[0].mxu0
  %v5189 = vadd.f32 0.0, %v5188
  %v5190 = vpop.f32.mrb[0].mxu0
  %5191 = vdwg.mxu0
  %v5192 = vmul.f32 %v5189, %v38
  %v5193 = vadd.f32 %v5016, %v5192
  %v5194 = vld [vmem:[%s1 + $0x3b8] sm:$0xff]
  %v5195 = vld [vmem:[%s1 + $0x3c0] sm:$0xff]
  %v5196 = vld [vmem:[%s1 + $0x3c8] sm:$0xff]
  %v5197 = vld [vmem:[%s1 + $0x3d0] sm:$0xff]
  %v5198 = vld [vmem:[%s1 + $0x3d8] sm:$0x1]
  %v5199 = vmul.f32 %v5198, 2.0
  %v5200 = vlaneseq
  %v5201 = vshrl.u32 %v5200, 7
  %v5202 = vsub.s32 0, %v5201
  %v5203 = vrot.slane %v5199, %v5202
  %v5205 = vsel %vm203, %v5193, 0
  %5207 = vmatprep.subr.mxu0 0.0
  %5208 = vmatpush1.msra.mxu0 %v5194
  %5209 = vmatprep.subr.mxu0 0.0
  %5210 = vmatpush1.msra.mxu0 %v5195
  %5211 = vmatprep.subr.mxu0 0.0
  %5212 = vmatpush1.msra.mxu0 %v5196
  %5213 = vmatprep.subr.mxu0 0.0
  %5214 = vmatpush1.msra.mxu0 %v5197
  %5215 = vmatprep.subr.mxu0 0.0
  %5216 = vmatpush1.msra.mxu0 0.0
  %5217 = vmatprep.subr.mxu0 0.0
  %5218 = vmatpush1.msra.mxu0 0.0
  %5219 = vmatprep.subr.mxu0 0.0
  %5220 = vmatpush1.msra.mxu0 0.0
  %5221 = vmatprep.subr.mxu0 0.0
  %5222 = vmatpush1.msra.mxu0 0.0
  %5223 = vmatprep.subr.mxu0 0.0
  %5224 = vmatpush1.msra.mxu0 0.0
  %5225 = vmatprep.subr.mxu0 0.0
  %5226 = vmatpush1.msra.mxu0 0.0
  %5227 = vmatprep.subr.mxu0 0.0
  %5228 = vmatpush1.msra.mxu0 0.0
  %5229 = vmatprep.subr.mxu0 0.0
  %5230 = vmatpush1.msra.mxu0 0.0
  %5231 = vmatprep.subr.mxu0 0.0
  %5232 = vmatpush1.msra.mxu0 0.0
  %5233 = vmatprep.subr.mxu0 0.0
  %5234 = vmatpush1.msra.mxu0 0.0
  %5235 = vmatprep.subr.mxu0 0.0
  %5236 = vmatpush1.msra.mxu0 0.0
  %5237 = vmatprep.subr.mxu0 0.0
  %5238 = vmatpush1.msra.mxu0 0.0
  %5239 = vmatprep.subr.mxu0 0.0
  %5240 = vmatpush1.msra.mxu0 0.0
  %5241 = vmatprep.subr.mxu0 0.0
  %5242 = vmatpush1.msra.mxu0 0.0
  %5243 = vmatprep.subr.mxu0 0.0
  %5244 = vmatpush1.msra.mxu0 0.0
  %5245 = vmatprep.subr.mxu0 0.0
  %5246 = vmatpush1.msra.mxu0 0.0
  %5247 = vmatprep.subr.mxu0 0.0
  %5248 = vmatpush1.msra.mxu0 0.0
  %5249 = vmatprep.subr.mxu0 0.0
  %5250 = vmatpush1.msra.mxu0 0.0
  %5251 = vmatprep.subr.mxu0 0.0
  %5252 = vmatpush1.msra.mxu0 0.0
  %5253 = vmatprep.subr.mxu0 0.0
  %5254 = vmatpush1.msra.mxu0 0.0
  %5255 = vmatprep.subr.mxu0 0.0
  %5256 = vmatpush1.msra.mxu0 0.0
  %5257 = vmatprep.subr.mxu0 0.0
  %5258 = vmatpush1.msra.mxu0 0.0
  %5259 = vmatprep.subr.mxu0 0.0
  %5260 = vmatpush1.msra.mxu0 0.0
  %5261 = vmatprep.subr.mxu0 0.0
  %5262 = vmatpush1.msra.mxu0 0.0
  %5263 = vmatprep.subr.mxu0 0.0
  %5264 = vmatpush1.msra.mxu0 0.0
  %5265 = vmatprep.subr.mxu0 0.0
  %5266 = vmatpush1.msra.mxu0 0.0
  %5267 = vmatprep.subr.mxu0 0.0
  %5268 = vmatpush1.msra.mxu0 0.0
  %5269 = vmatprep.subr.mxu0 0.0
  %5270 = vmatpush1.msra.mxu0 0.0
  %5271 = vmatprep.mubr.f32.mxu0 0.0
  %5272 = vmatmul.mubr.f32.gmra.mrb[0].mxu0 %v5205
  %v5273 = vpop.f32.mrb[0].mxu0
  %v5274 = vadd.f32 %v5203, %v5273
  %v5275 = vpop.f32.mrb[0].mxu0
  %5276 = vdwg.mxu0
  %v5277 = vmul.f32 %v5116, 0.5
  %v5278 = vmul.f32 %v5117, 0.5
  %v5279 = vld [vmem:[%s1 + $0x3e0] sm:$0xff]
  %v5280 = vld [vmem:[%s1 + $0x3e8] sm:$0xff]
  %v5281 = vld [vmem:[%s1 + $0x3f0] sm:$0xff]
  %v5282 = vld [vmem:[%s1 + $0x3f8] sm:$0xff]
  %v5284 = vsel %vm203, %v4577, 0
  %v5287 = vsel %vm203, %v4578, 0
  %v5290 = vsel %vm203, %v4579, 0
  %v5293 = vsel %vm203, %v4580, 0
  %5295 = vmatprep.subr.mxu0 0.0
  %5296 = vmatpush1.msra.mxu0 %v5279
  %5297 = vmatprep.subr.mxu0 0.0
  %5298 = vmatpush1.msra.mxu0 %v5280
  %5299 = vmatprep.subr.mxu0 0.0
  %5300 = vmatpush1.msra.mxu0 %v5281
  %5301 = vmatprep.subr.mxu0 0.0
  %5302 = vmatpush1.msra.mxu0 %v5282
  %5303 = vmatprep.subr.mxu0 0.0
  %5304 = vmatpush1.msra.mxu0 0.0
  %5305 = vmatprep.subr.mxu0 0.0
  %5306 = vmatpush1.msra.mxu0 0.0
  %5307 = vmatprep.subr.mxu0 0.0
  %5308 = vmatpush1.msra.mxu0 0.0
  %5309 = vmatprep.subr.mxu0 0.0
  %5310 = vmatpush1.msra.mxu0 0.0
  %5311 = vmatprep.subr.mxu0 0.0
  %5312 = vmatpush1.msra.mxu0 0.0
  %5313 = vmatprep.subr.mxu0 0.0
  %5314 = vmatpush1.msra.mxu0 0.0
  %5315 = vmatprep.subr.mxu0 0.0
  %5316 = vmatpush1.msra.mxu0 0.0
  %5317 = vmatprep.subr.mxu0 0.0
  %5318 = vmatpush1.msra.mxu0 0.0
  %5319 = vmatprep.subr.mxu0 0.0
  %5320 = vmatpush1.msra.mxu0 0.0
  %5321 = vmatprep.subr.mxu0 0.0
  %5322 = vmatpush1.msra.mxu0 0.0
  %5323 = vmatprep.subr.mxu0 0.0
  %5324 = vmatpush1.msra.mxu0 0.0
  %5325 = vmatprep.subr.mxu0 0.0
  %5326 = vmatpush1.msra.mxu0 0.0
  %5327 = vmatprep.subr.mxu0 0.0
  %5328 = vmatpush1.msra.mxu0 0.0
  %5329 = vmatprep.subr.mxu0 0.0
  %5330 = vmatpush1.msra.mxu0 0.0
  %5331 = vmatprep.subr.mxu0 0.0
  %5332 = vmatpush1.msra.mxu0 0.0
  %5333 = vmatprep.subr.mxu0 0.0
  %5334 = vmatpush1.msra.mxu0 0.0
  %5335 = vmatprep.subr.mxu0 0.0
  %5336 = vmatpush1.msra.mxu0 0.0
  %5337 = vmatprep.subr.mxu0 0.0
  %5338 = vmatpush1.msra.mxu0 0.0
  %5339 = vmatprep.subr.mxu0 0.0
  %5340 = vmatpush1.msra.mxu0 0.0
  %5341 = vmatprep.subr.mxu0 0.0
  %5342 = vmatpush1.msra.mxu0 0.0
  %5343 = vmatprep.subr.mxu0 0.0
  %5344 = vmatpush1.msra.mxu0 0.0
  %5345 = vmatprep.subr.mxu0 0.0
  %5346 = vmatpush1.msra.mxu0 0.0
  %5347 = vmatprep.subr.mxu0 0.0
  %5348 = vmatpush1.msra.mxu0 0.0
  %5349 = vmatprep.subr.mxu0 0.0
  %5350 = vmatpush1.msra.mxu0 0.0
  %5351 = vmatprep.subr.mxu0 0.0
  %5352 = vmatpush1.msra.mxu0 0.0
  %5353 = vmatprep.subr.mxu0 0.0
  %5354 = vmatpush1.msra.mxu0 0.0
  %5355 = vmatprep.subr.mxu0 0.0
  %5356 = vmatpush1.msra.mxu0 0.0
  %5357 = vmatprep.subr.mxu0 0.0
  %5358 = vmatpush1.msra.mxu0 0.0
  %5359 = vmatprep.mubr.f32.mxu0 0.0
  %5360 = vmatmul.mubr.f32.gmra.mrb[0].mxu0 %v5284
  %v5361 = vpop.f32.mrb[0].mxu0
  %v5362 = vadd.f32 0.0, %v5361
  %v5363 = vpop.f32.mrb[0].mxu0
  %5364 = vmatprep.mubr.f32.mxu0 0.0
  %5365 = vmatmul.mubr.f32.gmra.mrb[0].mxu0 %v5287
  %v5366 = vpop.f32.mrb[0].mxu0
  %v5367 = vadd.f32 0.0, %v5366
  %v5368 = vpop.f32.mrb[0].mxu0
  %5369 = vmatprep.mubr.f32.mxu0 0.0
  %5370 = vmatmul.mubr.f32.gmra.mrb[0].mxu0 %v5290
  %v5371 = vpop.f32.mrb[0].mxu0
  %v5372 = vadd.f32 0.0, %v5371
  %v5373 = vpop.f32.mrb[0].mxu0
  %5374 = vmatprep.mubr.f32.mxu0 0.0
  %5375 = vmatmul.mubr.f32.gmra.mrb[0].mxu0 %v5293
  %v5376 = vpop.f32.mrb[0].mxu0
  %v5377 = vadd.f32 0.0, %v5376
  %v5378 = vpop.f32.mrb[0].mxu0
  %5379 = vdwg.mxu0
  %v5380 = vld [vmem:[%s1 + $0x350] sm:$0x3f]
  %v5381 = vld [vmem:[%s1 + $0x400] sm:$0xff]
  %v5382 = vld [vmem:[%s1 + $0x408] sm:$0xff]
  %v5383 = vld [vmem:[%s1 + $0x410] sm:$0xff]
  %v5384 = vld [vmem:[%s1 + $0x418] sm:$0xff]
  %v5386 = vsel %vm203, %v5380, 0
  %5388 = vmatprep.subr.mxu0 0.0
  %5389 = vmatpush1.msra.mxu0 %v5381
  %5390 = vmatprep.subr.mxu0 0.0
  %5391 = vmatpush1.msra.mxu0 %v5382
  %5392 = vmatprep.subr.mxu0 0.0
  %5393 = vmatpush1.msra.mxu0 %v5383
  %5394 = vmatprep.subr.mxu0 0.0
  %5395 = vmatpush1.msra.mxu0 %v5384
  %5396 = vmatprep.subr.mxu0 0.0
  %5397 = vmatpush1.msra.mxu0 0.0
  %5398 = vmatprep.subr.mxu0 0.0
  %5399 = vmatpush1.msra.mxu0 0.0
  %5400 = vmatprep.subr.mxu0 0.0
  %5401 = vmatpush1.msra.mxu0 0.0
  %5402 = vmatprep.subr.mxu0 0.0
  %5403 = vmatpush1.msra.mxu0 0.0
  %5404 = vmatprep.subr.mxu0 0.0
  %5405 = vmatpush1.msra.mxu0 0.0
  %5406 = vmatprep.subr.mxu0 0.0
  %5407 = vmatpush1.msra.mxu0 0.0
  %5408 = vmatprep.subr.mxu0 0.0
  %5409 = vmatpush1.msra.mxu0 0.0
  %5410 = vmatprep.subr.mxu0 0.0
  %5411 = vmatpush1.msra.mxu0 0.0
  %5412 = vmatprep.subr.mxu0 0.0
  %5413 = vmatpush1.msra.mxu0 0.0
  %5414 = vmatprep.subr.mxu0 0.0
  %5415 = vmatpush1.msra.mxu0 0.0
  %5416 = vmatprep.subr.mxu0 0.0
  %5417 = vmatpush1.msra.mxu0 0.0
  %5418 = vmatprep.subr.mxu0 0.0
  %5419 = vmatpush1.msra.mxu0 0.0
  %5420 = vmatprep.subr.mxu0 0.0
  %5421 = vmatpush1.msra.mxu0 0.0
  %5422 = vmatprep.subr.mxu0 0.0
  %5423 = vmatpush1.msra.mxu0 0.0
  %5424 = vmatprep.subr.mxu0 0.0
  %5425 = vmatpush1.msra.mxu0 0.0
  %5426 = vmatprep.subr.mxu0 0.0
  %5427 = vmatpush1.msra.mxu0 0.0
  %5428 = vmatprep.subr.mxu0 0.0
  %5429 = vmatpush1.msra.mxu0 0.0
  %5430 = vmatprep.subr.mxu0 0.0
  %5431 = vmatpush1.msra.mxu0 0.0
  %5432 = vmatprep.subr.mxu0 0.0
  %5433 = vmatpush1.msra.mxu0 0.0
  %5434 = vmatprep.subr.mxu0 0.0
  %5435 = vmatpush1.msra.mxu0 0.0
  %5436 = vmatprep.subr.mxu0 0.0
  %5437 = vmatpush1.msra.mxu0 0.0
  %5438 = vmatprep.subr.mxu0 0.0
  %5439 = vmatpush1.msra.mxu0 0.0
  %5440 = vmatprep.subr.mxu0 0.0
  %5441 = vmatpush1.msra.mxu0 0.0
  %5442 = vmatprep.subr.mxu0 0.0
  %5443 = vmatpush1.msra.mxu0 0.0
  %5444 = vmatprep.subr.mxu0 0.0
  %5445 = vmatpush1.msra.mxu0 0.0
  %5446 = vmatprep.subr.mxu0 0.0
  %5447 = vmatpush1.msra.mxu0 0.0
  %5448 = vmatprep.subr.mxu0 0.0
  %5449 = vmatpush1.msra.mxu0 0.0
  %5450 = vmatprep.subr.mxu0 0.0
  %5451 = vmatpush1.msra.mxu0 0.0
  %5452 = vmatprep.mubr.f32.mxu0 0.0
  %5453 = vmatmul.mubr.f32.gmra.mrb[0].mxu0 %v5386
  %v5454 = vpop.f32.mrb[0].mxu0
  %v5455 = vadd.f32 0.0, %v5454
  %v5456 = vpop.f32.mrb[0].mxu0
  %5457 = vdwg.mxu0
  %v5458 = vld [vmem:[%s1 + $0x420] sm:$0xff]
  %v5459 = vld [vmem:[%s1 + $0x428] sm:$0xff]
  %v5460 = vld [vmem:[%s1 + $0x430] sm:$0xff]
  %v5461 = vld [vmem:[%s1 + $0x438] sm:$0xff]
  %5462 = vmatprep.subr.mxu0 0.0
  %5463 = vmatpush1.msra.mxu0 %v5458
  %5464 = vmatprep.subr.mxu0 0.0
  %5465 = vmatpush1.msra.mxu0 %v5459
  %5466 = vmatprep.subr.mxu0 0.0
  %5467 = vmatpush1.msra.mxu0 %v5460
  %5468 = vmatprep.subr.mxu0 0.0
  %5469 = vmatpush1.msra.mxu0 %v5461
  %5470 = vmatprep.subr.mxu0 0.0
  %5471 = vmatpush1.msra.mxu0 0.0
  %5472 = vmatprep.subr.mxu0 0.0
  %5473 = vmatpush1.msra.mxu0 0.0
  %5474 = vmatprep.subr.mxu0 0.0
  %5475 = vmatpush1.msra.mxu0 0.0
  %5476 = vmatprep.subr.mxu0 0.0
  %5477 = vmatpush1.msra.mxu0 0.0
  %5478 = vmatprep.subr.mxu0 0.0
  %5479 = vmatpush1.msra.mxu0 0.0
  %5480 = vmatprep.subr.mxu0 0.0
  %5481 = vmatpush1.msra.mxu0 0.0
  %5482 = vmatprep.subr.mxu0 0.0
  %5483 = vmatpush1.msra.mxu0 0.0
  %5484 = vmatprep.subr.mxu0 0.0
  %5485 = vmatpush1.msra.mxu0 0.0
  %5486 = vmatprep.subr.mxu0 0.0
  %5487 = vmatpush1.msra.mxu0 0.0
  %5488 = vmatprep.subr.mxu0 0.0
  %5489 = vmatpush1.msra.mxu0 0.0
  %5490 = vmatprep.subr.mxu0 0.0
  %5491 = vmatpush1.msra.mxu0 0.0
  %5492 = vmatprep.subr.mxu0 0.0
  %5493 = vmatpush1.msra.mxu0 0.0
  %5494 = vmatprep.subr.mxu0 0.0
  %5495 = vmatpush1.msra.mxu0 0.0
  %5496 = vmatprep.subr.mxu0 0.0
  %5497 = vmatpush1.msra.mxu0 0.0
  %5498 = vmatprep.subr.mxu0 0.0
  %5499 = vmatpush1.msra.mxu0 0.0
  %5500 = vmatprep.subr.mxu0 0.0
  %5501 = vmatpush1.msra.mxu0 0.0
  %5502 = vmatprep.subr.mxu0 0.0
  %5503 = vmatpush1.msra.mxu0 0.0
  %5504 = vmatprep.subr.mxu0 0.0
  %5505 = vmatpush1.msra.mxu0 0.0
  %5506 = vmatprep.subr.mxu0 0.0
  %5507 = vmatpush1.msra.mxu0 0.0
  %5508 = vmatprep.subr.mxu0 0.0
  %5509 = vmatpush1.msra.mxu0 0.0
  %5510 = vmatprep.subr.mxu0 0.0
  %5511 = vmatpush1.msra.mxu0 0.0
  %5512 = vmatprep.subr.mxu0 0.0
  %5513 = vmatpush1.msra.mxu0 0.0
  %5514 = vmatprep.subr.mxu0 0.0
  %5515 = vmatpush1.msra.mxu0 0.0
  %5516 = vmatprep.subr.mxu0 0.0
  %5517 = vmatpush1.msra.mxu0 0.0
  %5518 = vmatprep.subr.mxu0 0.0
  %5519 = vmatpush1.msra.mxu0 0.0
  %5520 = vmatprep.subr.mxu0 0.0
  %5521 = vmatpush1.msra.mxu0 0.0
  %5522 = vmatprep.subr.mxu0 0.0
  %5523 = vmatpush1.msra.mxu0 0.0
  %5524 = vmatprep.subr.mxu0 0.0
  %5525 = vmatpush1.msra.mxu0 0.0
  %5526 = vmatprep.mubr.f32.mxu0 0.0
  %5527 = vmatmul.mubr.f32.gmra.mrb[0].mxu0 %v5386
  %v5528 = vpop.f32.mrb[0].mxu0
  %v5529 = vadd.f32 0.0, %v5528
  %v5530 = vpop.f32.mrb[0].mxu0
  %5531 = vdwg.mxu0
  %v5532 = vmul.f32 %v5362, %v35
  %v5533 = vmul.f32 %v5367, %v35
  %v5534 = vmul.f32 %v5372, %v35
  %v5535 = vmul.f32 %v5377, %v35
  %v5537 = vsel %vm203, %v5532, 0
  %v5540 = vsel %vm203, %v5533, 0
  %v5543 = vsel %vm203, %v5534, 0
  %v5546 = vsel %vm203, %v5535, 0
  %v5549 = vsel %vm203, %v5455, 0
  %5551 = vmatprep.subr.mxu0 0.0
  %5552 = vmatpush1.xpose.msra.mxu0 %v5549
  %5553 = vmatprep.subr.mxu0 0.0
  %5554 = vmatpush1.xpose.msra.mxu0 0.0
  %5555 = vmatprep.subr.mxu0 0.0
  %5556 = vmatpush1.xpose.msra.mxu0 0.0
  %5557 = vmatprep.subr.mxu0 0.0
  %5558 = vmatpush1.xpose.msra.mxu0 0.0
  %5559 = vmatprep.subr.mxu0 0.0
  %5560 = vmatpush1.xpose.msra.mxu0 0.0
  %5561 = vmatprep.subr.mxu0 0.0
  %5562 = vmatpush1.xpose.msra.mxu0 0.0
  %5563 = vmatprep.subr.mxu0 0.0
  %5564 = vmatpush1.xpose.msra.mxu0 0.0
  %5565 = vmatprep.subr.mxu0 0.0
  %5566 = vmatpush1.xpose.msra.mxu0 0.0
  %5567 = vmatprep.subr.mxu0 0.0
  %5568 = vmatpush1.xpose.msra.mxu0 0.0
  %5569 = vmatprep.subr.mxu0 0.0
  %5570 = vmatpush1.xpose.msra.mxu0 0.0
  %5571 = vmatprep.subr.mxu0 0.0
  %5572 = vmatpush1.xpose.msra.mxu0 0.0
  %5573 = vmatprep.subr.mxu0 0.0
  %5574 = vmatpush1.xpose.msra.mxu0 0.0
  %5575 = vmatprep.subr.mxu0 0.0
  %5576 = vmatpush1.xpose.msra.mxu0 0.0
  %5577 = vmatprep.subr.mxu0 0.0
  %5578 = vmatpush1.xpose.msra.mxu0 0.0
  %5579 = vmatprep.subr.mxu0 0.0
  %5580 = vmatpush1.xpose.msra.mxu0 0.0
  %5581 = vmatprep.subr.mxu0 0.0
  %5582 = vmatpush1.xpose.msra.mxu0 0.0
  %5583 = vmatprep.subr.mxu0 0.0
  %5584 = vmatpush1.xpose.msra.mxu0 0.0
  %5585 = vmatprep.subr.mxu0 0.0
  %5586 = vmatpush1.xpose.msra.mxu0 0.0
  %5587 = vmatprep.subr.mxu0 0.0
  %5588 = vmatpush1.xpose.msra.mxu0 0.0
  %5589 = vmatprep.subr.mxu0 0.0
  %5590 = vmatpush1.xpose.msra.mxu0 0.0
  %5591 = vmatprep.subr.mxu0 0.0
  %5592 = vmatpush1.xpose.msra.mxu0 0.0
  %5593 = vmatprep.subr.mxu0 0.0
  %5594 = vmatpush1.xpose.msra.mxu0 0.0
  %5595 = vmatprep.subr.mxu0 0.0
  %5596 = vmatpush1.xpose.msra.mxu0 0.0
  %5597 = vmatprep.subr.mxu0 0.0
  %5598 = vmatpush1.xpose.msra.mxu0 0.0
  %5599 = vmatprep.subr.mxu0 0.0
  %5600 = vmatpush1.xpose.msra.mxu0 0.0
  %5601 = vmatprep.subr.mxu0 0.0
  %5602 = vmatpush1.xpose.msra.mxu0 0.0
  %5603 = vmatprep.subr.mxu0 0.0
  %5604 = vmatpush1.xpose.msra.mxu0 0.0
  %5605 = vmatprep.subr.mxu0 0.0
  %5606 = vmatpush1.xpose.msra.mxu0 0.0
  %5607 = vmatprep.subr.mxu0 0.0
  %5608 = vmatpush1.xpose.msra.mxu0 0.0
  %5609 = vmatprep.subr.mxu0 0.0
  %5610 = vmatpush1.xpose.msra.mxu0 0.0
  %5611 = vmatprep.subr.mxu0 0.0
  %5612 = vmatpush1.xpose.msra.mxu0 0.0
  %5613 = vmatprep.subr.mxu0 0.0
  %5614 = vmatpush1.xpose.msra.mxu0 0.0
  %5615 = vmatprep.mubr.f32.mxu0 0.0
  %5616 = vmatmul.mubr.f32.gmra.mrb[0].mxu0 %v5537
  %v5617 = vpop.f32.mrb[0].mxu0
  %v5618 = vadd.f32 0.0, %v5617
  %v5619 = vpop.f32.mrb[0].mxu0
  %5620 = vmatprep.mubr.f32.mxu0 0.0
  %5621 = vmatmul.mubr.f32.gmra.mrb[0].mxu0 %v5540
  %v5622 = vpop.f32.mrb[0].mxu0
  %v5623 = vadd.f32 0.0, %v5622
  %v5624 = vpop.f32.mrb[0].mxu0
  %5625 = vmatprep.mubr.f32.mxu0 0.0
  %5626 = vmatmul.mubr.f32.gmra.mrb[0].mxu0 %v5543
  %v5627 = vpop.f32.mrb[0].mxu0
  %v5628 = vadd.f32 0.0, %v5627
  %v5629 = vpop.f32.mrb[0].mxu0
  %5630 = vmatprep.mubr.f32.mxu0 0.0
  %5631 = vmatmul.mubr.f32.gmra.mrb[0].mxu0 %v5546
  %v5632 = vpop.f32.mrb[0].mxu0
  %v5633 = vadd.f32 0.0, %v5632
  %v5634 = vpop.f32.mrb[0].mxu0
  %5635 = vdwg.mxu0
  %v5636 = vmul.f32 %v5618, 0.25
  %v5637 = vmul.f32 %v5623, 0.25
  %v5638 = vmul.f32 %v5628, 0.25
  %v5639 = vmul.f32 %v5633, 0.25
  %vm5640 = vcmask 48128
  %v5641 = vsel %vm5640, %v5636, -inf
  %5642 = vmax.xlane.f32.xlu0 %v5641
  %v5643 = vpop.xlane.xlu0 %5642
  %v5644 = vsel %vm5640, %v5637, -inf
  %5645 = vmax.xlane.f32.xlu0 %v5644
  %v5646 = vpop.xlane.xlu0 %5645
  %v5647 = vsel %vm5640, %v5638, -inf
  %5648 = vmax.xlane.f32.xlu0 %v5647
  %v5649 = vpop.xlane.xlu0 %5648
  %v5650 = vsel %vm5640, %v5639, -inf
  %5651 = vmax.xlane.f32.xlu0 %v5650
  %v5652 = vpop.xlane.xlu0 %5651
  %v5653 = vsub.f32 %v5636, %v5643
  %v5654 = vsub.f32 %v5637, %v5646
  %v5655 = vsub.f32 %v5638, %v5649
  %v5656 = vsub.f32 %v5639, %v5652
  %v5657 = vmul.f32 %v5653, 1.442695
  %v5658 = vpow.pop %v5657
  %v5659 = vmul.f32 %v5654, 1.442695
  %v5660 = vpow.pop %v5659
  %v5661 = vmul.f32 %v5655, 1.442695
  %v5662 = vpow.pop %v5661
  %v5663 = vmul.f32 %v5656, 1.442695
  %v5664 = vpow.pop %v5663
  %v5665 = vsel %vm5640, %v5658, 0.0
  %5666 = vadd.xlane.f32.xlu0 %v5665
  %v5667 = vpop.xlane.xlu0 %5666
  %v5668 = vsel %vm5640, %v5660, 0.0
  %5669 = vadd.xlane.f32.xlu0 %v5668
  %v5670 = vpop.xlane.xlu0 %5669
  %v5671 = vsel %vm5640, %v5662, 0.0
  %5672 = vadd.xlane.f32.xlu0 %v5671
  %v5673 = vpop.xlane.xlu0 %5672
  %v5674 = vsel %vm5640, %v5664, 0.0
  %5675 = vadd.xlane.f32.xlu0 %v5674
  %v5676 = vpop.xlane.xlu0 %5675
  %v5677 = vrcp.pop %v5667
  %v5678 = vrcp.pop %v5670
  %v5679 = vrcp.pop %v5673
  %v5680 = vrcp.pop %v5676
  %v5681 = vmul.f32 %v5658, %v5677
  %v5682 = vmul.f32 %v5660, %v5678
  %v5683 = vmul.f32 %v5662, %v5679
  %v5684 = vmul.f32 %v5664, %v5680
  %v5685 = vadd.f32 %v5681, 0.0
  %v5686 = vadd.f32 %v5682, 0.0
  %v5687 = vadd.f32 %v5683, 0.0
  %v5688 = vadd.f32 %v5684, 0.0
  %v5690 = vsel %vm5640, %v5681, 0
  %v5693 = vsel %vm5640, %v5682, 0
  %v5696 = vsel %vm5640, %v5683, 0
  %v5699 = vsel %vm5640, %v5684, 0
  %vm5701 = vcmask 1045504
  %v5703 = vsel %vm5701, %v5529, 0
  %5705 = vmatprep.subr.mxu0 0.0
  %5706 = vmatpush1.msra.mxu0 %v5703
  %5707 = vmatprep.subr.mxu0 0.0
  %5708 = vmatpush1.msra.mxu0 0.0
  %5709 = vmatprep.subr.mxu0 0.0
  %5710 = vmatpush1.msra.mxu0 0.0
  %5711 = vmatprep.subr.mxu0 0.0
  %5712 = vmatpush1.msra.mxu0 0.0
  %5713 = vmatprep.subr.mxu0 0.0
  %5714 = vmatpush1.msra.mxu0 0.0
  %5715 = vmatprep.subr.mxu0 0.0
  %5716 = vmatpush1.msra.mxu0 0.0
  %5717 = vmatprep.subr.mxu0 0.0
  %5718 = vmatpush1.msra.mxu0 0.0
  %5719 = vmatprep.subr.mxu0 0.0
  %5720 = vmatpush1.msra.mxu0 0.0
  %5721 = vmatprep.subr.mxu0 0.0
  %5722 = vmatpush1.msra.mxu0 0.0
  %5723 = vmatprep.subr.mxu0 0.0
  %5724 = vmatpush1.msra.mxu0 0.0
  %5725 = vmatprep.subr.mxu0 0.0
  %5726 = vmatpush1.msra.mxu0 0.0
  %5727 = vmatprep.subr.mxu0 0.0
  %5728 = vmatpush1.msra.mxu0 0.0
  %5729 = vmatprep.subr.mxu0 0.0
  %5730 = vmatpush1.msra.mxu0 0.0
  %5731 = vmatprep.subr.mxu0 0.0
  %5732 = vmatpush1.msra.mxu0 0.0
  %5733 = vmatprep.subr.mxu0 0.0
  %5734 = vmatpush1.msra.mxu0 0.0
  %5735 = vmatprep.subr.mxu0 0.0
  %5736 = vmatpush1.msra.mxu0 0.0
  %5737 = vmatprep.subr.mxu0 0.0
  %5738 = vmatpush1.msra.mxu0 0.0
  %5739 = vmatprep.subr.mxu0 0.0
  %5740 = vmatpush1.msra.mxu0 0.0
  %5741 = vmatprep.subr.mxu0 0.0
  %5742 = vmatpush1.msra.mxu0 0.0
  %5743 = vmatprep.subr.mxu0 0.0
  %5744 = vmatpush1.msra.mxu0 0.0
  %5745 = vmatprep.subr.mxu0 0.0
  %5746 = vmatpush1.msra.mxu0 0.0
  %5747 = vmatprep.subr.mxu0 0.0
  %5748 = vmatpush1.msra.mxu0 0.0
  %5749 = vmatprep.subr.mxu0 0.0
  %5750 = vmatpush1.msra.mxu0 0.0
  %5751 = vmatprep.subr.mxu0 0.0
  %5752 = vmatpush1.msra.mxu0 0.0
  %5753 = vmatprep.subr.mxu0 0.0
  %5754 = vmatpush1.msra.mxu0 0.0
  %5755 = vmatprep.subr.mxu0 0.0
  %5756 = vmatpush1.msra.mxu0 0.0
  %5757 = vmatprep.subr.mxu0 0.0
  %5758 = vmatpush1.msra.mxu0 0.0
  %5759 = vmatprep.subr.mxu0 0.0
  %5760 = vmatpush1.msra.mxu0 0.0
  %5761 = vmatprep.subr.mxu0 0.0
  %5762 = vmatpush1.msra.mxu0 0.0
  %5763 = vmatprep.subr.mxu0 0.0
  %5764 = vmatpush1.msra.mxu0 0.0
  %5765 = vmatprep.subr.mxu0 0.0
  %5766 = vmatpush1.msra.mxu0 0.0
  %5767 = vmatprep.subr.mxu0 0.0
  %5768 = vmatpush1.msra.mxu0 0.0
  %5769 = vmatprep.mubr.f32.mxu0 0.0
  %5770 = vmatmul.mubr.f32.gmra.mrb[0].mxu0 %v5690
  %v5771 = vpop.f32.mrb[0].mxu0
  %v5772 = vadd.f32 0.0, %v5771
  %v5773 = vpop.f32.mrb[0].mxu0
  %5774 = vmatprep.mubr.f32.mxu0 0.0
  %5775 = vmatmul.mubr.f32.gmra.mrb[0].mxu0 %v5693
  %v5776 = vpop.f32.mrb[0].mxu0
  %v5777 = vadd.f32 0.0, %v5776
  %v5778 = vpop.f32.mrb[0].mxu0
  %5779 = vmatprep.mubr.f32.mxu0 0.0
  %5780 = vmatmul.mubr.f32.gmra.mrb[0].mxu0 %v5696
  %v5781 = vpop.f32.mrb[0].mxu0
  %v5782 = vadd.f32 0.0, %v5781
  %v5783 = vpop.f32.mrb[0].mxu0
  %5784 = vmatprep.mubr.f32.mxu0 0.0
  %5785 = vmatmul.mubr.f32.gmra.mrb[0].mxu0 %v5699
  %v5786 = vpop.f32.mrb[0].mxu0
  %v5787 = vadd.f32 0.0, %v5786
  %v5788 = vpop.f32.mrb[0].mxu0
  %5789 = vdwg.mxu0
  %v5790 = vmul.f32 %v5772, %v35
  %v5791 = vmul.f32 %v5777, %v35
  %v5792 = vmul.f32 %v5782, %v35
  %v5793 = vmul.f32 %v5787, %v35
  %v5794 = vadd.f32 %v5790, 0.0
  %v5795 = vadd.f32 %v5791, 0.0
  %v5796 = vadd.f32 %v5792, 0.0
  %v5797 = vadd.f32 %v5793, 0.0
  %v5798 = vmul.f32 %v5362, %v38
  %v5799 = vmul.f32 %v5367, %v38
  %v5800 = vmul.f32 %v5372, %v38
  %v5801 = vmul.f32 %v5377, %v38
  %v5803 = vsel %vm203, %v5798, 0
  %v5806 = vsel %vm203, %v5799, 0
  %v5809 = vsel %vm203, %v5800, 0
  %v5812 = vsel %vm203, %v5801, 0
  %5814 = vmatprep.subr.mxu0 0.0
  %5815 = vmatpush1.xpose.msra.mxu0 %v5549
  %5816 = vmatprep.subr.mxu0 0.0
  %5817 = vmatpush1.xpose.msra.mxu0 0.0
  %5818 = vmatprep.subr.mxu0 0.0
  %5819 = vmatpush1.xpose.msra.mxu0 0.0
  %5820 = vmatprep.subr.mxu0 0.0
  %5821 = vmatpush1.xpose.msra.mxu0 0.0
  %5822 = vmatprep.subr.mxu0 0.0
  %5823 = vmatpush1.xpose.msra.mxu0 0.0
  %5824 = vmatprep.subr.mxu0 0.0
  %5825 = vmatpush1.xpose.msra.mxu0 0.0
  %5826 = vmatprep.subr.mxu0 0.0
  %5827 = vmatpush1.xpose.msra.mxu0 0.0
  %5828 = vmatprep.subr.mxu0 0.0
  %5829 = vmatpush1.xpose.msra.mxu0 0.0
  %5830 = vmatprep.subr.mxu0 0.0
  %5831 = vmatpush1.xpose.msra.mxu0 0.0
  %5832 = vmatprep.subr.mxu0 0.0
  %5833 = vmatpush1.xpose.msra.mxu0 0.0
  %5834 = vmatprep.subr.mxu0 0.0
  %5835 = vmatpush1.xpose.msra.mxu0 0.0
  %5836 = vmatprep.subr.mxu0 0.0
  %5837 = vmatpush1.xpose.msra.mxu0 0.0
  %5838 = vmatprep.subr.mxu0 0.0
  %5839 = vmatpush1.xpose.msra.mxu0 0.0
  %5840 = vmatprep.subr.mxu0 0.0
  %5841 = vmatpush1.xpose.msra.mxu0 0.0
  %5842 = vmatprep.subr.mxu0 0.0
  %5843 = vmatpush1.xpose.msra.mxu0 0.0
  %5844 = vmatprep.subr.mxu0 0.0
  %5845 = vmatpush1.xpose.msra.mxu0 0.0
  %5846 = vmatprep.subr.mxu0 0.0
  %5847 = vmatpush1.xpose.msra.mxu0 0.0
  %5848 = vmatprep.subr.mxu0 0.0
  %5849 = vmatpush1.xpose.msra.mxu0 0.0
  %5850 = vmatprep.subr.mxu0 0.0
  %5851 = vmatpush1.xpose.msra.mxu0 0.0
  %5852 = vmatprep.subr.mxu0 0.0
  %5853 = vmatpush1.xpose.msra.mxu0 0.0
  %5854 = vmatprep.subr.mxu0 0.0
  %5855 = vmatpush1.xpose.msra.mxu0 0.0
  %5856 = vmatprep.subr.mxu0 0.0
  %5857 = vmatpush1.xpose.msra.mxu0 0.0
  %5858 = vmatprep.subr.mxu0 0.0
  %5859 = vmatpush1.xpose.msra.mxu0 0.0
  %5860 = vmatprep.subr.mxu0 0.0
  %5861 = vmatpush1.xpose.msra.mxu0 0.0
  %5862 = vmatprep.subr.mxu0 0.0
  %5863 = vmatpush1.xpose.msra.mxu0 0.0
  %5864 = vmatprep.subr.mxu0 0.0
  %5865 = vmatpush1.xpose.msra.mxu0 0.0
  %5866 = vmatprep.subr.mxu0 0.0
  %5867 = vmatpush1.xpose.msra.mxu0 0.0
  %5868 = vmatprep.subr.mxu0 0.0
  %5869 = vmatpush1.xpose.msra.mxu0 0.0
  %5870 = vmatprep.subr.mxu0 0.0
  %5871 = vmatpush1.xpose.msra.mxu0 0.0
  %5872 = vmatprep.subr.mxu0 0.0
  %5873 = vmatpush1.xpose.msra.mxu0 0.0
  %5874 = vmatprep.subr.mxu0 0.0
  %5875 = vmatpush1.xpose.msra.mxu0 0.0
  %5876 = vmatprep.subr.mxu0 0.0
  %5877 = vmatpush1.xpose.msra.mxu0 0.0
  %5878 = vmatprep.mubr.f32.mxu0 0.0
  %5879 = vmatmul.mubr.f32.gmra.mrb[0].mxu0 %v5803
  %v5880 = vpop.f32.mrb[0].mxu0
  %v5881 = vadd.f32 0.0, %v5880
  %v5882 = vpop.f32.mrb[0].mxu0
  %5883 = vmatprep.mubr.f32.mxu0 0.0
  %5884 = vmatmul.mubr.f32.gmra.mrb[0].mxu0 %v5806
  %v5885 = vpop.f32.mrb[0].mxu0
  %v5886 = vadd.f32 0.0, %v5885
  %v5887 = vpop.f32.mrb[0].mxu0
  %5888 = vmatprep.mubr.f32.mxu0 0.0
  %5889 = vmatmul.mubr.f32.gmra.mrb[0].mxu0 %v5809
  %v5890 = vpop.f32.mrb[0].mxu0
  %v5891 = vadd.f32 0.0, %v5890
  %v5892 = vpop.f32.mrb[0].mxu0
  %5893 = vmatprep.mubr.f32.mxu0 0.0
  %5894 = vmatmul.mubr.f32.gmra.mrb[0].mxu0 %v5812
  %v5895 = vpop.f32.mrb[0].mxu0
  %v5896 = vadd.f32 0.0, %v5895
  %v5897 = vpop.f32.mrb[0].mxu0
  %5898 = vdwg.mxu0
  %v5899 = vmul.f32 %v5881, 0.25
  %v5900 = vmul.f32 %v5886, 0.25
  %v5901 = vmul.f32 %v5891, 0.25
  %v5902 = vmul.f32 %v5896, 0.25
  %v5903 = vsel %vm5640, %v5899, -inf
  %5904 = vmax.xlane.f32.xlu0 %v5903
  %v5905 = vpop.xlane.xlu0 %5904
  %v5906 = vsel %vm5640, %v5900, -inf
  %5907 = vmax.xlane.f32.xlu0 %v5906
  %v5908 = vpop.xlane.xlu0 %5907
  %v5909 = vsel %vm5640, %v5901, -inf
  %5910 = vmax.xlane.f32.xlu0 %v5909
  %v5911 = vpop.xlane.xlu0 %5910
  %v5912 = vsel %vm5640, %v5902, -inf
  %5913 = vmax.xlane.f32.xlu0 %v5912
  %v5914 = vpop.xlane.xlu0 %5913
  %v5915 = vsub.f32 %v5899, %v5905
  %v5916 = vsub.f32 %v5900, %v5908
  %v5917 = vsub.f32 %v5901, %v5911
  %v5918 = vsub.f32 %v5902, %v5914
  %v5919 = vmul.f32 %v5915, 1.442695
  %v5920 = vpow.pop %v5919
  %v5921 = vmul.f32 %v5916, 1.442695
  %v5922 = vpow.pop %v5921
  %v5923 = vmul.f32 %v5917, 1.442695
  %v5924 = vpow.pop %v5923
  %v5925 = vmul.f32 %v5918, 1.442695
  %v5926 = vpow.pop %v5925
  %v5927 = vsel %vm5640, %v5920, 0.0
  %5928 = vadd.xlane.f32.xlu0 %v5927
  %v5929 = vpop.xlane.xlu0 %5928
  %v5930 = vsel %vm5640, %v5922, 0.0
  %5931 = vadd.xlane.f32.xlu0 %v5930
  %v5932 = vpop.xlane.xlu0 %5931
  %v5933 = vsel %vm5640, %v5924, 0.0
  %5934 = vadd.xlane.f32.xlu0 %v5933
  %v5935 = vpop.xlane.xlu0 %5934
  %v5936 = vsel %vm5640, %v5926, 0.0
  %5937 = vadd.xlane.f32.xlu0 %v5936
  %v5938 = vpop.xlane.xlu0 %5937
  %v5939 = vrcp.pop %v5929
  %v5940 = vrcp.pop %v5932
  %v5941 = vrcp.pop %v5935
  %v5942 = vrcp.pop %v5938
  %v5943 = vmul.f32 %v5920, %v5939
  %v5944 = vmul.f32 %v5922, %v5940
  %v5945 = vmul.f32 %v5924, %v5941
  %v5946 = vmul.f32 %v5926, %v5942
  %v5947 = vadd.f32 %v5685, %v5943
  %v5948 = vadd.f32 %v5686, %v5944
  %v5949 = vadd.f32 %v5687, %v5945
  %v5950 = vadd.f32 %v5688, %v5946
  %v5952 = vsel %vm5640, %v5943, 0
  %v5955 = vsel %vm5640, %v5944, 0
  %v5958 = vsel %vm5640, %v5945, 0
  %v5961 = vsel %vm5640, %v5946, 0
  %5963 = vmatprep.subr.mxu0 0.0
  %5964 = vmatpush1.msra.mxu0 %v5703
  %5965 = vmatprep.subr.mxu0 0.0
  %5966 = vmatpush1.msra.mxu0 0.0
  %5967 = vmatprep.subr.mxu0 0.0
  %5968 = vmatpush1.msra.mxu0 0.0
  %5969 = vmatprep.subr.mxu0 0.0
  %5970 = vmatpush1.msra.mxu0 0.0
  %5971 = vmatprep.subr.mxu0 0.0
  %5972 = vmatpush1.msra.mxu0 0.0
  %5973 = vmatprep.subr.mxu0 0.0
  %5974 = vmatpush1.msra.mxu0 0.0
  %5975 = vmatprep.subr.mxu0 0.0
  %5976 = vmatpush1.msra.mxu0 0.0
  %5977 = vmatprep.subr.mxu0 0.0
  %5978 = vmatpush1.msra.mxu0 0.0
  %5979 = vmatprep.subr.mxu0 0.0
  %5980 = vmatpush1.msra.mxu0 0.0
  %5981 = vmatprep.subr.mxu0 0.0
  %5982 = vmatpush1.msra.mxu0 0.0
  %5983 = vmatprep.subr.mxu0 0.0
  %5984 = vmatpush1.msra.mxu0 0.0
  %5985 = vmatprep.subr.mxu0 0.0
  %5986 = vmatpush1.msra.mxu0 0.0
  %5987 = vmatprep.subr.mxu0 0.0
  %5988 = vmatpush1.msra.mxu0 0.0
  %5989 = vmatprep.subr.mxu0 0.0
  %5990 = vmatpush1.msra.mxu0 0.0
  %5991 = vmatprep.subr.mxu0 0.0
  %5992 = vmatpush1.msra.mxu0 0.0
  %5993 = vmatprep.subr.mxu0 0.0
  %5994 = vmatpush1.msra.mxu0 0.0
  %5995 = vmatprep.subr.mxu0 0.0
  %5996 = vmatpush1.msra.mxu0 0.0
  %5997 = vmatprep.subr.mxu0 0.0
  %5998 = vmatpush1.msra.mxu0 0.0
  %5999 = vmatprep.subr.mxu0 0.0
  %6000 = vmatpush1.msra.mxu0 0.0
  %6001 = vmatprep.subr.mxu0 0.0
  %6002 = vmatpush1.msra.mxu0 0.0
  %6003 = vmatprep.subr.mxu0 0.0
  %6004 = vmatpush1.msra.mxu0 0.0
  %6005 = vmatprep.subr.mxu0 0.0
  %6006 = vmatpush1.msra.mxu0 0.0
  %6007 = vmatprep.subr.mxu0 0.0
  %6008 = vmatpush1.msra.mxu0 0.0
  %6009 = vmatprep.subr.mxu0 0.0
  %6010 = vmatpush1.msra.mxu0 0.0
  %6011 = vmatprep.subr.mxu0 0.0
  %6012 = vmatpush1.msra.mxu0 0.0
  %6013 = vmatprep.subr.mxu0 0.0
  %6014 = vmatpush1.msra.mxu0 0.0
  %6015 = vmatprep.subr.mxu0 0.0
  %6016 = vmatpush1.msra.mxu0 0.0
  %6017 = vmatprep.subr.mxu0 0.0
  %6018 = vmatpush1.msra.mxu0 0.0
  %6019 = vmatprep.subr.mxu0 0.0
  %6020 = vmatpush1.msra.mxu0 0.0
  %6021 = vmatprep.subr.mxu0 0.0
  %6022 = vmatpush1.msra.mxu0 0.0
  %6023 = vmatprep.subr.mxu0 0.0
  %6024 = vmatpush1.msra.mxu0 0.0
  %6025 = vmatprep.subr.mxu0 0.0
  %6026 = vmatpush1.msra.mxu0 0.0
  %6027 = vmatprep.mubr.f32.mxu0 0.0
  %6028 = vmatmul.mubr.f32.gmra.mrb[0].mxu0 %v5952
  %v6029 = vpop.f32.mrb[0].mxu0
  %v6030 = vadd.f32 0.0, %v6029
  %v6031 = vpop.f32.mrb[0].mxu0
  %6032 = vmatprep.mubr.f32.mxu0 0.0
  %6033 = vmatmul.mubr.f32.gmra.mrb[0].mxu0 %v5955
  %v6034 = vpop.f32.mrb[0].mxu0
  %v6035 = vadd.f32 0.0, %v6034
  %v6036 = vpop.f32.mrb[0].mxu0
  %6037 = vmatprep.mubr.f32.mxu0 0.0
  %6038 = vmatmul.mubr.f32.gmra.mrb[0].mxu0 %v5958
  %v6039 = vpop.f32.mrb[0].mxu0
  %v6040 = vadd.f32 0.0, %v6039
  %v6041 = vpop.f32.mrb[0].mxu0
  %6042 = vmatprep.mubr.f32.mxu0 0.0
  %6043 = vmatmul.mubr.f32.gmra.mrb[0].mxu0 %v5961
  %v6044 = vpop.f32.mrb[0].mxu0
  %v6045 = vadd.f32 0.0, %v6044
  %v6046 = vpop.f32.mrb[0].mxu0
  %6047 = vdwg.mxu0
  %v6048 = vmul.f32 %v6030, %v38
  %v6049 = vmul.f32 %v6035, %v38
  %v6050 = vmul.f32 %v6040, %v38
  %v6051 = vmul.f32 %v6045, %v38
  %v6052 = vadd.f32 %v5794, %v6048
  %v6053 = vadd.f32 %v5795, %v6049
  %v6054 = vadd.f32 %v5796, %v6050
  %v6055 = vadd.f32 %v5797, %v6051
  %v6056 = vld [vmem:[%s1 + $0x440] sm:$0xff]
  %v6057 = vld [vmem:[%s1 + $0x448] sm:$0xff]
  %v6058 = vld [vmem:[%s1 + $0x450] sm:$0xff]
  %v6059 = vld [vmem:[%s1 + $0x458] sm:$0xff]
  %v6060 = vld [vmem:[%s1 + $0x460] sm:$0x1]
  %v6061 = vlaneseq
  %v6062 = vshrl.u32 %v6061, 7
  %v6063 = vsub.s32 0, %v6062
  %v6064 = vrot.slane %v6060, %v6063
  %v6066 = vsel %vm203, %v6052, 0
  %v6069 = vsel %vm203, %v6053, 0
  %v6072 = vsel %vm203, %v6054, 0
  %v6075 = vsel %vm203, %v6055, 0
  %6077 = vmatprep.subr.mxu0 0.0
  %6078 = vmatpush1.msra.mxu0 %v6056
  %6079 = vmatprep.subr.mxu0 0.0
  %6080 = vmatpush1.msra.mxu0 %v6057
  %6081 = vmatprep.subr.mxu0 0.0
  %6082 = vmatpush1.msra.mxu0 %v6058
  %6083 = vmatprep.subr.mxu0 0.0
  %6084 = vmatpush1.msra.mxu0 %v6059
  %6085 = vmatprep.subr.mxu0 0.0
  %6086 = vmatpush1.msra.mxu0 0.0
  %6087 = vmatprep.subr.mxu0 0.0
  %6088 = vmatpush1.msra.mxu0 0.0
  %6089 = vmatprep.subr.mxu0 0.0
  %6090 = vmatpush1.msra.mxu0 0.0
  %6091 = vmatprep.subr.mxu0 0.0
  %6092 = vmatpush1.msra.mxu0 0.0
  %6093 = vmatprep.subr.mxu0 0.0
  %6094 = vmatpush1.msra.mxu0 0.0
  %6095 = vmatprep.subr.mxu0 0.0
  %6096 = vmatpush1.msra.mxu0 0.0
  %6097 = vmatprep.subr.mxu0 0.0
  %6098 = vmatpush1.msra.mxu0 0.0
  %6099 = vmatprep.subr.mxu0 0.0
  %6100 = vmatpush1.msra.mxu0 0.0
  %6101 = vmatprep.subr.mxu0 0.0
  %6102 = vmatpush1.msra.mxu0 0.0
  %6103 = vmatprep.subr.mxu0 0.0
  %6104 = vmatpush1.msra.mxu0 0.0
  %6105 = vmatprep.subr.mxu0 0.0
  %6106 = vmatpush1.msra.mxu0 0.0
  %6107 = vmatprep.subr.mxu0 0.0
  %6108 = vmatpush1.msra.mxu0 0.0
  %6109 = vmatprep.subr.mxu0 0.0
  %6110 = vmatpush1.msra.mxu0 0.0
  %6111 = vmatprep.subr.mxu0 0.0
  %6112 = vmatpush1.msra.mxu0 0.0
  %6113 = vmatprep.subr.mxu0 0.0
  %6114 = vmatpush1.msra.mxu0 0.0
  %6115 = vmatprep.subr.mxu0 0.0
  %6116 = vmatpush1.msra.mxu0 0.0
  %6117 = vmatprep.subr.mxu0 0.0
  %6118 = vmatpush1.msra.mxu0 0.0
  %6119 = vmatprep.subr.mxu0 0.0
  %6120 = vmatpush1.msra.mxu0 0.0
  %6121 = vmatprep.subr.mxu0 0.0
  %6122 = vmatpush1.msra.mxu0 0.0
  %6123 = vmatprep.subr.mxu0 0.0
  %6124 = vmatpush1.msra.mxu0 0.0
  %6125 = vmatprep.subr.mxu0 0.0
  %6126 = vmatpush1.msra.mxu0 0.0
  %6127 = vmatprep.subr.mxu0 0.0
  %6128 = vmatpush1.msra.mxu0 0.0
  %6129 = vmatprep.subr.mxu0 0.0
  %6130 = vmatpush1.msra.mxu0 0.0
  %6131 = vmatprep.subr.mxu0 0.0
  %6132 = vmatpush1.msra.mxu0 0.0
  %6133 = vmatprep.subr.mxu0 0.0
  %6134 = vmatpush1.msra.mxu0 0.0
  %6135 = vmatprep.subr.mxu0 0.0
  %6136 = vmatpush1.msra.mxu0 0.0
  %6137 = vmatprep.subr.mxu0 0.0
  %6138 = vmatpush1.msra.mxu0 0.0
  %6139 = vmatprep.subr.mxu0 0.0
  %6140 = vmatpush1.msra.mxu0 0.0
  %6141 = vmatprep.mubr.f32.mxu0 0.0
  %6142 = vmatmul.mubr.f32.gmra.mrb[0].mxu0 %v6066
  %v6143 = vpop.f32.mrb[0].mxu0
  %v6144 = vadd.f32 %v6064, %v6143
  %v6145 = vpop.f32.mrb[0].mxu0
  %6146 = vmatprep.mubr.f32.mxu0 0.0
  %6147 = vmatmul.mubr.f32.gmra.mrb[0].mxu0 %v6069
  %v6148 = vpop.f32.mrb[0].mxu0
  %v6149 = vadd.f32 %v6064, %v6148
  %v6150 = vpop.f32.mrb[0].mxu0
  %6151 = vmatprep.mubr.f32.mxu0 0.0
  %6152 = vmatmul.mubr.f32.gmra.mrb[0].mxu0 %v6072
  %v6153 = vpop.f32.mrb[0].mxu0
  %v6154 = vadd.f32 %v6064, %v6153
  %v6155 = vpop.f32.mrb[0].mxu0
  %6156 = vmatprep.mubr.f32.mxu0 0.0
  %6157 = vmatmul.mubr.f32.gmra.mrb[0].mxu0 %v6075
  %v6158 = vpop.f32.mrb[0].mxu0
  %v6159 = vadd.f32 %v6064, %v6158
  %v6160 = vpop.f32.mrb[0].mxu0
  %6161 = vdwg.mxu0
  %v6162 = vmul.f32 %v5947, 0.5
  %v6163 = vmul.f32 %v5948, 0.5
  %v6164 = vmul.f32 %v5949, 0.5
  %v6165 = vmul.f32 %v5950, 0.5
  %v6166 = vadd.f32 %v6144, %v6149
  %v6167 = vrot.slane %v6166, 4
  %v6168 = vadd.f32 %v6166, %v6167
  %v6169 = vrot.slane %v6168, 2
  %v6170 = vadd.f32 %v6168, %v6169
  %v6171 = vrot.slane %v6170, 1
  %v6172 = vadd.f32 %v6170, %v6171
  %v6173 = vrcp.pop 16.0
  %v6174 = vmul.f32 %v6172, %v6173
  %v6175 = vadd.f32 %v6154, %v6159
  %v6176 = vrot.slane %v6175, 4
  %v6177 = vadd.f32 %v6175, %v6176
  %v6178 = vrot.slane %v6177, 2
  %v6179 = vadd.f32 %v6177, %v6178
  %v6180 = vrot.slane %v6179, 1
  %v6181 = vadd.f32 %v6179, %v6180
  %v6182 = vmul.f32 %v6181, %v6173
  %v6183 = vsel %vm4941, %v6174, %v6182
  %v6184 = vadd.f32 %v5274, %v6183
  %v6185 = vsel %vm5640, %v6162, 0.0
  %v6186 = vsel %vm5640, %v6163, 0.0
  %v6187 = vsel %vm5640, %v6164, 0.0
  %v6188 = vsel %vm5640, %v6165, 0.0
  %vm6189 = vcmask 1041408
  %v6190 = vsel %vm6189, %v6184, 0.0
  %v6191 = vsel %vm4937, %v5277, 0.0
  %v6192 = vsel %vm6189, %v6191, 0.0
  %v6193 = vsel %vm4937, %v5278, 0.0
  %v6194 = vsel %vm6189, %v6193, 0.0
  %6195 = vst [vmem:[%s2] sm:$0xff] %v6185
  %6196 = vst [vmem:[%s2 + $0x8] sm:$0xff] %v6186
  %6197 = vst [vmem:[%s2 + $0x10] sm:$0xff] %v6187
  %6198 = vst [vmem:[%s2 + $0x18] sm:$0xff] %v6188
  %6199 = vst [vmem:[%s2 + $0x20] sm:$0xff] %v6190
  %6200 = vst [vmem:[%s2 + $0x28] sm:$0xff] %v6192
  %6201 = vst [vmem:[%s2 + $0x30] sm:$0xff] %v6194
  // Predicated region
  $region10: #{cvit_forward.1} parent=0 // pred_check
    _
  $region11: #{cvit_forward.1} parent=0 // pred_check_branch
    %6203 = sbr.rel (0) target = $region13
  $region12: #{cvit_forward.1} parent=0 // pred_region
    _
  $region13: #{cvit_forward.1} parent=0 // pred_fallthru
    _
  // Predicated region
  $region14: #{cvit_forward.1} parent=0 // pred_check
    _
  $region15: #{cvit_forward.1} parent=0 // pred_check_branch
    %6205 = sbr.rel (0) target = $region17
  $region16: #{cvit_forward.1} parent=0 // pred_region
    _
  $region17: #{cvit_forward.1} parent=0 // pred_fallthru
    _

</llo_original>
